<compile_context>
chip_gen: v7x
topology: tpu7x:2x2x1
jax: 0.10.0
libtpu: 0.0.40
codegen_flags: <defaults>
</compile_context>

<pallas_src>
import math

import jax
import jax.numpy as jnp
from jax.experimental import pallas as pl
from jax.experimental.pallas import tpu as pltpu

# ----------------------------- small config ---------------------------------
VOCAB = 64
D_MODEL = 32
N_ENC_HEADS = 4
N_ENC_LAYERS = 2
N_DEC_HEADS = 4          # original module uses 16 heads / d_model=768; scaled down
N_DEC_LAYERS = 2         # original module uses 8 decoder layers; scaled down
DIM_FF = 64              # original default dim_feedforward=2048; scaled down
LN_EPS = 1e-5
NEG_BIG = -1e30          # finite "minus infinity" for masked keys

N_ENC_W = 12             # stacked encoder-layer weight arrays
N_DEC_W = 20             # stacked decoder-layer weight arrays


# ----------------------- in-kernel building blocks ---------------------------
def _mha(q, k, v, bias, n_heads):
    """Multi-head scaled-dot-product attention on 2-D VMEM values.

    q: (Sq, D), k/v: (Sk, D), bias: (1, Sk) additive (0 or NEG_BIG).
    Per-head unrolled loop -> only 2-D matmuls and lane slices, no 3-D transposes.
    """
    _, d = q.shape
    dh = d // n_heads
    scale = 1.0 / math.sqrt(dh)
    outs = []
    for h in range(n_heads):
        lo, hi = h * dh, (h + 1) * dh
        qh, kh, vh = q[:, lo:hi], k[:, lo:hi], v[:, lo:hi]
        s = jax.lax.dot_general(qh, kh, (((1,), (1,)), ((), ())),
                                preferred_element_type=jnp.float32) * scale
        s = s + bias                                   # broadcast over queries
        m = jnp.max(s, axis=-1, keepdims=True)
        p = jnp.exp(s - m)
        denom = jnp.sum(p, axis=-1, keepdims=True)
        p = p * pl.reciprocal(denom, approx=True)      # EUP divide
        outs.append(jnp.dot(p, vh, preferred_element_type=jnp.float32))
    return jnp.concatenate(outs, axis=-1)              # (Sq, D)


def _self_attn(x, bias, wqkv, bqkv, wo, bo, n_heads):
    d = x.shape[-1]
    qkv = jnp.dot(x, wqkv, preferred_element_type=jnp.float32) + bqkv
    q, k, v = qkv[:, :d], qkv[:, d:2 * d], qkv[:, 2 * d:]
    o = _mha(q, k, v, bias, n_heads)
    return jnp.dot(o, wo, preferred_element_type=jnp.float32) + bo


def _cross_attn(x, mem, bias, wq, bq, wkv, bkv, wo, bo, n_heads):
    d = x.shape[-1]
    q = jnp.dot(x, wq, preferred_element_type=jnp.float32) + bq
    kv = jnp.dot(mem, wkv, preferred_element_type=jnp.float32) + bkv
    k, v = kv[:, :d], kv[:, d:]
    o = _mha(q, k, v, bias, n_heads)
    return jnp.dot(o, wo, preferred_element_type=jnp.float32) + bo


def _add_ln(x, res, g, b):
    y = x + res
    mean = jnp.mean(y, axis=-1, keepdims=True)
    yc = y - mean
    var = jnp.mean(yc * yc, axis=-1, keepdims=True)
    return yc * jax.lax.rsqrt(var + LN_EPS) * g + b


def _ffn(x, w1, b1, w2, b2):
    h = jnp.maximum(jnp.dot(x, w1, preferred_element_type=jnp.float32) + b1, 0.0)
    return jnp.dot(h, w2, preferred_element_type=jnp.float32) + b2


# --------------------------- fused model kernel ------------------------------
def _dialog_kernel(*refs):
    """One grid step = one batch element through the full encoder + decoder."""
    hist_x_ref, utt_x_ref, hist_m_ref, utt_m_ref = refs[:4]
    enc = refs[4:4 + N_ENC_W]
    dec = refs[4 + N_ENC_W:4 + N_ENC_W + N_DEC_W]
    out_ref = refs[-1]

    # key-padding bias built in-kernel: mask is 1.0 at padded key positions
    hist_bias = hist_m_ref[0] * NEG_BIG                # (1, S_hist)
    utt_bias = utt_m_ref[0] * NEG_BIG                  # (1, S_utt)

    # ---- HistoryEncoder (post-norm TransformerEncoderLayer x N) ----
    (e_wqkv, e_bqkv, e_wo, e_bo, e_ln1g, e_ln1b,
     e_w1, e_b1, e_w2, e_b2, e_ln2g, e_ln2b) = enc

    x = hist_x_ref[0]                                  # (S_hist, D)
    for l in range(N_ENC_LAYERS):
        a = _self_attn(x, hist_bias, e_wqkv[l], e_bqkv[l], e_wo[l], e_bo[l],
                       N_ENC_HEADS)
        x = _add_ln(x, a, e_ln1g[l], e_ln1b[l])
        f = _ffn(x, e_w1[l], e_b1[l], e_w2[l], e_b2[l])
        x = _add_ln(x, f, e_ln2g[l], e_ln2b[l])
    memory = x                                         # stays in VMEM

    # ---- UtteranceDecoder (post-norm TransformerDecoderLayer x N) ----
    (d_wqkv, d_bqkv, d_wo, d_bo, d_ln1g, d_ln1b,
     d_cwq, d_cbq, d_cwkv, d_cbkv, d_cwo, d_cbo, d_ln2g, d_ln2b,
     d_w1, d_b1, d_w2, d_b2, d_ln3g, d_ln3b) = dec

    y = utt_x_ref[0]                                   # (S_utt, D)
    for l in range(N_DEC_LAYERS):
        a = _self_attn(y, utt_bias, d_wqkv[l], d_bqkv[l], d_wo[l], d_bo[l],
                       N_DEC_HEADS)
        y = _add_ln(y, a, d_ln1g[l], d_ln1b[l])
        c = _cross_attn(y, memory, hist_bias, d_cwq[l], d_cbq[l],
                        d_cwkv[l], d_cbkv[l], d_cwo[l], d_cbo[l], N_DEC_HEADS)
        y = _add_ln(y, c, d_ln2g[l], d_ln2b[l])
        f = _ffn(y, d_w1[l], d_b1[l], d_w2[l], d_b2[l])
        y = _add_ln(y, f, d_ln3g[l], d_ln3b[l])

    out_ref[0] = y.astype(out_ref.dtype)               # single final store


def _resident_spec(shape):
    """Full-array block with a constant index map -> loaded once, stays in VMEM."""
    zeros = (0,) * len(shape)
    return pl.BlockSpec(shape, lambda b, _z=zeros: _z)


def dialog_transformer_forward(params, hist_ids, hist_kpm, utt_ids, utt_kpm):
    # embedding gathers stay as plain-JAX glue
    hist_x = params["enc_emb"][hist_ids]               # (B, S_hist, D)
    utt_x = params["dec_emb"][utt_ids]                 # (B, S_utt, D)
    B, S_h, D = hist_x.shape
    S_u = utt_x.shape[1]

    # key_padding_mask (True = ignore key) -> float (B, 1, S)
    hist_m = hist_kpm.astype(jnp.float32)[:, None, :]
    utt_m = utt_kpm.astype(jnp.float32)[:, None, :]

    weights = tuple(params["enc_flat"]) + tuple(params["dec_flat"])

    in_specs = [
        pl.BlockSpec((1, S_h, D), lambda b: (b, 0, 0)),
        pl.BlockSpec((1, S_u, D), lambda b: (b, 0, 0)),
        pl.BlockSpec((1, 1, S_h), lambda b: (b, 0, 0)),
        pl.BlockSpec((1, 1, S_u), lambda b: (b, 0, 0)),
    ] + [_resident_spec(w.shape) for w in weights]

    return pl.pallas_call(
        _dialog_kernel,
        out_shape=jax.ShapeDtypeStruct((B, S_u, D), jnp.float32),
        grid=(B,),
        in_specs=in_specs,
        out_specs=pl.BlockSpec((1, S_u, D), lambda b: (b, 0, 0)),
        compiler_params=pltpu.CompilerParams(
            dimension_semantics=("parallel",)),        # batch -> both v7x TCs
    )(hist_x, utt_x, hist_m, utt_m, *weights)


# ----------------------------- parameter init --------------------------------
def _w(key, shape):
    return jax.random.normal(key, shape, jnp.float32) * 0.05


def init_params(key):
    ks = iter(jax.random.split(key, 16))
    Le, Ld, D, F = N_ENC_LAYERS, N_DEC_LAYERS, D_MODEL, DIM_FF

    enc_flat = (
        _w(next(ks), (Le, D, 3 * D)),                  # packed Wq|Wk|Wv
        jnp.zeros((Le, 1, 3 * D), jnp.float32),        # packed bq|bk|bv
        _w(next(ks), (Le, D, D)),                      # Wo
        jnp.zeros((Le, 1, D), jnp.float32),            # bo
        jnp.ones((Le, 1, D), jnp.float32),             # ln1 gamma
        jnp.zeros((Le, 1, D), jnp.float32),            # ln1 beta
        _w(next(ks), (Le, D, F)),                      # FFN W1
        jnp.zeros((Le, 1, F), jnp.float32),            # b1
        _w(next(ks), (Le, F, D)),                      # FFN W2
        jnp.zeros((Le, 1, D), jnp.float32),            # b2
        jnp.ones((Le, 1, D), jnp.float32),             # ln2 gamma
        jnp.zeros((Le, 1, D), jnp.float32),            # ln2 beta
    )
    dec_flat = (
        _w(next(ks), (Ld, D, 3 * D)),                  # self-attn packed QKV
        jnp.zeros((Ld, 1, 3 * D), jnp.float32),
        _w(next(ks), (Ld, D, D)),                      # self-attn Wo
        jnp.zeros((Ld, 1, D), jnp.float32),
        jnp.ones((Ld, 1, D), jnp.float32),             # ln1
        jnp.zeros((Ld, 1, D), jnp.float32),
        _w(next(ks), (Ld, D, D)),                      # cross-attn Wq
        jnp.zeros((Ld, 1, D), jnp.float32),
        _w(next(ks), (Ld, D, 2 * D)),                  # cross-attn packed Wk|Wv
        jnp.zeros((Ld, 1, 2 * D), jnp.float32),
        _w(next(ks), (Ld, D, D)),                      # cross-attn Wo
        jnp.zeros((Ld, 1, D), jnp.float32),
        jnp.ones((Ld, 1, D), jnp.float32),             # ln2
        jnp.zeros((Ld, 1, D), jnp.float32),
        _w(next(ks), (Ld, D, F)),                      # FFN W1
        jnp.zeros((Ld, 1, F), jnp.float32),
        _w(next(ks), (Ld, F, D)),                      # FFN W2
        jnp.zeros((Ld, 1, D), jnp.float32),
        jnp.ones((Ld, 1, D), jnp.float32),             # ln3
        jnp.zeros((Ld, 1, D), jnp.float32),
    )
    return dict(
        enc_emb=jax.random.normal(next(ks), (VOCAB, D), jnp.float32),
        dec_emb=jax.random.normal(next(ks), (VOCAB, D), jnp.float32),
        enc_flat=enc_flat,
        dec_flat=dec_flat,
    )


# ----------------------------------- main ------------------------------------
if __name__ == "__main__":
    root = jax.random.PRNGKey(0)
    k_param, k_h, k_u = jax.random.split(root, 3)

    B, S_HIST, S_UTT = 2, 8, 8
    params = init_params(k_param)

    hist_ids = jax.random.randint(k_h, (B, S_HIST), 0, VOCAB, dtype=jnp.int32)
    utt_ids = jax.random.randint(k_u, (B, S_UTT), 0, VOCAB, dtype=jnp.int32)

    # key_padding_mask: True = padded / ignored position (PyTorch semantics).
    hist_kpm = jnp.arange(S_HIST)[None, :] >= jnp.array([[6], [5]])
    utt_kpm = jnp.arange(S_UTT)[None, :] >= jnp.array([[7], [4]])

    fwd = jax.jit(dialog_transformer_forward)
    out = fwd(params, hist_ids, hist_kpm, utt_ids, utt_kpm)
    jax.block_until_ready(out)

    assert out.shape == (B, S_UTT, D_MODEL)
    assert bool(jnp.all(jnp.isfinite(out)))
    print("KERNEL_OK")
</pallas_src>

<mosaic_0001>
module attributes {stable_mosaic.version = 11 : i64} {
  func.func @_dialog_kernel(%arg0: i32, %arg1: memref<1x8x32xf32, #tpu.memory_space<vmem>>, %arg2: memref<1x8x32xf32, #tpu.memory_space<vmem>>, %arg3: memref<1x1x8xf32, #tpu.memory_space<vmem>>, %arg4: memref<1x1x8xf32, #tpu.memory_space<vmem>>, %arg5: memref<2x32x96xf32, #tpu.memory_space<vmem>>, %arg6: memref<2x1x96xf32, #tpu.memory_space<vmem>>, %arg7: memref<2x32x32xf32, #tpu.memory_space<vmem>>, %arg8: memref<2x1x32xf32, #tpu.memory_space<vmem>>, %arg9: memref<2x1x32xf32, #tpu.memory_space<vmem>>, %arg10: memref<2x1x32xf32, #tpu.memory_space<vmem>>, %arg11: memref<2x32x64xf32, #tpu.memory_space<vmem>>, %arg12: memref<2x1x64xf32, #tpu.memory_space<vmem>>, %arg13: memref<2x64x32xf32, #tpu.memory_space<vmem>>, %arg14: memref<2x1x32xf32, #tpu.memory_space<vmem>>, %arg15: memref<2x1x32xf32, #tpu.memory_space<vmem>>, %arg16: memref<2x1x32xf32, #tpu.memory_space<vmem>>, %arg17: memref<2x32x96xf32, #tpu.memory_space<vmem>>, %arg18: memref<2x1x96xf32, #tpu.memory_space<vmem>>, %arg19: memref<2x32x32xf32, #tpu.memory_space<vmem>>, %arg20: memref<2x1x32xf32, #tpu.memory_space<vmem>>, %arg21: memref<2x1x32xf32, #tpu.memory_space<vmem>>, %arg22: memref<2x1x32xf32, #tpu.memory_space<vmem>>, %arg23: memref<2x32x32xf32, #tpu.memory_space<vmem>>, %arg24: memref<2x1x32xf32, #tpu.memory_space<vmem>>, %arg25: memref<2x32x64xf32, #tpu.memory_space<vmem>>, %arg26: memref<2x1x64xf32, #tpu.memory_space<vmem>>, %arg27: memref<2x32x32xf32, #tpu.memory_space<vmem>>, %arg28: memref<2x1x32xf32, #tpu.memory_space<vmem>>, %arg29: memref<2x1x32xf32, #tpu.memory_space<vmem>>, %arg30: memref<2x1x32xf32, #tpu.memory_space<vmem>>, %arg31: memref<2x32x64xf32, #tpu.memory_space<vmem>>, %arg32: memref<2x1x64xf32, #tpu.memory_space<vmem>>, %arg33: memref<2x64x32xf32, #tpu.memory_space<vmem>>, %arg34: memref<2x1x32xf32, #tpu.memory_space<vmem>>, %arg35: memref<2x1x32xf32, #tpu.memory_space<vmem>>, %arg36: memref<2x1x32xf32, #tpu.memory_space<vmem>>, %arg37: memref<1x8x32xf32, #tpu.memory_space<vmem>>) attributes {dimension_semantics = [#tpu.dimension_semantics<parallel>], iteration_bounds = array<i64: 2>, scalar_prefetch = 0 : i64, scratch_operands = 0 : i64, tpu.core_type = #tpu.core_type<tc>, window_params = [{transform_indices = @transform_0, window_bounds = array<i64: 1, 8, 32>}, {transform_indices = @transform_1, window_bounds = array<i64: 1, 8, 32>}, {transform_indices = @transform_2, window_bounds = array<i64: 1, 1, 8>}, {transform_indices = @transform_3, window_bounds = array<i64: 1, 1, 8>}, {pipeline_mode = #tpu.pipeline_mode<synchronous>, transform_indices = @transform_4, window_bounds = array<i64: 2, 32, 96>}, {pipeline_mode = #tpu.pipeline_mode<synchronous>, transform_indices = @transform_5, window_bounds = array<i64: 2, 1, 96>}, {pipeline_mode = #tpu.pipeline_mode<synchronous>, transform_indices = @transform_6, window_bounds = array<i64: 2, 32, 32>}, {pipeline_mode = #tpu.pipeline_mode<synchronous>, transform_indices = @transform_7, window_bounds = array<i64: 2, 1, 32>}, {pipeline_mode = #tpu.pipeline_mode<synchronous>, transform_indices = @transform_8, window_bounds = array<i64: 2, 1, 32>}, {pipeline_mode = #tpu.pipeline_mode<synchronous>, transform_indices = @transform_9, window_bounds = array<i64: 2, 1, 32>}, {pipeline_mode = #tpu.pipeline_mode<synchronous>, transform_indices = @transform_10, window_bounds = array<i64: 2, 32, 64>}, {pipeline_mode = #tpu.pipeline_mode<synchronous>, transform_indices = @transform_11, window_bounds = array<i64: 2, 1, 64>}, {pipeline_mode = #tpu.pipeline_mode<synchronous>, transform_indices = @transform_12, window_bounds = array<i64: 2, 64, 32>}, {pipeline_mode = #tpu.pipeline_mode<synchronous>, transform_indices = @transform_13, window_bounds = array<i64: 2, 1, 32>}, {pipeline_mode = #tpu.pipeline_mode<synchronous>, transform_indices = @transform_14, window_bounds = array<i64: 2, 1, 32>}, {pipeline_mode = #tpu.pipeline_mode<synchronous>, transform_indices = @transform_15, window_bounds = array<i64: 2, 1, 32>}, {pipeline_mode = #tpu.pipeline_mode<synchronous>, transform_indices = @transform_16, window_bounds = array<i64: 2, 32, 96>}, {pipeline_mode = #tpu.pipeline_mode<synchronous>, transform_indices = @transform_17, window_bounds = array<i64: 2, 1, 96>}, {pipeline_mode = #tpu.pipeline_mode<synchronous>, transform_indices = @transform_18, window_bounds = array<i64: 2, 32, 32>}, {pipeline_mode = #tpu.pipeline_mode<synchronous>, transform_indices = @transform_19, window_bounds = array<i64: 2, 1, 32>}, {pipeline_mode = #tpu.pipeline_mode<synchronous>, transform_indices = @transform_20, window_bounds = array<i64: 2, 1, 32>}, {pipeline_mode = #tpu.pipeline_mode<synchronous>, transform_indices = @transform_21, window_bounds = array<i64: 2, 1, 32>}, {pipeline_mode = #tpu.pipeline_mode<synchronous>, transform_indices = @transform_22, window_bounds = array<i64: 2, 32, 32>}, {pipeline_mode = #tpu.pipeline_mode<synchronous>, transform_indices = @transform_23, window_bounds = array<i64: 2, 1, 32>}, {pipeline_mode = #tpu.pipeline_mode<synchronous>, transform_indices = @transform_24, window_bounds = array<i64: 2, 32, 64>}, {pipeline_mode = #tpu.pipeline_mode<synchronous>, transform_indices = @transform_25, window_bounds = array<i64: 2, 1, 64>}, {pipeline_mode = #tpu.pipeline_mode<synchronous>, transform_indices = @transform_26, window_bounds = array<i64: 2, 32, 32>}, {pipeline_mode = #tpu.pipeline_mode<synchronous>, transform_indices = @transform_27, window_bounds = array<i64: 2, 1, 32>}, {pipeline_mode = #tpu.pipeline_mode<synchronous>, transform_indices = @transform_28, window_bounds = array<i64: 2, 1, 32>}, {pipeline_mode = #tpu.pipeline_mode<synchronous>, transform_indices = @transform_29, window_bounds = array<i64: 2, 1, 32>}, {pipeline_mode = #tpu.pipeline_mode<synchronous>, transform_indices = @transform_30, window_bounds = array<i64: 2, 32, 64>}, {pipeline_mode = #tpu.pipeline_mode<synchronous>, transform_indices = @transform_31, window_bounds = array<i64: 2, 1, 64>}, {pipeline_mode = #tpu.pipeline_mode<synchronous>, transform_indices = @transform_32, window_bounds = array<i64: 2, 64, 32>}, {pipeline_mode = #tpu.pipeline_mode<synchronous>, transform_indices = @transform_33, window_bounds = array<i64: 2, 1, 32>}, {pipeline_mode = #tpu.pipeline_mode<synchronous>, transform_indices = @transform_34, window_bounds = array<i64: 2, 1, 32>}, {pipeline_mode = #tpu.pipeline_mode<synchronous>, transform_indices = @transform_35, window_bounds = array<i64: 2, 1, 32>}, {transform_indices = @transform_36, window_bounds = array<i64: 1, 8, 32>}]} {
    %c0 = arith.constant 0 : index
    %c0_0 = arith.constant 0 : index
    %c0_1 = arith.constant 0 : index
    %0 = vector.load %arg3[%c0, %c0_0, %c0_1] : memref<1x1x8xf32, #tpu.memory_space<vmem>>, vector<1x1x8xf32>
    %1 = vector.shape_cast %0 : vector<1x1x8xf32> to vector<1x8xf32>
    %cst = arith.constant -1.000000e+30 : f32
    %2 = vector.broadcast %cst : f32 to vector<1x8xf32>
    %3 = arith.mulf %1, %2 : vector<1x8xf32>
    %c0_2 = arith.constant 0 : index
    %c0_3 = arith.constant 0 : index
    %c0_4 = arith.constant 0 : index
    %4 = vector.load %arg4[%c0_2, %c0_3, %c0_4] : memref<1x1x8xf32, #tpu.memory_space<vmem>>, vector<1x1x8xf32>
    %5 = vector.shape_cast %4 : vector<1x1x8xf32> to vector<1x8xf32>
    %cst_5 = arith.constant -1.000000e+30 : f32
    %6 = vector.broadcast %cst_5 : f32 to vector<1x8xf32>
    %7 = arith.mulf %5, %6 : vector<1x8xf32>
    %c0_6 = arith.constant 0 : index
    %c0_7 = arith.constant 0 : index
    %c0_8 = arith.constant 0 : index
    %8 = vector.load %arg1[%c0_6, %c0_7, %c0_8] : memref<1x8x32xf32, #tpu.memory_space<vmem>>, vector<1x8x32xf32>
    %9 = vector.shape_cast %8 : vector<1x8x32xf32> to vector<8x32xf32>
    %c0_9 = arith.constant 0 : index
    %c0_10 = arith.constant 0 : index
    %c0_11 = arith.constant 0 : index
    %10 = vector.load %arg5[%c0_9, %c0_10, %c0_11] : memref<2x32x96xf32, #tpu.memory_space<vmem>>, vector<1x32x96xf32>
    %11 = vector.shape_cast %10 : vector<1x32x96xf32> to vector<32x96xf32>
    %c0_12 = arith.constant 0 : index
    %c0_13 = arith.constant 0 : index
    %c0_14 = arith.constant 0 : index
    %12 = vector.load %arg6[%c0_12, %c0_13, %c0_14] : memref<2x1x96xf32, #tpu.memory_space<vmem>>, vector<1x1x96xf32>
    %13 = vector.shape_cast %12 : vector<1x1x96xf32> to vector<1x96xf32>
    %c0_15 = arith.constant 0 : index
    %c0_16 = arith.constant 0 : index
    %c0_17 = arith.constant 0 : index
    %14 = vector.load %arg7[%c0_15, %c0_16, %c0_17] : memref<2x32x32xf32, #tpu.memory_space<vmem>>, vector<1x32x32xf32>
    %15 = vector.shape_cast %14 : vector<1x32x32xf32> to vector<32x32xf32>
    %c0_18 = arith.constant 0 : index
    %c0_19 = arith.constant 0 : index
    %c0_20 = arith.constant 0 : index
    %16 = vector.load %arg8[%c0_18, %c0_19, %c0_20] : memref<2x1x32xf32, #tpu.memory_space<vmem>>, vector<1x1x32xf32>
    %17 = vector.shape_cast %16 : vector<1x1x32xf32> to vector<1x32xf32>
    %cst_21 = arith.constant dense<0.000000e+00> : vector<8x96xf32>
    %18 = tpu.matmul %9, %11, %cst_21 {dimension_numbers = #tpu.dot_dimension_numbers<[1], [0], [0], [1], [0, 0, 1, 1], [], []>} : vector<8x32xf32>, vector<32x96xf32>, vector<8x96xf32> -> vector<8x96xf32>
    %19 = vector.broadcast %13 : vector<1x96xf32> to vector<8x96xf32>
    %20 = arith.addf %18, %19 : vector<8x96xf32>
    %21 = vector.extract_strided_slice %20 {offsets = [0, 0], sizes = [8, 32], strides = [1, 1]} : vector<8x96xf32> to vector<8x32xf32>
    %22 = vector.extract_strided_slice %20 {offsets = [0, 32], sizes = [8, 32], strides = [1, 1]} : vector<8x96xf32> to vector<8x32xf32>
    %23 = vector.extract_strided_slice %20 {offsets = [0, 64], sizes = [8, 32], strides = [1, 1]} : vector<8x96xf32> to vector<8x32xf32>
    %24 = vector.extract_strided_slice %21 {offsets = [0, 0], sizes = [8, 8], strides = [1, 1]} : vector<8x32xf32> to vector<8x8xf32>
    %25 = vector.extract_strided_slice %22 {offsets = [0, 0], sizes = [8, 8], strides = [1, 1]} : vector<8x32xf32> to vector<8x8xf32>
    %26 = vector.extract_strided_slice %23 {offsets = [0, 0], sizes = [8, 8], strides = [1, 1]} : vector<8x32xf32> to vector<8x8xf32>
    %cst_22 = arith.constant dense<0.000000e+00> : vector<8x8xf32>
    %27 = tpu.matmul %24, %25, %cst_22 {dimension_numbers = #tpu.dot_dimension_numbers<[1], [1], [0], [0], [0, 0, 1, 0], [], []>} : vector<8x8xf32>, vector<8x8xf32>, vector<8x8xf32> -> vector<8x8xf32>
    %cst_23 = arith.constant 0.353553385 : f32
    %28 = vector.broadcast %cst_23 : f32 to vector<8x8xf32>
    %29 = arith.mulf %27, %28 : vector<8x8xf32>
    %30 = vector.broadcast %3 : vector<1x8xf32> to vector<8x8xf32>
    %31 = arith.addf %29, %30 : vector<8x8xf32>
    %cst_24 = arith.constant dense<0xFF800000> : vector<8xf32>
    %32 = vector.multi_reduction <maximumf>, %31, %cst_24 [1] : vector<8x8xf32> to vector<8xf32>
    %33 = vector.shape_cast %32 : vector<8xf32> to vector<8x1xf32>
    %34 = vector.broadcast %33 : vector<8x1xf32> to vector<8x8xf32>
    %35 = arith.subf %31, %34 : vector<8x8xf32>
    %36 = math.exp %35 : vector<8x8xf32>
    %cst_25 = arith.constant dense<0.000000e+00> : vector<8xf32>
    %37 = vector.multi_reduction <add>, %36, %cst_25 [1] : vector<8x8xf32> to vector<8xf32>
    %38 = vector.shape_cast %37 : vector<8xf32> to vector<8x1xf32>
    %39 = tpu.reciprocal %38 {approx = true} : vector<8x1xf32> -> vector<8x1xf32>
    %40 = vector.broadcast %39 : vector<8x1xf32> to vector<8x8xf32>
    %41 = arith.mulf %36, %40 : vector<8x8xf32>
    %cst_26 = arith.constant dense<0.000000e+00> : vector<8x8xf32>
    %42 = tpu.matmul %41, %26, %cst_26 {dimension_numbers = #tpu.dot_dimension_numbers<[1], [0], [0], [1], [0, 0, 1, 1], [], []>} : vector<8x8xf32>, vector<8x8xf32>, vector<8x8xf32> -> vector<8x8xf32>
    %43 = vector.extract_strided_slice %21 {offsets = [0, 8], sizes = [8, 8], strides = [1, 1]} : vector<8x32xf32> to vector<8x8xf32>
    %44 = vector.extract_strided_slice %22 {offsets = [0, 8], sizes = [8, 8], strides = [1, 1]} : vector<8x32xf32> to vector<8x8xf32>
    %45 = vector.extract_strided_slice %23 {offsets = [0, 8], sizes = [8, 8], strides = [1, 1]} : vector<8x32xf32> to vector<8x8xf32>
    %cst_27 = arith.constant dense<0.000000e+00> : vector<8x8xf32>
    %46 = tpu.matmul %43, %44, %cst_27 {dimension_numbers = #tpu.dot_dimension_numbers<[1], [1], [0], [0], [0, 0, 1, 0], [], []>} : vector<8x8xf32>, vector<8x8xf32>, vector<8x8xf32> -> vector<8x8xf32>
    %cst_28 = arith.constant 0.353553385 : f32
    %47 = vector.broadcast %cst_28 : f32 to vector<8x8xf32>
    %48 = arith.mulf %46, %47 : vector<8x8xf32>
    %49 = vector.broadcast %3 : vector<1x8xf32> to vector<8x8xf32>
    %50 = arith.addf %48, %49 : vector<8x8xf32>
    %cst_29 = arith.constant dense<0xFF800000> : vector<8xf32>
    %51 = vector.multi_reduction <maximumf>, %50, %cst_29 [1] : vector<8x8xf32> to vector<8xf32>
    %52 = vector.shape_cast %51 : vector<8xf32> to vector<8x1xf32>
    %53 = vector.broadcast %52 : vector<8x1xf32> to vector<8x8xf32>
    %54 = arith.subf %50, %53 : vector<8x8xf32>
    %55 = math.exp %54 : vector<8x8xf32>
    %cst_30 = arith.constant dense<0.000000e+00> : vector<8xf32>
    %56 = vector.multi_reduction <add>, %55, %cst_30 [1] : vector<8x8xf32> to vector<8xf32>
    %57 = vector.shape_cast %56 : vector<8xf32> to vector<8x1xf32>
    %58 = tpu.reciprocal %57 {approx = true} : vector<8x1xf32> -> vector<8x1xf32>
    %59 = vector.broadcast %58 : vector<8x1xf32> to vector<8x8xf32>
    %60 = arith.mulf %55, %59 : vector<8x8xf32>
    %cst_31 = arith.constant dense<0.000000e+00> : vector<8x8xf32>
    %61 = tpu.matmul %60, %45, %cst_31 {dimension_numbers = #tpu.dot_dimension_numbers<[1], [0], [0], [1], [0, 0, 1, 1], [], []>} : vector<8x8xf32>, vector<8x8xf32>, vector<8x8xf32> -> vector<8x8xf32>
    %62 = vector.extract_strided_slice %21 {offsets = [0, 16], sizes = [8, 8], strides = [1, 1]} : vector<8x32xf32> to vector<8x8xf32>
    %63 = vector.extract_strided_slice %22 {offsets = [0, 16], sizes = [8, 8], strides = [1, 1]} : vector<8x32xf32> to vector<8x8xf32>
    %64 = vector.extract_strided_slice %23 {offsets = [0, 16], sizes = [8, 8], strides = [1, 1]} : vector<8x32xf32> to vector<8x8xf32>
    %cst_32 = arith.constant dense<0.000000e+00> : vector<8x8xf32>
    %65 = tpu.matmul %62, %63, %cst_32 {dimension_numbers = #tpu.dot_dimension_numbers<[1], [1], [0], [0], [0, 0, 1, 0], [], []>} : vector<8x8xf32>, vector<8x8xf32>, vector<8x8xf32> -> vector<8x8xf32>
    %cst_33 = arith.constant 0.353553385 : f32
    %66 = vector.broadcast %cst_33 : f32 to vector<8x8xf32>
    %67 = arith.mulf %65, %66 : vector<8x8xf32>
    %68 = vector.broadcast %3 : vector<1x8xf32> to vector<8x8xf32>
    %69 = arith.addf %67, %68 : vector<8x8xf32>
    %cst_34 = arith.constant dense<0xFF800000> : vector<8xf32>
    %70 = vector.multi_reduction <maximumf>, %69, %cst_34 [1] : vector<8x8xf32> to vector<8xf32>
    %71 = vector.shape_cast %70 : vector<8xf32> to vector<8x1xf32>
    %72 = vector.broadcast %71 : vector<8x1xf32> to vector<8x8xf32>
    %73 = arith.subf %69, %72 : vector<8x8xf32>
    %74 = math.exp %73 : vector<8x8xf32>
    %cst_35 = arith.constant dense<0.000000e+00> : vector<8xf32>
    %75 = vector.multi_reduction <add>, %74, %cst_35 [1] : vector<8x8xf32> to vector<8xf32>
    %76 = vector.shape_cast %75 : vector<8xf32> to vector<8x1xf32>
    %77 = tpu.reciprocal %76 {approx = true} : vector<8x1xf32> -> vector<8x1xf32>
    %78 = vector.broadcast %77 : vector<8x1xf32> to vector<8x8xf32>
    %79 = arith.mulf %74, %78 : vector<8x8xf32>
    %cst_36 = arith.constant dense<0.000000e+00> : vector<8x8xf32>
    %80 = tpu.matmul %79, %64, %cst_36 {dimension_numbers = #tpu.dot_dimension_numbers<[1], [0], [0], [1], [0, 0, 1, 1], [], []>} : vector<8x8xf32>, vector<8x8xf32>, vector<8x8xf32> -> vector<8x8xf32>
    %81 = vector.extract_strided_slice %21 {offsets = [0, 24], sizes = [8, 8], strides = [1, 1]} : vector<8x32xf32> to vector<8x8xf32>
    %82 = vector.extract_strided_slice %22 {offsets = [0, 24], sizes = [8, 8], strides = [1, 1]} : vector<8x32xf32> to vector<8x8xf32>
    %83 = vector.extract_strided_slice %23 {offsets = [0, 24], sizes = [8, 8], strides = [1, 1]} : vector<8x32xf32> to vector<8x8xf32>
    %cst_37 = arith.constant dense<0.000000e+00> : vector<8x8xf32>
    %84 = tpu.matmul %81, %82, %cst_37 {dimension_numbers = #tpu.dot_dimension_numbers<[1], [1], [0], [0], [0, 0, 1, 0], [], []>} : vector<8x8xf32>, vector<8x8xf32>, vector<8x8xf32> -> vector<8x8xf32>
    %cst_38 = arith.constant 0.353553385 : f32
    %85 = vector.broadcast %cst_38 : f32 to vector<8x8xf32>
    %86 = arith.mulf %84, %85 : vector<8x8xf32>
    %87 = vector.broadcast %3 : vector<1x8xf32> to vector<8x8xf32>
    %88 = arith.addf %86, %87 : vector<8x8xf32>
    %cst_39 = arith.constant dense<0xFF800000> : vector<8xf32>
    %89 = vector.multi_reduction <maximumf>, %88, %cst_39 [1] : vector<8x8xf32> to vector<8xf32>
    %90 = vector.shape_cast %89 : vector<8xf32> to vector<8x1xf32>
    %91 = vector.broadcast %90 : vector<8x1xf32> to vector<8x8xf32>
    %92 = arith.subf %88, %91 : vector<8x8xf32>
    %93 = math.exp %92 : vector<8x8xf32>
    %cst_40 = arith.constant dense<0.000000e+00> : vector<8xf32>
    %94 = vector.multi_reduction <add>, %93, %cst_40 [1] : vector<8x8xf32> to vector<8xf32>
    %95 = vector.shape_cast %94 : vector<8xf32> to vector<8x1xf32>
    %96 = tpu.reciprocal %95 {approx = true} : vector<8x1xf32> -> vector<8x1xf32>
    %97 = vector.broadcast %96 : vector<8x1xf32> to vector<8x8xf32>
    %98 = arith.mulf %93, %97 : vector<8x8xf32>
    %cst_41 = arith.constant dense<0.000000e+00> : vector<8x8xf32>
    %99 = tpu.matmul %98, %83, %cst_41 {dimension_numbers = #tpu.dot_dimension_numbers<[1], [0], [0], [1], [0, 0, 1, 1], [], []>} : vector<8x8xf32>, vector<8x8xf32>, vector<8x8xf32> -> vector<8x8xf32>
    %100 = tpu.concatenate %42, %61, %80, %99 in 1 : vector<8x8xf32>, vector<8x8xf32>, vector<8x8xf32>, vector<8x8xf32> -> vector<8x32xf32>
    %cst_42 = arith.constant dense<0.000000e+00> : vector<8x32xf32>
    %101 = tpu.matmul %100, %15, %cst_42 {dimension_numbers = #tpu.dot_dimension_numbers<[1], [0], [0], [1], [0, 0, 1, 1], [], []>} : vector<8x32xf32>, vector<32x32xf32>, vector<8x32xf32> -> vector<8x32xf32>
    %102 = vector.broadcast %17 : vector<1x32xf32> to vector<8x32xf32>
    %103 = arith.addf %101, %102 : vector<8x32xf32>
    %c0_43 = arith.constant 0 : index
    %c0_44 = arith.constant 0 : index
    %c0_45 = arith.constant 0 : index
    %104 = vector.load %arg9[%c0_43, %c0_44, %c0_45] : memref<2x1x32xf32, #tpu.memory_space<vmem>>, vector<1x1x32xf32>
    %105 = vector.shape_cast %104 : vector<1x1x32xf32> to vector<1x32xf32>
    %c0_46 = arith.constant 0 : index
    %c0_47 = arith.constant 0 : index
    %c0_48 = arith.constant 0 : index
    %106 = vector.load %arg10[%c0_46, %c0_47, %c0_48] : memref<2x1x32xf32, #tpu.memory_space<vmem>>, vector<1x1x32xf32>
    %107 = vector.shape_cast %106 : vector<1x1x32xf32> to vector<1x32xf32>
    %108 = arith.addf %9, %103 : vector<8x32xf32>
    %cst_49 = arith.constant dense<0.000000e+00> : vector<8xf32>
    %109 = vector.multi_reduction <add>, %108, %cst_49 [1] : vector<8x32xf32> to vector<8xf32>
    %110 = vector.shape_cast %109 : vector<8xf32> to vector<8x1xf32>
    %cst_50 = arith.constant 3.200000e+01 : f32
    %111 = vector.broadcast %cst_50 : f32 to vector<8x1xf32>
    %112 = arith.divf %110, %111 : vector<8x1xf32>
    %113 = vector.broadcast %112 : vector<8x1xf32> to vector<8x32xf32>
    %114 = arith.subf %108, %113 : vector<8x32xf32>
    %115 = arith.mulf %114, %114 : vector<8x32xf32>
    %cst_51 = arith.constant dense<0.000000e+00> : vector<8xf32>
    %116 = vector.multi_reduction <add>, %115, %cst_51 [1] : vector<8x32xf32> to vector<8xf32>
    %117 = vector.shape_cast %116 : vector<8xf32> to vector<8x1xf32>
    %cst_52 = arith.constant 3.200000e+01 : f32
    %118 = vector.broadcast %cst_52 : f32 to vector<8x1xf32>
    %119 = arith.divf %117, %118 : vector<8x1xf32>
    %cst_53 = arith.constant 9.99999974E-6 : f32
    %120 = vector.broadcast %cst_53 : f32 to vector<8x1xf32>
    %121 = arith.addf %119, %120 : vector<8x1xf32>
    %122 = math.rsqrt %121 : vector<8x1xf32>
    %123 = vector.broadcast %122 : vector<8x1xf32> to vector<8x32xf32>
    %124 = arith.mulf %114, %123 : vector<8x32xf32>
    %125 = vector.broadcast %105 : vector<1x32xf32> to vector<8x32xf32>
    %126 = arith.mulf %124, %125 : vector<8x32xf32>
    %127 = vector.broadcast %107 : vector<1x32xf32> to vector<8x32xf32>
    %128 = arith.addf %126, %127 : vector<8x32xf32>
    %c0_54 = arith.constant 0 : index
    %c0_55 = arith.constant 0 : index
    %c0_56 = arith.constant 0 : index
    %129 = vector.load %arg11[%c0_54, %c0_55, %c0_56] : memref<2x32x64xf32, #tpu.memory_space<vmem>>, vector<1x32x64xf32>
    %130 = vector.shape_cast %129 : vector<1x32x64xf32> to vector<32x64xf32>
    %c0_57 = arith.constant 0 : index
    %c0_58 = arith.constant 0 : index
    %c0_59 = arith.constant 0 : index
    %131 = vector.load %arg12[%c0_57, %c0_58, %c0_59] : memref<2x1x64xf32, #tpu.memory_space<vmem>>, vector<1x1x64xf32>
    %132 = vector.shape_cast %131 : vector<1x1x64xf32> to vector<1x64xf32>
    %c0_60 = arith.constant 0 : index
    %c0_61 = arith.constant 0 : index
    %c0_62 = arith.constant 0 : index
    %133 = vector.load %arg13[%c0_60, %c0_61, %c0_62] : memref<2x64x32xf32, #tpu.memory_space<vmem>>, vector<1x64x32xf32>
    %134 = vector.shape_cast %133 : vector<1x64x32xf32> to vector<64x32xf32>
    %c0_63 = arith.constant 0 : index
    %c0_64 = arith.constant 0 : index
    %c0_65 = arith.constant 0 : index
    %135 = vector.load %arg14[%c0_63, %c0_64, %c0_65] : memref<2x1x32xf32, #tpu.memory_space<vmem>>, vector<1x1x32xf32>
    %136 = vector.shape_cast %135 : vector<1x1x32xf32> to vector<1x32xf32>
    %cst_66 = arith.constant dense<0.000000e+00> : vector<8x64xf32>
    %137 = tpu.matmul %128, %130, %cst_66 {dimension_numbers = #tpu.dot_dimension_numbers<[1], [0], [0], [1], [0, 0, 1, 1], [], []>} : vector<8x32xf32>, vector<32x64xf32>, vector<8x64xf32> -> vector<8x64xf32>
    %138 = vector.broadcast %132 : vector<1x64xf32> to vector<8x64xf32>
    %139 = arith.addf %137, %138 : vector<8x64xf32>
    %cst_67 = arith.constant 0.000000e+00 : f32
    %140 = vector.broadcast %cst_67 : f32 to vector<8x64xf32>
    %141 = arith.maximumf %139, %140 : vector<8x64xf32>
    %cst_68 = arith.constant dense<0.000000e+00> : vector<8x32xf32>
    %142 = tpu.matmul %141, %134, %cst_68 {dimension_numbers = #tpu.dot_dimension_numbers<[1], [0], [0], [1], [0, 0, 1, 1], [], []>} : vector<8x64xf32>, vector<64x32xf32>, vector<8x32xf32> -> vector<8x32xf32>
    %143 = vector.broadcast %136 : vector<1x32xf32> to vector<8x32xf32>
    %144 = arith.addf %142, %143 : vector<8x32xf32>
    %c0_69 = arith.constant 0 : index
    %c0_70 = arith.constant 0 : index
    %c0_71 = arith.constant 0 : index
    %145 = vector.load %arg15[%c0_69, %c0_70, %c0_71] : memref<2x1x32xf32, #tpu.memory_space<vmem>>, vector<1x1x32xf32>
    %146 = vector.shape_cast %145 : vector<1x1x32xf32> to vector<1x32xf32>
    %c0_72 = arith.constant 0 : index
    %c0_73 = arith.constant 0 : index
    %c0_74 = arith.constant 0 : index
    %147 = vector.load %arg16[%c0_72, %c0_73, %c0_74] : memref<2x1x32xf32, #tpu.memory_space<vmem>>, vector<1x1x32xf32>
    %148 = vector.shape_cast %147 : vector<1x1x32xf32> to vector<1x32xf32>
    %149 = arith.addf %128, %144 : vector<8x32xf32>
    %cst_75 = arith.constant dense<0.000000e+00> : vector<8xf32>
    %150 = vector.multi_reduction <add>, %149, %cst_75 [1] : vector<8x32xf32> to vector<8xf32>
    %151 = vector.shape_cast %150 : vector<8xf32> to vector<8x1xf32>
    %cst_76 = arith.constant 3.200000e+01 : f32
    %152 = vector.broadcast %cst_76 : f32 to vector<8x1xf32>
    %153 = arith.divf %151, %152 : vector<8x1xf32>
    %154 = vector.broadcast %153 : vector<8x1xf32> to vector<8x32xf32>
    %155 = arith.subf %149, %154 : vector<8x32xf32>
    %156 = arith.mulf %155, %155 : vector<8x32xf32>
    %cst_77 = arith.constant dense<0.000000e+00> : vector<8xf32>
    %157 = vector.multi_reduction <add>, %156, %cst_77 [1] : vector<8x32xf32> to vector<8xf32>
    %158 = vector.shape_cast %157 : vector<8xf32> to vector<8x1xf32>
    %cst_78 = arith.constant 3.200000e+01 : f32
    %159 = vector.broadcast %cst_78 : f32 to vector<8x1xf32>
    %160 = arith.divf %158, %159 : vector<8x1xf32>
    %cst_79 = arith.constant 9.99999974E-6 : f32
    %161 = vector.broadcast %cst_79 : f32 to vector<8x1xf32>
    %162 = arith.addf %160, %161 : vector<8x1xf32>
    %163 = math.rsqrt %162 : vector<8x1xf32>
    %164 = vector.broadcast %163 : vector<8x1xf32> to vector<8x32xf32>
    %165 = arith.mulf %155, %164 : vector<8x32xf32>
    %166 = vector.broadcast %146 : vector<1x32xf32> to vector<8x32xf32>
    %167 = arith.mulf %165, %166 : vector<8x32xf32>
    %168 = vector.broadcast %148 : vector<1x32xf32> to vector<8x32xf32>
    %169 = arith.addf %167, %168 : vector<8x32xf32>
    %c1 = arith.constant 1 : index
    %c0_80 = arith.constant 0 : index
    %c0_81 = arith.constant 0 : index
    %170 = vector.load %arg5[%c1, %c0_80, %c0_81] : memref<2x32x96xf32, #tpu.memory_space<vmem>>, vector<1x32x96xf32>
    %171 = vector.shape_cast %170 : vector<1x32x96xf32> to vector<32x96xf32>
    %c1_82 = arith.constant 1 : index
    %c0_83 = arith.constant 0 : index
    %c0_84 = arith.constant 0 : index
    %172 = vector.load %arg6[%c1_82, %c0_83, %c0_84] : memref<2x1x96xf32, #tpu.memory_space<vmem>>, vector<1x1x96xf32>
    %173 = vector.shape_cast %172 : vector<1x1x96xf32> to vector<1x96xf32>
    %c1_85 = arith.constant 1 : index
    %c0_86 = arith.constant 0 : index
    %c0_87 = arith.constant 0 : index
    %174 = vector.load %arg7[%c1_85, %c0_86, %c0_87] : memref<2x32x32xf32, #tpu.memory_space<vmem>>, vector<1x32x32xf32>
    %175 = vector.shape_cast %174 : vector<1x32x32xf32> to vector<32x32xf32>
    %c1_88 = arith.constant 1 : index
    %c0_89 = arith.constant 0 : index
    %c0_90 = arith.constant 0 : index
    %176 = vector.load %arg8[%c1_88, %c0_89, %c0_90] : memref<2x1x32xf32, #tpu.memory_space<vmem>>, vector<1x1x32xf32>
    %177 = vector.shape_cast %176 : vector<1x1x32xf32> to vector<1x32xf32>
    %cst_91 = arith.constant dense<0.000000e+00> : vector<8x96xf32>
    %178 = tpu.matmul %169, %171, %cst_91 {dimension_numbers = #tpu.dot_dimension_numbers<[1], [0], [0], [1], [0, 0, 1, 1], [], []>} : vector<8x32xf32>, vector<32x96xf32>, vector<8x96xf32> -> vector<8x96xf32>
    %179 = vector.broadcast %173 : vector<1x96xf32> to vector<8x96xf32>
    %180 = arith.addf %178, %179 : vector<8x96xf32>
    %181 = vector.extract_strided_slice %180 {offsets = [0, 0], sizes = [8, 32], strides = [1, 1]} : vector<8x96xf32> to vector<8x32xf32>
    %182 = vector.extract_strided_slice %180 {offsets = [0, 32], sizes = [8, 32], strides = [1, 1]} : vector<8x96xf32> to vector<8x32xf32>
    %183 = vector.extract_strided_slice %180 {offsets = [0, 64], sizes = [8, 32], strides = [1, 1]} : vector<8x96xf32> to vector<8x32xf32>
    %184 = vector.extract_strided_slice %181 {offsets = [0, 0], sizes = [8, 8], strides = [1, 1]} : vector<8x32xf32> to vector<8x8xf32>
    %185 = vector.extract_strided_slice %182 {offsets = [0, 0], sizes = [8, 8], strides = [1, 1]} : vector<8x32xf32> to vector<8x8xf32>
    %186 = vector.extract_strided_slice %183 {offsets = [0, 0], sizes = [8, 8], strides = [1, 1]} : vector<8x32xf32> to vector<8x8xf32>
    %cst_92 = arith.constant dense<0.000000e+00> : vector<8x8xf32>
    %187 = tpu.matmul %184, %185, %cst_92 {dimension_numbers = #tpu.dot_dimension_numbers<[1], [1], [0], [0], [0, 0, 1, 0], [], []>} : vector<8x8xf32>, vector<8x8xf32>, vector<8x8xf32> -> vector<8x8xf32>
    %cst_93 = arith.constant 0.353553385 : f32
    %188 = vector.broadcast %cst_93 : f32 to vector<8x8xf32>
    %189 = arith.mulf %187, %188 : vector<8x8xf32>
    %190 = vector.broadcast %3 : vector<1x8xf32> to vector<8x8xf32>
    %191 = arith.addf %189, %190 : vector<8x8xf32>
    %cst_94 = arith.constant dense<0xFF800000> : vector<8xf32>
    %192 = vector.multi_reduction <maximumf>, %191, %cst_94 [1] : vector<8x8xf32> to vector<8xf32>
    %193 = vector.shape_cast %192 : vector<8xf32> to vector<8x1xf32>
    %194 = vector.broadcast %193 : vector<8x1xf32> to vector<8x8xf32>
    %195 = arith.subf %191, %194 : vector<8x8xf32>
    %196 = math.exp %195 : vector<8x8xf32>
    %cst_95 = arith.constant dense<0.000000e+00> : vector<8xf32>
    %197 = vector.multi_reduction <add>, %196, %cst_95 [1] : vector<8x8xf32> to vector<8xf32>
    %198 = vector.shape_cast %197 : vector<8xf32> to vector<8x1xf32>
    %199 = tpu.reciprocal %198 {approx = true} : vector<8x1xf32> -> vector<8x1xf32>
    %200 = vector.broadcast %199 : vector<8x1xf32> to vector<8x8xf32>
    %201 = arith.mulf %196, %200 : vector<8x8xf32>
    %cst_96 = arith.constant dense<0.000000e+00> : vector<8x8xf32>
    %202 = tpu.matmul %201, %186, %cst_96 {dimension_numbers = #tpu.dot_dimension_numbers<[1], [0], [0], [1], [0, 0, 1, 1], [], []>} : vector<8x8xf32>, vector<8x8xf32>, vector<8x8xf32> -> vector<8x8xf32>
    %203 = vector.extract_strided_slice %181 {offsets = [0, 8], sizes = [8, 8], strides = [1, 1]} : vector<8x32xf32> to vector<8x8xf32>
    %204 = vector.extract_strided_slice %182 {offsets = [0, 8], sizes = [8, 8], strides = [1, 1]} : vector<8x32xf32> to vector<8x8xf32>
    %205 = vector.extract_strided_slice %183 {offsets = [0, 8], sizes = [8, 8], strides = [1, 1]} : vector<8x32xf32> to vector<8x8xf32>
    %cst_97 = arith.constant dense<0.000000e+00> : vector<8x8xf32>
    %206 = tpu.matmul %203, %204, %cst_97 {dimension_numbers = #tpu.dot_dimension_numbers<[1], [1], [0], [0], [0, 0, 1, 0], [], []>} : vector<8x8xf32>, vector<8x8xf32>, vector<8x8xf32> -> vector<8x8xf32>
    %cst_98 = arith.constant 0.353553385 : f32
    %207 = vector.broadcast %cst_98 : f32 to vector<8x8xf32>
    %208 = arith.mulf %206, %207 : vector<8x8xf32>
    %209 = vector.broadcast %3 : vector<1x8xf32> to vector<8x8xf32>
    %210 = arith.addf %208, %209 : vector<8x8xf32>
    %cst_99 = arith.constant dense<0xFF800000> : vector<8xf32>
    %211 = vector.multi_reduction <maximumf>, %210, %cst_99 [1] : vector<8x8xf32> to vector<8xf32>
    %212 = vector.shape_cast %211 : vector<8xf32> to vector<8x1xf32>
    %213 = vector.broadcast %212 : vector<8x1xf32> to vector<8x8xf32>
    %214 = arith.subf %210, %213 : vector<8x8xf32>
    %215 = math.exp %214 : vector<8x8xf32>
    %cst_100 = arith.constant dense<0.000000e+00> : vector<8xf32>
    %216 = vector.multi_reduction <add>, %215, %cst_100 [1] : vector<8x8xf32> to vector<8xf32>
    %217 = vector.shape_cast %216 : vector<8xf32> to vector<8x1xf32>
    %218 = tpu.reciprocal %217 {approx = true} : vector<8x1xf32> -> vector<8x1xf32>
    %219 = vector.broadcast %218 : vector<8x1xf32> to vector<8x8xf32>
    %220 = arith.mulf %215, %219 : vector<8x8xf32>
    %cst_101 = arith.constant dense<0.000000e+00> : vector<8x8xf32>
    %221 = tpu.matmul %220, %205, %cst_101 {dimension_numbers = #tpu.dot_dimension_numbers<[1], [0], [0], [1], [0, 0, 1, 1], [], []>} : vector<8x8xf32>, vector<8x8xf32>, vector<8x8xf32> -> vector<8x8xf32>
    %222 = vector.extract_strided_slice %181 {offsets = [0, 16], sizes = [8, 8], strides = [1, 1]} : vector<8x32xf32> to vector<8x8xf32>
    %223 = vector.extract_strided_slice %182 {offsets = [0, 16], sizes = [8, 8], strides = [1, 1]} : vector<8x32xf32> to vector<8x8xf32>
    %224 = vector.extract_strided_slice %183 {offsets = [0, 16], sizes = [8, 8], strides = [1, 1]} : vector<8x32xf32> to vector<8x8xf32>
    %cst_102 = arith.constant dense<0.000000e+00> : vector<8x8xf32>
    %225 = tpu.matmul %222, %223, %cst_102 {dimension_numbers = #tpu.dot_dimension_numbers<[1], [1], [0], [0], [0, 0, 1, 0], [], []>} : vector<8x8xf32>, vector<8x8xf32>, vector<8x8xf32> -> vector<8x8xf32>
    %cst_103 = arith.constant 0.353553385 : f32
    %226 = vector.broadcast %cst_103 : f32 to vector<8x8xf32>
    %227 = arith.mulf %225, %226 : vector<8x8xf32>
    %228 = vector.broadcast %3 : vector<1x8xf32> to vector<8x8xf32>
    %229 = arith.addf %227, %228 : vector<8x8xf32>
    %cst_104 = arith.constant dense<0xFF800000> : vector<8xf32>
    %230 = vector.multi_reduction <maximumf>, %229, %cst_104 [1] : vector<8x8xf32> to vector<8xf32>
    %231 = vector.shape_cast %230 : vector<8xf32> to vector<8x1xf32>
    %232 = vector.broadcast %231 : vector<8x1xf32> to vector<8x8xf32>
    %233 = arith.subf %229, %232 : vector<8x8xf32>
    %234 = math.exp %233 : vector<8x8xf32>
    %cst_105 = arith.constant dense<0.000000e+00> : vector<8xf32>
    %235 = vector.multi_reduction <add>, %234, %cst_105 [1] : vector<8x8xf32> to vector<8xf32>
    %236 = vector.shape_cast %235 : vector<8xf32> to vector<8x1xf32>
    %237 = tpu.reciprocal %236 {approx = true} : vector<8x1xf32> -> vector<8x1xf32>
    %238 = vector.broadcast %237 : vector<8x1xf32> to vector<8x8xf32>
    %239 = arith.mulf %234, %238 : vector<8x8xf32>
    %cst_106 = arith.constant dense<0.000000e+00> : vector<8x8xf32>
    %240 = tpu.matmul %239, %224, %cst_106 {dimension_numbers = #tpu.dot_dimension_numbers<[1], [0], [0], [1], [0, 0, 1, 1], [], []>} : vector<8x8xf32>, vector<8x8xf32>, vector<8x8xf32> -> vector<8x8xf32>
    %241 = vector.extract_strided_slice %181 {offsets = [0, 24], sizes = [8, 8], strides = [1, 1]} : vector<8x32xf32> to vector<8x8xf32>
    %242 = vector.extract_strided_slice %182 {offsets = [0, 24], sizes = [8, 8], strides = [1, 1]} : vector<8x32xf32> to vector<8x8xf32>
    %243 = vector.extract_strided_slice %183 {offsets = [0, 24], sizes = [8, 8], strides = [1, 1]} : vector<8x32xf32> to vector<8x8xf32>
    %cst_107 = arith.constant dense<0.000000e+00> : vector<8x8xf32>
    %244 = tpu.matmul %241, %242, %cst_107 {dimension_numbers = #tpu.dot_dimension_numbers<[1], [1], [0], [0], [0, 0, 1, 0], [], []>} : vector<8x8xf32>, vector<8x8xf32>, vector<8x8xf32> -> vector<8x8xf32>
    %cst_108 = arith.constant 0.353553385 : f32
    %245 = vector.broadcast %cst_108 : f32 to vector<8x8xf32>
    %246 = arith.mulf %244, %245 : vector<8x8xf32>
    %247 = vector.broadcast %3 : vector<1x8xf32> to vector<8x8xf32>
    %248 = arith.addf %246, %247 : vector<8x8xf32>
    %cst_109 = arith.constant dense<0xFF800000> : vector<8xf32>
    %249 = vector.multi_reduction <maximumf>, %248, %cst_109 [1] : vector<8x8xf32> to vector<8xf32>
    %250 = vector.shape_cast %249 : vector<8xf32> to vector<8x1xf32>
    %251 = vector.broadcast %250 : vector<8x1xf32> to vector<8x8xf32>
    %252 = arith.subf %248, %251 : vector<8x8xf32>
    %253 = math.exp %252 : vector<8x8xf32>
    %cst_110 = arith.constant dense<0.000000e+00> : vector<8xf32>
    %254 = vector.multi_reduction <add>, %253, %cst_110 [1] : vector<8x8xf32> to vector<8xf32>
    %255 = vector.shape_cast %254 : vector<8xf32> to vector<8x1xf32>
    %256 = tpu.reciprocal %255 {approx = true} : vector<8x1xf32> -> vector<8x1xf32>
    %257 = vector.broadcast %256 : vector<8x1xf32> to vector<8x8xf32>
    %258 = arith.mulf %253, %257 : vector<8x8xf32>
    %cst_111 = arith.constant dense<0.000000e+00> : vector<8x8xf32>
    %259 = tpu.matmul %258, %243, %cst_111 {dimension_numbers = #tpu.dot_dimension_numbers<[1], [0], [0], [1], [0, 0, 1, 1], [], []>} : vector<8x8xf32>, vector<8x8xf32>, vector<8x8xf32> -> vector<8x8xf32>
    %260 = tpu.concatenate %202, %221, %240, %259 in 1 : vector<8x8xf32>, vector<8x8xf32>, vector<8x8xf32>, vector<8x8xf32> -> vector<8x32xf32>
    %cst_112 = arith.constant dense<0.000000e+00> : vector<8x32xf32>
    %261 = tpu.matmul %260, %175, %cst_112 {dimension_numbers = #tpu.dot_dimension_numbers<[1], [0], [0], [1], [0, 0, 1, 1], [], []>} : vector<8x32xf32>, vector<32x32xf32>, vector<8x32xf32> -> vector<8x32xf32>
    %262 = vector.broadcast %177 : vector<1x32xf32> to vector<8x32xf32>
    %263 = arith.addf %261, %262 : vector<8x32xf32>
    %c1_113 = arith.constant 1 : index
    %c0_114 = arith.constant 0 : index
    %c0_115 = arith.constant 0 : index
    %264 = vector.load %arg9[%c1_113, %c0_114, %c0_115] : memref<2x1x32xf32, #tpu.memory_space<vmem>>, vector<1x1x32xf32>
    %265 = vector.shape_cast %264 : vector<1x1x32xf32> to vector<1x32xf32>
    %c1_116 = arith.constant 1 : index
    %c0_117 = arith.constant 0 : index
    %c0_118 = arith.constant 0 : index
    %266 = vector.load %arg10[%c1_116, %c0_117, %c0_118] : memref<2x1x32xf32, #tpu.memory_space<vmem>>, vector<1x1x32xf32>
    %267 = vector.shape_cast %266 : vector<1x1x32xf32> to vector<1x32xf32>
    %268 = arith.addf %169, %263 : vector<8x32xf32>
    %cst_119 = arith.constant dense<0.000000e+00> : vector<8xf32>
    %269 = vector.multi_reduction <add>, %268, %cst_119 [1] : vector<8x32xf32> to vector<8xf32>
    %270 = vector.shape_cast %269 : vector<8xf32> to vector<8x1xf32>
    %cst_120 = arith.constant 3.200000e+01 : f32
    %271 = vector.broadcast %cst_120 : f32 to vector<8x1xf32>
    %272 = arith.divf %270, %271 : vector<8x1xf32>
    %273 = vector.broadcast %272 : vector<8x1xf32> to vector<8x32xf32>
    %274 = arith.subf %268, %273 : vector<8x32xf32>
    %275 = arith.mulf %274, %274 : vector<8x32xf32>
    %cst_121 = arith.constant dense<0.000000e+00> : vector<8xf32>
    %276 = vector.multi_reduction <add>, %275, %cst_121 [1] : vector<8x32xf32> to vector<8xf32>
    %277 = vector.shape_cast %276 : vector<8xf32> to vector<8x1xf32>
    %cst_122 = arith.constant 3.200000e+01 : f32
    %278 = vector.broadcast %cst_122 : f32 to vector<8x1xf32>
    %279 = arith.divf %277, %278 : vector<8x1xf32>
    %cst_123 = arith.constant 9.99999974E-6 : f32
    %280 = vector.broadcast %cst_123 : f32 to vector<8x1xf32>
    %281 = arith.addf %279, %280 : vector<8x1xf32>
    %282 = math.rsqrt %281 : vector<8x1xf32>
    %283 = vector.broadcast %282 : vector<8x1xf32> to vector<8x32xf32>
    %284 = arith.mulf %274, %283 : vector<8x32xf32>
    %285 = vector.broadcast %265 : vector<1x32xf32> to vector<8x32xf32>
    %286 = arith.mulf %284, %285 : vector<8x32xf32>
    %287 = vector.broadcast %267 : vector<1x32xf32> to vector<8x32xf32>
    %288 = arith.addf %286, %287 : vector<8x32xf32>
    %c1_124 = arith.constant 1 : index
    %c0_125 = arith.constant 0 : index
    %c0_126 = arith.constant 0 : index
    %289 = vector.load %arg11[%c1_124, %c0_125, %c0_126] : memref<2x32x64xf32, #tpu.memory_space<vmem>>, vector<1x32x64xf32>
    %290 = vector.shape_cast %289 : vector<1x32x64xf32> to vector<32x64xf32>
    %c1_127 = arith.constant 1 : index
    %c0_128 = arith.constant 0 : index
    %c0_129 = arith.constant 0 : index
    %291 = vector.load %arg12[%c1_127, %c0_128, %c0_129] : memref<2x1x64xf32, #tpu.memory_space<vmem>>, vector<1x1x64xf32>
    %292 = vector.shape_cast %291 : vector<1x1x64xf32> to vector<1x64xf32>
    %c1_130 = arith.constant 1 : index
    %c0_131 = arith.constant 0 : index
    %c0_132 = arith.constant 0 : index
    %293 = vector.load %arg13[%c1_130, %c0_131, %c0_132] : memref<2x64x32xf32, #tpu.memory_space<vmem>>, vector<1x64x32xf32>
    %294 = vector.shape_cast %293 : vector<1x64x32xf32> to vector<64x32xf32>
    %c1_133 = arith.constant 1 : index
    %c0_134 = arith.constant 0 : index
    %c0_135 = arith.constant 0 : index
    %295 = vector.load %arg14[%c1_133, %c0_134, %c0_135] : memref<2x1x32xf32, #tpu.memory_space<vmem>>, vector<1x1x32xf32>
    %296 = vector.shape_cast %295 : vector<1x1x32xf32> to vector<1x32xf32>
    %cst_136 = arith.constant dense<0.000000e+00> : vector<8x64xf32>
    %297 = tpu.matmul %288, %290, %cst_136 {dimension_numbers = #tpu.dot_dimension_numbers<[1], [0], [0], [1], [0, 0, 1, 1], [], []>} : vector<8x32xf32>, vector<32x64xf32>, vector<8x64xf32> -> vector<8x64xf32>
    %298 = vector.broadcast %292 : vector<1x64xf32> to vector<8x64xf32>
    %299 = arith.addf %297, %298 : vector<8x64xf32>
    %cst_137 = arith.constant 0.000000e+00 : f32
    %300 = vector.broadcast %cst_137 : f32 to vector<8x64xf32>
    %301 = arith.maximumf %299, %300 : vector<8x64xf32>
    %cst_138 = arith.constant dense<0.000000e+00> : vector<8x32xf32>
    %302 = tpu.matmul %301, %294, %cst_138 {dimension_numbers = #tpu.dot_dimension_numbers<[1], [0], [0], [1], [0, 0, 1, 1], [], []>} : vector<8x64xf32>, vector<64x32xf32>, vector<8x32xf32> -> vector<8x32xf32>
    %303 = vector.broadcast %296 : vector<1x32xf32> to vector<8x32xf32>
    %304 = arith.addf %302, %303 : vector<8x32xf32>
    %c1_139 = arith.constant 1 : index
    %c0_140 = arith.constant 0 : index
    %c0_141 = arith.constant 0 : index
    %305 = vector.load %arg15[%c1_139, %c0_140, %c0_141] : memref<2x1x32xf32, #tpu.memory_space<vmem>>, vector<1x1x32xf32>
    %306 = vector.shape_cast %305 : vector<1x1x32xf32> to vector<1x32xf32>
    %c1_142 = arith.constant 1 : index
    %c0_143 = arith.constant 0 : index
    %c0_144 = arith.constant 0 : index
    %307 = vector.load %arg16[%c1_142, %c0_143, %c0_144] : memref<2x1x32xf32, #tpu.memory_space<vmem>>, vector<1x1x32xf32>
    %308 = vector.shape_cast %307 : vector<1x1x32xf32> to vector<1x32xf32>
    %309 = arith.addf %288, %304 : vector<8x32xf32>
    %cst_145 = arith.constant dense<0.000000e+00> : vector<8xf32>
    %310 = vector.multi_reduction <add>, %309, %cst_145 [1] : vector<8x32xf32> to vector<8xf32>
    %311 = vector.shape_cast %310 : vector<8xf32> to vector<8x1xf32>
    %cst_146 = arith.constant 3.200000e+01 : f32
    %312 = vector.broadcast %cst_146 : f32 to vector<8x1xf32>
    %313 = arith.divf %311, %312 : vector<8x1xf32>
    %314 = vector.broadcast %313 : vector<8x1xf32> to vector<8x32xf32>
    %315 = arith.subf %309, %314 : vector<8x32xf32>
    %316 = arith.mulf %315, %315 : vector<8x32xf32>
    %cst_147 = arith.constant dense<0.000000e+00> : vector<8xf32>
    %317 = vector.multi_reduction <add>, %316, %cst_147 [1] : vector<8x32xf32> to vector<8xf32>
    %318 = vector.shape_cast %317 : vector<8xf32> to vector<8x1xf32>
    %cst_148 = arith.constant 3.200000e+01 : f32
    %319 = vector.broadcast %cst_148 : f32 to vector<8x1xf32>
    %320 = arith.divf %318, %319 : vector<8x1xf32>
    %cst_149 = arith.constant 9.99999974E-6 : f32
    %321 = vector.broadcast %cst_149 : f32 to vector<8x1xf32>
    %322 = arith.addf %320, %321 : vector<8x1xf32>
    %323 = math.rsqrt %322 : vector<8x1xf32>
    %324 = vector.broadcast %323 : vector<8x1xf32> to vector<8x32xf32>
    %325 = arith.mulf %315, %324 : vector<8x32xf32>
    %326 = vector.broadcast %306 : vector<1x32xf32> to vector<8x32xf32>
    %327 = arith.mulf %325, %326 : vector<8x32xf32>
    %328 = vector.broadcast %308 : vector<1x32xf32> to vector<8x32xf32>
    %329 = arith.addf %327, %328 : vector<8x32xf32>
    %c0_150 = arith.constant 0 : index
    %c0_151 = arith.constant 0 : index
    %c0_152 = arith.constant 0 : index
    %330 = vector.load %arg2[%c0_150, %c0_151, %c0_152] : memref<1x8x32xf32, #tpu.memory_space<vmem>>, vector<1x8x32xf32>
    %331 = vector.shape_cast %330 : vector<1x8x32xf32> to vector<8x32xf32>
    %c0_153 = arith.constant 0 : index
    %c0_154 = arith.constant 0 : index
    %c0_155 = arith.constant 0 : index
    %332 = vector.load %arg17[%c0_153, %c0_154, %c0_155] : memref<2x32x96xf32, #tpu.memory_space<vmem>>, vector<1x32x96xf32>
    %333 = vector.shape_cast %332 : vector<1x32x96xf32> to vector<32x96xf32>
    %c0_156 = arith.constant 0 : index
    %c0_157 = arith.constant 0 : index
    %c0_158 = arith.constant 0 : index
    %334 = vector.load %arg18[%c0_156, %c0_157, %c0_158] : memref<2x1x96xf32, #tpu.memory_space<vmem>>, vector<1x1x96xf32>
    %335 = vector.shape_cast %334 : vector<1x1x96xf32> to vector<1x96xf32>
    %c0_159 = arith.constant 0 : index
    %c0_160 = arith.constant 0 : index
    %c0_161 = arith.constant 0 : index
    %336 = vector.load %arg19[%c0_159, %c0_160, %c0_161] : memref<2x32x32xf32, #tpu.memory_space<vmem>>, vector<1x32x32xf32>
    %337 = vector.shape_cast %336 : vector<1x32x32xf32> to vector<32x32xf32>
    %c0_162 = arith.constant 0 : index
    %c0_163 = arith.constant 0 : index
    %c0_164 = arith.constant 0 : index
    %338 = vector.load %arg20[%c0_162, %c0_163, %c0_164] : memref<2x1x32xf32, #tpu.memory_space<vmem>>, vector<1x1x32xf32>
    %339 = vector.shape_cast %338 : vector<1x1x32xf32> to vector<1x32xf32>
    %cst_165 = arith.constant dense<0.000000e+00> : vector<8x96xf32>
    %340 = tpu.matmul %331, %333, %cst_165 {dimension_numbers = #tpu.dot_dimension_numbers<[1], [0], [0], [1], [0, 0, 1, 1], [], []>} : vector<8x32xf32>, vector<32x96xf32>, vector<8x96xf32> -> vector<8x96xf32>
    %341 = vector.broadcast %335 : vector<1x96xf32> to vector<8x96xf32>
    %342 = arith.addf %340, %341 : vector<8x96xf32>
    %343 = vector.extract_strided_slice %342 {offsets = [0, 0], sizes = [8, 32], strides = [1, 1]} : vector<8x96xf32> to vector<8x32xf32>
    %344 = vector.extract_strided_slice %342 {offsets = [0, 32], sizes = [8, 32], strides = [1, 1]} : vector<8x96xf32> to vector<8x32xf32>
    %345 = vector.extract_strided_slice %342 {offsets = [0, 64], sizes = [8, 32], strides = [1, 1]} : vector<8x96xf32> to vector<8x32xf32>
    %346 = vector.extract_strided_slice %343 {offsets = [0, 0], sizes = [8, 8], strides = [1, 1]} : vector<8x32xf32> to vector<8x8xf32>
    %347 = vector.extract_strided_slice %344 {offsets = [0, 0], sizes = [8, 8], strides = [1, 1]} : vector<8x32xf32> to vector<8x8xf32>
    %348 = vector.extract_strided_slice %345 {offsets = [0, 0], sizes = [8, 8], strides = [1, 1]} : vector<8x32xf32> to vector<8x8xf32>
    %cst_166 = arith.constant dense<0.000000e+00> : vector<8x8xf32>
    %349 = tpu.matmul %346, %347, %cst_166 {dimension_numbers = #tpu.dot_dimension_numbers<[1], [1], [0], [0], [0, 0, 1, 0], [], []>} : vector<8x8xf32>, vector<8x8xf32>, vector<8x8xf32> -> vector<8x8xf32>
    %cst_167 = arith.constant 0.353553385 : f32
    %350 = vector.broadcast %cst_167 : f32 to vector<8x8xf32>
    %351 = arith.mulf %349, %350 : vector<8x8xf32>
    %352 = vector.broadcast %7 : vector<1x8xf32> to vector<8x8xf32>
    %353 = arith.addf %351, %352 : vector<8x8xf32>
    %cst_168 = arith.constant dense<0xFF800000> : vector<8xf32>
    %354 = vector.multi_reduction <maximumf>, %353, %cst_168 [1] : vector<8x8xf32> to vector<8xf32>
    %355 = vector.shape_cast %354 : vector<8xf32> to vector<8x1xf32>
    %356 = vector.broadcast %355 : vector<8x1xf32> to vector<8x8xf32>
    %357 = arith.subf %353, %356 : vector<8x8xf32>
    %358 = math.exp %357 : vector<8x8xf32>
    %cst_169 = arith.constant dense<0.000000e+00> : vector<8xf32>
    %359 = vector.multi_reduction <add>, %358, %cst_169 [1] : vector<8x8xf32> to vector<8xf32>
    %360 = vector.shape_cast %359 : vector<8xf32> to vector<8x1xf32>
    %361 = tpu.reciprocal %360 {approx = true} : vector<8x1xf32> -> vector<8x1xf32>
    %362 = vector.broadcast %361 : vector<8x1xf32> to vector<8x8xf32>
    %363 = arith.mulf %358, %362 : vector<8x8xf32>
    %cst_170 = arith.constant dense<0.000000e+00> : vector<8x8xf32>
    %364 = tpu.matmul %363, %348, %cst_170 {dimension_numbers = #tpu.dot_dimension_numbers<[1], [0], [0], [1], [0, 0, 1, 1], [], []>} : vector<8x8xf32>, vector<8x8xf32>, vector<8x8xf32> -> vector<8x8xf32>
    %365 = vector.extract_strided_slice %343 {offsets = [0, 8], sizes = [8, 8], strides = [1, 1]} : vector<8x32xf32> to vector<8x8xf32>
    %366 = vector.extract_strided_slice %344 {offsets = [0, 8], sizes = [8, 8], strides = [1, 1]} : vector<8x32xf32> to vector<8x8xf32>
    %367 = vector.extract_strided_slice %345 {offsets = [0, 8], sizes = [8, 8], strides = [1, 1]} : vector<8x32xf32> to vector<8x8xf32>
    %cst_171 = arith.constant dense<0.000000e+00> : vector<8x8xf32>
    %368 = tpu.matmul %365, %366, %cst_171 {dimension_numbers = #tpu.dot_dimension_numbers<[1], [1], [0], [0], [0, 0, 1, 0], [], []>} : vector<8x8xf32>, vector<8x8xf32>, vector<8x8xf32> -> vector<8x8xf32>
    %cst_172 = arith.constant 0.353553385 : f32
    %369 = vector.broadcast %cst_172 : f32 to vector<8x8xf32>
    %370 = arith.mulf %368, %369 : vector<8x8xf32>
    %371 = vector.broadcast %7 : vector<1x8xf32> to vector<8x8xf32>
    %372 = arith.addf %370, %371 : vector<8x8xf32>
    %cst_173 = arith.constant dense<0xFF800000> : vector<8xf32>
    %373 = vector.multi_reduction <maximumf>, %372, %cst_173 [1] : vector<8x8xf32> to vector<8xf32>
    %374 = vector.shape_cast %373 : vector<8xf32> to vector<8x1xf32>
    %375 = vector.broadcast %374 : vector<8x1xf32> to vector<8x8xf32>
    %376 = arith.subf %372, %375 : vector<8x8xf32>
    %377 = math.exp %376 : vector<8x8xf32>
    %cst_174 = arith.constant dense<0.000000e+00> : vector<8xf32>
    %378 = vector.multi_reduction <add>, %377, %cst_174 [1] : vector<8x8xf32> to vector<8xf32>
    %379 = vector.shape_cast %378 : vector<8xf32> to vector<8x1xf32>
    %380 = tpu.reciprocal %379 {approx = true} : vector<8x1xf32> -> vector<8x1xf32>
    %381 = vector.broadcast %380 : vector<8x1xf32> to vector<8x8xf32>
    %382 = arith.mulf %377, %381 : vector<8x8xf32>
    %cst_175 = arith.constant dense<0.000000e+00> : vector<8x8xf32>
    %383 = tpu.matmul %382, %367, %cst_175 {dimension_numbers = #tpu.dot_dimension_numbers<[1], [0], [0], [1], [0, 0, 1, 1], [], []>} : vector<8x8xf32>, vector<8x8xf32>, vector<8x8xf32> -> vector<8x8xf32>
    %384 = vector.extract_strided_slice %343 {offsets = [0, 16], sizes = [8, 8], strides = [1, 1]} : vector<8x32xf32> to vector<8x8xf32>
    %385 = vector.extract_strided_slice %344 {offsets = [0, 16], sizes = [8, 8], strides = [1, 1]} : vector<8x32xf32> to vector<8x8xf32>
    %386 = vector.extract_strided_slice %345 {offsets = [0, 16], sizes = [8, 8], strides = [1, 1]} : vector<8x32xf32> to vector<8x8xf32>
    %cst_176 = arith.constant dense<0.000000e+00> : vector<8x8xf32>
    %387 = tpu.matmul %384, %385, %cst_176 {dimension_numbers = #tpu.dot_dimension_numbers<[1], [1], [0], [0], [0, 0, 1, 0], [], []>} : vector<8x8xf32>, vector<8x8xf32>, vector<8x8xf32> -> vector<8x8xf32>
    %cst_177 = arith.constant 0.353553385 : f32
    %388 = vector.broadcast %cst_177 : f32 to vector<8x8xf32>
    %389 = arith.mulf %387, %388 : vector<8x8xf32>
    %390 = vector.broadcast %7 : vector<1x8xf32> to vector<8x8xf32>
    %391 = arith.addf %389, %390 : vector<8x8xf32>
    %cst_178 = arith.constant dense<0xFF800000> : vector<8xf32>
    %392 = vector.multi_reduction <maximumf>, %391, %cst_178 [1] : vector<8x8xf32> to vector<8xf32>
    %393 = vector.shape_cast %392 : vector<8xf32> to vector<8x1xf32>
    %394 = vector.broadcast %393 : vector<8x1xf32> to vector<8x8xf32>
    %395 = arith.subf %391, %394 : vector<8x8xf32>
    %396 = math.exp %395 : vector<8x8xf32>
    %cst_179 = arith.constant dense<0.000000e+00> : vector<8xf32>
    %397 = vector.multi_reduction <add>, %396, %cst_179 [1] : vector<8x8xf32> to vector<8xf32>
    %398 = vector.shape_cast %397 : vector<8xf32> to vector<8x1xf32>
    %399 = tpu.reciprocal %398 {approx = true} : vector<8x1xf32> -> vector<8x1xf32>
    %400 = vector.broadcast %399 : vector<8x1xf32> to vector<8x8xf32>
    %401 = arith.mulf %396, %400 : vector<8x8xf32>
    %cst_180 = arith.constant dense<0.000000e+00> : vector<8x8xf32>
    %402 = tpu.matmul %401, %386, %cst_180 {dimension_numbers = #tpu.dot_dimension_numbers<[1], [0], [0], [1], [0, 0, 1, 1], [], []>} : vector<8x8xf32>, vector<8x8xf32>, vector<8x8xf32> -> vector<8x8xf32>
    %403 = vector.extract_strided_slice %343 {offsets = [0, 24], sizes = [8, 8], strides = [1, 1]} : vector<8x32xf32> to vector<8x8xf32>
    %404 = vector.extract_strided_slice %344 {offsets = [0, 24], sizes = [8, 8], strides = [1, 1]} : vector<8x32xf32> to vector<8x8xf32>
    %405 = vector.extract_strided_slice %345 {offsets = [0, 24], sizes = [8, 8], strides = [1, 1]} : vector<8x32xf32> to vector<8x8xf32>
    %cst_181 = arith.constant dense<0.000000e+00> : vector<8x8xf32>
    %406 = tpu.matmul %403, %404, %cst_181 {dimension_numbers = #tpu.dot_dimension_numbers<[1], [1], [0], [0], [0, 0, 1, 0], [], []>} : vector<8x8xf32>, vector<8x8xf32>, vector<8x8xf32> -> vector<8x8xf32>
    %cst_182 = arith.constant 0.353553385 : f32
    %407 = vector.broadcast %cst_182 : f32 to vector<8x8xf32>
    %408 = arith.mulf %406, %407 : vector<8x8xf32>
    %409 = vector.broadcast %7 : vector<1x8xf32> to vector<8x8xf32>
    %410 = arith.addf %408, %409 : vector<8x8xf32>
    %cst_183 = arith.constant dense<0xFF800000> : vector<8xf32>
    %411 = vector.multi_reduction <maximumf>, %410, %cst_183 [1] : vector<8x8xf32> to vector<8xf32>
    %412 = vector.shape_cast %411 : vector<8xf32> to vector<8x1xf32>
    %413 = vector.broadcast %412 : vector<8x1xf32> to vector<8x8xf32>
    %414 = arith.subf %410, %413 : vector<8x8xf32>
    %415 = math.exp %414 : vector<8x8xf32>
    %cst_184 = arith.constant dense<0.000000e+00> : vector<8xf32>
    %416 = vector.multi_reduction <add>, %415, %cst_184 [1] : vector<8x8xf32> to vector<8xf32>
    %417 = vector.shape_cast %416 : vector<8xf32> to vector<8x1xf32>
    %418 = tpu.reciprocal %417 {approx = true} : vector<8x1xf32> -> vector<8x1xf32>
    %419 = vector.broadcast %418 : vector<8x1xf32> to vector<8x8xf32>
    %420 = arith.mulf %415, %419 : vector<8x8xf32>
    %cst_185 = arith.constant dense<0.000000e+00> : vector<8x8xf32>
    %421 = tpu.matmul %420, %405, %cst_185 {dimension_numbers = #tpu.dot_dimension_numbers<[1], [0], [0], [1], [0, 0, 1, 1], [], []>} : vector<8x8xf32>, vector<8x8xf32>, vector<8x8xf32> -> vector<8x8xf32>
    %422 = tpu.concatenate %364, %383, %402, %421 in 1 : vector<8x8xf32>, vector<8x8xf32>, vector<8x8xf32>, vector<8x8xf32> -> vector<8x32xf32>
    %cst_186 = arith.constant dense<0.000000e+00> : vector<8x32xf32>
    %423 = tpu.matmul %422, %337, %cst_186 {dimension_numbers = #tpu.dot_dimension_numbers<[1], [0], [0], [1], [0, 0, 1, 1], [], []>} : vector<8x32xf32>, vector<32x32xf32>, vector<8x32xf32> -> vector<8x32xf32>
    %424 = vector.broadcast %339 : vector<1x32xf32> to vector<8x32xf32>
    %425 = arith.addf %423, %424 : vector<8x32xf32>
    %c0_187 = arith.constant 0 : index
    %c0_188 = arith.constant 0 : index
    %c0_189 = arith.constant 0 : index
    %426 = vector.load %arg21[%c0_187, %c0_188, %c0_189] : memref<2x1x32xf32, #tpu.memory_space<vmem>>, vector<1x1x32xf32>
    %427 = vector.shape_cast %426 : vector<1x1x32xf32> to vector<1x32xf32>
    %c0_190 = arith.constant 0 : index
    %c0_191 = arith.constant 0 : index
    %c0_192 = arith.constant 0 : index
    %428 = vector.load %arg22[%c0_190, %c0_191, %c0_192] : memref<2x1x32xf32, #tpu.memory_space<vmem>>, vector<1x1x32xf32>
    %429 = vector.shape_cast %428 : vector<1x1x32xf32> to vector<1x32xf32>
    %430 = arith.addf %331, %425 : vector<8x32xf32>
    %cst_193 = arith.constant dense<0.000000e+00> : vector<8xf32>
    %431 = vector.multi_reduction <add>, %430, %cst_193 [1] : vector<8x32xf32> to vector<8xf32>
    %432 = vector.shape_cast %431 : vector<8xf32> to vector<8x1xf32>
    %cst_194 = arith.constant 3.200000e+01 : f32
    %433 = vector.broadcast %cst_194 : f32 to vector<8x1xf32>
    %434 = arith.divf %432, %433 : vector<8x1xf32>
    %435 = vector.broadcast %434 : vector<8x1xf32> to vector<8x32xf32>
    %436 = arith.subf %430, %435 : vector<8x32xf32>
    %437 = arith.mulf %436, %436 : vector<8x32xf32>
    %cst_195 = arith.constant dense<0.000000e+00> : vector<8xf32>
    %438 = vector.multi_reduction <add>, %437, %cst_195 [1] : vector<8x32xf32> to vector<8xf32>
    %439 = vector.shape_cast %438 : vector<8xf32> to vector<8x1xf32>
    %cst_196 = arith.constant 3.200000e+01 : f32
    %440 = vector.broadcast %cst_196 : f32 to vector<8x1xf32>
    %441 = arith.divf %439, %440 : vector<8x1xf32>
    %cst_197 = arith.constant 9.99999974E-6 : f32
    %442 = vector.broadcast %cst_197 : f32 to vector<8x1xf32>
    %443 = arith.addf %441, %442 : vector<8x1xf32>
    %444 = math.rsqrt %443 : vector<8x1xf32>
    %445 = vector.broadcast %444 : vector<8x1xf32> to vector<8x32xf32>
    %446 = arith.mulf %436, %445 : vector<8x32xf32>
    %447 = vector.broadcast %427 : vector<1x32xf32> to vector<8x32xf32>
    %448 = arith.mulf %446, %447 : vector<8x32xf32>
    %449 = vector.broadcast %429 : vector<1x32xf32> to vector<8x32xf32>
    %450 = arith.addf %448, %449 : vector<8x32xf32>
    %c0_198 = arith.constant 0 : index
    %c0_199 = arith.constant 0 : index
    %c0_200 = arith.constant 0 : index
    %451 = vector.load %arg23[%c0_198, %c0_199, %c0_200] : memref<2x32x32xf32, #tpu.memory_space<vmem>>, vector<1x32x32xf32>
    %452 = vector.shape_cast %451 : vector<1x32x32xf32> to vector<32x32xf32>
    %c0_201 = arith.constant 0 : index
    %c0_202 = arith.constant 0 : index
    %c0_203 = arith.constant 0 : index
    %453 = vector.load %arg24[%c0_201, %c0_202, %c0_203] : memref<2x1x32xf32, #tpu.memory_space<vmem>>, vector<1x1x32xf32>
    %454 = vector.shape_cast %453 : vector<1x1x32xf32> to vector<1x32xf32>
    %c0_204 = arith.constant 0 : index
    %c0_205 = arith.constant 0 : index
    %c0_206 = arith.constant 0 : index
    %455 = vector.load %arg25[%c0_204, %c0_205, %c0_206] : memref<2x32x64xf32, #tpu.memory_space<vmem>>, vector<1x32x64xf32>
    %456 = vector.shape_cast %455 : vector<1x32x64xf32> to vector<32x64xf32>
    %c0_207 = arith.constant 0 : index
    %c0_208 = arith.constant 0 : index
    %c0_209 = arith.constant 0 : index
    %457 = vector.load %arg26[%c0_207, %c0_208, %c0_209] : memref<2x1x64xf32, #tpu.memory_space<vmem>>, vector<1x1x64xf32>
    %458 = vector.shape_cast %457 : vector<1x1x64xf32> to vector<1x64xf32>
    %c0_210 = arith.constant 0 : index
    %c0_211 = arith.constant 0 : index
    %c0_212 = arith.constant 0 : index
    %459 = vector.load %arg27[%c0_210, %c0_211, %c0_212] : memref<2x32x32xf32, #tpu.memory_space<vmem>>, vector<1x32x32xf32>
    %460 = vector.shape_cast %459 : vector<1x32x32xf32> to vector<32x32xf32>
    %c0_213 = arith.constant 0 : index
    %c0_214 = arith.constant 0 : index
    %c0_215 = arith.constant 0 : index
    %461 = vector.load %arg28[%c0_213, %c0_214, %c0_215] : memref<2x1x32xf32, #tpu.memory_space<vmem>>, vector<1x1x32xf32>
    %462 = vector.shape_cast %461 : vector<1x1x32xf32> to vector<1x32xf32>
    %cst_216 = arith.constant dense<0.000000e+00> : vector<8x32xf32>
    %463 = tpu.matmul %450, %452, %cst_216 {dimension_numbers = #tpu.dot_dimension_numbers<[1], [0], [0], [1], [0, 0, 1, 1], [], []>} : vector<8x32xf32>, vector<32x32xf32>, vector<8x32xf32> -> vector<8x32xf32>
    %464 = vector.broadcast %454 : vector<1x32xf32> to vector<8x32xf32>
    %465 = arith.addf %463, %464 : vector<8x32xf32>
    %cst_217 = arith.constant dense<0.000000e+00> : vector<8x64xf32>
    %466 = tpu.matmul %329, %456, %cst_217 {dimension_numbers = #tpu.dot_dimension_numbers<[1], [0], [0], [1], [0, 0, 1, 1], [], []>} : vector<8x32xf32>, vector<32x64xf32>, vector<8x64xf32> -> vector<8x64xf32>
    %467 = vector.broadcast %458 : vector<1x64xf32> to vector<8x64xf32>
    %468 = arith.addf %466, %467 : vector<8x64xf32>
    %469 = vector.extract_strided_slice %468 {offsets = [0, 0], sizes = [8, 32], strides = [1, 1]} : vector<8x64xf32> to vector<8x32xf32>
    %470 = vector.extract_strided_slice %468 {offsets = [0, 32], sizes = [8, 32], strides = [1, 1]} : vector<8x64xf32> to vector<8x32xf32>
    %471 = vector.extract_strided_slice %465 {offsets = [0, 0], sizes = [8, 8], strides = [1, 1]} : vector<8x32xf32> to vector<8x8xf32>
    %472 = vector.extract_strided_slice %469 {offsets = [0, 0], sizes = [8, 8], strides = [1, 1]} : vector<8x32xf32> to vector<8x8xf32>
    %473 = vector.extract_strided_slice %470 {offsets = [0, 0], sizes = [8, 8], strides = [1, 1]} : vector<8x32xf32> to vector<8x8xf32>
    %cst_218 = arith.constant dense<0.000000e+00> : vector<8x8xf32>
    %474 = tpu.matmul %471, %472, %cst_218 {dimension_numbers = #tpu.dot_dimension_numbers<[1], [1], [0], [0], [0, 0, 1, 0], [], []>} : vector<8x8xf32>, vector<8x8xf32>, vector<8x8xf32> -> vector<8x8xf32>
    %cst_219 = arith.constant 0.353553385 : f32
    %475 = vector.broadcast %cst_219 : f32 to vector<8x8xf32>
    %476 = arith.mulf %474, %475 : vector<8x8xf32>
    %477 = vector.broadcast %3 : vector<1x8xf32> to vector<8x8xf32>
    %478 = arith.addf %476, %477 : vector<8x8xf32>
    %cst_220 = arith.constant dense<0xFF800000> : vector<8xf32>
    %479 = vector.multi_reduction <maximumf>, %478, %cst_220 [1] : vector<8x8xf32> to vector<8xf32>
    %480 = vector.shape_cast %479 : vector<8xf32> to vector<8x1xf32>
    %481 = vector.broadcast %480 : vector<8x1xf32> to vector<8x8xf32>
    %482 = arith.subf %478, %481 : vector<8x8xf32>
    %483 = math.exp %482 : vector<8x8xf32>
    %cst_221 = arith.constant dense<0.000000e+00> : vector<8xf32>
    %484 = vector.multi_reduction <add>, %483, %cst_221 [1] : vector<8x8xf32> to vector<8xf32>
    %485 = vector.shape_cast %484 : vector<8xf32> to vector<8x1xf32>
    %486 = tpu.reciprocal %485 {approx = true} : vector<8x1xf32> -> vector<8x1xf32>
    %487 = vector.broadcast %486 : vector<8x1xf32> to vector<8x8xf32>
    %488 = arith.mulf %483, %487 : vector<8x8xf32>
    %cst_222 = arith.constant dense<0.000000e+00> : vector<8x8xf32>
    %489 = tpu.matmul %488, %473, %cst_222 {dimension_numbers = #tpu.dot_dimension_numbers<[1], [0], [0], [1], [0, 0, 1, 1], [], []>} : vector<8x8xf32>, vector<8x8xf32>, vector<8x8xf32> -> vector<8x8xf32>
    %490 = vector.extract_strided_slice %465 {offsets = [0, 8], sizes = [8, 8], strides = [1, 1]} : vector<8x32xf32> to vector<8x8xf32>
    %491 = vector.extract_strided_slice %469 {offsets = [0, 8], sizes = [8, 8], strides = [1, 1]} : vector<8x32xf32> to vector<8x8xf32>
    %492 = vector.extract_strided_slice %470 {offsets = [0, 8], sizes = [8, 8], strides = [1, 1]} : vector<8x32xf32> to vector<8x8xf32>
    %cst_223 = arith.constant dense<0.000000e+00> : vector<8x8xf32>
    %493 = tpu.matmul %490, %491, %cst_223 {dimension_numbers = #tpu.dot_dimension_numbers<[1], [1], [0], [0], [0, 0, 1, 0], [], []>} : vector<8x8xf32>, vector<8x8xf32>, vector<8x8xf32> -> vector<8x8xf32>
    %cst_224 = arith.constant 0.353553385 : f32
    %494 = vector.broadcast %cst_224 : f32 to vector<8x8xf32>
    %495 = arith.mulf %493, %494 : vector<8x8xf32>
    %496 = vector.broadcast %3 : vector<1x8xf32> to vector<8x8xf32>
    %497 = arith.addf %495, %496 : vector<8x8xf32>
    %cst_225 = arith.constant dense<0xFF800000> : vector<8xf32>
    %498 = vector.multi_reduction <maximumf>, %497, %cst_225 [1] : vector<8x8xf32> to vector<8xf32>
    %499 = vector.shape_cast %498 : vector<8xf32> to vector<8x1xf32>
    %500 = vector.broadcast %499 : vector<8x1xf32> to vector<8x8xf32>
    %501 = arith.subf %497, %500 : vector<8x8xf32>
    %502 = math.exp %501 : vector<8x8xf32>
    %cst_226 = arith.constant dense<0.000000e+00> : vector<8xf32>
    %503 = vector.multi_reduction <add>, %502, %cst_226 [1] : vector<8x8xf32> to vector<8xf32>
    %504 = vector.shape_cast %503 : vector<8xf32> to vector<8x1xf32>
    %505 = tpu.reciprocal %504 {approx = true} : vector<8x1xf32> -> vector<8x1xf32>
    %506 = vector.broadcast %505 : vector<8x1xf32> to vector<8x8xf32>
    %507 = arith.mulf %502, %506 : vector<8x8xf32>
    %cst_227 = arith.constant dense<0.000000e+00> : vector<8x8xf32>
    %508 = tpu.matmul %507, %492, %cst_227 {dimension_numbers = #tpu.dot_dimension_numbers<[1], [0], [0], [1], [0, 0, 1, 1], [], []>} : vector<8x8xf32>, vector<8x8xf32>, vector<8x8xf32> -> vector<8x8xf32>
    %509 = vector.extract_strided_slice %465 {offsets = [0, 16], sizes = [8, 8], strides = [1, 1]} : vector<8x32xf32> to vector<8x8xf32>
    %510 = vector.extract_strided_slice %469 {offsets = [0, 16], sizes = [8, 8], strides = [1, 1]} : vector<8x32xf32> to vector<8x8xf32>
    %511 = vector.extract_strided_slice %470 {offsets = [0, 16], sizes = [8, 8], strides = [1, 1]} : vector<8x32xf32> to vector<8x8xf32>
    %cst_228 = arith.constant dense<0.000000e+00> : vector<8x8xf32>
    %512 = tpu.matmul %509, %510, %cst_228 {dimension_numbers = #tpu.dot_dimension_numbers<[1], [1], [0], [0], [0, 0, 1, 0], [], []>} : vector<8x8xf32>, vector<8x8xf32>, vector<8x8xf32> -> vector<8x8xf32>
    %cst_229 = arith.constant 0.353553385 : f32
    %513 = vector.broadcast %cst_229 : f32 to vector<8x8xf32>
    %514 = arith.mulf %512, %513 : vector<8x8xf32>
    %515 = vector.broadcast %3 : vector<1x8xf32> to vector<8x8xf32>
    %516 = arith.addf %514, %515 : vector<8x8xf32>
    %cst_230 = arith.constant dense<0xFF800000> : vector<8xf32>
    %517 = vector.multi_reduction <maximumf>, %516, %cst_230 [1] : vector<8x8xf32> to vector<8xf32>
    %518 = vector.shape_cast %517 : vector<8xf32> to vector<8x1xf32>
    %519 = vector.broadcast %518 : vector<8x1xf32> to vector<8x8xf32>
    %520 = arith.subf %516, %519 : vector<8x8xf32>
    %521 = math.exp %520 : vector<8x8xf32>
    %cst_231 = arith.constant dense<0.000000e+00> : vector<8xf32>
    %522 = vector.multi_reduction <add>, %521, %cst_231 [1] : vector<8x8xf32> to vector<8xf32>
    %523 = vector.shape_cast %522 : vector<8xf32> to vector<8x1xf32>
    %524 = tpu.reciprocal %523 {approx = true} : vector<8x1xf32> -> vector<8x1xf32>
    %525 = vector.broadcast %524 : vector<8x1xf32> to vector<8x8xf32>
    %526 = arith.mulf %521, %525 : vector<8x8xf32>
    %cst_232 = arith.constant dense<0.000000e+00> : vector<8x8xf32>
    %527 = tpu.matmul %526, %511, %cst_232 {dimension_numbers = #tpu.dot_dimension_numbers<[1], [0], [0], [1], [0, 0, 1, 1], [], []>} : vector<8x8xf32>, vector<8x8xf32>, vector<8x8xf32> -> vector<8x8xf32>
    %528 = vector.extract_strided_slice %465 {offsets = [0, 24], sizes = [8, 8], strides = [1, 1]} : vector<8x32xf32> to vector<8x8xf32>
    %529 = vector.extract_strided_slice %469 {offsets = [0, 24], sizes = [8, 8], strides = [1, 1]} : vector<8x32xf32> to vector<8x8xf32>
    %530 = vector.extract_strided_slice %470 {offsets = [0, 24], sizes = [8, 8], strides = [1, 1]} : vector<8x32xf32> to vector<8x8xf32>
    %cst_233 = arith.constant dense<0.000000e+00> : vector<8x8xf32>
    %531 = tpu.matmul %528, %529, %cst_233 {dimension_numbers = #tpu.dot_dimension_numbers<[1], [1], [0], [0], [0, 0, 1, 0], [], []>} : vector<8x8xf32>, vector<8x8xf32>, vector<8x8xf32> -> vector<8x8xf32>
    %cst_234 = arith.constant 0.353553385 : f32
    %532 = vector.broadcast %cst_234 : f32 to vector<8x8xf32>
    %533 = arith.mulf %531, %532 : vector<8x8xf32>
    %534 = vector.broadcast %3 : vector<1x8xf32> to vector<8x8xf32>
    %535 = arith.addf %533, %534 : vector<8x8xf32>
    %cst_235 = arith.constant dense<0xFF800000> : vector<8xf32>
    %536 = vector.multi_reduction <maximumf>, %535, %cst_235 [1] : vector<8x8xf32> to vector<8xf32>
    %537 = vector.shape_cast %536 : vector<8xf32> to vector<8x1xf32>
    %538 = vector.broadcast %537 : vector<8x1xf32> to vector<8x8xf32>
    %539 = arith.subf %535, %538 : vector<8x8xf32>
    %540 = math.exp %539 : vector<8x8xf32>
    %cst_236 = arith.constant dense<0.000000e+00> : vector<8xf32>
    %541 = vector.multi_reduction <add>, %540, %cst_236 [1] : vector<8x8xf32> to vector<8xf32>
    %542 = vector.shape_cast %541 : vector<8xf32> to vector<8x1xf32>
    %543 = tpu.reciprocal %542 {approx = true} : vector<8x1xf32> -> vector<8x1xf32>
    %544 = vector.broadcast %543 : vector<8x1xf32> to vector<8x8xf32>
    %545 = arith.mulf %540, %544 : vector<8x8xf32>
    %cst_237 = arith.constant dense<0.000000e+00> : vector<8x8xf32>
    %546 = tpu.matmul %545, %530, %cst_237 {dimension_numbers = #tpu.dot_dimension_numbers<[1], [0], [0], [1], [0, 0, 1, 1], [], []>} : vector<8x8xf32>, vector<8x8xf32>, vector<8x8xf32> -> vector<8x8xf32>
    %547 = tpu.concatenate %489, %508, %527, %546 in 1 : vector<8x8xf32>, vector<8x8xf32>, vector<8x8xf32>, vector<8x8xf32> -> vector<8x32xf32>
    %cst_238 = arith.constant dense<0.000000e+00> : vector<8x32xf32>
    %548 = tpu.matmul %547, %460, %cst_238 {dimension_numbers = #tpu.dot_dimension_numbers<[1], [0], [0], [1], [0, 0, 1, 1], [], []>} : vector<8x32xf32>, vector<32x32xf32>, vector<8x32xf32> -> vector<8x32xf32>
    %549 = vector.broadcast %462 : vector<1x32xf32> to vector<8x32xf32>
    %550 = arith.addf %548, %549 : vector<8x32xf32>
    %c0_239 = arith.constant 0 : index
    %c0_240 = arith.constant 0 : index
    %c0_241 = arith.constant 0 : index
    %551 = vector.load %arg29[%c0_239, %c0_240, %c0_241] : memref<2x1x32xf32, #tpu.memory_space<vmem>>, vector<1x1x32xf32>
    %552 = vector.shape_cast %551 : vector<1x1x32xf32> to vector<1x32xf32>
    %c0_242 = arith.constant 0 : index
    %c0_243 = arith.constant 0 : index
    %c0_244 = arith.constant 0 : index
    %553 = vector.load %arg30[%c0_242, %c0_243, %c0_244] : memref<2x1x32xf32, #tpu.memory_space<vmem>>, vector<1x1x32xf32>
    %554 = vector.shape_cast %553 : vector<1x1x32xf32> to vector<1x32xf32>
    %555 = arith.addf %450, %550 : vector<8x32xf32>
    %cst_245 = arith.constant dense<0.000000e+00> : vector<8xf32>
    %556 = vector.multi_reduction <add>, %555, %cst_245 [1] : vector<8x32xf32> to vector<8xf32>
    %557 = vector.shape_cast %556 : vector<8xf32> to vector<8x1xf32>
    %cst_246 = arith.constant 3.200000e+01 : f32
    %558 = vector.broadcast %cst_246 : f32 to vector<8x1xf32>
    %559 = arith.divf %557, %558 : vector<8x1xf32>
    %560 = vector.broadcast %559 : vector<8x1xf32> to vector<8x32xf32>
    %561 = arith.subf %555, %560 : vector<8x32xf32>
    %562 = arith.mulf %561, %561 : vector<8x32xf32>
    %cst_247 = arith.constant dense<0.000000e+00> : vector<8xf32>
    %563 = vector.multi_reduction <add>, %562, %cst_247 [1] : vector<8x32xf32> to vector<8xf32>
    %564 = vector.shape_cast %563 : vector<8xf32> to vector<8x1xf32>
    %cst_248 = arith.constant 3.200000e+01 : f32
    %565 = vector.broadcast %cst_248 : f32 to vector<8x1xf32>
    %566 = arith.divf %564, %565 : vector<8x1xf32>
    %cst_249 = arith.constant 9.99999974E-6 : f32
    %567 = vector.broadcast %cst_249 : f32 to vector<8x1xf32>
    %568 = arith.addf %566, %567 : vector<8x1xf32>
    %569 = math.rsqrt %568 : vector<8x1xf32>
    %570 = vector.broadcast %569 : vector<8x1xf32> to vector<8x32xf32>
    %571 = arith.mulf %561, %570 : vector<8x32xf32>
    %572 = vector.broadcast %552 : vector<1x32xf32> to vector<8x32xf32>
    %573 = arith.mulf %571, %572 : vector<8x32xf32>
    %574 = vector.broadcast %554 : vector<1x32xf32> to vector<8x32xf32>
    %575 = arith.addf %573, %574 : vector<8x32xf32>
    %c0_250 = arith.constant 0 : index
    %c0_251 = arith.constant 0 : index
    %c0_252 = arith.constant 0 : index
    %576 = vector.load %arg31[%c0_250, %c0_251, %c0_252] : memref<2x32x64xf32, #tpu.memory_space<vmem>>, vector<1x32x64xf32>
    %577 = vector.shape_cast %576 : vector<1x32x64xf32> to vector<32x64xf32>
    %c0_253 = arith.constant 0 : index
    %c0_254 = arith.constant 0 : index
    %c0_255 = arith.constant 0 : index
    %578 = vector.load %arg32[%c0_253, %c0_254, %c0_255] : memref<2x1x64xf32, #tpu.memory_space<vmem>>, vector<1x1x64xf32>
    %579 = vector.shape_cast %578 : vector<1x1x64xf32> to vector<1x64xf32>
    %c0_256 = arith.constant 0 : index
    %c0_257 = arith.constant 0 : index
    %c0_258 = arith.constant 0 : index
    %580 = vector.load %arg33[%c0_256, %c0_257, %c0_258] : memref<2x64x32xf32, #tpu.memory_space<vmem>>, vector<1x64x32xf32>
    %581 = vector.shape_cast %580 : vector<1x64x32xf32> to vector<64x32xf32>
    %c0_259 = arith.constant 0 : index
    %c0_260 = arith.constant 0 : index
    %c0_261 = arith.constant 0 : index
    %582 = vector.load %arg34[%c0_259, %c0_260, %c0_261] : memref<2x1x32xf32, #tpu.memory_space<vmem>>, vector<1x1x32xf32>
    %583 = vector.shape_cast %582 : vector<1x1x32xf32> to vector<1x32xf32>
    %cst_262 = arith.constant dense<0.000000e+00> : vector<8x64xf32>
    %584 = tpu.matmul %575, %577, %cst_262 {dimension_numbers = #tpu.dot_dimension_numbers<[1], [0], [0], [1], [0, 0, 1, 1], [], []>} : vector<8x32xf32>, vector<32x64xf32>, vector<8x64xf32> -> vector<8x64xf32>
    %585 = vector.broadcast %579 : vector<1x64xf32> to vector<8x64xf32>
    %586 = arith.addf %584, %585 : vector<8x64xf32>
    %cst_263 = arith.constant 0.000000e+00 : f32
    %587 = vector.broadcast %cst_263 : f32 to vector<8x64xf32>
    %588 = arith.maximumf %586, %587 : vector<8x64xf32>
    %cst_264 = arith.constant dense<0.000000e+00> : vector<8x32xf32>
    %589 = tpu.matmul %588, %581, %cst_264 {dimension_numbers = #tpu.dot_dimension_numbers<[1], [0], [0], [1], [0, 0, 1, 1], [], []>} : vector<8x64xf32>, vector<64x32xf32>, vector<8x32xf32> -> vector<8x32xf32>
    %590 = vector.broadcast %583 : vector<1x32xf32> to vector<8x32xf32>
    %591 = arith.addf %589, %590 : vector<8x32xf32>
    %c0_265 = arith.constant 0 : index
    %c0_266 = arith.constant 0 : index
    %c0_267 = arith.constant 0 : index
    %592 = vector.load %arg35[%c0_265, %c0_266, %c0_267] : memref<2x1x32xf32, #tpu.memory_space<vmem>>, vector<1x1x32xf32>
    %593 = vector.shape_cast %592 : vector<1x1x32xf32> to vector<1x32xf32>
    %c0_268 = arith.constant 0 : index
    %c0_269 = arith.constant 0 : index
    %c0_270 = arith.constant 0 : index
    %594 = vector.load %arg36[%c0_268, %c0_269, %c0_270] : memref<2x1x32xf32, #tpu.memory_space<vmem>>, vector<1x1x32xf32>
    %595 = vector.shape_cast %594 : vector<1x1x32xf32> to vector<1x32xf32>
    %596 = arith.addf %575, %591 : vector<8x32xf32>
    %cst_271 = arith.constant dense<0.000000e+00> : vector<8xf32>
    %597 = vector.multi_reduction <add>, %596, %cst_271 [1] : vector<8x32xf32> to vector<8xf32>
    %598 = vector.shape_cast %597 : vector<8xf32> to vector<8x1xf32>
    %cst_272 = arith.constant 3.200000e+01 : f32
    %599 = vector.broadcast %cst_272 : f32 to vector<8x1xf32>
    %600 = arith.divf %598, %599 : vector<8x1xf32>
    %601 = vector.broadcast %600 : vector<8x1xf32> to vector<8x32xf32>
    %602 = arith.subf %596, %601 : vector<8x32xf32>
    %603 = arith.mulf %602, %602 : vector<8x32xf32>
    %cst_273 = arith.constant dense<0.000000e+00> : vector<8xf32>
    %604 = vector.multi_reduction <add>, %603, %cst_273 [1] : vector<8x32xf32> to vector<8xf32>
    %605 = vector.shape_cast %604 : vector<8xf32> to vector<8x1xf32>
    %cst_274 = arith.constant 3.200000e+01 : f32
    %606 = vector.broadcast %cst_274 : f32 to vector<8x1xf32>
    %607 = arith.divf %605, %606 : vector<8x1xf32>
    %cst_275 = arith.constant 9.99999974E-6 : f32
    %608 = vector.broadcast %cst_275 : f32 to vector<8x1xf32>
    %609 = arith.addf %607, %608 : vector<8x1xf32>
    %610 = math.rsqrt %609 : vector<8x1xf32>
    %611 = vector.broadcast %610 : vector<8x1xf32> to vector<8x32xf32>
    %612 = arith.mulf %602, %611 : vector<8x32xf32>
    %613 = vector.broadcast %593 : vector<1x32xf32> to vector<8x32xf32>
    %614 = arith.mulf %612, %613 : vector<8x32xf32>
    %615 = vector.broadcast %595 : vector<1x32xf32> to vector<8x32xf32>
    %616 = arith.addf %614, %615 : vector<8x32xf32>
    %c1_276 = arith.constant 1 : index
    %c0_277 = arith.constant 0 : index
    %c0_278 = arith.constant 0 : index
    %617 = vector.load %arg17[%c1_276, %c0_277, %c0_278] : memref<2x32x96xf32, #tpu.memory_space<vmem>>, vector<1x32x96xf32>
    %618 = vector.shape_cast %617 : vector<1x32x96xf32> to vector<32x96xf32>
    %c1_279 = arith.constant 1 : index
    %c0_280 = arith.constant 0 : index
    %c0_281 = arith.constant 0 : index
    %619 = vector.load %arg18[%c1_279, %c0_280, %c0_281] : memref<2x1x96xf32, #tpu.memory_space<vmem>>, vector<1x1x96xf32>
    %620 = vector.shape_cast %619 : vector<1x1x96xf32> to vector<1x96xf32>
    %c1_282 = arith.constant 1 : index
    %c0_283 = arith.constant 0 : index
    %c0_284 = arith.constant 0 : index
    %621 = vector.load %arg19[%c1_282, %c0_283, %c0_284] : memref<2x32x32xf32, #tpu.memory_space<vmem>>, vector<1x32x32xf32>
    %622 = vector.shape_cast %621 : vector<1x32x32xf32> to vector<32x32xf32>
    %c1_285 = arith.constant 1 : index
    %c0_286 = arith.constant 0 : index
    %c0_287 = arith.constant 0 : index
    %623 = vector.load %arg20[%c1_285, %c0_286, %c0_287] : memref<2x1x32xf32, #tpu.memory_space<vmem>>, vector<1x1x32xf32>
    %624 = vector.shape_cast %623 : vector<1x1x32xf32> to vector<1x32xf32>
    %cst_288 = arith.constant dense<0.000000e+00> : vector<8x96xf32>
    %625 = tpu.matmul %616, %618, %cst_288 {dimension_numbers = #tpu.dot_dimension_numbers<[1], [0], [0], [1], [0, 0, 1, 1], [], []>} : vector<8x32xf32>, vector<32x96xf32>, vector<8x96xf32> -> vector<8x96xf32>
    %626 = vector.broadcast %620 : vector<1x96xf32> to vector<8x96xf32>
    %627 = arith.addf %625, %626 : vector<8x96xf32>
    %628 = vector.extract_strided_slice %627 {offsets = [0, 0], sizes = [8, 32], strides = [1, 1]} : vector<8x96xf32> to vector<8x32xf32>
    %629 = vector.extract_strided_slice %627 {offsets = [0, 32], sizes = [8, 32], strides = [1, 1]} : vector<8x96xf32> to vector<8x32xf32>
    %630 = vector.extract_strided_slice %627 {offsets = [0, 64], sizes = [8, 32], strides = [1, 1]} : vector<8x96xf32> to vector<8x32xf32>
    %631 = vector.extract_strided_slice %628 {offsets = [0, 0], sizes = [8, 8], strides = [1, 1]} : vector<8x32xf32> to vector<8x8xf32>
    %632 = vector.extract_strided_slice %629 {offsets = [0, 0], sizes = [8, 8], strides = [1, 1]} : vector<8x32xf32> to vector<8x8xf32>
    %633 = vector.extract_strided_slice %630 {offsets = [0, 0], sizes = [8, 8], strides = [1, 1]} : vector<8x32xf32> to vector<8x8xf32>
    %cst_289 = arith.constant dense<0.000000e+00> : vector<8x8xf32>
    %634 = tpu.matmul %631, %632, %cst_289 {dimension_numbers = #tpu.dot_dimension_numbers<[1], [1], [0], [0], [0, 0, 1, 0], [], []>} : vector<8x8xf32>, vector<8x8xf32>, vector<8x8xf32> -> vector<8x8xf32>
    %cst_290 = arith.constant 0.353553385 : f32
    %635 = vector.broadcast %cst_290 : f32 to vector<8x8xf32>
    %636 = arith.mulf %634, %635 : vector<8x8xf32>
    %637 = vector.broadcast %7 : vector<1x8xf32> to vector<8x8xf32>
    %638 = arith.addf %636, %637 : vector<8x8xf32>
    %cst_291 = arith.constant dense<0xFF800000> : vector<8xf32>
    %639 = vector.multi_reduction <maximumf>, %638, %cst_291 [1] : vector<8x8xf32> to vector<8xf32>
    %640 = vector.shape_cast %639 : vector<8xf32> to vector<8x1xf32>
    %641 = vector.broadcast %640 : vector<8x1xf32> to vector<8x8xf32>
    %642 = arith.subf %638, %641 : vector<8x8xf32>
    %643 = math.exp %642 : vector<8x8xf32>
    %cst_292 = arith.constant dense<0.000000e+00> : vector<8xf32>
    %644 = vector.multi_reduction <add>, %643, %cst_292 [1] : vector<8x8xf32> to vector<8xf32>
    %645 = vector.shape_cast %644 : vector<8xf32> to vector<8x1xf32>
    %646 = tpu.reciprocal %645 {approx = true} : vector<8x1xf32> -> vector<8x1xf32>
    %647 = vector.broadcast %646 : vector<8x1xf32> to vector<8x8xf32>
    %648 = arith.mulf %643, %647 : vector<8x8xf32>
    %cst_293 = arith.constant dense<0.000000e+00> : vector<8x8xf32>
    %649 = tpu.matmul %648, %633, %cst_293 {dimension_numbers = #tpu.dot_dimension_numbers<[1], [0], [0], [1], [0, 0, 1, 1], [], []>} : vector<8x8xf32>, vector<8x8xf32>, vector<8x8xf32> -> vector<8x8xf32>
    %650 = vector.extract_strided_slice %628 {offsets = [0, 8], sizes = [8, 8], strides = [1, 1]} : vector<8x32xf32> to vector<8x8xf32>
    %651 = vector.extract_strided_slice %629 {offsets = [0, 8], sizes = [8, 8], strides = [1, 1]} : vector<8x32xf32> to vector<8x8xf32>
    %652 = vector.extract_strided_slice %630 {offsets = [0, 8], sizes = [8, 8], strides = [1, 1]} : vector<8x32xf32> to vector<8x8xf32>
    %cst_294 = arith.constant dense<0.000000e+00> : vector<8x8xf32>
    %653 = tpu.matmul %650, %651, %cst_294 {dimension_numbers = #tpu.dot_dimension_numbers<[1], [1], [0], [0], [0, 0, 1, 0], [], []>} : vector<8x8xf32>, vector<8x8xf32>, vector<8x8xf32> -> vector<8x8xf32>
    %cst_295 = arith.constant 0.353553385 : f32
    %654 = vector.broadcast %cst_295 : f32 to vector<8x8xf32>
    %655 = arith.mulf %653, %654 : vector<8x8xf32>
    %656 = vector.broadcast %7 : vector<1x8xf32> to vector<8x8xf32>
    %657 = arith.addf %655, %656 : vector<8x8xf32>
    %cst_296 = arith.constant dense<0xFF800000> : vector<8xf32>
    %658 = vector.multi_reduction <maximumf>, %657, %cst_296 [1] : vector<8x8xf32> to vector<8xf32>
    %659 = vector.shape_cast %658 : vector<8xf32> to vector<8x1xf32>
    %660 = vector.broadcast %659 : vector<8x1xf32> to vector<8x8xf32>
    %661 = arith.subf %657, %660 : vector<8x8xf32>
    %662 = math.exp %661 : vector<8x8xf32>
    %cst_297 = arith.constant dense<0.000000e+00> : vector<8xf32>
    %663 = vector.multi_reduction <add>, %662, %cst_297 [1] : vector<8x8xf32> to vector<8xf32>
    %664 = vector.shape_cast %663 : vector<8xf32> to vector<8x1xf32>
    %665 = tpu.reciprocal %664 {approx = true} : vector<8x1xf32> -> vector<8x1xf32>
    %666 = vector.broadcast %665 : vector<8x1xf32> to vector<8x8xf32>
    %667 = arith.mulf %662, %666 : vector<8x8xf32>
    %cst_298 = arith.constant dense<0.000000e+00> : vector<8x8xf32>
    %668 = tpu.matmul %667, %652, %cst_298 {dimension_numbers = #tpu.dot_dimension_numbers<[1], [0], [0], [1], [0, 0, 1, 1], [], []>} : vector<8x8xf32>, vector<8x8xf32>, vector<8x8xf32> -> vector<8x8xf32>
    %669 = vector.extract_strided_slice %628 {offsets = [0, 16], sizes = [8, 8], strides = [1, 1]} : vector<8x32xf32> to vector<8x8xf32>
    %670 = vector.extract_strided_slice %629 {offsets = [0, 16], sizes = [8, 8], strides = [1, 1]} : vector<8x32xf32> to vector<8x8xf32>
    %671 = vector.extract_strided_slice %630 {offsets = [0, 16], sizes = [8, 8], strides = [1, 1]} : vector<8x32xf32> to vector<8x8xf32>
    %cst_299 = arith.constant dense<0.000000e+00> : vector<8x8xf32>
    %672 = tpu.matmul %669, %670, %cst_299 {dimension_numbers = #tpu.dot_dimension_numbers<[1], [1], [0], [0], [0, 0, 1, 0], [], []>} : vector<8x8xf32>, vector<8x8xf32>, vector<8x8xf32> -> vector<8x8xf32>
    %cst_300 = arith.constant 0.353553385 : f32
    %673 = vector.broadcast %cst_300 : f32 to vector<8x8xf32>
    %674 = arith.mulf %672, %673 : vector<8x8xf32>
    %675 = vector.broadcast %7 : vector<1x8xf32> to vector<8x8xf32>
    %676 = arith.addf %674, %675 : vector<8x8xf32>
    %cst_301 = arith.constant dense<0xFF800000> : vector<8xf32>
    %677 = vector.multi_reduction <maximumf>, %676, %cst_301 [1] : vector<8x8xf32> to vector<8xf32>
    %678 = vector.shape_cast %677 : vector<8xf32> to vector<8x1xf32>
    %679 = vector.broadcast %678 : vector<8x1xf32> to vector<8x8xf32>
    %680 = arith.subf %676, %679 : vector<8x8xf32>
    %681 = math.exp %680 : vector<8x8xf32>
    %cst_302 = arith.constant dense<0.000000e+00> : vector<8xf32>
    %682 = vector.multi_reduction <add>, %681, %cst_302 [1] : vector<8x8xf32> to vector<8xf32>
    %683 = vector.shape_cast %682 : vector<8xf32> to vector<8x1xf32>
    %684 = tpu.reciprocal %683 {approx = true} : vector<8x1xf32> -> vector<8x1xf32>
    %685 = vector.broadcast %684 : vector<8x1xf32> to vector<8x8xf32>
    %686 = arith.mulf %681, %685 : vector<8x8xf32>
    %cst_303 = arith.constant dense<0.000000e+00> : vector<8x8xf32>
    %687 = tpu.matmul %686, %671, %cst_303 {dimension_numbers = #tpu.dot_dimension_numbers<[1], [0], [0], [1], [0, 0, 1, 1], [], []>} : vector<8x8xf32>, vector<8x8xf32>, vector<8x8xf32> -> vector<8x8xf32>
    %688 = vector.extract_strided_slice %628 {offsets = [0, 24], sizes = [8, 8], strides = [1, 1]} : vector<8x32xf32> to vector<8x8xf32>
    %689 = vector.extract_strided_slice %629 {offsets = [0, 24], sizes = [8, 8], strides = [1, 1]} : vector<8x32xf32> to vector<8x8xf32>
    %690 = vector.extract_strided_slice %630 {offsets = [0, 24], sizes = [8, 8], strides = [1, 1]} : vector<8x32xf32> to vector<8x8xf32>
    %cst_304 = arith.constant dense<0.000000e+00> : vector<8x8xf32>
    %691 = tpu.matmul %688, %689, %cst_304 {dimension_numbers = #tpu.dot_dimension_numbers<[1], [1], [0], [0], [0, 0, 1, 0], [], []>} : vector<8x8xf32>, vector<8x8xf32>, vector<8x8xf32> -> vector<8x8xf32>
    %cst_305 = arith.constant 0.353553385 : f32
    %692 = vector.broadcast %cst_305 : f32 to vector<8x8xf32>
    %693 = arith.mulf %691, %692 : vector<8x8xf32>
    %694 = vector.broadcast %7 : vector<1x8xf32> to vector<8x8xf32>
    %695 = arith.addf %693, %694 : vector<8x8xf32>
    %cst_306 = arith.constant dense<0xFF800000> : vector<8xf32>
    %696 = vector.multi_reduction <maximumf>, %695, %cst_306 [1] : vector<8x8xf32> to vector<8xf32>
    %697 = vector.shape_cast %696 : vector<8xf32> to vector<8x1xf32>
    %698 = vector.broadcast %697 : vector<8x1xf32> to vector<8x8xf32>
    %699 = arith.subf %695, %698 : vector<8x8xf32>
    %700 = math.exp %699 : vector<8x8xf32>
    %cst_307 = arith.constant dense<0.000000e+00> : vector<8xf32>
    %701 = vector.multi_reduction <add>, %700, %cst_307 [1] : vector<8x8xf32> to vector<8xf32>
    %702 = vector.shape_cast %701 : vector<8xf32> to vector<8x1xf32>
    %703 = tpu.reciprocal %702 {approx = true} : vector<8x1xf32> -> vector<8x1xf32>
    %704 = vector.broadcast %703 : vector<8x1xf32> to vector<8x8xf32>
    %705 = arith.mulf %700, %704 : vector<8x8xf32>
    %cst_308 = arith.constant dense<0.000000e+00> : vector<8x8xf32>
    %706 = tpu.matmul %705, %690, %cst_308 {dimension_numbers = #tpu.dot_dimension_numbers<[1], [0], [0], [1], [0, 0, 1, 1], [], []>} : vector<8x8xf32>, vector<8x8xf32>, vector<8x8xf32> -> vector<8x8xf32>
    %707 = tpu.concatenate %649, %668, %687, %706 in 1 : vector<8x8xf32>, vector<8x8xf32>, vector<8x8xf32>, vector<8x8xf32> -> vector<8x32xf32>
    %cst_309 = arith.constant dense<0.000000e+00> : vector<8x32xf32>
    %708 = tpu.matmul %707, %622, %cst_309 {dimension_numbers = #tpu.dot_dimension_numbers<[1], [0], [0], [1], [0, 0, 1, 1], [], []>} : vector<8x32xf32>, vector<32x32xf32>, vector<8x32xf32> -> vector<8x32xf32>
    %709 = vector.broadcast %624 : vector<1x32xf32> to vector<8x32xf32>
    %710 = arith.addf %708, %709 : vector<8x32xf32>
    %c1_310 = arith.constant 1 : index
    %c0_311 = arith.constant 0 : index
    %c0_312 = arith.constant 0 : index
    %711 = vector.load %arg21[%c1_310, %c0_311, %c0_312] : memref<2x1x32xf32, #tpu.memory_space<vmem>>, vector<1x1x32xf32>
    %712 = vector.shape_cast %711 : vector<1x1x32xf32> to vector<1x32xf32>
    %c1_313 = arith.constant 1 : index
    %c0_314 = arith.constant 0 : index
    %c0_315 = arith.constant 0 : index
    %713 = vector.load %arg22[%c1_313, %c0_314, %c0_315] : memref<2x1x32xf32, #tpu.memory_space<vmem>>, vector<1x1x32xf32>
    %714 = vector.shape_cast %713 : vector<1x1x32xf32> to vector<1x32xf32>
    %715 = arith.addf %616, %710 : vector<8x32xf32>
    %cst_316 = arith.constant dense<0.000000e+00> : vector<8xf32>
    %716 = vector.multi_reduction <add>, %715, %cst_316 [1] : vector<8x32xf32> to vector<8xf32>
    %717 = vector.shape_cast %716 : vector<8xf32> to vector<8x1xf32>
    %cst_317 = arith.constant 3.200000e+01 : f32
    %718 = vector.broadcast %cst_317 : f32 to vector<8x1xf32>
    %719 = arith.divf %717, %718 : vector<8x1xf32>
    %720 = vector.broadcast %719 : vector<8x1xf32> to vector<8x32xf32>
    %721 = arith.subf %715, %720 : vector<8x32xf32>
    %722 = arith.mulf %721, %721 : vector<8x32xf32>
    %cst_318 = arith.constant dense<0.000000e+00> : vector<8xf32>
    %723 = vector.multi_reduction <add>, %722, %cst_318 [1] : vector<8x32xf32> to vector<8xf32>
    %724 = vector.shape_cast %723 : vector<8xf32> to vector<8x1xf32>
    %cst_319 = arith.constant 3.200000e+01 : f32
    %725 = vector.broadcast %cst_319 : f32 to vector<8x1xf32>
    %726 = arith.divf %724, %725 : vector<8x1xf32>
    %cst_320 = arith.constant 9.99999974E-6 : f32
    %727 = vector.broadcast %cst_320 : f32 to vector<8x1xf32>
    %728 = arith.addf %726, %727 : vector<8x1xf32>
    %729 = math.rsqrt %728 : vector<8x1xf32>
    %730 = vector.broadcast %729 : vector<8x1xf32> to vector<8x32xf32>
    %731 = arith.mulf %721, %730 : vector<8x32xf32>
    %732 = vector.broadcast %712 : vector<1x32xf32> to vector<8x32xf32>
    %733 = arith.mulf %731, %732 : vector<8x32xf32>
    %734 = vector.broadcast %714 : vector<1x32xf32> to vector<8x32xf32>
    %735 = arith.addf %733, %734 : vector<8x32xf32>
    %c1_321 = arith.constant 1 : index
    %c0_322 = arith.constant 0 : index
    %c0_323 = arith.constant 0 : index
    %736 = vector.load %arg23[%c1_321, %c0_322, %c0_323] : memref<2x32x32xf32, #tpu.memory_space<vmem>>, vector<1x32x32xf32>
    %737 = vector.shape_cast %736 : vector<1x32x32xf32> to vector<32x32xf32>
    %c1_324 = arith.constant 1 : index
    %c0_325 = arith.constant 0 : index
    %c0_326 = arith.constant 0 : index
    %738 = vector.load %arg24[%c1_324, %c0_325, %c0_326] : memref<2x1x32xf32, #tpu.memory_space<vmem>>, vector<1x1x32xf32>
    %739 = vector.shape_cast %738 : vector<1x1x32xf32> to vector<1x32xf32>
    %c1_327 = arith.constant 1 : index
    %c0_328 = arith.constant 0 : index
    %c0_329 = arith.constant 0 : index
    %740 = vector.load %arg25[%c1_327, %c0_328, %c0_329] : memref<2x32x64xf32, #tpu.memory_space<vmem>>, vector<1x32x64xf32>
    %741 = vector.shape_cast %740 : vector<1x32x64xf32> to vector<32x64xf32>
    %c1_330 = arith.constant 1 : index
    %c0_331 = arith.constant 0 : index
    %c0_332 = arith.constant 0 : index
    %742 = vector.load %arg26[%c1_330, %c0_331, %c0_332] : memref<2x1x64xf32, #tpu.memory_space<vmem>>, vector<1x1x64xf32>
    %743 = vector.shape_cast %742 : vector<1x1x64xf32> to vector<1x64xf32>
    %c1_333 = arith.constant 1 : index
    %c0_334 = arith.constant 0 : index
    %c0_335 = arith.constant 0 : index
    %744 = vector.load %arg27[%c1_333, %c0_334, %c0_335] : memref<2x32x32xf32, #tpu.memory_space<vmem>>, vector<1x32x32xf32>
    %745 = vector.shape_cast %744 : vector<1x32x32xf32> to vector<32x32xf32>
    %c1_336 = arith.constant 1 : index
    %c0_337 = arith.constant 0 : index
    %c0_338 = arith.constant 0 : index
    %746 = vector.load %arg28[%c1_336, %c0_337, %c0_338] : memref<2x1x32xf32, #tpu.memory_space<vmem>>, vector<1x1x32xf32>
    %747 = vector.shape_cast %746 : vector<1x1x32xf32> to vector<1x32xf32>
    %cst_339 = arith.constant dense<0.000000e+00> : vector<8x32xf32>
    %748 = tpu.matmul %735, %737, %cst_339 {dimension_numbers = #tpu.dot_dimension_numbers<[1], [0], [0], [1], [0, 0, 1, 1], [], []>} : vector<8x32xf32>, vector<32x32xf32>, vector<8x32xf32> -> vector<8x32xf32>
    %749 = vector.broadcast %739 : vector<1x32xf32> to vector<8x32xf32>
    %750 = arith.addf %748, %749 : vector<8x32xf32>
    %cst_340 = arith.constant dense<0.000000e+00> : vector<8x64xf32>
    %751 = tpu.matmul %329, %741, %cst_340 {dimension_numbers = #tpu.dot_dimension_numbers<[1], [0], [0], [1], [0, 0, 1, 1], [], []>} : vector<8x32xf32>, vector<32x64xf32>, vector<8x64xf32> -> vector<8x64xf32>
    %752 = vector.broadcast %743 : vector<1x64xf32> to vector<8x64xf32>
    %753 = arith.addf %751, %752 : vector<8x64xf32>
    %754 = vector.extract_strided_slice %753 {offsets = [0, 0], sizes = [8, 32], strides = [1, 1]} : vector<8x64xf32> to vector<8x32xf32>
    %755 = vector.extract_strided_slice %753 {offsets = [0, 32], sizes = [8, 32], strides = [1, 1]} : vector<8x64xf32> to vector<8x32xf32>
    %756 = vector.extract_strided_slice %750 {offsets = [0, 0], sizes = [8, 8], strides = [1, 1]} : vector<8x32xf32> to vector<8x8xf32>
    %757 = vector.extract_strided_slice %754 {offsets = [0, 0], sizes = [8, 8], strides = [1, 1]} : vector<8x32xf32> to vector<8x8xf32>
    %758 = vector.extract_strided_slice %755 {offsets = [0, 0], sizes = [8, 8], strides = [1, 1]} : vector<8x32xf32> to vector<8x8xf32>
    %cst_341 = arith.constant dense<0.000000e+00> : vector<8x8xf32>
    %759 = tpu.matmul %756, %757, %cst_341 {dimension_numbers = #tpu.dot_dimension_numbers<[1], [1], [0], [0], [0, 0, 1, 0], [], []>} : vector<8x8xf32>, vector<8x8xf32>, vector<8x8xf32> -> vector<8x8xf32>
    %cst_342 = arith.constant 0.353553385 : f32
    %760 = vector.broadcast %cst_342 : f32 to vector<8x8xf32>
    %761 = arith.mulf %759, %760 : vector<8x8xf32>
    %762 = vector.broadcast %3 : vector<1x8xf32> to vector<8x8xf32>
    %763 = arith.addf %761, %762 : vector<8x8xf32>
    %cst_343 = arith.constant dense<0xFF800000> : vector<8xf32>
    %764 = vector.multi_reduction <maximumf>, %763, %cst_343 [1] : vector<8x8xf32> to vector<8xf32>
    %765 = vector.shape_cast %764 : vector<8xf32> to vector<8x1xf32>
    %766 = vector.broadcast %765 : vector<8x1xf32> to vector<8x8xf32>
    %767 = arith.subf %763, %766 : vector<8x8xf32>
    %768 = math.exp %767 : vector<8x8xf32>
    %cst_344 = arith.constant dense<0.000000e+00> : vector<8xf32>
    %769 = vector.multi_reduction <add>, %768, %cst_344 [1] : vector<8x8xf32> to vector<8xf32>
    %770 = vector.shape_cast %769 : vector<8xf32> to vector<8x1xf32>
    %771 = tpu.reciprocal %770 {approx = true} : vector<8x1xf32> -> vector<8x1xf32>
    %772 = vector.broadcast %771 : vector<8x1xf32> to vector<8x8xf32>
    %773 = arith.mulf %768, %772 : vector<8x8xf32>
    %cst_345 = arith.constant dense<0.000000e+00> : vector<8x8xf32>
    %774 = tpu.matmul %773, %758, %cst_345 {dimension_numbers = #tpu.dot_dimension_numbers<[1], [0], [0], [1], [0, 0, 1, 1], [], []>} : vector<8x8xf32>, vector<8x8xf32>, vector<8x8xf32> -> vector<8x8xf32>
    %775 = vector.extract_strided_slice %750 {offsets = [0, 8], sizes = [8, 8], strides = [1, 1]} : vector<8x32xf32> to vector<8x8xf32>
    %776 = vector.extract_strided_slice %754 {offsets = [0, 8], sizes = [8, 8], strides = [1, 1]} : vector<8x32xf32> to vector<8x8xf32>
    %777 = vector.extract_strided_slice %755 {offsets = [0, 8], sizes = [8, 8], strides = [1, 1]} : vector<8x32xf32> to vector<8x8xf32>
    %cst_346 = arith.constant dense<0.000000e+00> : vector<8x8xf32>
    %778 = tpu.matmul %775, %776, %cst_346 {dimension_numbers = #tpu.dot_dimension_numbers<[1], [1], [0], [0], [0, 0, 1, 0], [], []>} : vector<8x8xf32>, vector<8x8xf32>, vector<8x8xf32> -> vector<8x8xf32>
    %cst_347 = arith.constant 0.353553385 : f32
    %779 = vector.broadcast %cst_347 : f32 to vector<8x8xf32>
    %780 = arith.mulf %778, %779 : vector<8x8xf32>
    %781 = vector.broadcast %3 : vector<1x8xf32> to vector<8x8xf32>
    %782 = arith.addf %780, %781 : vector<8x8xf32>
    %cst_348 = arith.constant dense<0xFF800000> : vector<8xf32>
    %783 = vector.multi_reduction <maximumf>, %782, %cst_348 [1] : vector<8x8xf32> to vector<8xf32>
    %784 = vector.shape_cast %783 : vector<8xf32> to vector<8x1xf32>
    %785 = vector.broadcast %784 : vector<8x1xf32> to vector<8x8xf32>
    %786 = arith.subf %782, %785 : vector<8x8xf32>
    %787 = math.exp %786 : vector<8x8xf32>
    %cst_349 = arith.constant dense<0.000000e+00> : vector<8xf32>
    %788 = vector.multi_reduction <add>, %787, %cst_349 [1] : vector<8x8xf32> to vector<8xf32>
    %789 = vector.shape_cast %788 : vector<8xf32> to vector<8x1xf32>
    %790 = tpu.reciprocal %789 {approx = true} : vector<8x1xf32> -> vector<8x1xf32>
    %791 = vector.broadcast %790 : vector<8x1xf32> to vector<8x8xf32>
    %792 = arith.mulf %787, %791 : vector<8x8xf32>
    %cst_350 = arith.constant dense<0.000000e+00> : vector<8x8xf32>
    %793 = tpu.matmul %792, %777, %cst_350 {dimension_numbers = #tpu.dot_dimension_numbers<[1], [0], [0], [1], [0, 0, 1, 1], [], []>} : vector<8x8xf32>, vector<8x8xf32>, vector<8x8xf32> -> vector<8x8xf32>
    %794 = vector.extract_strided_slice %750 {offsets = [0, 16], sizes = [8, 8], strides = [1, 1]} : vector<8x32xf32> to vector<8x8xf32>
    %795 = vector.extract_strided_slice %754 {offsets = [0, 16], sizes = [8, 8], strides = [1, 1]} : vector<8x32xf32> to vector<8x8xf32>
    %796 = vector.extract_strided_slice %755 {offsets = [0, 16], sizes = [8, 8], strides = [1, 1]} : vector<8x32xf32> to vector<8x8xf32>
    %cst_351 = arith.constant dense<0.000000e+00> : vector<8x8xf32>
    %797 = tpu.matmul %794, %795, %cst_351 {dimension_numbers = #tpu.dot_dimension_numbers<[1], [1], [0], [0], [0, 0, 1, 0], [], []>} : vector<8x8xf32>, vector<8x8xf32>, vector<8x8xf32> -> vector<8x8xf32>
    %cst_352 = arith.constant 0.353553385 : f32
    %798 = vector.broadcast %cst_352 : f32 to vector<8x8xf32>
    %799 = arith.mulf %797, %798 : vector<8x8xf32>
    %800 = vector.broadcast %3 : vector<1x8xf32> to vector<8x8xf32>
    %801 = arith.addf %799, %800 : vector<8x8xf32>
    %cst_353 = arith.constant dense<0xFF800000> : vector<8xf32>
    %802 = vector.multi_reduction <maximumf>, %801, %cst_353 [1] : vector<8x8xf32> to vector<8xf32>
    %803 = vector.shape_cast %802 : vector<8xf32> to vector<8x1xf32>
    %804 = vector.broadcast %803 : vector<8x1xf32> to vector<8x8xf32>
    %805 = arith.subf %801, %804 : vector<8x8xf32>
    %806 = math.exp %805 : vector<8x8xf32>
    %cst_354 = arith.constant dense<0.000000e+00> : vector<8xf32>
    %807 = vector.multi_reduction <add>, %806, %cst_354 [1] : vector<8x8xf32> to vector<8xf32>
    %808 = vector.shape_cast %807 : vector<8xf32> to vector<8x1xf32>
    %809 = tpu.reciprocal %808 {approx = true} : vector<8x1xf32> -> vector<8x1xf32>
    %810 = vector.broadcast %809 : vector<8x1xf32> to vector<8x8xf32>
    %811 = arith.mulf %806, %810 : vector<8x8xf32>
    %cst_355 = arith.constant dense<0.000000e+00> : vector<8x8xf32>
    %812 = tpu.matmul %811, %796, %cst_355 {dimension_numbers = #tpu.dot_dimension_numbers<[1], [0], [0], [1], [0, 0, 1, 1], [], []>} : vector<8x8xf32>, vector<8x8xf32>, vector<8x8xf32> -> vector<8x8xf32>
    %813 = vector.extract_strided_slice %750 {offsets = [0, 24], sizes = [8, 8], strides = [1, 1]} : vector<8x32xf32> to vector<8x8xf32>
    %814 = vector.extract_strided_slice %754 {offsets = [0, 24], sizes = [8, 8], strides = [1, 1]} : vector<8x32xf32> to vector<8x8xf32>
    %815 = vector.extract_strided_slice %755 {offsets = [0, 24], sizes = [8, 8], strides = [1, 1]} : vector<8x32xf32> to vector<8x8xf32>
    %cst_356 = arith.constant dense<0.000000e+00> : vector<8x8xf32>
    %816 = tpu.matmul %813, %814, %cst_356 {dimension_numbers = #tpu.dot_dimension_numbers<[1], [1], [0], [0], [0, 0, 1, 0], [], []>} : vector<8x8xf32>, vector<8x8xf32>, vector<8x8xf32> -> vector<8x8xf32>
    %cst_357 = arith.constant 0.353553385 : f32
    %817 = vector.broadcast %cst_357 : f32 to vector<8x8xf32>
    %818 = arith.mulf %816, %817 : vector<8x8xf32>
    %819 = vector.broadcast %3 : vector<1x8xf32> to vector<8x8xf32>
    %820 = arith.addf %818, %819 : vector<8x8xf32>
    %cst_358 = arith.constant dense<0xFF800000> : vector<8xf32>
    %821 = vector.multi_reduction <maximumf>, %820, %cst_358 [1] : vector<8x8xf32> to vector<8xf32>
    %822 = vector.shape_cast %821 : vector<8xf32> to vector<8x1xf32>
    %823 = vector.broadcast %822 : vector<8x1xf32> to vector<8x8xf32>
    %824 = arith.subf %820, %823 : vector<8x8xf32>
    %825 = math.exp %824 : vector<8x8xf32>
    %cst_359 = arith.constant dense<0.000000e+00> : vector<8xf32>
    %826 = vector.multi_reduction <add>, %825, %cst_359 [1] : vector<8x8xf32> to vector<8xf32>
    %827 = vector.shape_cast %826 : vector<8xf32> to vector<8x1xf32>
    %828 = tpu.reciprocal %827 {approx = true} : vector<8x1xf32> -> vector<8x1xf32>
    %829 = vector.broadcast %828 : vector<8x1xf32> to vector<8x8xf32>
    %830 = arith.mulf %825, %829 : vector<8x8xf32>
    %cst_360 = arith.constant dense<0.000000e+00> : vector<8x8xf32>
    %831 = tpu.matmul %830, %815, %cst_360 {dimension_numbers = #tpu.dot_dimension_numbers<[1], [0], [0], [1], [0, 0, 1, 1], [], []>} : vector<8x8xf32>, vector<8x8xf32>, vector<8x8xf32> -> vector<8x8xf32>
    %832 = tpu.concatenate %774, %793, %812, %831 in 1 : vector<8x8xf32>, vector<8x8xf32>, vector<8x8xf32>, vector<8x8xf32> -> vector<8x32xf32>
    %cst_361 = arith.constant dense<0.000000e+00> : vector<8x32xf32>
    %833 = tpu.matmul %832, %745, %cst_361 {dimension_numbers = #tpu.dot_dimension_numbers<[1], [0], [0], [1], [0, 0, 1, 1], [], []>} : vector<8x32xf32>, vector<32x32xf32>, vector<8x32xf32> -> vector<8x32xf32>
    %834 = vector.broadcast %747 : vector<1x32xf32> to vector<8x32xf32>
    %835 = arith.addf %833, %834 : vector<8x32xf32>
    %c1_362 = arith.constant 1 : index
    %c0_363 = arith.constant 0 : index
    %c0_364 = arith.constant 0 : index
    %836 = vector.load %arg29[%c1_362, %c0_363, %c0_364] : memref<2x1x32xf32, #tpu.memory_space<vmem>>, vector<1x1x32xf32>
    %837 = vector.shape_cast %836 : vector<1x1x32xf32> to vector<1x32xf32>
    %c1_365 = arith.constant 1 : index
    %c0_366 = arith.constant 0 : index
    %c0_367 = arith.constant 0 : index
    %838 = vector.load %arg30[%c1_365, %c0_366, %c0_367] : memref<2x1x32xf32, #tpu.memory_space<vmem>>, vector<1x1x32xf32>
    %839 = vector.shape_cast %838 : vector<1x1x32xf32> to vector<1x32xf32>
    %840 = arith.addf %735, %835 : vector<8x32xf32>
    %cst_368 = arith.constant dense<0.000000e+00> : vector<8xf32>
    %841 = vector.multi_reduction <add>, %840, %cst_368 [1] : vector<8x32xf32> to vector<8xf32>
    %842 = vector.shape_cast %841 : vector<8xf32> to vector<8x1xf32>
    %cst_369 = arith.constant 3.200000e+01 : f32
    %843 = vector.broadcast %cst_369 : f32 to vector<8x1xf32>
    %844 = arith.divf %842, %843 : vector<8x1xf32>
    %845 = vector.broadcast %844 : vector<8x1xf32> to vector<8x32xf32>
    %846 = arith.subf %840, %845 : vector<8x32xf32>
    %847 = arith.mulf %846, %846 : vector<8x32xf32>
    %cst_370 = arith.constant dense<0.000000e+00> : vector<8xf32>
    %848 = vector.multi_reduction <add>, %847, %cst_370 [1] : vector<8x32xf32> to vector<8xf32>
    %849 = vector.shape_cast %848 : vector<8xf32> to vector<8x1xf32>
    %cst_371 = arith.constant 3.200000e+01 : f32
    %850 = vector.broadcast %cst_371 : f32 to vector<8x1xf32>
    %851 = arith.divf %849, %850 : vector<8x1xf32>
    %cst_372 = arith.constant 9.99999974E-6 : f32
    %852 = vector.broadcast %cst_372 : f32 to vector<8x1xf32>
    %853 = arith.addf %851, %852 : vector<8x1xf32>
    %854 = math.rsqrt %853 : vector<8x1xf32>
    %855 = vector.broadcast %854 : vector<8x1xf32> to vector<8x32xf32>
    %856 = arith.mulf %846, %855 : vector<8x32xf32>
    %857 = vector.broadcast %837 : vector<1x32xf32> to vector<8x32xf32>
    %858 = arith.mulf %856, %857 : vector<8x32xf32>
    %859 = vector.broadcast %839 : vector<1x32xf32> to vector<8x32xf32>
    %860 = arith.addf %858, %859 : vector<8x32xf32>
    %c1_373 = arith.constant 1 : index
    %c0_374 = arith.constant 0 : index
    %c0_375 = arith.constant 0 : index
    %861 = vector.load %arg31[%c1_373, %c0_374, %c0_375] : memref<2x32x64xf32, #tpu.memory_space<vmem>>, vector<1x32x64xf32>
    %862 = vector.shape_cast %861 : vector<1x32x64xf32> to vector<32x64xf32>
    %c1_376 = arith.constant 1 : index
    %c0_377 = arith.constant 0 : index
    %c0_378 = arith.constant 0 : index
    %863 = vector.load %arg32[%c1_376, %c0_377, %c0_378] : memref<2x1x64xf32, #tpu.memory_space<vmem>>, vector<1x1x64xf32>
    %864 = vector.shape_cast %863 : vector<1x1x64xf32> to vector<1x64xf32>
    %c1_379 = arith.constant 1 : index
    %c0_380 = arith.constant 0 : index
    %c0_381 = arith.constant 0 : index
    %865 = vector.load %arg33[%c1_379, %c0_380, %c0_381] : memref<2x64x32xf32, #tpu.memory_space<vmem>>, vector<1x64x32xf32>
    %866 = vector.shape_cast %865 : vector<1x64x32xf32> to vector<64x32xf32>
    %c1_382 = arith.constant 1 : index
    %c0_383 = arith.constant 0 : index
    %c0_384 = arith.constant 0 : index
    %867 = vector.load %arg34[%c1_382, %c0_383, %c0_384] : memref<2x1x32xf32, #tpu.memory_space<vmem>>, vector<1x1x32xf32>
    %868 = vector.shape_cast %867 : vector<1x1x32xf32> to vector<1x32xf32>
    %cst_385 = arith.constant dense<0.000000e+00> : vector<8x64xf32>
    %869 = tpu.matmul %860, %862, %cst_385 {dimension_numbers = #tpu.dot_dimension_numbers<[1], [0], [0], [1], [0, 0, 1, 1], [], []>} : vector<8x32xf32>, vector<32x64xf32>, vector<8x64xf32> -> vector<8x64xf32>
    %870 = vector.broadcast %864 : vector<1x64xf32> to vector<8x64xf32>
    %871 = arith.addf %869, %870 : vector<8x64xf32>
    %cst_386 = arith.constant 0.000000e+00 : f32
    %872 = vector.broadcast %cst_386 : f32 to vector<8x64xf32>
    %873 = arith.maximumf %871, %872 : vector<8x64xf32>
    %cst_387 = arith.constant dense<0.000000e+00> : vector<8x32xf32>
    %874 = tpu.matmul %873, %866, %cst_387 {dimension_numbers = #tpu.dot_dimension_numbers<[1], [0], [0], [1], [0, 0, 1, 1], [], []>} : vector<8x64xf32>, vector<64x32xf32>, vector<8x32xf32> -> vector<8x32xf32>
    %875 = vector.broadcast %868 : vector<1x32xf32> to vector<8x32xf32>
    %876 = arith.addf %874, %875 : vector<8x32xf32>
    %c1_388 = arith.constant 1 : index
    %c0_389 = arith.constant 0 : index
    %c0_390 = arith.constant 0 : index
    %877 = vector.load %arg35[%c1_388, %c0_389, %c0_390] : memref<2x1x32xf32, #tpu.memory_space<vmem>>, vector<1x1x32xf32>
    %878 = vector.shape_cast %877 : vector<1x1x32xf32> to vector<1x32xf32>
    %c1_391 = arith.constant 1 : index
    %c0_392 = arith.constant 0 : index
    %c0_393 = arith.constant 0 : index
    %879 = vector.load %arg36[%c1_391, %c0_392, %c0_393] : memref<2x1x32xf32, #tpu.memory_space<vmem>>, vector<1x1x32xf32>
    %880 = vector.shape_cast %879 : vector<1x1x32xf32> to vector<1x32xf32>
    %881 = arith.addf %860, %876 : vector<8x32xf32>
    %cst_394 = arith.constant dense<0.000000e+00> : vector<8xf32>
    %882 = vector.multi_reduction <add>, %881, %cst_394 [1] : vector<8x32xf32> to vector<8xf32>
    %883 = vector.shape_cast %882 : vector<8xf32> to vector<8x1xf32>
    %cst_395 = arith.constant 3.200000e+01 : f32
    %884 = vector.broadcast %cst_395 : f32 to vector<8x1xf32>
    %885 = arith.divf %883, %884 : vector<8x1xf32>
    %886 = vector.broadcast %885 : vector<8x1xf32> to vector<8x32xf32>
    %887 = arith.subf %881, %886 : vector<8x32xf32>
    %888 = arith.mulf %887, %887 : vector<8x32xf32>
    %cst_396 = arith.constant dense<0.000000e+00> : vector<8xf32>
    %889 = vector.multi_reduction <add>, %888, %cst_396 [1] : vector<8x32xf32> to vector<8xf32>
    %890 = vector.shape_cast %889 : vector<8xf32> to vector<8x1xf32>
    %cst_397 = arith.constant 3.200000e+01 : f32
    %891 = vector.broadcast %cst_397 : f32 to vector<8x1xf32>
    %892 = arith.divf %890, %891 : vector<8x1xf32>
    %cst_398 = arith.constant 9.99999974E-6 : f32
    %893 = vector.broadcast %cst_398 : f32 to vector<8x1xf32>
    %894 = arith.addf %892, %893 : vector<8x1xf32>
    %895 = math.rsqrt %894 : vector<8x1xf32>
    %896 = vector.broadcast %895 : vector<8x1xf32> to vector<8x32xf32>
    %897 = arith.mulf %887, %896 : vector<8x32xf32>
    %898 = vector.broadcast %878 : vector<1x32xf32> to vector<8x32xf32>
    %899 = arith.mulf %897, %898 : vector<8x32xf32>
    %900 = vector.broadcast %880 : vector<1x32xf32> to vector<8x32xf32>
    %901 = arith.addf %899, %900 : vector<8x32xf32>
    %c0_399 = arith.constant 0 : index
    %c0_400 = arith.constant 0 : index
    %c0_401 = arith.constant 0 : index
    %902 = vector.load %arg37[%c0_399, %c0_400, %c0_401] : memref<1x8x32xf32, #tpu.memory_space<vmem>>, vector<1x8x32xf32>
    %903 = vector.shape_cast %902 : vector<1x8x32xf32> to vector<8x32xf32>
    %904 = vector.shape_cast %901 : vector<8x32xf32> to vector<1x8x32xf32>
    tpu.vector_store %arg37[%c0_399, %c0_400, %c0_401], %904 {strides = array<i32>} : memref<1x8x32xf32, #tpu.memory_space<vmem>>, vector<1x8x32xf32>,
    return
  }
  func.func @transform_0(%arg0: i32) -> (i32, i32, i32) {
    %c0_i32 = arith.constant 0 : i32
    %c0_i32_0 = arith.constant 0 : i32
    %c0_i32_1 = arith.constant 0 : i32
    return %arg0, %c0_i32, %c0_i32_0 : i32, i32, i32
  }
  func.func @transform_1(%arg0: i32) -> (i32, i32, i32) {
    %c0_i32 = arith.constant 0 : i32
    %c0_i32_0 = arith.constant 0 : i32
    %c0_i32_1 = arith.constant 0 : i32
    return %arg0, %c0_i32, %c0_i32_0 : i32, i32, i32
  }
  func.func @transform_2(%arg0: i32) -> (i32, i32, i32) {
    %c0_i32 = arith.constant 0 : i32
    %c0_i32_0 = arith.constant 0 : i32
    %c0_i32_1 = arith.constant 0 : i32
    return %arg0, %c0_i32, %c0_i32_0 : i32, i32, i32
  }
  func.func @transform_3(%arg0: i32) -> (i32, i32, i32) {
    %c0_i32 = arith.constant 0 : i32
    %c0_i32_0 = arith.constant 0 : i32
    %c0_i32_1 = arith.constant 0 : i32
    return %arg0, %c0_i32, %c0_i32_0 : i32, i32, i32
  }
  func.func @transform_4(%arg0: i32) -> (i32, i32, i32) {
    %c0_i32 = arith.constant 0 : i32
    %c0_i32_0 = arith.constant 0 : i32
    %c0_i32_1 = arith.constant 0 : i32
    %c0_i32_2 = arith.constant 0 : i32
    return %c0_i32, %c0_i32_0, %c0_i32_1 : i32, i32, i32
  }
  func.func @transform_5(%arg0: i32) -> (i32, i32, i32) {
    %c0_i32 = arith.constant 0 : i32
    %c0_i32_0 = arith.constant 0 : i32
    %c0_i32_1 = arith.constant 0 : i32
    %c0_i32_2 = arith.constant 0 : i32
    return %c0_i32, %c0_i32_0, %c0_i32_1 : i32, i32, i32
  }
  func.func @transform_6(%arg0: i32) -> (i32, i32, i32) {
    %c0_i32 = arith.constant 0 : i32
    %c0_i32_0 = arith.constant 0 : i32
    %c0_i32_1 = arith.constant 0 : i32
    %c0_i32_2 = arith.constant 0 : i32
    return %c0_i32, %c0_i32_0, %c0_i32_1 : i32, i32, i32
  }
  func.func @transform_7(%arg0: i32) -> (i32, i32, i32) {
    %c0_i32 = arith.constant 0 : i32
    %c0_i32_0 = arith.constant 0 : i32
    %c0_i32_1 = arith.constant 0 : i32
    %c0_i32_2 = arith.constant 0 : i32
    return %c0_i32, %c0_i32_0, %c0_i32_1 : i32, i32, i32
  }
  func.func @transform_8(%arg0: i32) -> (i32, i32, i32) {
    %c0_i32 = arith.constant 0 : i32
    %c0_i32_0 = arith.constant 0 : i32
    %c0_i32_1 = arith.constant 0 : i32
    %c0_i32_2 = arith.constant 0 : i32
    return %c0_i32, %c0_i32_0, %c0_i32_1 : i32, i32, i32
  }
  func.func @transform_9(%arg0: i32) -> (i32, i32, i32) {
    %c0_i32 = arith.constant 0 : i32
    %c0_i32_0 = arith.constant 0 : i32
    %c0_i32_1 = arith.constant 0 : i32
    %c0_i32_2 = arith.constant 0 : i32
    return %c0_i32, %c0_i32_0, %c0_i32_1 : i32, i32, i32
  }
  func.func @transform_10(%arg0: i32) -> (i32, i32, i32) {
    %c0_i32 = arith.constant 0 : i32
    %c0_i32_0 = arith.constant 0 : i32
    %c0_i32_1 = arith.constant 0 : i32
    %c0_i32_2 = arith.constant 0 : i32
    return %c0_i32, %c0_i32_0, %c0_i32_1 : i32, i32, i32
  }
  func.func @transform_11(%arg0: i32) -> (i32, i32, i32) {
    %c0_i32 = arith.constant 0 : i32
    %c0_i32_0 = arith.constant 0 : i32
    %c0_i32_1 = arith.constant 0 : i32
    %c0_i32_2 = arith.constant 0 : i32
    return %c0_i32, %c0_i32_0, %c0_i32_1 : i32, i32, i32
  }
  func.func @transform_12(%arg0: i32) -> (i32, i32, i32) {
    %c0_i32 = arith.constant 0 : i32
    %c0_i32_0 = arith.constant 0 : i32
    %c0_i32_1 = arith.constant 0 : i32
    %c0_i32_2 = arith.constant 0 : i32
    return %c0_i32, %c0_i32_0, %c0_i32_1 : i32, i32, i32
  }
  func.func @transform_13(%arg0: i32) -> (i32, i32, i32) {
    %c0_i32 = arith.constant 0 : i32
    %c0_i32_0 = arith.constant 0 : i32
    %c0_i32_1 = arith.constant 0 : i32
    %c0_i32_2 = arith.constant 0 : i32
    return %c0_i32, %c0_i32_0, %c0_i32_1 : i32, i32, i32
  }
  func.func @transform_14(%arg0: i32) -> (i32, i32, i32) {
    %c0_i32 = arith.constant 0 : i32
    %c0_i32_0 = arith.constant 0 : i32
    %c0_i32_1 = arith.constant 0 : i32
    %c0_i32_2 = arith.constant 0 : i32
    return %c0_i32, %c0_i32_0, %c0_i32_1 : i32, i32, i32
  }
  func.func @transform_15(%arg0: i32) -> (i32, i32, i32) {
    %c0_i32 = arith.constant 0 : i32
    %c0_i32_0 = arith.constant 0 : i32
    %c0_i32_1 = arith.constant 0 : i32
    %c0_i32_2 = arith.constant 0 : i32
    return %c0_i32, %c0_i32_0, %c0_i32_1 : i32, i32, i32
  }
  func.func @transform_16(%arg0: i32) -> (i32, i32, i32) {
    %c0_i32 = arith.constant 0 : i32
    %c0_i32_0 = arith.constant 0 : i32
    %c0_i32_1 = arith.constant 0 : i32
    %c0_i32_2 = arith.constant 0 : i32
    return %c0_i32, %c0_i32_0, %c0_i32_1 : i32, i32, i32
  }
  func.func @transform_17(%arg0: i32) -> (i32, i32, i32) {
    %c0_i32 = arith.constant 0 : i32
    %c0_i32_0 = arith.constant 0 : i32
    %c0_i32_1 = arith.constant 0 : i32
    %c0_i32_2 = arith.constant 0 : i32
    return %c0_i32, %c0_i32_0, %c0_i32_1 : i32, i32, i32
  }
  func.func @transform_18(%arg0: i32) -> (i32, i32, i32) {
    %c0_i32 = arith.constant 0 : i32
    %c0_i32_0 = arith.constant 0 : i32
    %c0_i32_1 = arith.constant 0 : i32
    %c0_i32_2 = arith.constant 0 : i32
    return %c0_i32, %c0_i32_0, %c0_i32_1 : i32, i32, i32
  }
  func.func @transform_19(%arg0: i32) -> (i32, i32, i32) {
    %c0_i32 = arith.constant 0 : i32
    %c0_i32_0 = arith.constant 0 : i32
    %c0_i32_1 = arith.constant 0 : i32
    %c0_i32_2 = arith.constant 0 : i32
    return %c0_i32, %c0_i32_0, %c0_i32_1 : i32, i32, i32
  }
  func.func @transform_20(%arg0: i32) -> (i32, i32, i32) {
    %c0_i32 = arith.constant 0 : i32
    %c0_i32_0 = arith.constant 0 : i32
    %c0_i32_1 = arith.constant 0 : i32
    %c0_i32_2 = arith.constant 0 : i32
    return %c0_i32, %c0_i32_0, %c0_i32_1 : i32, i32, i32
  }
  func.func @transform_21(%arg0: i32) -> (i32, i32, i32) {
    %c0_i32 = arith.constant 0 : i32
    %c0_i32_0 = arith.constant 0 : i32
    %c0_i32_1 = arith.constant 0 : i32
    %c0_i32_2 = arith.constant 0 : i32
    return %c0_i32, %c0_i32_0, %c0_i32_1 : i32, i32, i32
  }
  func.func @transform_22(%arg0: i32) -> (i32, i32, i32) {
    %c0_i32 = arith.constant 0 : i32
    %c0_i32_0 = arith.constant 0 : i32
    %c0_i32_1 = arith.constant 0 : i32
    %c0_i32_2 = arith.constant 0 : i32
    return %c0_i32, %c0_i32_0, %c0_i32_1 : i32, i32, i32
  }
  func.func @transform_23(%arg0: i32) -> (i32, i32, i32) {
    %c0_i32 = arith.constant 0 : i32
    %c0_i32_0 = arith.constant 0 : i32
    %c0_i32_1 = arith.constant 0 : i32
    %c0_i32_2 = arith.constant 0 : i32
    return %c0_i32, %c0_i32_0, %c0_i32_1 : i32, i32, i32
  }
  func.func @transform_24(%arg0: i32) -> (i32, i32, i32) {
    %c0_i32 = arith.constant 0 : i32
    %c0_i32_0 = arith.constant 0 : i32
    %c0_i32_1 = arith.constant 0 : i32
    %c0_i32_2 = arith.constant 0 : i32
    return %c0_i32, %c0_i32_0, %c0_i32_1 : i32, i32, i32
  }
  func.func @transform_25(%arg0: i32) -> (i32, i32, i32) {
    %c0_i32 = arith.constant 0 : i32
    %c0_i32_0 = arith.constant 0 : i32
    %c0_i32_1 = arith.constant 0 : i32
    %c0_i32_2 = arith.constant 0 : i32
    return %c0_i32, %c0_i32_0, %c0_i32_1 : i32, i32, i32
  }
  func.func @transform_26(%arg0: i32) -> (i32, i32, i32) {
    %c0_i32 = arith.constant 0 : i32
    %c0_i32_0 = arith.constant 0 : i32
    %c0_i32_1 = arith.constant 0 : i32
    %c0_i32_2 = arith.constant 0 : i32
    return %c0_i32, %c0_i32_0, %c0_i32_1 : i32, i32, i32
  }
  func.func @transform_27(%arg0: i32) -> (i32, i32, i32) {
    %c0_i32 = arith.constant 0 : i32
    %c0_i32_0 = arith.constant 0 : i32
    %c0_i32_1 = arith.constant 0 : i32
    %c0_i32_2 = arith.constant 0 : i32
    return %c0_i32, %c0_i32_0, %c0_i32_1 : i32, i32, i32
  }
  func.func @transform_28(%arg0: i32) -> (i32, i32, i32) {
    %c0_i32 = arith.constant 0 : i32
    %c0_i32_0 = arith.constant 0 : i32
    %c0_i32_1 = arith.constant 0 : i32
    %c0_i32_2 = arith.constant 0 : i32
    return %c0_i32, %c0_i32_0, %c0_i32_1 : i32, i32, i32
  }
  func.func @transform_29(%arg0: i32) -> (i32, i32, i32) {
    %c0_i32 = arith.constant 0 : i32
    %c0_i32_0 = arith.constant 0 : i32
    %c0_i32_1 = arith.constant 0 : i32
    %c0_i32_2 = arith.constant 0 : i32
    return %c0_i32, %c0_i32_0, %c0_i32_1 : i32, i32, i32
  }
  func.func @transform_30(%arg0: i32) -> (i32, i32, i32) {
    %c0_i32 = arith.constant 0 : i32
    %c0_i32_0 = arith.constant 0 : i32
    %c0_i32_1 = arith.constant 0 : i32
    %c0_i32_2 = arith.constant 0 : i32
    return %c0_i32, %c0_i32_0, %c0_i32_1 : i32, i32, i32
  }
  func.func @transform_31(%arg0: i32) -> (i32, i32, i32) {
    %c0_i32 = arith.constant 0 : i32
    %c0_i32_0 = arith.constant 0 : i32
    %c0_i32_1 = arith.constant 0 : i32
    %c0_i32_2 = arith.constant 0 : i32
    return %c0_i32, %c0_i32_0, %c0_i32_1 : i32, i32, i32
  }
  func.func @transform_32(%arg0: i32) -> (i32, i32, i32) {
    %c0_i32 = arith.constant 0 : i32
    %c0_i32_0 = arith.constant 0 : i32
    %c0_i32_1 = arith.constant 0 : i32
    %c0_i32_2 = arith.constant 0 : i32
    return %c0_i32, %c0_i32_0, %c0_i32_1 : i32, i32, i32
  }
  func.func @transform_33(%arg0: i32) -> (i32, i32, i32) {
    %c0_i32 = arith.constant 0 : i32
    %c0_i32_0 = arith.constant 0 : i32
    %c0_i32_1 = arith.constant 0 : i32
    %c0_i32_2 = arith.constant 0 : i32
    return %c0_i32, %c0_i32_0, %c0_i32_1 : i32, i32, i32
  }
  func.func @transform_34(%arg0: i32) -> (i32, i32, i32) {
    %c0_i32 = arith.constant 0 : i32
    %c0_i32_0 = arith.constant 0 : i32
    %c0_i32_1 = arith.constant 0 : i32
    %c0_i32_2 = arith.constant 0 : i32
    return %c0_i32, %c0_i32_0, %c0_i32_1 : i32, i32, i32
  }
  func.func @transform_35(%arg0: i32) -> (i32, i32, i32) {
    %c0_i32 = arith.constant 0 : i32
    %c0_i32_0 = arith.constant 0 : i32
    %c0_i32_1 = arith.constant 0 : i32
    %c0_i32_2 = arith.constant 0 : i32
    return %c0_i32, %c0_i32_0, %c0_i32_1 : i32, i32, i32
  }
  func.func @transform_36(%arg0: i32) -> (i32, i32, i32) {
    %c0_i32 = arith.constant 0 : i32
    %c0_i32_0 = arith.constant 0 : i32
    %c0_i32_1 = arith.constant 0 : i32
    return %arg0, %c0_i32, %c0_i32_0 : i32, i32, i32
  }
}

</mosaic_0001>

<llo_original>
// kernel: dialog_transformer_forward.1
$region0: #{dialog_transformer_forward.1}
  #allocation0 [shape = 'u32[]', space=smem, size = 0x4, offset = 0x4, fixed_abs, tag = 'smem constant byte address 0x4 - core index']
  #allocation1 [shape = 'u32[144,128]{1,0:T(1,128)}', space=vmem, size = 0x12000, scoped, tag = 'internal scratch']
  %s0 = inlined_call_operand.smem [shape: u32[37], index: -1, kind: input, shape index: {}]
  %s1 = sld [smem:[%s0]]
  %s2 = scalar_lea.smem %s0, 1
  %s3 = sld [smem:[%s2]]
  %s4 = scalar_lea.smem %s0, 2
  %s5 = sld [smem:[%s4]]
  %s6 = scalar_lea.smem %s0, 3
  %s7 = sld [smem:[%s6]]
  %s8 = scalar_lea.smem %s0, 4
  %s9 = sld [smem:[%s8]]
  %s10 = scalar_lea.smem %s0, 5
  %s11 = sld [smem:[%s10]]
  %s12 = scalar_lea.smem %s0, 6
  %s13 = sld [smem:[%s12]]
  %s14 = scalar_lea.smem %s0, 7
  %s15 = sld [smem:[%s14]]
  %s16 = scalar_lea.smem %s0, 8
  %s17 = sld [smem:[%s16]]
  %s18 = scalar_lea.smem %s0, 9
  %s19 = sld [smem:[%s18]]
  %s20 = scalar_lea.smem %s0, 10
  %s21 = sld [smem:[%s20]]
  %s22 = scalar_lea.smem %s0, 11
  %s23 = sld [smem:[%s22]]
  %s24 = scalar_lea.smem %s0, 12
  %s25 = sld [smem:[%s24]]
  %s26 = scalar_lea.smem %s0, 13
  %s27 = sld [smem:[%s26]]
  %s28 = scalar_lea.smem %s0, 14
  %s29 = sld [smem:[%s28]]
  %s30 = scalar_lea.smem %s0, 15
  %s31 = sld [smem:[%s30]]
  %s32 = scalar_lea.smem %s0, 16
  %s33 = sld [smem:[%s32]]
  %s34 = scalar_lea.smem %s0, 17
  %s35 = sld [smem:[%s34]]
  %s36 = scalar_lea.smem %s0, 18
  %s37 = sld [smem:[%s36]]
  %s38 = scalar_lea.smem %s0, 19
  %s39 = sld [smem:[%s38]]
  %s40 = scalar_lea.smem %s0, 20
  %s41 = sld [smem:[%s40]]
  %s42 = scalar_lea.smem %s0, 21
  %s43 = sld [smem:[%s42]]
  %s44 = scalar_lea.smem %s0, 22
  %s45 = sld [smem:[%s44]]
  %s46 = scalar_lea.smem %s0, 23
  %s47 = sld [smem:[%s46]]
  %s48 = scalar_lea.smem %s0, 24
  %s49 = sld [smem:[%s48]]
  %s50 = scalar_lea.smem %s0, 25
  %s51 = sld [smem:[%s50]]
  %s52 = scalar_lea.smem %s0, 26
  %s53 = sld [smem:[%s52]]
  %s54 = scalar_lea.smem %s0, 27
  %s55 = sld [smem:[%s54]]
  %s56 = scalar_lea.smem %s0, 28
  %s57 = sld [smem:[%s56]]
  %s58 = scalar_lea.smem %s0, 29
  %s59 = sld [smem:[%s58]]
  %s60 = scalar_lea.smem %s0, 30
  %s61 = sld [smem:[%s60]]
  %s62 = scalar_lea.smem %s0, 31
  %s63 = sld [smem:[%s62]]
  %s64 = scalar_lea.smem %s0, 32
  %s65 = sld [smem:[%s64]]
  %s66 = scalar_lea.smem %s0, 33
  %s67 = sld [smem:[%s66]]
  %s68 = scalar_lea.smem %s0, 34
  %s69 = sld [smem:[%s68]]
  %s70 = scalar_lea.smem %s0, 35
  %s71 = sld [smem:[%s70]]
  %s72 = scalar_lea.smem %s0, 36
  %s73 = sld [smem:[%s72]]
  %s74 = sld [smem:[#allocation0]]
  $region177: #{dialog_transformer_forward.1} parent=0
    _
  %s76 = ssub.s32 1, %s74
  %s77 = scalar_select 0, %s76, %s74
  $region1: #{dialog_transformer_forward.1} parent=0
    #allocation2 [shape = 'u8[8192]{0}', space=vmem, size = 0x2000, scoped, tag = 'output window, operand 0']
    #allocation3 [shape = 's32[2]{0}', space=sflag, size = 0x8, scoped, tag = 'scoped memory for dialog_transformer_forward.1']
    %78 = vsyncpa [#allocation3], 0
    %s79 = scalar_lea.sflag [#allocation3], 1
    %80 = vsyncpa %s79, 0
    loop: start=0, step=1, limit=4
    $region2: #{dialog_transformer_forward.1} parent=1 // loop_pre_header
      _
    $region3: #{dialog_transformer_forward.1} parent=1 // loop_header
      %s82 = sphi 0, %s86
      %p83 = scmp.ge.s32.totalorder %s82, 4
      %s92 = sphi 0, %s94
      %s95 = sphi 0, %s92
      %s96 = sphi 0, %s95
      %s112 = sphi 0, %s96
      %s118 = sphi 0, %s120
      %s121 = sphi 0, %s118
      %s122 = sphi 0, %s121
      %s138 = sphi 0, %s122
      %s144 = sphi 0, %s146
      %s147 = sphi 0, %s144
      %s148 = sphi 0, %s147
      %s164 = sphi 0, %s148
      %s170 = sphi 0, %s172
      %s173 = sphi 0, %s170
      %s174 = sphi 0, %s173
      %s190 = sphi 0, %s174
      %s194 = sphi 0, %s194
      %s196 = sphi 0, %s194
      %s197 = sphi 0, %s196
      %s211 = sphi 0, %s197
      %s215 = sphi 0, %s215
      %s217 = sphi 0, %s215
      %s218 = sphi 0, %s217
      %s232 = sphi 0, %s218
      %s236 = sphi 0, %s236
      %s238 = sphi 0, %s236
      %s239 = sphi 0, %s238
      %s253 = sphi 0, %s239
      %s257 = sphi 0, %s257
      %s259 = sphi 0, %s257
      %s260 = sphi 0, %s259
      %s274 = sphi 0, %s260
      %s278 = sphi 0, %s278
      %s280 = sphi 0, %s278
      %s281 = sphi 0, %s280
      %s295 = sphi 0, %s281
      %s299 = sphi 0, %s299
      %s301 = sphi 0, %s299
      %s302 = sphi 0, %s301
      %s316 = sphi 0, %s302
      %s320 = sphi 0, %s320
      %s322 = sphi 0, %s320
      %s323 = sphi 0, %s322
      %s337 = sphi 0, %s323
      %s341 = sphi 0, %s341
      %s343 = sphi 0, %s341
      %s344 = sphi 0, %s343
      %s358 = sphi 0, %s344
      %s362 = sphi 0, %s362
      %s364 = sphi 0, %s362
      %s365 = sphi 0, %s364
      %s379 = sphi 0, %s365
      %s383 = sphi 0, %s383
      %s385 = sphi 0, %s383
      %s386 = sphi 0, %s385
      %s400 = sphi 0, %s386
      %s404 = sphi 0, %s404
      %s406 = sphi 0, %s404
      %s407 = sphi 0, %s406
      %s421 = sphi 0, %s407
      %s425 = sphi 0, %s425
      %s427 = sphi 0, %s425
      %s428 = sphi 0, %s427
      %s442 = sphi 0, %s428
      %s446 = sphi 0, %s446
      %s448 = sphi 0, %s446
      %s449 = sphi 0, %s448
      %s463 = sphi 0, %s449
      %s467 = sphi 0, %s467
      %s469 = sphi 0, %s467
      %s470 = sphi 0, %s469
      %s484 = sphi 0, %s470
      %s488 = sphi 0, %s488
      %s490 = sphi 0, %s488
      %s491 = sphi 0, %s490
      %s505 = sphi 0, %s491
      %s509 = sphi 0, %s509
      %s511 = sphi 0, %s509
      %s512 = sphi 0, %s511
      %s526 = sphi 0, %s512
      %s530 = sphi 0, %s530
      %s532 = sphi 0, %s530
      %s533 = sphi 0, %s532
      %s547 = sphi 0, %s533
      %s551 = sphi 0, %s551
      %s553 = sphi 0, %s551
      %s554 = sphi 0, %s553
      %s568 = sphi 0, %s554
      %s572 = sphi 0, %s572
      %s574 = sphi 0, %s572
      %s575 = sphi 0, %s574
      %s589 = sphi 0, %s575
      %s593 = sphi 0, %s593
      %s595 = sphi 0, %s593
      %s596 = sphi 0, %s595
      %s610 = sphi 0, %s596
      %s614 = sphi 0, %s614
      %s616 = sphi 0, %s614
      %s617 = sphi 0, %s616
      %s631 = sphi 0, %s617
      %s635 = sphi 0, %s635
      %s637 = sphi 0, %s635
      %s638 = sphi 0, %s637
      %s652 = sphi 0, %s638
      %s656 = sphi 0, %s656
      %s658 = sphi 0, %s656
      %s659 = sphi 0, %s658
      %s673 = sphi 0, %s659
      %s677 = sphi 0, %s677
      %s679 = sphi 0, %s677
      %s680 = sphi 0, %s679
      %s694 = sphi 0, %s680
      %s698 = sphi 0, %s698
      %s700 = sphi 0, %s698
      %s701 = sphi 0, %s700
      %s715 = sphi 0, %s701
      %s719 = sphi 0, %s719
      %s721 = sphi 0, %s719
      %s722 = sphi 0, %s721
      %s736 = sphi 0, %s722
      %s740 = sphi 0, %s740
      %s742 = sphi 0, %s740
      %s743 = sphi 0, %s742
      %s757 = sphi 0, %s743
      %s761 = sphi 0, %s761
      %s763 = sphi 0, %s761
      %s764 = sphi 0, %s763
      %s778 = sphi 0, %s764
      %s782 = sphi 0, %s782
      %s784 = sphi 0, %s782
      %s785 = sphi 0, %s784
      %s799 = sphi 0, %s785
      %s803 = sphi 0, %s803
      %s805 = sphi 0, %s803
      %s806 = sphi 0, %s805
      %s820 = sphi 0, %s806
      %s824 = sphi 0, %s824
      %s826 = sphi 0, %s824
      %s827 = sphi 0, %s826
      %s841 = sphi 0, %s827
      %s845 = sphi 0, %s845
      %s847 = sphi 0, %s845
      %s848 = sphi 0, %s847
      %s862 = sphi 0, %s848
      %s868 = sphi 0, %s870
      %s871 = sphi 0, %s868
      %s872 = sphi 0, %s871
      %s888 = sphi 0, %s872
    $region4: #{dialog_transformer_forward.1} parent=1 // loop_header_branch
      %85 = sbr.rel (%p83) target = $region8
    $region5: #{dialog_transformer_forward.1} parent=1 // loop_body
      %s87 = ssub.s32 %s82, 1
      %s88 = ssub.s32 %s82, 2
      %s89 = sadd.s32 %s82, 1
      %s90 = ssub.s32 %s82, %s89
      %p91 = scmp.eq.s32.totalorder %s90, 0
      %s93 = sadd.s32 %s92, 1
      %s94 = scalar_select %p91, %s92, %s93
      %p97 = pneg %p91
      %p98 = scmp.eq.s32.totalorder %s82, 1
      %p99 = por %p97, %p98
      %p100 = scmp.ne.s32.totalorder %s92, %s95
      %p101 = scmp.eq.s32.totalorder %s82, 0
      %p102 = por %p100, %p101
      %p103 = scmp.ne.s32.totalorder %s92, %s95
      %p104 = scmp.eq.s32.totalorder %s87, 1
      %p105 = por %p103, %p104
      %p106 = scmp.ne.s32.totalorder %s95, %s96
      %p107 = scmp.eq.s32.totalorder %s87, 0
      %p108 = por %p106, %p107
      %p109 = scmp.ne.s32.totalorder %s95, %s96
      %p110 = scmp.eq.s32.totalorder %s88, 1
      %p111 = por %p109, %p110
      %p113 = scmp.ne.s32.totalorder %s96, %s112
      %p114 = scmp.eq.s32.totalorder %s88, 0
      %p115 = por %p113, %p114
      %s116 = ssub.s32 %s82, %s89
      %p117 = scmp.eq.s32.totalorder %s116, 0
      %s119 = sadd.s32 %s118, 1
      %s120 = scalar_select %p117, %s118, %s119
      %p123 = pneg %p117
      %p124 = scmp.eq.s32.totalorder %s82, 1
      %p125 = por %p123, %p124
      %p126 = scmp.ne.s32.totalorder %s118, %s121
      %p127 = scmp.eq.s32.totalorder %s82, 0
      %p128 = por %p126, %p127
      %p129 = scmp.ne.s32.totalorder %s118, %s121
      %p130 = scmp.eq.s32.totalorder %s87, 1
      %p131 = por %p129, %p130
      %p132 = scmp.ne.s32.totalorder %s121, %s122
      %p133 = scmp.eq.s32.totalorder %s87, 0
      %p134 = por %p132, %p133
      %p135 = scmp.ne.s32.totalorder %s121, %s122
      %p136 = scmp.eq.s32.totalorder %s88, 1
      %p137 = por %p135, %p136
      %p139 = scmp.ne.s32.totalorder %s122, %s138
      %p140 = scmp.eq.s32.totalorder %s88, 0
      %p141 = por %p139, %p140
      %s142 = ssub.s32 %s82, %s89
      %p143 = scmp.eq.s32.totalorder %s142, 0
      %s145 = sadd.s32 %s144, 1
      %s146 = scalar_select %p143, %s144, %s145
      %p149 = pneg %p143
      %p150 = scmp.eq.s32.totalorder %s82, 1
      %p151 = por %p149, %p150
      %p152 = scmp.ne.s32.totalorder %s144, %s147
      %p153 = scmp.eq.s32.totalorder %s82, 0
      %p154 = por %p152, %p153
      %p155 = scmp.ne.s32.totalorder %s144, %s147
      %p156 = scmp.eq.s32.totalorder %s87, 1
      %p157 = por %p155, %p156
      %p158 = scmp.ne.s32.totalorder %s147, %s148
      %p159 = scmp.eq.s32.totalorder %s87, 0
      %p160 = por %p158, %p159
      %p161 = scmp.ne.s32.totalorder %s147, %s148
      %p162 = scmp.eq.s32.totalorder %s88, 1
      %p163 = por %p161, %p162
      %p165 = scmp.ne.s32.totalorder %s148, %s164
      %p166 = scmp.eq.s32.totalorder %s88, 0
      %p167 = por %p165, %p166
      %s168 = ssub.s32 %s82, %s89
      %p169 = scmp.eq.s32.totalorder %s168, 0
      %s171 = sadd.s32 %s170, 1
      %s172 = scalar_select %p169, %s170, %s171
      %p175 = pneg %p169
      %p176 = scmp.eq.s32.totalorder %s82, 1
      %p177 = por %p175, %p176
      %p178 = scmp.ne.s32.totalorder %s170, %s173
      %p179 = scmp.eq.s32.totalorder %s82, 0
      %p180 = por %p178, %p179
      %p181 = scmp.ne.s32.totalorder %s170, %s173
      %p182 = scmp.eq.s32.totalorder %s87, 1
      %p183 = por %p181, %p182
      %p184 = scmp.ne.s32.totalorder %s173, %s174
      %p185 = scmp.eq.s32.totalorder %s87, 0
      %p186 = por %p184, %p185
      %p187 = scmp.ne.s32.totalorder %s173, %s174
      %p188 = scmp.eq.s32.totalorder %s88, 1
      %p189 = por %p187, %p188
      %p191 = scmp.ne.s32.totalorder %s174, %s190
      %p192 = scmp.eq.s32.totalorder %s88, 0
      %p193 = por %p191, %p192
      %s195 = sadd.s32 %s194, 1
      %p198 = scmp.eq.s32.totalorder %s82, 1
      %p199 = scmp.ne.s32.totalorder %s194, %s196
      %p200 = scmp.eq.s32.totalorder %s82, 0
      %p201 = por %p199, %p200
      %p202 = scmp.ne.s32.totalorder %s194, %s196
      %p203 = scmp.eq.s32.totalorder %s87, 1
      %p204 = por %p202, %p203
      %p205 = scmp.ne.s32.totalorder %s196, %s197
      %p206 = scmp.eq.s32.totalorder %s87, 0
      %p207 = por %p205, %p206
      %p208 = scmp.ne.s32.totalorder %s196, %s197
      %p209 = scmp.eq.s32.totalorder %s88, 1
      %p210 = por %p208, %p209
      %p212 = scmp.ne.s32.totalorder %s197, %s211
      %p213 = scmp.eq.s32.totalorder %s88, 0
      %p214 = por %p212, %p213
      %s216 = sadd.s32 %s215, 1
      %p219 = scmp.eq.s32.totalorder %s82, 1
      %p220 = scmp.ne.s32.totalorder %s215, %s217
      %p221 = scmp.eq.s32.totalorder %s82, 0
      %p222 = por %p220, %p221
      %p223 = scmp.ne.s32.totalorder %s215, %s217
      %p224 = scmp.eq.s32.totalorder %s87, 1
      %p225 = por %p223, %p224
      %p226 = scmp.ne.s32.totalorder %s217, %s218
      %p227 = scmp.eq.s32.totalorder %s87, 0
      %p228 = por %p226, %p227
      %p229 = scmp.ne.s32.totalorder %s217, %s218
      %p230 = scmp.eq.s32.totalorder %s88, 1
      %p231 = por %p229, %p230
      %p233 = scmp.ne.s32.totalorder %s218, %s232
      %p234 = scmp.eq.s32.totalorder %s88, 0
      %p235 = por %p233, %p234
      %s237 = sadd.s32 %s236, 1
      %p240 = scmp.eq.s32.totalorder %s82, 1
      %p241 = scmp.ne.s32.totalorder %s236, %s238
      %p242 = scmp.eq.s32.totalorder %s82, 0
      %p243 = por %p241, %p242
      %p244 = scmp.ne.s32.totalorder %s236, %s238
      %p245 = scmp.eq.s32.totalorder %s87, 1
      %p246 = por %p244, %p245
      %p247 = scmp.ne.s32.totalorder %s238, %s239
      %p248 = scmp.eq.s32.totalorder %s87, 0
      %p249 = por %p247, %p248
      %p250 = scmp.ne.s32.totalorder %s238, %s239
      %p251 = scmp.eq.s32.totalorder %s88, 1
      %p252 = por %p250, %p251
      %p254 = scmp.ne.s32.totalorder %s239, %s253
      %p255 = scmp.eq.s32.totalorder %s88, 0
      %p256 = por %p254, %p255
      %s258 = sadd.s32 %s257, 1
      %p261 = scmp.eq.s32.totalorder %s82, 1
      %p262 = scmp.ne.s32.totalorder %s257, %s259
      %p263 = scmp.eq.s32.totalorder %s82, 0
      %p264 = por %p262, %p263
      %p265 = scmp.ne.s32.totalorder %s257, %s259
      %p266 = scmp.eq.s32.totalorder %s87, 1
      %p267 = por %p265, %p266
      %p268 = scmp.ne.s32.totalorder %s259, %s260
      %p269 = scmp.eq.s32.totalorder %s87, 0
      %p270 = por %p268, %p269
      %p271 = scmp.ne.s32.totalorder %s259, %s260
      %p272 = scmp.eq.s32.totalorder %s88, 1
      %p273 = por %p271, %p272
      %p275 = scmp.ne.s32.totalorder %s260, %s274
      %p276 = scmp.eq.s32.totalorder %s88, 0
      %p277 = por %p275, %p276
      %s279 = sadd.s32 %s278, 1
      %p282 = scmp.eq.s32.totalorder %s82, 1
      %p283 = scmp.ne.s32.totalorder %s278, %s280
      %p284 = scmp.eq.s32.totalorder %s82, 0
      %p285 = por %p283, %p284
      %p286 = scmp.ne.s32.totalorder %s278, %s280
      %p287 = scmp.eq.s32.totalorder %s87, 1
      %p288 = por %p286, %p287
      %p289 = scmp.ne.s32.totalorder %s280, %s281
      %p290 = scmp.eq.s32.totalorder %s87, 0
      %p291 = por %p289, %p290
      %p292 = scmp.ne.s32.totalorder %s280, %s281
      %p293 = scmp.eq.s32.totalorder %s88, 1
      %p294 = por %p292, %p293
      %p296 = scmp.ne.s32.totalorder %s281, %s295
      %p297 = scmp.eq.s32.totalorder %s88, 0
      %p298 = por %p296, %p297
      %s300 = sadd.s32 %s299, 1
      %p303 = scmp.eq.s32.totalorder %s82, 1
      %p304 = scmp.ne.s32.totalorder %s299, %s301
      %p305 = scmp.eq.s32.totalorder %s82, 0
      %p306 = por %p304, %p305
      %p307 = scmp.ne.s32.totalorder %s299, %s301
      %p308 = scmp.eq.s32.totalorder %s87, 1
      %p309 = por %p307, %p308
      %p310 = scmp.ne.s32.totalorder %s301, %s302
      %p311 = scmp.eq.s32.totalorder %s87, 0
      %p312 = por %p310, %p311
      %p313 = scmp.ne.s32.totalorder %s301, %s302
      %p314 = scmp.eq.s32.totalorder %s88, 1
      %p315 = por %p313, %p314
      %p317 = scmp.ne.s32.totalorder %s302, %s316
      %p318 = scmp.eq.s32.totalorder %s88, 0
      %p319 = por %p317, %p318
      %s321 = sadd.s32 %s320, 1
      %p324 = scmp.eq.s32.totalorder %s82, 1
      %p325 = scmp.ne.s32.totalorder %s320, %s322
      %p326 = scmp.eq.s32.totalorder %s82, 0
      %p327 = por %p325, %p326
      %p328 = scmp.ne.s32.totalorder %s320, %s322
      %p329 = scmp.eq.s32.totalorder %s87, 1
      %p330 = por %p328, %p329
      %p331 = scmp.ne.s32.totalorder %s322, %s323
      %p332 = scmp.eq.s32.totalorder %s87, 0
      %p333 = por %p331, %p332
      %p334 = scmp.ne.s32.totalorder %s322, %s323
      %p335 = scmp.eq.s32.totalorder %s88, 1
      %p336 = por %p334, %p335
      %p338 = scmp.ne.s32.totalorder %s323, %s337
      %p339 = scmp.eq.s32.totalorder %s88, 0
      %p340 = por %p338, %p339
      %s342 = sadd.s32 %s341, 1
      %p345 = scmp.eq.s32.totalorder %s82, 1
      %p346 = scmp.ne.s32.totalorder %s341, %s343
      %p347 = scmp.eq.s32.totalorder %s82, 0
      %p348 = por %p346, %p347
      %p349 = scmp.ne.s32.totalorder %s341, %s343
      %p350 = scmp.eq.s32.totalorder %s87, 1
      %p351 = por %p349, %p350
      %p352 = scmp.ne.s32.totalorder %s343, %s344
      %p353 = scmp.eq.s32.totalorder %s87, 0
      %p354 = por %p352, %p353
      %p355 = scmp.ne.s32.totalorder %s343, %s344
      %p356 = scmp.eq.s32.totalorder %s88, 1
      %p357 = por %p355, %p356
      %p359 = scmp.ne.s32.totalorder %s344, %s358
      %p360 = scmp.eq.s32.totalorder %s88, 0
      %p361 = por %p359, %p360
      %s363 = sadd.s32 %s362, 1
      %p366 = scmp.eq.s32.totalorder %s82, 1
      %p367 = scmp.ne.s32.totalorder %s362, %s364
      %p368 = scmp.eq.s32.totalorder %s82, 0
      %p369 = por %p367, %p368
      %p370 = scmp.ne.s32.totalorder %s362, %s364
      %p371 = scmp.eq.s32.totalorder %s87, 1
      %p372 = por %p370, %p371
      %p373 = scmp.ne.s32.totalorder %s364, %s365
      %p374 = scmp.eq.s32.totalorder %s87, 0
      %p375 = por %p373, %p374
      %p376 = scmp.ne.s32.totalorder %s364, %s365
      %p377 = scmp.eq.s32.totalorder %s88, 1
      %p378 = por %p376, %p377
      %p380 = scmp.ne.s32.totalorder %s365, %s379
      %p381 = scmp.eq.s32.totalorder %s88, 0
      %p382 = por %p380, %p381
      %s384 = sadd.s32 %s383, 1
      %p387 = scmp.eq.s32.totalorder %s82, 1
      %p388 = scmp.ne.s32.totalorder %s383, %s385
      %p389 = scmp.eq.s32.totalorder %s82, 0
      %p390 = por %p388, %p389
      %p391 = scmp.ne.s32.totalorder %s383, %s385
      %p392 = scmp.eq.s32.totalorder %s87, 1
      %p393 = por %p391, %p392
      %p394 = scmp.ne.s32.totalorder %s385, %s386
      %p395 = scmp.eq.s32.totalorder %s87, 0
      %p396 = por %p394, %p395
      %p397 = scmp.ne.s32.totalorder %s385, %s386
      %p398 = scmp.eq.s32.totalorder %s88, 1
      %p399 = por %p397, %p398
      %p401 = scmp.ne.s32.totalorder %s386, %s400
      %p402 = scmp.eq.s32.totalorder %s88, 0
      %p403 = por %p401, %p402
      %s405 = sadd.s32 %s404, 1
      %p408 = scmp.eq.s32.totalorder %s82, 1
      %p409 = scmp.ne.s32.totalorder %s404, %s406
      %p410 = scmp.eq.s32.totalorder %s82, 0
      %p411 = por %p409, %p410
      %p412 = scmp.ne.s32.totalorder %s404, %s406
      %p413 = scmp.eq.s32.totalorder %s87, 1
      %p414 = por %p412, %p413
      %p415 = scmp.ne.s32.totalorder %s406, %s407
      %p416 = scmp.eq.s32.totalorder %s87, 0
      %p417 = por %p415, %p416
      %p418 = scmp.ne.s32.totalorder %s406, %s407
      %p419 = scmp.eq.s32.totalorder %s88, 1
      %p420 = por %p418, %p419
      %p422 = scmp.ne.s32.totalorder %s407, %s421
      %p423 = scmp.eq.s32.totalorder %s88, 0
      %p424 = por %p422, %p423
      %s426 = sadd.s32 %s425, 1
      %p429 = scmp.eq.s32.totalorder %s82, 1
      %p430 = scmp.ne.s32.totalorder %s425, %s427
      %p431 = scmp.eq.s32.totalorder %s82, 0
      %p432 = por %p430, %p431
      %p433 = scmp.ne.s32.totalorder %s425, %s427
      %p434 = scmp.eq.s32.totalorder %s87, 1
      %p435 = por %p433, %p434
      %p436 = scmp.ne.s32.totalorder %s427, %s428
      %p437 = scmp.eq.s32.totalorder %s87, 0
      %p438 = por %p436, %p437
      %p439 = scmp.ne.s32.totalorder %s427, %s428
      %p440 = scmp.eq.s32.totalorder %s88, 1
      %p441 = por %p439, %p440
      %p443 = scmp.ne.s32.totalorder %s428, %s442
      %p444 = scmp.eq.s32.totalorder %s88, 0
      %p445 = por %p443, %p444
      %s447 = sadd.s32 %s446, 1
      %p450 = scmp.eq.s32.totalorder %s82, 1
      %p451 = scmp.ne.s32.totalorder %s446, %s448
      %p452 = scmp.eq.s32.totalorder %s82, 0
      %p453 = por %p451, %p452
      %p454 = scmp.ne.s32.totalorder %s446, %s448
      %p455 = scmp.eq.s32.totalorder %s87, 1
      %p456 = por %p454, %p455
      %p457 = scmp.ne.s32.totalorder %s448, %s449
      %p458 = scmp.eq.s32.totalorder %s87, 0
      %p459 = por %p457, %p458
      %p460 = scmp.ne.s32.totalorder %s448, %s449
      %p461 = scmp.eq.s32.totalorder %s88, 1
      %p462 = por %p460, %p461
      %p464 = scmp.ne.s32.totalorder %s449, %s463
      %p465 = scmp.eq.s32.totalorder %s88, 0
      %p466 = por %p464, %p465
      %s468 = sadd.s32 %s467, 1
      %p471 = scmp.eq.s32.totalorder %s82, 1
      %p472 = scmp.ne.s32.totalorder %s467, %s469
      %p473 = scmp.eq.s32.totalorder %s82, 0
      %p474 = por %p472, %p473
      %p475 = scmp.ne.s32.totalorder %s467, %s469
      %p476 = scmp.eq.s32.totalorder %s87, 1
      %p477 = por %p475, %p476
      %p478 = scmp.ne.s32.totalorder %s469, %s470
      %p479 = scmp.eq.s32.totalorder %s87, 0
      %p480 = por %p478, %p479
      %p481 = scmp.ne.s32.totalorder %s469, %s470
      %p482 = scmp.eq.s32.totalorder %s88, 1
      %p483 = por %p481, %p482
      %p485 = scmp.ne.s32.totalorder %s470, %s484
      %p486 = scmp.eq.s32.totalorder %s88, 0
      %p487 = por %p485, %p486
      %s489 = sadd.s32 %s488, 1
      %p492 = scmp.eq.s32.totalorder %s82, 1
      %p493 = scmp.ne.s32.totalorder %s488, %s490
      %p494 = scmp.eq.s32.totalorder %s82, 0
      %p495 = por %p493, %p494
      %p496 = scmp.ne.s32.totalorder %s488, %s490
      %p497 = scmp.eq.s32.totalorder %s87, 1
      %p498 = por %p496, %p497
      %p499 = scmp.ne.s32.totalorder %s490, %s491
      %p500 = scmp.eq.s32.totalorder %s87, 0
      %p501 = por %p499, %p500
      %p502 = scmp.ne.s32.totalorder %s490, %s491
      %p503 = scmp.eq.s32.totalorder %s88, 1
      %p504 = por %p502, %p503
      %p506 = scmp.ne.s32.totalorder %s491, %s505
      %p507 = scmp.eq.s32.totalorder %s88, 0
      %p508 = por %p506, %p507
      %s510 = sadd.s32 %s509, 1
      %p513 = scmp.eq.s32.totalorder %s82, 1
      %p514 = scmp.ne.s32.totalorder %s509, %s511
      %p515 = scmp.eq.s32.totalorder %s82, 0
      %p516 = por %p514, %p515
      %p517 = scmp.ne.s32.totalorder %s509, %s511
      %p518 = scmp.eq.s32.totalorder %s87, 1
      %p519 = por %p517, %p518
      %p520 = scmp.ne.s32.totalorder %s511, %s512
      %p521 = scmp.eq.s32.totalorder %s87, 0
      %p522 = por %p520, %p521
      %p523 = scmp.ne.s32.totalorder %s511, %s512
      %p524 = scmp.eq.s32.totalorder %s88, 1
      %p525 = por %p523, %p524
      %p527 = scmp.ne.s32.totalorder %s512, %s526
      %p528 = scmp.eq.s32.totalorder %s88, 0
      %p529 = por %p527, %p528
      %s531 = sadd.s32 %s530, 1
      %p534 = scmp.eq.s32.totalorder %s82, 1
      %p535 = scmp.ne.s32.totalorder %s530, %s532
      %p536 = scmp.eq.s32.totalorder %s82, 0
      %p537 = por %p535, %p536
      %p538 = scmp.ne.s32.totalorder %s530, %s532
      %p539 = scmp.eq.s32.totalorder %s87, 1
      %p540 = por %p538, %p539
      %p541 = scmp.ne.s32.totalorder %s532, %s533
      %p542 = scmp.eq.s32.totalorder %s87, 0
      %p543 = por %p541, %p542
      %p544 = scmp.ne.s32.totalorder %s532, %s533
      %p545 = scmp.eq.s32.totalorder %s88, 1
      %p546 = por %p544, %p545
      %p548 = scmp.ne.s32.totalorder %s533, %s547
      %p549 = scmp.eq.s32.totalorder %s88, 0
      %p550 = por %p548, %p549
      %s552 = sadd.s32 %s551, 1
      %p555 = scmp.eq.s32.totalorder %s82, 1
      %p556 = scmp.ne.s32.totalorder %s551, %s553
      %p557 = scmp.eq.s32.totalorder %s82, 0
      %p558 = por %p556, %p557
      %p559 = scmp.ne.s32.totalorder %s551, %s553
      %p560 = scmp.eq.s32.totalorder %s87, 1
      %p561 = por %p559, %p560
      %p562 = scmp.ne.s32.totalorder %s553, %s554
      %p563 = scmp.eq.s32.totalorder %s87, 0
      %p564 = por %p562, %p563
      %p565 = scmp.ne.s32.totalorder %s553, %s554
      %p566 = scmp.eq.s32.totalorder %s88, 1
      %p567 = por %p565, %p566
      %p569 = scmp.ne.s32.totalorder %s554, %s568
      %p570 = scmp.eq.s32.totalorder %s88, 0
      %p571 = por %p569, %p570
      %s573 = sadd.s32 %s572, 1
      %p576 = scmp.eq.s32.totalorder %s82, 1
      %p577 = scmp.ne.s32.totalorder %s572, %s574
      %p578 = scmp.eq.s32.totalorder %s82, 0
      %p579 = por %p577, %p578
      %p580 = scmp.ne.s32.totalorder %s572, %s574
      %p581 = scmp.eq.s32.totalorder %s87, 1
      %p582 = por %p580, %p581
      %p583 = scmp.ne.s32.totalorder %s574, %s575
      %p584 = scmp.eq.s32.totalorder %s87, 0
      %p585 = por %p583, %p584
      %p586 = scmp.ne.s32.totalorder %s574, %s575
      %p587 = scmp.eq.s32.totalorder %s88, 1
      %p588 = por %p586, %p587
      %p590 = scmp.ne.s32.totalorder %s575, %s589
      %p591 = scmp.eq.s32.totalorder %s88, 0
      %p592 = por %p590, %p591
      %s594 = sadd.s32 %s593, 1
      %p597 = scmp.eq.s32.totalorder %s82, 1
      %p598 = scmp.ne.s32.totalorder %s593, %s595
      %p599 = scmp.eq.s32.totalorder %s82, 0
      %p600 = por %p598, %p599
      %p601 = scmp.ne.s32.totalorder %s593, %s595
      %p602 = scmp.eq.s32.totalorder %s87, 1
      %p603 = por %p601, %p602
      %p604 = scmp.ne.s32.totalorder %s595, %s596
      %p605 = scmp.eq.s32.totalorder %s87, 0
      %p606 = por %p604, %p605
      %p607 = scmp.ne.s32.totalorder %s595, %s596
      %p608 = scmp.eq.s32.totalorder %s88, 1
      %p609 = por %p607, %p608
      %p611 = scmp.ne.s32.totalorder %s596, %s610
      %p612 = scmp.eq.s32.totalorder %s88, 0
      %p613 = por %p611, %p612
      %s615 = sadd.s32 %s614, 1
      %p618 = scmp.eq.s32.totalorder %s82, 1
      %p619 = scmp.ne.s32.totalorder %s614, %s616
      %p620 = scmp.eq.s32.totalorder %s82, 0
      %p621 = por %p619, %p620
      %p622 = scmp.ne.s32.totalorder %s614, %s616
      %p623 = scmp.eq.s32.totalorder %s87, 1
      %p624 = por %p622, %p623
      %p625 = scmp.ne.s32.totalorder %s616, %s617
      %p626 = scmp.eq.s32.totalorder %s87, 0
      %p627 = por %p625, %p626
      %p628 = scmp.ne.s32.totalorder %s616, %s617
      %p629 = scmp.eq.s32.totalorder %s88, 1
      %p630 = por %p628, %p629
      %p632 = scmp.ne.s32.totalorder %s617, %s631
      %p633 = scmp.eq.s32.totalorder %s88, 0
      %p634 = por %p632, %p633
      %s636 = sadd.s32 %s635, 1
      %p639 = scmp.eq.s32.totalorder %s82, 1
      %p640 = scmp.ne.s32.totalorder %s635, %s637
      %p641 = scmp.eq.s32.totalorder %s82, 0
      %p642 = por %p640, %p641
      %p643 = scmp.ne.s32.totalorder %s635, %s637
      %p644 = scmp.eq.s32.totalorder %s87, 1
      %p645 = por %p643, %p644
      %p646 = scmp.ne.s32.totalorder %s637, %s638
      %p647 = scmp.eq.s32.totalorder %s87, 0
      %p648 = por %p646, %p647
      %p649 = scmp.ne.s32.totalorder %s637, %s638
      %p650 = scmp.eq.s32.totalorder %s88, 1
      %p651 = por %p649, %p650
      %p653 = scmp.ne.s32.totalorder %s638, %s652
      %p654 = scmp.eq.s32.totalorder %s88, 0
      %p655 = por %p653, %p654
      %s657 = sadd.s32 %s656, 1
      %p660 = scmp.eq.s32.totalorder %s82, 1
      %p661 = scmp.ne.s32.totalorder %s656, %s658
      %p662 = scmp.eq.s32.totalorder %s82, 0
      %p663 = por %p661, %p662
      %p664 = scmp.ne.s32.totalorder %s656, %s658
      %p665 = scmp.eq.s32.totalorder %s87, 1
      %p666 = por %p664, %p665
      %p667 = scmp.ne.s32.totalorder %s658, %s659
      %p668 = scmp.eq.s32.totalorder %s87, 0
      %p669 = por %p667, %p668
      %p670 = scmp.ne.s32.totalorder %s658, %s659
      %p671 = scmp.eq.s32.totalorder %s88, 1
      %p672 = por %p670, %p671
      %p674 = scmp.ne.s32.totalorder %s659, %s673
      %p675 = scmp.eq.s32.totalorder %s88, 0
      %p676 = por %p674, %p675
      %s678 = sadd.s32 %s677, 1
      %p681 = scmp.eq.s32.totalorder %s82, 1
      %p682 = scmp.ne.s32.totalorder %s677, %s679
      %p683 = scmp.eq.s32.totalorder %s82, 0
      %p684 = por %p682, %p683
      %p685 = scmp.ne.s32.totalorder %s677, %s679
      %p686 = scmp.eq.s32.totalorder %s87, 1
      %p687 = por %p685, %p686
      %p688 = scmp.ne.s32.totalorder %s679, %s680
      %p689 = scmp.eq.s32.totalorder %s87, 0
      %p690 = por %p688, %p689
      %p691 = scmp.ne.s32.totalorder %s679, %s680
      %p692 = scmp.eq.s32.totalorder %s88, 1
      %p693 = por %p691, %p692
      %p695 = scmp.ne.s32.totalorder %s680, %s694
      %p696 = scmp.eq.s32.totalorder %s88, 0
      %p697 = por %p695, %p696
      %s699 = sadd.s32 %s698, 1
      %p702 = scmp.eq.s32.totalorder %s82, 1
      %p703 = scmp.ne.s32.totalorder %s698, %s700
      %p704 = scmp.eq.s32.totalorder %s82, 0
      %p705 = por %p703, %p704
      %p706 = scmp.ne.s32.totalorder %s698, %s700
      %p707 = scmp.eq.s32.totalorder %s87, 1
      %p708 = por %p706, %p707
      %p709 = scmp.ne.s32.totalorder %s700, %s701
      %p710 = scmp.eq.s32.totalorder %s87, 0
      %p711 = por %p709, %p710
      %p712 = scmp.ne.s32.totalorder %s700, %s701
      %p713 = scmp.eq.s32.totalorder %s88, 1
      %p714 = por %p712, %p713
      %p716 = scmp.ne.s32.totalorder %s701, %s715
      %p717 = scmp.eq.s32.totalorder %s88, 0
      %p718 = por %p716, %p717
      %s720 = sadd.s32 %s719, 1
      %p723 = scmp.eq.s32.totalorder %s82, 1
      %p724 = scmp.ne.s32.totalorder %s719, %s721
      %p725 = scmp.eq.s32.totalorder %s82, 0
      %p726 = por %p724, %p725
      %p727 = scmp.ne.s32.totalorder %s719, %s721
      %p728 = scmp.eq.s32.totalorder %s87, 1
      %p729 = por %p727, %p728
      %p730 = scmp.ne.s32.totalorder %s721, %s722
      %p731 = scmp.eq.s32.totalorder %s87, 0
      %p732 = por %p730, %p731
      %p733 = scmp.ne.s32.totalorder %s721, %s722
      %p734 = scmp.eq.s32.totalorder %s88, 1
      %p735 = por %p733, %p734
      %p737 = scmp.ne.s32.totalorder %s722, %s736
      %p738 = scmp.eq.s32.totalorder %s88, 0
      %p739 = por %p737, %p738
      %s741 = sadd.s32 %s740, 1
      %p744 = scmp.eq.s32.totalorder %s82, 1
      %p745 = scmp.ne.s32.totalorder %s740, %s742
      %p746 = scmp.eq.s32.totalorder %s82, 0
      %p747 = por %p745, %p746
      %p748 = scmp.ne.s32.totalorder %s740, %s742
      %p749 = scmp.eq.s32.totalorder %s87, 1
      %p750 = por %p748, %p749
      %p751 = scmp.ne.s32.totalorder %s742, %s743
      %p752 = scmp.eq.s32.totalorder %s87, 0
      %p753 = por %p751, %p752
      %p754 = scmp.ne.s32.totalorder %s742, %s743
      %p755 = scmp.eq.s32.totalorder %s88, 1
      %p756 = por %p754, %p755
      %p758 = scmp.ne.s32.totalorder %s743, %s757
      %p759 = scmp.eq.s32.totalorder %s88, 0
      %p760 = por %p758, %p759
      %s762 = sadd.s32 %s761, 1
      %p765 = scmp.eq.s32.totalorder %s82, 1
      %p766 = scmp.ne.s32.totalorder %s761, %s763
      %p767 = scmp.eq.s32.totalorder %s82, 0
      %p768 = por %p766, %p767
      %p769 = scmp.ne.s32.totalorder %s761, %s763
      %p770 = scmp.eq.s32.totalorder %s87, 1
      %p771 = por %p769, %p770
      %p772 = scmp.ne.s32.totalorder %s763, %s764
      %p773 = scmp.eq.s32.totalorder %s87, 0
      %p774 = por %p772, %p773
      %p775 = scmp.ne.s32.totalorder %s763, %s764
      %p776 = scmp.eq.s32.totalorder %s88, 1
      %p777 = por %p775, %p776
      %p779 = scmp.ne.s32.totalorder %s764, %s778
      %p780 = scmp.eq.s32.totalorder %s88, 0
      %p781 = por %p779, %p780
      %s783 = sadd.s32 %s782, 1
      %p786 = scmp.eq.s32.totalorder %s82, 1
      %p787 = scmp.ne.s32.totalorder %s782, %s784
      %p788 = scmp.eq.s32.totalorder %s82, 0
      %p789 = por %p787, %p788
      %p790 = scmp.ne.s32.totalorder %s782, %s784
      %p791 = scmp.eq.s32.totalorder %s87, 1
      %p792 = por %p790, %p791
      %p793 = scmp.ne.s32.totalorder %s784, %s785
      %p794 = scmp.eq.s32.totalorder %s87, 0
      %p795 = por %p793, %p794
      %p796 = scmp.ne.s32.totalorder %s784, %s785
      %p797 = scmp.eq.s32.totalorder %s88, 1
      %p798 = por %p796, %p797
      %p800 = scmp.ne.s32.totalorder %s785, %s799
      %p801 = scmp.eq.s32.totalorder %s88, 0
      %p802 = por %p800, %p801
      %s804 = sadd.s32 %s803, 1
      %p807 = scmp.eq.s32.totalorder %s82, 1
      %p808 = scmp.ne.s32.totalorder %s803, %s805
      %p809 = scmp.eq.s32.totalorder %s82, 0
      %p810 = por %p808, %p809
      %p811 = scmp.ne.s32.totalorder %s803, %s805
      %p812 = scmp.eq.s32.totalorder %s87, 1
      %p813 = por %p811, %p812
      %p814 = scmp.ne.s32.totalorder %s805, %s806
      %p815 = scmp.eq.s32.totalorder %s87, 0
      %p816 = por %p814, %p815
      %p817 = scmp.ne.s32.totalorder %s805, %s806
      %p818 = scmp.eq.s32.totalorder %s88, 1
      %p819 = por %p817, %p818
      %p821 = scmp.ne.s32.totalorder %s806, %s820
      %p822 = scmp.eq.s32.totalorder %s88, 0
      %p823 = por %p821, %p822
      %s825 = sadd.s32 %s824, 1
      %p828 = scmp.eq.s32.totalorder %s82, 1
      %p829 = scmp.ne.s32.totalorder %s824, %s826
      %p830 = scmp.eq.s32.totalorder %s82, 0
      %p831 = por %p829, %p830
      %p832 = scmp.ne.s32.totalorder %s824, %s826
      %p833 = scmp.eq.s32.totalorder %s87, 1
      %p834 = por %p832, %p833
      %p835 = scmp.ne.s32.totalorder %s826, %s827
      %p836 = scmp.eq.s32.totalorder %s87, 0
      %p837 = por %p835, %p836
      %p838 = scmp.ne.s32.totalorder %s826, %s827
      %p839 = scmp.eq.s32.totalorder %s88, 1
      %p840 = por %p838, %p839
      %p842 = scmp.ne.s32.totalorder %s827, %s841
      %p843 = scmp.eq.s32.totalorder %s88, 0
      %p844 = por %p842, %p843
      %s846 = sadd.s32 %s845, 1
      %p849 = scmp.eq.s32.totalorder %s82, 1
      %p850 = scmp.ne.s32.totalorder %s845, %s847
      %p851 = scmp.eq.s32.totalorder %s82, 0
      %p852 = por %p850, %p851
      %p853 = scmp.ne.s32.totalorder %s845, %s847
      %p854 = scmp.eq.s32.totalorder %s87, 1
      %p855 = por %p853, %p854
      %p856 = scmp.ne.s32.totalorder %s847, %s848
      %p857 = scmp.eq.s32.totalorder %s87, 0
      %p858 = por %p856, %p857
      %p859 = scmp.ne.s32.totalorder %s847, %s848
      %p860 = scmp.eq.s32.totalorder %s88, 1
      %p861 = por %p859, %p860
      %p863 = scmp.ne.s32.totalorder %s848, %s862
      %p864 = scmp.eq.s32.totalorder %s88, 0
      %p865 = por %p863, %p864
      %s866 = ssub.s32 %s82, %s89
      %p867 = scmp.eq.s32.totalorder %s866, 0
      %s869 = sadd.s32 %s868, 1
      %s870 = scalar_select %p867, %s868, %s869
      %p873 = pneg %p867
      %p874 = scmp.eq.s32.totalorder %s82, 1
      %p875 = por %p873, %p874
      %p876 = scmp.ne.s32.totalorder %s868, %s871
      %p877 = scmp.eq.s32.totalorder %s82, 0
      %p878 = por %p876, %p877
      %p879 = scmp.ne.s32.totalorder %s868, %s871
      %p880 = scmp.eq.s32.totalorder %s87, 1
      %p881 = por %p879, %p880
      %p882 = scmp.ne.s32.totalorder %s871, %s872
      %p883 = scmp.eq.s32.totalorder %s87, 0
      %p884 = por %p882, %p883
      %p885 = scmp.ne.s32.totalorder %s871, %s872
      %p886 = scmp.eq.s32.totalorder %s88, 1
      %p887 = por %p885, %p886
      %p889 = scmp.ne.s32.totalorder %s872, %s888
      %p890 = scmp.eq.s32.totalorder %s88, 0
      %p891 = por %p889, %p890
      %p892 = scmp.le.s32.totalorder 1, %s82
      %p893 = scmp.lt.s32.totalorder %s82, 3
      %p894 = pnand %p892, %p893
      %p895 = pneg %p894
      // Predicated region
      $region9: #{dialog_transformer_forward.1} parent=5 // pred_check
        _
      $region10: #{dialog_transformer_forward.1} parent=5 // pred_check_branch
        %897 = sbr.rel (%p894) target = $region12
      $region11: #{dialog_transformer_forward.1} parent=5 // pred_region
        %s898 = ssub.s32 %s82, 1
        // Predicated region
        $region13: #{dialog_transformer_forward.1} parent=11 // pred_check
          %p899 = pneg %p207
        $region14: #{dialog_transformer_forward.1} parent=11 // pred_check_branch
          %901 = sbr.rel (%p899) target = $region16
        $region15: #{dialog_transformer_forward.1} parent=11 // pred_region
          _
        $region16: #{dialog_transformer_forward.1} parent=11 // pred_fallthru
          _
        // Predicated region
        $region17: #{dialog_transformer_forward.1} parent=11 // pred_check
          %p902 = pneg %p228
        $region18: #{dialog_transformer_forward.1} parent=11 // pred_check_branch
          %904 = sbr.rel (%p902) target = $region20
        $region19: #{dialog_transformer_forward.1} parent=11 // pred_region
          _
        $region20: #{dialog_transformer_forward.1} parent=11 // pred_fallthru
          _
        // Predicated region
        $region21: #{dialog_transformer_forward.1} parent=11 // pred_check
          %p905 = pneg %p249
        $region22: #{dialog_transformer_forward.1} parent=11 // pred_check_branch
          %907 = sbr.rel (%p905) target = $region24
        $region23: #{dialog_transformer_forward.1} parent=11 // pred_region
          _
        $region24: #{dialog_transformer_forward.1} parent=11 // pred_fallthru
          _
        // Predicated region
        $region25: #{dialog_transformer_forward.1} parent=11 // pred_check
          %p908 = pneg %p270
        $region26: #{dialog_transformer_forward.1} parent=11 // pred_check_branch
          %910 = sbr.rel (%p908) target = $region28
        $region27: #{dialog_transformer_forward.1} parent=11 // pred_region
          _
        $region28: #{dialog_transformer_forward.1} parent=11 // pred_fallthru
          _
        // Predicated region
        $region29: #{dialog_transformer_forward.1} parent=11 // pred_check
          %p911 = pneg %p291
        $region30: #{dialog_transformer_forward.1} parent=11 // pred_check_branch
          %913 = sbr.rel (%p911) target = $region32
        $region31: #{dialog_transformer_forward.1} parent=11 // pred_region
          _
        $region32: #{dialog_transformer_forward.1} parent=11 // pred_fallthru
          _
        // Predicated region
        $region33: #{dialog_transformer_forward.1} parent=11 // pred_check
          %p914 = pneg %p312
        $region34: #{dialog_transformer_forward.1} parent=11 // pred_check_branch
          %916 = sbr.rel (%p914) target = $region36
        $region35: #{dialog_transformer_forward.1} parent=11 // pred_region
          _
        $region36: #{dialog_transformer_forward.1} parent=11 // pred_fallthru
          _
        // Predicated region
        $region37: #{dialog_transformer_forward.1} parent=11 // pred_check
          %p917 = pneg %p333
        $region38: #{dialog_transformer_forward.1} parent=11 // pred_check_branch
          %919 = sbr.rel (%p917) target = $region40
        $region39: #{dialog_transformer_forward.1} parent=11 // pred_region
          _
        $region40: #{dialog_transformer_forward.1} parent=11 // pred_fallthru
          _
        // Predicated region
        $region41: #{dialog_transformer_forward.1} parent=11 // pred_check
          %p920 = pneg %p354
        $region42: #{dialog_transformer_forward.1} parent=11 // pred_check_branch
          %922 = sbr.rel (%p920) target = $region44
        $region43: #{dialog_transformer_forward.1} parent=11 // pred_region
          _
        $region44: #{dialog_transformer_forward.1} parent=11 // pred_fallthru
          _
        // Predicated region
        $region45: #{dialog_transformer_forward.1} parent=11 // pred_check
          %p923 = pneg %p375
        $region46: #{dialog_transformer_forward.1} parent=11 // pred_check_branch
          %925 = sbr.rel (%p923) target = $region48
        $region47: #{dialog_transformer_forward.1} parent=11 // pred_region
          _
        $region48: #{dialog_transformer_forward.1} parent=11 // pred_fallthru
          _
        // Predicated region
        $region49: #{dialog_transformer_forward.1} parent=11 // pred_check
          %p926 = pneg %p396
        $region50: #{dialog_transformer_forward.1} parent=11 // pred_check_branch
          %928 = sbr.rel (%p926) target = $region52
        $region51: #{dialog_transformer_forward.1} parent=11 // pred_region
          _
        $region52: #{dialog_transformer_forward.1} parent=11 // pred_fallthru
          _
        // Predicated region
        $region53: #{dialog_transformer_forward.1} parent=11 // pred_check
          %p929 = pneg %p417
        $region54: #{dialog_transformer_forward.1} parent=11 // pred_check_branch
          %931 = sbr.rel (%p929) target = $region56
        $region55: #{dialog_transformer_forward.1} parent=11 // pred_region
          _
        $region56: #{dialog_transformer_forward.1} parent=11 // pred_fallthru
          _
        // Predicated region
        $region57: #{dialog_transformer_forward.1} parent=11 // pred_check
          %p932 = pneg %p438
        $region58: #{dialog_transformer_forward.1} parent=11 // pred_check_branch
          %934 = sbr.rel (%p932) target = $region60
        $region59: #{dialog_transformer_forward.1} parent=11 // pred_region
          _
        $region60: #{dialog_transformer_forward.1} parent=11 // pred_fallthru
          _
        // Predicated region
        $region61: #{dialog_transformer_forward.1} parent=11 // pred_check
          %p935 = pneg %p459
        $region62: #{dialog_transformer_forward.1} parent=11 // pred_check_branch
          %937 = sbr.rel (%p935) target = $region64
        $region63: #{dialog_transformer_forward.1} parent=11 // pred_region
          _
        $region64: #{dialog_transformer_forward.1} parent=11 // pred_fallthru
          _
        // Predicated region
        $region65: #{dialog_transformer_forward.1} parent=11 // pred_check
          %p938 = pneg %p480
        $region66: #{dialog_transformer_forward.1} parent=11 // pred_check_branch
          %940 = sbr.rel (%p938) target = $region68
        $region67: #{dialog_transformer_forward.1} parent=11 // pred_region
          _
        $region68: #{dialog_transformer_forward.1} parent=11 // pred_fallthru
          _
        // Predicated region
        $region69: #{dialog_transformer_forward.1} parent=11 // pred_check
          %p941 = pneg %p501
        $region70: #{dialog_transformer_forward.1} parent=11 // pred_check_branch
          %943 = sbr.rel (%p941) target = $region72
        $region71: #{dialog_transformer_forward.1} parent=11 // pred_region
          _
        $region72: #{dialog_transformer_forward.1} parent=11 // pred_fallthru
          _
        // Predicated region
        $region73: #{dialog_transformer_forward.1} parent=11 // pred_check
          %p944 = pneg %p522
        $region74: #{dialog_transformer_forward.1} parent=11 // pred_check_branch
          %946 = sbr.rel (%p944) target = $region76
        $region75: #{dialog_transformer_forward.1} parent=11 // pred_region
          _
        $region76: #{dialog_transformer_forward.1} parent=11 // pred_fallthru
          _
        // Predicated region
        $region77: #{dialog_transformer_forward.1} parent=11 // pred_check
          %p947 = pneg %p543
        $region78: #{dialog_transformer_forward.1} parent=11 // pred_check_branch
          %949 = sbr.rel (%p947) target = $region80
        $region79: #{dialog_transformer_forward.1} parent=11 // pred_region
          _
        $region80: #{dialog_transformer_forward.1} parent=11 // pred_fallthru
          _
        // Predicated region
        $region81: #{dialog_transformer_forward.1} parent=11 // pred_check
          %p950 = pneg %p564
        $region82: #{dialog_transformer_forward.1} parent=11 // pred_check_branch
          %952 = sbr.rel (%p950) target = $region84
        $region83: #{dialog_transformer_forward.1} parent=11 // pred_region
          _
        $region84: #{dialog_transformer_forward.1} parent=11 // pred_fallthru
          _
        // Predicated region
        $region85: #{dialog_transformer_forward.1} parent=11 // pred_check
          %p953 = pneg %p585
        $region86: #{dialog_transformer_forward.1} parent=11 // pred_check_branch
          %955 = sbr.rel (%p953) target = $region88
        $region87: #{dialog_transformer_forward.1} parent=11 // pred_region
          _
        $region88: #{dialog_transformer_forward.1} parent=11 // pred_fallthru
          _
        // Predicated region
        $region89: #{dialog_transformer_forward.1} parent=11 // pred_check
          %p956 = pneg %p606
        $region90: #{dialog_transformer_forward.1} parent=11 // pred_check_branch
          %958 = sbr.rel (%p956) target = $region92
        $region91: #{dialog_transformer_forward.1} parent=11 // pred_region
          _
        $region92: #{dialog_transformer_forward.1} parent=11 // pred_fallthru
          _
        // Predicated region
        $region93: #{dialog_transformer_forward.1} parent=11 // pred_check
          %p959 = pneg %p627
        $region94: #{dialog_transformer_forward.1} parent=11 // pred_check_branch
          %961 = sbr.rel (%p959) target = $region96
        $region95: #{dialog_transformer_forward.1} parent=11 // pred_region
          _
        $region96: #{dialog_transformer_forward.1} parent=11 // pred_fallthru
          _
        // Predicated region
        $region97: #{dialog_transformer_forward.1} parent=11 // pred_check
          %p962 = pneg %p648
        $region98: #{dialog_transformer_forward.1} parent=11 // pred_check_branch
          %964 = sbr.rel (%p962) target = $region100
        $region99: #{dialog_transformer_forward.1} parent=11 // pred_region
          _
        $region100: #{dialog_transformer_forward.1} parent=11 // pred_fallthru
          _
        // Predicated region
        $region101: #{dialog_transformer_forward.1} parent=11 // pred_check
          %p965 = pneg %p669
        $region102: #{dialog_transformer_forward.1} parent=11 // pred_check_branch
          %967 = sbr.rel (%p965) target = $region104
        $region103: #{dialog_transformer_forward.1} parent=11 // pred_region
          _
        $region104: #{dialog_transformer_forward.1} parent=11 // pred_fallthru
          _
        // Predicated region
        $region105: #{dialog_transformer_forward.1} parent=11 // pred_check
          %p968 = pneg %p690
        $region106: #{dialog_transformer_forward.1} parent=11 // pred_check_branch
          %970 = sbr.rel (%p968) target = $region108
        $region107: #{dialog_transformer_forward.1} parent=11 // pred_region
          _
        $region108: #{dialog_transformer_forward.1} parent=11 // pred_fallthru
          _
        // Predicated region
        $region109: #{dialog_transformer_forward.1} parent=11 // pred_check
          %p971 = pneg %p711
        $region110: #{dialog_transformer_forward.1} parent=11 // pred_check_branch
          %973 = sbr.rel (%p971) target = $region112
        $region111: #{dialog_transformer_forward.1} parent=11 // pred_region
          _
        $region112: #{dialog_transformer_forward.1} parent=11 // pred_fallthru
          _
        // Predicated region
        $region113: #{dialog_transformer_forward.1} parent=11 // pred_check
          %p974 = pneg %p732
        $region114: #{dialog_transformer_forward.1} parent=11 // pred_check_branch
          %976 = sbr.rel (%p974) target = $region116
        $region115: #{dialog_transformer_forward.1} parent=11 // pred_region
          _
        $region116: #{dialog_transformer_forward.1} parent=11 // pred_fallthru
          _
        // Predicated region
        $region117: #{dialog_transformer_forward.1} parent=11 // pred_check
          %p977 = pneg %p753
        $region118: #{dialog_transformer_forward.1} parent=11 // pred_check_branch
          %979 = sbr.rel (%p977) target = $region120
        $region119: #{dialog_transformer_forward.1} parent=11 // pred_region
          _
        $region120: #{dialog_transformer_forward.1} parent=11 // pred_fallthru
          _
        // Predicated region
        $region121: #{dialog_transformer_forward.1} parent=11 // pred_check
          %p980 = pneg %p774
        $region122: #{dialog_transformer_forward.1} parent=11 // pred_check_branch
          %982 = sbr.rel (%p980) target = $region124
        $region123: #{dialog_transformer_forward.1} parent=11 // pred_region
          _
        $region124: #{dialog_transformer_forward.1} parent=11 // pred_fallthru
          _
        // Predicated region
        $region125: #{dialog_transformer_forward.1} parent=11 // pred_check
          %p983 = pneg %p795
        $region126: #{dialog_transformer_forward.1} parent=11 // pred_check_branch
          %985 = sbr.rel (%p983) target = $region128
        $region127: #{dialog_transformer_forward.1} parent=11 // pred_region
          _
        $region128: #{dialog_transformer_forward.1} parent=11 // pred_fallthru
          _
        // Predicated region
        $region129: #{dialog_transformer_forward.1} parent=11 // pred_check
          %p986 = pneg %p816
        $region130: #{dialog_transformer_forward.1} parent=11 // pred_check_branch
          %988 = sbr.rel (%p986) target = $region132
        $region131: #{dialog_transformer_forward.1} parent=11 // pred_region
          _
        $region132: #{dialog_transformer_forward.1} parent=11 // pred_fallthru
          _
        // Predicated region
        $region133: #{dialog_transformer_forward.1} parent=11 // pred_check
          %p989 = pneg %p837
        $region134: #{dialog_transformer_forward.1} parent=11 // pred_check_branch
          %991 = sbr.rel (%p989) target = $region136
        $region135: #{dialog_transformer_forward.1} parent=11 // pred_region
          _
        $region136: #{dialog_transformer_forward.1} parent=11 // pred_fallthru
          _
        // Predicated region
        $region137: #{dialog_transformer_forward.1} parent=11 // pred_check
          %p992 = pneg %p858
        $region138: #{dialog_transformer_forward.1} parent=11 // pred_check_branch
          %994 = sbr.rel (%p992) target = $region140
        $region139: #{dialog_transformer_forward.1} parent=11 // pred_region
          _
        $region140: #{dialog_transformer_forward.1} parent=11 // pred_fallthru
          _
      $region12: #{dialog_transformer_forward.1} parent=5 // pred_fallthru
        _
      %p995 = scmp.lt.s32.totalorder %s82, 2
      // Predicated region
      $region141: #{dialog_transformer_forward.1} parent=5 // pred_check
        %p996 = pneg %p995
      $region142: #{dialog_transformer_forward.1} parent=5 // pred_check_branch
        %998 = sbr.rel (%p996) target = $region144
      $region143: #{dialog_transformer_forward.1} parent=5 // pred_region
        // Predicated region
        $region145: #{dialog_transformer_forward.1} parent=143 // pred_check
          %p999 = pneg %p102
        $region146: #{dialog_transformer_forward.1} parent=143 // pred_check_branch
          %1001 = sbr.rel (%p999) target = $region148
        $region147: #{dialog_transformer_forward.1} parent=143 // pred_region
          %p1002 = scmp.lt.s32.totalorder %s82, 1
          %s1003 = scalar_select %p1002, %s82, 1
          %s1004 = smul.addr %s1003, 8
          %s1005 = scalar_lea.vmem %s1, %s1004
        $region148: #{dialog_transformer_forward.1} parent=143 // pred_fallthru
          _
        // Predicated region
        $region149: #{dialog_transformer_forward.1} parent=143 // pred_check
          %p1006 = pneg %p128
        $region150: #{dialog_transformer_forward.1} parent=143 // pred_check_branch
          %1008 = sbr.rel (%p1006) target = $region152
        $region151: #{dialog_transformer_forward.1} parent=143 // pred_region
          %p1009 = scmp.lt.s32.totalorder %s82, 1
          %s1010 = scalar_select %p1009, %s82, 1
          %s1011 = smul.addr %s1010, 8
          %s1012 = scalar_lea.vmem %s3, %s1011
        $region152: #{dialog_transformer_forward.1} parent=143 // pred_fallthru
          _
        // Predicated region
        $region153: #{dialog_transformer_forward.1} parent=143 // pred_check
          %p1013 = pneg %p154
        $region154: #{dialog_transformer_forward.1} parent=143 // pred_check_branch
          %1015 = sbr.rel (%p1013) target = $region156
        $region155: #{dialog_transformer_forward.1} parent=143 // pred_region
          %p1016 = scmp.lt.s32.totalorder %s82, 1
          %s1017 = scalar_select %p1016, %s82, 1
          %s1018 = scalar_lea.vmem %s5, %s1017
        $region156: #{dialog_transformer_forward.1} parent=143 // pred_fallthru
          _
        // Predicated region
        $region157: #{dialog_transformer_forward.1} parent=143 // pred_check
          %p1019 = pneg %p180
        $region158: #{dialog_transformer_forward.1} parent=143 // pred_check_branch
          %1021 = sbr.rel (%p1019) target = $region160
        $region159: #{dialog_transformer_forward.1} parent=143 // pred_region
          %p1022 = scmp.lt.s32.totalorder %s82, 1
          %s1023 = scalar_select %p1022, %s82, 1
          %s1024 = scalar_lea.vmem %s7, %s1023
        $region160: #{dialog_transformer_forward.1} parent=143 // pred_fallthru
          _
      $region144: #{dialog_transformer_forward.1} parent=5 // pred_fallthru
        _
      %p1025 = scmp.le.s32.totalorder 1, %s82
      %p1026 = scmp.lt.s32.totalorder %s82, 3
      %p1027 = pnand %p1025, %p1026
      %p1028 = pneg %p1027
      // Predicated region
      $region161: #{dialog_transformer_forward.1} parent=5 // pred_check
        _
      $region162: #{dialog_transformer_forward.1} parent=5 // pred_check_branch
        %1030 = sbr.rel (%p1027) target = $region164
      $region163: #{dialog_transformer_forward.1} parent=5 // pred_region
        %s1031 = ssub.s32 %s82, 1
        %p1032 = scmp.lt.s32.totalorder %s87, 1
        %s1033 = scalar_select %p1032, %s87, 1
        %s1034 = smul.addr %s1033, 8
        %s1035 = scalar_lea.vmem %s1, %s1034
        %p1036 = pneg %p108
        %p1037 = pneg %p105
        %p1038 = scmp.lt.s32.totalorder %s87, 1
        %s1039 = scalar_select %p1038, %s87, 1
        %s1040 = smul.addr %s1039, 8
        %s1041 = scalar_lea.vmem %s3, %s1040
        %p1042 = pneg %p134
        %p1043 = pneg %p131
        %p1044 = scmp.lt.s32.totalorder %s87, 1
        %s1045 = scalar_select %p1044, %s87, 1
        %s1046 = scalar_lea.vmem %s5, %s1045
        %p1047 = pneg %p160
        %p1048 = pneg %p157
        %p1049 = scmp.lt.s32.totalorder %s87, 1
        %s1050 = scalar_select %p1049, %s87, 1
        %s1051 = scalar_lea.vmem %s7, %s1050
        %p1052 = pneg %p186
        %p1053 = pneg %p183
        %p1054 = pneg %p207
        %p1055 = pneg %p204
        %p1056 = pneg %p228
        %p1057 = pneg %p225
        %p1058 = pneg %p249
        %p1059 = pneg %p246
        %p1060 = pneg %p270
        %p1061 = pneg %p267
        %p1062 = pneg %p291
        %p1063 = pneg %p288
        %p1064 = pneg %p312
        %p1065 = pneg %p309
        %p1066 = pneg %p333
        %p1067 = pneg %p330
        %p1068 = pneg %p354
        %p1069 = pneg %p351
        %p1070 = pneg %p375
        %p1071 = pneg %p372
        %p1072 = pneg %p396
        %p1073 = pneg %p393
        %p1074 = pneg %p417
        %p1075 = pneg %p414
        %p1076 = pneg %p438
        %p1077 = pneg %p435
        %p1078 = pneg %p459
        %p1079 = pneg %p456
        %p1080 = pneg %p480
        %p1081 = pneg %p477
        %p1082 = pneg %p501
        %p1083 = pneg %p498
        %p1084 = pneg %p522
        %p1085 = pneg %p519
        %p1086 = pneg %p543
        %p1087 = pneg %p540
        %p1088 = pneg %p564
        %p1089 = pneg %p561
        %p1090 = pneg %p585
        %p1091 = pneg %p582
        %p1092 = pneg %p606
        %p1093 = pneg %p603
        %p1094 = pneg %p627
        %p1095 = pneg %p624
        %p1096 = pneg %p648
        %p1097 = pneg %p645
        %p1098 = pneg %p669
        %p1099 = pneg %p666
        %p1100 = pneg %p690
        %p1101 = pneg %p687
        %p1102 = pneg %p711
        %p1103 = pneg %p708
        %p1104 = pneg %p732
        %p1105 = pneg %p729
        %p1106 = pneg %p753
        %p1107 = pneg %p750
        %p1108 = pneg %p774
        %p1109 = pneg %p771
        %p1110 = pneg %p795
        %p1111 = pneg %p792
        %p1112 = pneg %p816
        %p1113 = pneg %p813
        %p1114 = pneg %p837
        %p1115 = pneg %p834
        %p1116 = pneg %p858
        %p1117 = pneg %p855
        %p1118 = pneg %p884
        %p1119 = pneg %p881
        %s1120 = sand.u32 %s871, 1
        %s1121 = scalar_lea.sflag [#allocation3], %s1120
        %s1122 = sand.u32 %s871, 1
        %s1123 = smul.addr %s1122, 8
        %s1124 = scalar_lea.vmem [#allocation2], %s1123
        %p1125 = scmp.lt.s32.totalorder %s87, 1
        %s1126 = scalar_select %p1125, %s87, 1
        %s1127 = smul.addr %s1126, 8
        %s1128 = scalar_lea.vmem %s1, %s1127
        %p1129 = scmp.lt.s32.totalorder %s87, 1
        %s1130 = scalar_select %p1129, %s87, 1
        %s1131 = smul.addr %s1130, 8
        %s1132 = scalar_lea.vmem %s3, %s1131
        %p1133 = scmp.lt.s32.totalorder %s87, 1
        %s1134 = scalar_select %p1133, %s87, 1
        %s1135 = scalar_lea.vmem %s5, %s1134
        %p1136 = scmp.lt.s32.totalorder %s87, 1
        %s1137 = scalar_select %p1136, %s87, 1
        %s1138 = scalar_lea.vmem %s7, %s1137
        %v1139 = vld [vmem:[%s1135] sm:$0x1]
        %v1140 = vmul.f32 %v1139, -1e+30
        %v1141 = vld [vmem:[%s1138] sm:$0x1]
        %v1142 = vmul.f32 %v1141, -1e+30
        %v1143 = vld [vmem:[%s1128] sm:$0xff]
        %v1144 = vld [vmem:[%s9] sm:$0xff]
        %v1145 = vld [vmem:[%s9 + $0x8] sm:$0xff]
        %v1146 = vld [vmem:[%s9 + $0x10] sm:$0xff]
        %v1147 = vld [vmem:[%s9 + $0x18] sm:$0xff]
        %v1148 = vld [vmem:[%s11] sm:$0x1]
        %v1149 = vld [vmem:[%s13] sm:$0xff]
        %v1150 = vld [vmem:[%s13 + $0x8] sm:$0xff]
        %v1151 = vld [vmem:[%s13 + $0x10] sm:$0xff]
        %v1152 = vld [vmem:[%s13 + $0x18] sm:$0xff]
        %v1153 = vld [vmem:[%s15] sm:$0x1]
        %v1155 = vlaneseq
        %v1156 = vshrl.u32 %v1155, 7
        %v1157 = vsub.s32 0, %v1156
        %v1158 = vrot.slane %v1148, %v1157
        %vm1160 = vcmask 261120
        %v1162 = vsel %vm1160, %v1143, 0
        %1164 = vmatprep.subr.mxu0 0.0
        %1165 = vmatpush1.msra.mxu0 %v1144
        %1166 = vmatprep.subr.mxu0 0.0
        %1167 = vmatpush1.msra.mxu0 %v1145
        %1168 = vmatprep.subr.mxu0 0.0
        %1169 = vmatpush1.msra.mxu0 %v1146
        %1170 = vmatprep.subr.mxu0 0.0
        %1171 = vmatpush1.msra.mxu0 %v1147
        %1172 = vmatprep.subr.mxu0 0.0
        %1173 = vmatpush1.msra.mxu0 0.0
        %1174 = vmatprep.subr.mxu0 0.0
        %1175 = vmatpush1.msra.mxu0 0.0
        %1176 = vmatprep.subr.mxu0 0.0
        %1177 = vmatpush1.msra.mxu0 0.0
        %1178 = vmatprep.subr.mxu0 0.0
        %1179 = vmatpush1.msra.mxu0 0.0
        %1180 = vmatprep.subr.mxu0 0.0
        %1181 = vmatpush1.msra.mxu0 0.0
        %1182 = vmatprep.subr.mxu0 0.0
        %1183 = vmatpush1.msra.mxu0 0.0
        %1184 = vmatprep.subr.mxu0 0.0
        %1185 = vmatpush1.msra.mxu0 0.0
        %1186 = vmatprep.subr.mxu0 0.0
        %1187 = vmatpush1.msra.mxu0 0.0
        %1188 = vmatprep.subr.mxu0 0.0
        %1189 = vmatpush1.msra.mxu0 0.0
        %1190 = vmatprep.subr.mxu0 0.0
        %1191 = vmatpush1.msra.mxu0 0.0
        %1192 = vmatprep.subr.mxu0 0.0
        %1193 = vmatpush1.msra.mxu0 0.0
        %1194 = vmatprep.subr.mxu0 0.0
        %1195 = vmatpush1.msra.mxu0 0.0
        %1196 = vmatprep.subr.mxu0 0.0
        %1197 = vmatpush1.msra.mxu0 0.0
        %1198 = vmatprep.subr.mxu0 0.0
        %1199 = vmatpush1.msra.mxu0 0.0
        %1200 = vmatprep.subr.mxu0 0.0
        %1201 = vmatpush1.msra.mxu0 0.0
        %1202 = vmatprep.subr.mxu0 0.0
        %1203 = vmatpush1.msra.mxu0 0.0
        %1204 = vmatprep.subr.mxu0 0.0
        %1205 = vmatpush1.msra.mxu0 0.0
        %1206 = vmatprep.subr.mxu0 0.0
        %1207 = vmatpush1.msra.mxu0 0.0
        %1208 = vmatprep.subr.mxu0 0.0
        %1209 = vmatpush1.msra.mxu0 0.0
        %1210 = vmatprep.subr.mxu0 0.0
        %1211 = vmatpush1.msra.mxu0 0.0
        %1212 = vmatprep.subr.mxu0 0.0
        %1213 = vmatpush1.msra.mxu0 0.0
        %1214 = vmatprep.subr.mxu0 0.0
        %1215 = vmatpush1.msra.mxu0 0.0
        %1216 = vmatprep.subr.mxu0 0.0
        %1217 = vmatpush1.msra.mxu0 0.0
        %1218 = vmatprep.subr.mxu0 0.0
        %1219 = vmatpush1.msra.mxu0 0.0
        %1220 = vmatprep.subr.mxu0 0.0
        %1221 = vmatpush1.msra.mxu0 0.0
        %1222 = vmatprep.subr.mxu0 0.0
        %1223 = vmatpush1.msra.mxu0 0.0
        %1224 = vmatprep.subr.mxu0 0.0
        %1225 = vmatpush1.msra.mxu0 0.0
        %1226 = vmatprep.subr.mxu0 0.0
        %1227 = vmatpush1.msra.mxu0 0.0
        %1228 = vmatprep.mubr.f32.mxu0 0.0
        %1229 = vmatmul.mubr.f32.gmra.mrb[0].mxu0 %v1162
        %v1230 = vpop.f32.mrb[0].mxu0
        %v1231 = vadd.f32 %v1158, %v1230
        %v1232 = vpop.f32.mrb[0].mxu0
        %1233 = vdwg.mxu0
        %1235 = vrot.lane.b32.xlu0 %v1231, 96
        %v1236 = vpop.permute.xlu0 %1235
        %vm1237 = vcmask 64512
        %v1238 = vsel %vm1237, %v1231, 0
        %v1240 = vsel %vm1237, %v1236, 0
        %1242 = vmatprep.subr.mxu0 0.0
        %1243 = vmatpush1.xpose.msra.mxu0 %v1240
        %1244 = vmatprep.subr.mxu0 0.0
        %1245 = vmatpush1.xpose.msra.mxu0 0.0
        %1246 = vmatprep.subr.mxu0 0.0
        %1247 = vmatpush1.xpose.msra.mxu0 0.0
        %1248 = vmatprep.subr.mxu0 0.0
        %1249 = vmatpush1.xpose.msra.mxu0 0.0
        %1250 = vmatprep.subr.mxu0 0.0
        %1251 = vmatpush1.xpose.msra.mxu0 0.0
        %1252 = vmatprep.subr.mxu0 0.0
        %1253 = vmatpush1.xpose.msra.mxu0 0.0
        %1254 = vmatprep.subr.mxu0 0.0
        %1255 = vmatpush1.xpose.msra.mxu0 0.0
        %1256 = vmatprep.subr.mxu0 0.0
        %1257 = vmatpush1.xpose.msra.mxu0 0.0
        %1258 = vmatprep.subr.mxu0 0.0
        %1259 = vmatpush1.xpose.msra.mxu0 0.0
        %1260 = vmatprep.subr.mxu0 0.0
        %1261 = vmatpush1.xpose.msra.mxu0 0.0
        %1262 = vmatprep.subr.mxu0 0.0
        %1263 = vmatpush1.xpose.msra.mxu0 0.0
        %1264 = vmatprep.subr.mxu0 0.0
        %1265 = vmatpush1.xpose.msra.mxu0 0.0
        %1266 = vmatprep.subr.mxu0 0.0
        %1267 = vmatpush1.xpose.msra.mxu0 0.0
        %1268 = vmatprep.subr.mxu0 0.0
        %1269 = vmatpush1.xpose.msra.mxu0 0.0
        %1270 = vmatprep.subr.mxu0 0.0
        %1271 = vmatpush1.xpose.msra.mxu0 0.0
        %1272 = vmatprep.subr.mxu0 0.0
        %1273 = vmatpush1.xpose.msra.mxu0 0.0
        %1274 = vmatprep.subr.mxu0 0.0
        %1275 = vmatpush1.xpose.msra.mxu0 0.0
        %1276 = vmatprep.subr.mxu0 0.0
        %1277 = vmatpush1.xpose.msra.mxu0 0.0
        %1278 = vmatprep.subr.mxu0 0.0
        %1279 = vmatpush1.xpose.msra.mxu0 0.0
        %1280 = vmatprep.subr.mxu0 0.0
        %1281 = vmatpush1.xpose.msra.mxu0 0.0
        %1282 = vmatprep.subr.mxu0 0.0
        %1283 = vmatpush1.xpose.msra.mxu0 0.0
        %1284 = vmatprep.subr.mxu0 0.0
        %1285 = vmatpush1.xpose.msra.mxu0 0.0
        %1286 = vmatprep.subr.mxu0 0.0
        %1287 = vmatpush1.xpose.msra.mxu0 0.0
        %1288 = vmatprep.subr.mxu0 0.0
        %1289 = vmatpush1.xpose.msra.mxu0 0.0
        %1290 = vmatprep.subr.mxu0 0.0
        %1291 = vmatpush1.xpose.msra.mxu0 0.0
        %1292 = vmatprep.subr.mxu0 0.0
        %1293 = vmatpush1.xpose.msra.mxu0 0.0
        %1294 = vmatprep.subr.mxu0 0.0
        %1295 = vmatpush1.xpose.msra.mxu0 0.0
        %1296 = vmatprep.subr.mxu0 0.0
        %1297 = vmatpush1.xpose.msra.mxu0 0.0
        %1298 = vmatprep.subr.mxu0 0.0
        %1299 = vmatpush1.xpose.msra.mxu0 0.0
        %1300 = vmatprep.subr.mxu0 0.0
        %1301 = vmatpush1.xpose.msra.mxu0 0.0
        %1302 = vmatprep.subr.mxu0 0.0
        %1303 = vmatpush1.xpose.msra.mxu0 0.0
        %1304 = vmatprep.subr.mxu0 0.0
        %1305 = vmatpush1.xpose.msra.mxu0 0.0
        %1306 = vmatprep.mubr.f32.mxu0 0.0
        %1307 = vmatmul.mubr.f32.gmra.mrb[0].mxu0 %v1238
        %v1308 = vpop.f32.mrb[0].mxu0
        %v1309 = vadd.f32 0.0, %v1308
        %v1310 = vpop.f32.mrb[0].mxu0
        %1311 = vdwg.mxu0
        %v1312 = vmul.f32 %v1309, 0.35355338
        %v1314 = vlaneseq
        %v1315 = vshrl.u32 %v1314, 7
        %v1316 = vsub.s32 0, %v1315
        %v1317 = vrot.slane %v1140, %v1316
        %v1319 = vadd.f32 %v1312, %v1317
        %v1320 = vsel %vm1237, %v1319, -inf
        %1321 = vmax.xlane.f32.xlu0 %v1320
        %v1322 = vpop.xlane.xlu0 %1321
        %v1323 = vsub.f32 %v1319, %v1322
        %v1324 = vmul.f32 %v1323, 1.442695
        %v1325 = vpow.pop %v1324
        %v1326 = vsel %vm1237, %v1325, 0.0
        %1327 = vadd.xlane.f32.xlu0 %v1326
        %v1328 = vpop.xlane.xlu0 %1327
        %v1329 = vrcp.pop %v1328
        %v1330 = vmul.f32 %v1325, %v1329
        %1331 = vrot.lane.b32.xlu0 %v1231, 64
        %v1332 = vpop.permute.xlu0 %1331
        %v1335 = vsel %vm1237, %v1330, 0
        %1337 = vmatprep.subr.mxu0 0.0
        %1338 = vmatpush1.msra.mxu0 %v1332
        %1339 = vmatprep.subr.mxu0 0.0
        %1340 = vmatpush1.msra.mxu0 0.0
        %1341 = vmatprep.subr.mxu0 0.0
        %1342 = vmatpush1.msra.mxu0 0.0
        %1343 = vmatprep.subr.mxu0 0.0
        %1344 = vmatpush1.msra.mxu0 0.0
        %1345 = vmatprep.subr.mxu0 0.0
        %1346 = vmatpush1.msra.mxu0 0.0
        %1347 = vmatprep.subr.mxu0 0.0
        %1348 = vmatpush1.msra.mxu0 0.0
        %1349 = vmatprep.subr.mxu0 0.0
        %1350 = vmatpush1.msra.mxu0 0.0
        %1351 = vmatprep.subr.mxu0 0.0
        %1352 = vmatpush1.msra.mxu0 0.0
        %1353 = vmatprep.subr.mxu0 0.0
        %1354 = vmatpush1.msra.mxu0 0.0
        %1355 = vmatprep.subr.mxu0 0.0
        %1356 = vmatpush1.msra.mxu0 0.0
        %1357 = vmatprep.subr.mxu0 0.0
        %1358 = vmatpush1.msra.mxu0 0.0
        %1359 = vmatprep.subr.mxu0 0.0
        %1360 = vmatpush1.msra.mxu0 0.0
        %1361 = vmatprep.subr.mxu0 0.0
        %1362 = vmatpush1.msra.mxu0 0.0
        %1363 = vmatprep.subr.mxu0 0.0
        %1364 = vmatpush1.msra.mxu0 0.0
        %1365 = vmatprep.subr.mxu0 0.0
        %1366 = vmatpush1.msra.mxu0 0.0
        %1367 = vmatprep.subr.mxu0 0.0
        %1368 = vmatpush1.msra.mxu0 0.0
        %1369 = vmatprep.subr.mxu0 0.0
        %1370 = vmatpush1.msra.mxu0 0.0
        %1371 = vmatprep.subr.mxu0 0.0
        %1372 = vmatpush1.msra.mxu0 0.0
        %1373 = vmatprep.subr.mxu0 0.0
        %1374 = vmatpush1.msra.mxu0 0.0
        %1375 = vmatprep.subr.mxu0 0.0
        %1376 = vmatpush1.msra.mxu0 0.0
        %1377 = vmatprep.subr.mxu0 0.0
        %1378 = vmatpush1.msra.mxu0 0.0
        %1379 = vmatprep.subr.mxu0 0.0
        %1380 = vmatpush1.msra.mxu0 0.0
        %1381 = vmatprep.subr.mxu0 0.0
        %1382 = vmatpush1.msra.mxu0 0.0
        %1383 = vmatprep.subr.mxu0 0.0
        %1384 = vmatpush1.msra.mxu0 0.0
        %1385 = vmatprep.subr.mxu0 0.0
        %1386 = vmatpush1.msra.mxu0 0.0
        %1387 = vmatprep.subr.mxu0 0.0
        %1388 = vmatpush1.msra.mxu0 0.0
        %1389 = vmatprep.subr.mxu0 0.0
        %1390 = vmatpush1.msra.mxu0 0.0
        %1391 = vmatprep.subr.mxu0 0.0
        %1392 = vmatpush1.msra.mxu0 0.0
        %1393 = vmatprep.subr.mxu0 0.0
        %1394 = vmatpush1.msra.mxu0 0.0
        %1395 = vmatprep.subr.mxu0 0.0
        %1396 = vmatpush1.msra.mxu0 0.0
        %1397 = vmatprep.subr.mxu0 0.0
        %1398 = vmatpush1.msra.mxu0 0.0
        %1399 = vmatprep.subr.mxu0 0.0
        %1400 = vmatpush1.msra.mxu0 0.0
        %1401 = vmatprep.mubr.f32.mxu0 0.0
        %1402 = vmatmul.mubr.f32.gmra.mrb[0].mxu0 %v1335
        %v1403 = vpop.f32.mrb[0].mxu0
        %v1404 = vadd.f32 0.0, %v1403
        %v1405 = vpop.f32.mrb[0].mxu0
        %1406 = vdwg.mxu0
        %1407 = vrot.lane.b32.xlu0 %v1231, 120
        %v1408 = vpop.permute.xlu0 %1407
        %1409 = vrot.lane.b32.xlu0 %v1231, 88
        %v1410 = vpop.permute.xlu0 %1409
        %v1411 = vsel %vm1237, %v1408, 0
        %v1413 = vsel %vm1237, %v1410, 0
        %1415 = vmatprep.subr.mxu0 0.0
        %1416 = vmatpush1.xpose.msra.mxu0 %v1413
        %1417 = vmatprep.subr.mxu0 0.0
        %1418 = vmatpush1.xpose.msra.mxu0 0.0
        %1419 = vmatprep.subr.mxu0 0.0
        %1420 = vmatpush1.xpose.msra.mxu0 0.0
        %1421 = vmatprep.subr.mxu0 0.0
        %1422 = vmatpush1.xpose.msra.mxu0 0.0
        %1423 = vmatprep.subr.mxu0 0.0
        %1424 = vmatpush1.xpose.msra.mxu0 0.0
        %1425 = vmatprep.subr.mxu0 0.0
        %1426 = vmatpush1.xpose.msra.mxu0 0.0
        %1427 = vmatprep.subr.mxu0 0.0
        %1428 = vmatpush1.xpose.msra.mxu0 0.0
        %1429 = vmatprep.subr.mxu0 0.0
        %1430 = vmatpush1.xpose.msra.mxu0 0.0
        %1431 = vmatprep.subr.mxu0 0.0
        %1432 = vmatpush1.xpose.msra.mxu0 0.0
        %1433 = vmatprep.subr.mxu0 0.0
        %1434 = vmatpush1.xpose.msra.mxu0 0.0
        %1435 = vmatprep.subr.mxu0 0.0
        %1436 = vmatpush1.xpose.msra.mxu0 0.0
        %1437 = vmatprep.subr.mxu0 0.0
        %1438 = vmatpush1.xpose.msra.mxu0 0.0
        %1439 = vmatprep.subr.mxu0 0.0
        %1440 = vmatpush1.xpose.msra.mxu0 0.0
        %1441 = vmatprep.subr.mxu0 0.0
        %1442 = vmatpush1.xpose.msra.mxu0 0.0
        %1443 = vmatprep.subr.mxu0 0.0
        %1444 = vmatpush1.xpose.msra.mxu0 0.0
        %1445 = vmatprep.subr.mxu0 0.0
        %1446 = vmatpush1.xpose.msra.mxu0 0.0
        %1447 = vmatprep.subr.mxu0 0.0
        %1448 = vmatpush1.xpose.msra.mxu0 0.0
        %1449 = vmatprep.subr.mxu0 0.0
        %1450 = vmatpush1.xpose.msra.mxu0 0.0
        %1451 = vmatprep.subr.mxu0 0.0
        %1452 = vmatpush1.xpose.msra.mxu0 0.0
        %1453 = vmatprep.subr.mxu0 0.0
        %1454 = vmatpush1.xpose.msra.mxu0 0.0
        %1455 = vmatprep.subr.mxu0 0.0
        %1456 = vmatpush1.xpose.msra.mxu0 0.0
        %1457 = vmatprep.subr.mxu0 0.0
        %1458 = vmatpush1.xpose.msra.mxu0 0.0
        %1459 = vmatprep.subr.mxu0 0.0
        %1460 = vmatpush1.xpose.msra.mxu0 0.0
        %1461 = vmatprep.subr.mxu0 0.0
        %1462 = vmatpush1.xpose.msra.mxu0 0.0
        %1463 = vmatprep.subr.mxu0 0.0
        %1464 = vmatpush1.xpose.msra.mxu0 0.0
        %1465 = vmatprep.subr.mxu0 0.0
        %1466 = vmatpush1.xpose.msra.mxu0 0.0
        %1467 = vmatprep.subr.mxu0 0.0
        %1468 = vmatpush1.xpose.msra.mxu0 0.0
        %1469 = vmatprep.subr.mxu0 0.0
        %1470 = vmatpush1.xpose.msra.mxu0 0.0
        %1471 = vmatprep.subr.mxu0 0.0
        %1472 = vmatpush1.xpose.msra.mxu0 0.0
        %1473 = vmatprep.subr.mxu0 0.0
        %1474 = vmatpush1.xpose.msra.mxu0 0.0
        %1475 = vmatprep.subr.mxu0 0.0
        %1476 = vmatpush1.xpose.msra.mxu0 0.0
        %1477 = vmatprep.subr.mxu0 0.0
        %1478 = vmatpush1.xpose.msra.mxu0 0.0
        %1479 = vmatprep.mubr.f32.mxu0 0.0
        %1480 = vmatmul.mubr.f32.gmra.mrb[0].mxu0 %v1411
        %v1481 = vpop.f32.mrb[0].mxu0
        %v1482 = vadd.f32 0.0, %v1481
        %v1483 = vpop.f32.mrb[0].mxu0
        %1484 = vdwg.mxu0
        %v1485 = vmul.f32 %v1482, 0.35355338
        %v1486 = vadd.f32 %v1485, %v1317
        %v1487 = vsel %vm1237, %v1486, -inf
        %1488 = vmax.xlane.f32.xlu0 %v1487
        %v1489 = vpop.xlane.xlu0 %1488
        %v1490 = vsub.f32 %v1486, %v1489
        %v1491 = vmul.f32 %v1490, 1.442695
        %v1492 = vpow.pop %v1491
        %v1493 = vsel %vm1237, %v1492, 0.0
        %1494 = vadd.xlane.f32.xlu0 %v1493
        %v1495 = vpop.xlane.xlu0 %1494
        %v1496 = vrcp.pop %v1495
        %v1497 = vmul.f32 %v1492, %v1496
        %1498 = vrot.lane.b32.xlu0 %v1231, 56
        %v1499 = vpop.permute.xlu0 %1498
        %v1502 = vsel %vm1237, %v1497, 0
        %1504 = vmatprep.subr.mxu0 0.0
        %1505 = vmatpush1.msra.mxu0 %v1499
        %1506 = vmatprep.subr.mxu0 0.0
        %1507 = vmatpush1.msra.mxu0 0.0
        %1508 = vmatprep.subr.mxu0 0.0
        %1509 = vmatpush1.msra.mxu0 0.0
        %1510 = vmatprep.subr.mxu0 0.0
        %1511 = vmatpush1.msra.mxu0 0.0
        %1512 = vmatprep.subr.mxu0 0.0
        %1513 = vmatpush1.msra.mxu0 0.0
        %1514 = vmatprep.subr.mxu0 0.0
        %1515 = vmatpush1.msra.mxu0 0.0
        %1516 = vmatprep.subr.mxu0 0.0
        %1517 = vmatpush1.msra.mxu0 0.0
        %1518 = vmatprep.subr.mxu0 0.0
        %1519 = vmatpush1.msra.mxu0 0.0
        %1520 = vmatprep.subr.mxu0 0.0
        %1521 = vmatpush1.msra.mxu0 0.0
        %1522 = vmatprep.subr.mxu0 0.0
        %1523 = vmatpush1.msra.mxu0 0.0
        %1524 = vmatprep.subr.mxu0 0.0
        %1525 = vmatpush1.msra.mxu0 0.0
        %1526 = vmatprep.subr.mxu0 0.0
        %1527 = vmatpush1.msra.mxu0 0.0
        %1528 = vmatprep.subr.mxu0 0.0
        %1529 = vmatpush1.msra.mxu0 0.0
        %1530 = vmatprep.subr.mxu0 0.0
        %1531 = vmatpush1.msra.mxu0 0.0
        %1532 = vmatprep.subr.mxu0 0.0
        %1533 = vmatpush1.msra.mxu0 0.0
        %1534 = vmatprep.subr.mxu0 0.0
        %1535 = vmatpush1.msra.mxu0 0.0
        %1536 = vmatprep.subr.mxu0 0.0
        %1537 = vmatpush1.msra.mxu0 0.0
        %1538 = vmatprep.subr.mxu0 0.0
        %1539 = vmatpush1.msra.mxu0 0.0
        %1540 = vmatprep.subr.mxu0 0.0
        %1541 = vmatpush1.msra.mxu0 0.0
        %1542 = vmatprep.subr.mxu0 0.0
        %1543 = vmatpush1.msra.mxu0 0.0
        %1544 = vmatprep.subr.mxu0 0.0
        %1545 = vmatpush1.msra.mxu0 0.0
        %1546 = vmatprep.subr.mxu0 0.0
        %1547 = vmatpush1.msra.mxu0 0.0
        %1548 = vmatprep.subr.mxu0 0.0
        %1549 = vmatpush1.msra.mxu0 0.0
        %1550 = vmatprep.subr.mxu0 0.0
        %1551 = vmatpush1.msra.mxu0 0.0
        %1552 = vmatprep.subr.mxu0 0.0
        %1553 = vmatpush1.msra.mxu0 0.0
        %1554 = vmatprep.subr.mxu0 0.0
        %1555 = vmatpush1.msra.mxu0 0.0
        %1556 = vmatprep.subr.mxu0 0.0
        %1557 = vmatpush1.msra.mxu0 0.0
        %1558 = vmatprep.subr.mxu0 0.0
        %1559 = vmatpush1.msra.mxu0 0.0
        %1560 = vmatprep.subr.mxu0 0.0
        %1561 = vmatpush1.msra.mxu0 0.0
        %1562 = vmatprep.subr.mxu0 0.0
        %1563 = vmatpush1.msra.mxu0 0.0
        %1564 = vmatprep.subr.mxu0 0.0
        %1565 = vmatpush1.msra.mxu0 0.0
        %1566 = vmatprep.subr.mxu0 0.0
        %1567 = vmatpush1.msra.mxu0 0.0
        %1568 = vmatprep.mubr.f32.mxu0 0.0
        %1569 = vmatmul.mubr.f32.gmra.mrb[0].mxu0 %v1502
        %v1570 = vpop.f32.mrb[0].mxu0
        %v1571 = vadd.f32 0.0, %v1570
        %v1572 = vpop.f32.mrb[0].mxu0
        %1573 = vdwg.mxu0
        %1574 = vrot.lane.b32.xlu0 %v1231, 112
        %v1575 = vpop.permute.xlu0 %1574
        %1576 = vrot.lane.b32.xlu0 %v1231, 80
        %v1577 = vpop.permute.xlu0 %1576
        %v1578 = vsel %vm1237, %v1575, 0
        %v1580 = vsel %vm1237, %v1577, 0
        %1582 = vmatprep.subr.mxu0 0.0
        %1583 = vmatpush1.xpose.msra.mxu0 %v1580
        %1584 = vmatprep.subr.mxu0 0.0
        %1585 = vmatpush1.xpose.msra.mxu0 0.0
        %1586 = vmatprep.subr.mxu0 0.0
        %1587 = vmatpush1.xpose.msra.mxu0 0.0
        %1588 = vmatprep.subr.mxu0 0.0
        %1589 = vmatpush1.xpose.msra.mxu0 0.0
        %1590 = vmatprep.subr.mxu0 0.0
        %1591 = vmatpush1.xpose.msra.mxu0 0.0
        %1592 = vmatprep.subr.mxu0 0.0
        %1593 = vmatpush1.xpose.msra.mxu0 0.0
        %1594 = vmatprep.subr.mxu0 0.0
        %1595 = vmatpush1.xpose.msra.mxu0 0.0
        %1596 = vmatprep.subr.mxu0 0.0
        %1597 = vmatpush1.xpose.msra.mxu0 0.0
        %1598 = vmatprep.subr.mxu0 0.0
        %1599 = vmatpush1.xpose.msra.mxu0 0.0
        %1600 = vmatprep.subr.mxu0 0.0
        %1601 = vmatpush1.xpose.msra.mxu0 0.0
        %1602 = vmatprep.subr.mxu0 0.0
        %1603 = vmatpush1.xpose.msra.mxu0 0.0
        %1604 = vmatprep.subr.mxu0 0.0
        %1605 = vmatpush1.xpose.msra.mxu0 0.0
        %1606 = vmatprep.subr.mxu0 0.0
        %1607 = vmatpush1.xpose.msra.mxu0 0.0
        %1608 = vmatprep.subr.mxu0 0.0
        %1609 = vmatpush1.xpose.msra.mxu0 0.0
        %1610 = vmatprep.subr.mxu0 0.0
        %1611 = vmatpush1.xpose.msra.mxu0 0.0
        %1612 = vmatprep.subr.mxu0 0.0
        %1613 = vmatpush1.xpose.msra.mxu0 0.0
        %1614 = vmatprep.subr.mxu0 0.0
        %1615 = vmatpush1.xpose.msra.mxu0 0.0
        %1616 = vmatprep.subr.mxu0 0.0
        %1617 = vmatpush1.xpose.msra.mxu0 0.0
        %1618 = vmatprep.subr.mxu0 0.0
        %1619 = vmatpush1.xpose.msra.mxu0 0.0
        %1620 = vmatprep.subr.mxu0 0.0
        %1621 = vmatpush1.xpose.msra.mxu0 0.0
        %1622 = vmatprep.subr.mxu0 0.0
        %1623 = vmatpush1.xpose.msra.mxu0 0.0
        %1624 = vmatprep.subr.mxu0 0.0
        %1625 = vmatpush1.xpose.msra.mxu0 0.0
        %1626 = vmatprep.subr.mxu0 0.0
        %1627 = vmatpush1.xpose.msra.mxu0 0.0
        %1628 = vmatprep.subr.mxu0 0.0
        %1629 = vmatpush1.xpose.msra.mxu0 0.0
        %1630 = vmatprep.subr.mxu0 0.0
        %1631 = vmatpush1.xpose.msra.mxu0 0.0
        %1632 = vmatprep.subr.mxu0 0.0
        %1633 = vmatpush1.xpose.msra.mxu0 0.0
        %1634 = vmatprep.subr.mxu0 0.0
        %1635 = vmatpush1.xpose.msra.mxu0 0.0
        %1636 = vmatprep.subr.mxu0 0.0
        %1637 = vmatpush1.xpose.msra.mxu0 0.0
        %1638 = vmatprep.subr.mxu0 0.0
        %1639 = vmatpush1.xpose.msra.mxu0 0.0
        %1640 = vmatprep.subr.mxu0 0.0
        %1641 = vmatpush1.xpose.msra.mxu0 0.0
        %1642 = vmatprep.subr.mxu0 0.0
        %1643 = vmatpush1.xpose.msra.mxu0 0.0
        %1644 = vmatprep.subr.mxu0 0.0
        %1645 = vmatpush1.xpose.msra.mxu0 0.0
        %1646 = vmatprep.mubr.f32.mxu0 0.0
        %1647 = vmatmul.mubr.f32.gmra.mrb[0].mxu0 %v1578
        %v1648 = vpop.f32.mrb[0].mxu0
        %v1649 = vadd.f32 0.0, %v1648
        %v1650 = vpop.f32.mrb[0].mxu0
        %1651 = vdwg.mxu0
        %v1652 = vmul.f32 %v1649, 0.35355338
        %v1653 = vadd.f32 %v1652, %v1317
        %v1654 = vsel %vm1237, %v1653, -inf
        %1655 = vmax.xlane.f32.xlu0 %v1654
        %v1656 = vpop.xlane.xlu0 %1655
        %v1657 = vsub.f32 %v1653, %v1656
        %v1658 = vmul.f32 %v1657, 1.442695
        %v1659 = vpow.pop %v1658
        %v1660 = vsel %vm1237, %v1659, 0.0
        %1661 = vadd.xlane.f32.xlu0 %v1660
        %v1662 = vpop.xlane.xlu0 %1661
        %v1663 = vrcp.pop %v1662
        %v1664 = vmul.f32 %v1659, %v1663
        %1665 = vrot.lane.b32.xlu0 %v1231, 48
        %v1666 = vpop.permute.xlu0 %1665
        %v1669 = vsel %vm1237, %v1664, 0
        %1671 = vmatprep.subr.mxu0 0.0
        %1672 = vmatpush1.msra.mxu0 %v1666
        %1673 = vmatprep.subr.mxu0 0.0
        %1674 = vmatpush1.msra.mxu0 0.0
        %1675 = vmatprep.subr.mxu0 0.0
        %1676 = vmatpush1.msra.mxu0 0.0
        %1677 = vmatprep.subr.mxu0 0.0
        %1678 = vmatpush1.msra.mxu0 0.0
        %1679 = vmatprep.subr.mxu0 0.0
        %1680 = vmatpush1.msra.mxu0 0.0
        %1681 = vmatprep.subr.mxu0 0.0
        %1682 = vmatpush1.msra.mxu0 0.0
        %1683 = vmatprep.subr.mxu0 0.0
        %1684 = vmatpush1.msra.mxu0 0.0
        %1685 = vmatprep.subr.mxu0 0.0
        %1686 = vmatpush1.msra.mxu0 0.0
        %1687 = vmatprep.subr.mxu0 0.0
        %1688 = vmatpush1.msra.mxu0 0.0
        %1689 = vmatprep.subr.mxu0 0.0
        %1690 = vmatpush1.msra.mxu0 0.0
        %1691 = vmatprep.subr.mxu0 0.0
        %1692 = vmatpush1.msra.mxu0 0.0
        %1693 = vmatprep.subr.mxu0 0.0
        %1694 = vmatpush1.msra.mxu0 0.0
        %1695 = vmatprep.subr.mxu0 0.0
        %1696 = vmatpush1.msra.mxu0 0.0
        %1697 = vmatprep.subr.mxu0 0.0
        %1698 = vmatpush1.msra.mxu0 0.0
        %1699 = vmatprep.subr.mxu0 0.0
        %1700 = vmatpush1.msra.mxu0 0.0
        %1701 = vmatprep.subr.mxu0 0.0
        %1702 = vmatpush1.msra.mxu0 0.0
        %1703 = vmatprep.subr.mxu0 0.0
        %1704 = vmatpush1.msra.mxu0 0.0
        %1705 = vmatprep.subr.mxu0 0.0
        %1706 = vmatpush1.msra.mxu0 0.0
        %1707 = vmatprep.subr.mxu0 0.0
        %1708 = vmatpush1.msra.mxu0 0.0
        %1709 = vmatprep.subr.mxu0 0.0
        %1710 = vmatpush1.msra.mxu0 0.0
        %1711 = vmatprep.subr.mxu0 0.0
        %1712 = vmatpush1.msra.mxu0 0.0
        %1713 = vmatprep.subr.mxu0 0.0
        %1714 = vmatpush1.msra.mxu0 0.0
        %1715 = vmatprep.subr.mxu0 0.0
        %1716 = vmatpush1.msra.mxu0 0.0
        %1717 = vmatprep.subr.mxu0 0.0
        %1718 = vmatpush1.msra.mxu0 0.0
        %1719 = vmatprep.subr.mxu0 0.0
        %1720 = vmatpush1.msra.mxu0 0.0
        %1721 = vmatprep.subr.mxu0 0.0
        %1722 = vmatpush1.msra.mxu0 0.0
        %1723 = vmatprep.subr.mxu0 0.0
        %1724 = vmatpush1.msra.mxu0 0.0
        %1725 = vmatprep.subr.mxu0 0.0
        %1726 = vmatpush1.msra.mxu0 0.0
        %1727 = vmatprep.subr.mxu0 0.0
        %1728 = vmatpush1.msra.mxu0 0.0
        %1729 = vmatprep.subr.mxu0 0.0
        %1730 = vmatpush1.msra.mxu0 0.0
        %1731 = vmatprep.subr.mxu0 0.0
        %1732 = vmatpush1.msra.mxu0 0.0
        %1733 = vmatprep.subr.mxu0 0.0
        %1734 = vmatpush1.msra.mxu0 0.0
        %1735 = vmatprep.mubr.f32.mxu0 0.0
        %1736 = vmatmul.mubr.f32.gmra.mrb[0].mxu0 %v1669
        %v1737 = vpop.f32.mrb[0].mxu0
        %v1738 = vadd.f32 0.0, %v1737
        %v1739 = vpop.f32.mrb[0].mxu0
        %1740 = vdwg.mxu0
        %1741 = vrot.lane.b32.xlu0 %v1231, 104
        %v1742 = vpop.permute.xlu0 %1741
        %1743 = vrot.lane.b32.xlu0 %v1231, 72
        %v1744 = vpop.permute.xlu0 %1743
        %v1745 = vsel %vm1237, %v1742, 0
        %v1747 = vsel %vm1237, %v1744, 0
        %1749 = vmatprep.subr.mxu0 0.0
        %1750 = vmatpush1.xpose.msra.mxu0 %v1747
        %1751 = vmatprep.subr.mxu0 0.0
        %1752 = vmatpush1.xpose.msra.mxu0 0.0
        %1753 = vmatprep.subr.mxu0 0.0
        %1754 = vmatpush1.xpose.msra.mxu0 0.0
        %1755 = vmatprep.subr.mxu0 0.0
        %1756 = vmatpush1.xpose.msra.mxu0 0.0
        %1757 = vmatprep.subr.mxu0 0.0
        %1758 = vmatpush1.xpose.msra.mxu0 0.0
        %1759 = vmatprep.subr.mxu0 0.0
        %1760 = vmatpush1.xpose.msra.mxu0 0.0
        %1761 = vmatprep.subr.mxu0 0.0
        %1762 = vmatpush1.xpose.msra.mxu0 0.0
        %1763 = vmatprep.subr.mxu0 0.0
        %1764 = vmatpush1.xpose.msra.mxu0 0.0
        %1765 = vmatprep.subr.mxu0 0.0
        %1766 = vmatpush1.xpose.msra.mxu0 0.0
        %1767 = vmatprep.subr.mxu0 0.0
        %1768 = vmatpush1.xpose.msra.mxu0 0.0
        %1769 = vmatprep.subr.mxu0 0.0
        %1770 = vmatpush1.xpose.msra.mxu0 0.0
        %1771 = vmatprep.subr.mxu0 0.0
        %1772 = vmatpush1.xpose.msra.mxu0 0.0
        %1773 = vmatprep.subr.mxu0 0.0
        %1774 = vmatpush1.xpose.msra.mxu0 0.0
        %1775 = vmatprep.subr.mxu0 0.0
        %1776 = vmatpush1.xpose.msra.mxu0 0.0
        %1777 = vmatprep.subr.mxu0 0.0
        %1778 = vmatpush1.xpose.msra.mxu0 0.0
        %1779 = vmatprep.subr.mxu0 0.0
        %1780 = vmatpush1.xpose.msra.mxu0 0.0
        %1781 = vmatprep.subr.mxu0 0.0
        %1782 = vmatpush1.xpose.msra.mxu0 0.0
        %1783 = vmatprep.subr.mxu0 0.0
        %1784 = vmatpush1.xpose.msra.mxu0 0.0
        %1785 = vmatprep.subr.mxu0 0.0
        %1786 = vmatpush1.xpose.msra.mxu0 0.0
        %1787 = vmatprep.subr.mxu0 0.0
        %1788 = vmatpush1.xpose.msra.mxu0 0.0
        %1789 = vmatprep.subr.mxu0 0.0
        %1790 = vmatpush1.xpose.msra.mxu0 0.0
        %1791 = vmatprep.subr.mxu0 0.0
        %1792 = vmatpush1.xpose.msra.mxu0 0.0
        %1793 = vmatprep.subr.mxu0 0.0
        %1794 = vmatpush1.xpose.msra.mxu0 0.0
        %1795 = vmatprep.subr.mxu0 0.0
        %1796 = vmatpush1.xpose.msra.mxu0 0.0
        %1797 = vmatprep.subr.mxu0 0.0
        %1798 = vmatpush1.xpose.msra.mxu0 0.0
        %1799 = vmatprep.subr.mxu0 0.0
        %1800 = vmatpush1.xpose.msra.mxu0 0.0
        %1801 = vmatprep.subr.mxu0 0.0
        %1802 = vmatpush1.xpose.msra.mxu0 0.0
        %1803 = vmatprep.subr.mxu0 0.0
        %1804 = vmatpush1.xpose.msra.mxu0 0.0
        %1805 = vmatprep.subr.mxu0 0.0
        %1806 = vmatpush1.xpose.msra.mxu0 0.0
        %1807 = vmatprep.subr.mxu0 0.0
        %1808 = vmatpush1.xpose.msra.mxu0 0.0
        %1809 = vmatprep.subr.mxu0 0.0
        %1810 = vmatpush1.xpose.msra.mxu0 0.0
        %1811 = vmatprep.subr.mxu0 0.0
        %1812 = vmatpush1.xpose.msra.mxu0 0.0
        %1813 = vmatprep.mubr.f32.mxu0 0.0
        %1814 = vmatmul.mubr.f32.gmra.mrb[0].mxu0 %v1745
        %v1815 = vpop.f32.mrb[0].mxu0
        %v1816 = vadd.f32 0.0, %v1815
        %v1817 = vpop.f32.mrb[0].mxu0
        %1818 = vdwg.mxu0
        %v1819 = vmul.f32 %v1816, 0.35355338
        %v1820 = vadd.f32 %v1819, %v1317
        %v1821 = vsel %vm1237, %v1820, -inf
        %1822 = vmax.xlane.f32.xlu0 %v1821
        %v1823 = vpop.xlane.xlu0 %1822
        %v1824 = vsub.f32 %v1820, %v1823
        %v1825 = vmul.f32 %v1824, 1.442695
        %v1826 = vpow.pop %v1825
        %v1827 = vsel %vm1237, %v1826, 0.0
        %1828 = vadd.xlane.f32.xlu0 %v1827
        %v1829 = vpop.xlane.xlu0 %1828
        %v1830 = vrcp.pop %v1829
        %v1831 = vmul.f32 %v1826, %v1830
        %1832 = vrot.lane.b32.xlu0 %v1231, 40
        %v1833 = vpop.permute.xlu0 %1832
        %v1836 = vsel %vm1237, %v1831, 0
        %1838 = vmatprep.subr.mxu0 0.0
        %1839 = vmatpush1.msra.mxu0 %v1833
        %1840 = vmatprep.subr.mxu0 0.0
        %1841 = vmatpush1.msra.mxu0 0.0
        %1842 = vmatprep.subr.mxu0 0.0
        %1843 = vmatpush1.msra.mxu0 0.0
        %1844 = vmatprep.subr.mxu0 0.0
        %1845 = vmatpush1.msra.mxu0 0.0
        %1846 = vmatprep.subr.mxu0 0.0
        %1847 = vmatpush1.msra.mxu0 0.0
        %1848 = vmatprep.subr.mxu0 0.0
        %1849 = vmatpush1.msra.mxu0 0.0
        %1850 = vmatprep.subr.mxu0 0.0
        %1851 = vmatpush1.msra.mxu0 0.0
        %1852 = vmatprep.subr.mxu0 0.0
        %1853 = vmatpush1.msra.mxu0 0.0
        %1854 = vmatprep.subr.mxu0 0.0
        %1855 = vmatpush1.msra.mxu0 0.0
        %1856 = vmatprep.subr.mxu0 0.0
        %1857 = vmatpush1.msra.mxu0 0.0
        %1858 = vmatprep.subr.mxu0 0.0
        %1859 = vmatpush1.msra.mxu0 0.0
        %1860 = vmatprep.subr.mxu0 0.0
        %1861 = vmatpush1.msra.mxu0 0.0
        %1862 = vmatprep.subr.mxu0 0.0
        %1863 = vmatpush1.msra.mxu0 0.0
        %1864 = vmatprep.subr.mxu0 0.0
        %1865 = vmatpush1.msra.mxu0 0.0
        %1866 = vmatprep.subr.mxu0 0.0
        %1867 = vmatpush1.msra.mxu0 0.0
        %1868 = vmatprep.subr.mxu0 0.0
        %1869 = vmatpush1.msra.mxu0 0.0
        %1870 = vmatprep.subr.mxu0 0.0
        %1871 = vmatpush1.msra.mxu0 0.0
        %1872 = vmatprep.subr.mxu0 0.0
        %1873 = vmatpush1.msra.mxu0 0.0
        %1874 = vmatprep.subr.mxu0 0.0
        %1875 = vmatpush1.msra.mxu0 0.0
        %1876 = vmatprep.subr.mxu0 0.0
        %1877 = vmatpush1.msra.mxu0 0.0
        %1878 = vmatprep.subr.mxu0 0.0
        %1879 = vmatpush1.msra.mxu0 0.0
        %1880 = vmatprep.subr.mxu0 0.0
        %1881 = vmatpush1.msra.mxu0 0.0
        %1882 = vmatprep.subr.mxu0 0.0
        %1883 = vmatpush1.msra.mxu0 0.0
        %1884 = vmatprep.subr.mxu0 0.0
        %1885 = vmatpush1.msra.mxu0 0.0
        %1886 = vmatprep.subr.mxu0 0.0
        %1887 = vmatpush1.msra.mxu0 0.0
        %1888 = vmatprep.subr.mxu0 0.0
        %1889 = vmatpush1.msra.mxu0 0.0
        %1890 = vmatprep.subr.mxu0 0.0
        %1891 = vmatpush1.msra.mxu0 0.0
        %1892 = vmatprep.subr.mxu0 0.0
        %1893 = vmatpush1.msra.mxu0 0.0
        %1894 = vmatprep.subr.mxu0 0.0
        %1895 = vmatpush1.msra.mxu0 0.0
        %1896 = vmatprep.subr.mxu0 0.0
        %1897 = vmatpush1.msra.mxu0 0.0
        %1898 = vmatprep.subr.mxu0 0.0
        %1899 = vmatpush1.msra.mxu0 0.0
        %1900 = vmatprep.subr.mxu0 0.0
        %1901 = vmatpush1.msra.mxu0 0.0
        %1902 = vmatprep.mubr.f32.mxu0 0.0
        %1903 = vmatmul.mubr.f32.gmra.mrb[0].mxu0 %v1836
        %v1904 = vpop.f32.mrb[0].mxu0
        %v1905 = vadd.f32 0.0, %v1904
        %v1906 = vpop.f32.mrb[0].mxu0
        %1907 = vdwg.mxu0
        %1909 = vrot.lane.b32.xlu0 %v1571, 8
        %v1910 = vpop.permute.xlu0 %1909
        %1913 = vrot.lane.b32.xlu0 %v1738, 16
        %v1914 = vpop.permute.xlu0 %1913
        %1917 = vrot.lane.b32.xlu0 %v1905, 24
        %v1918 = vpop.permute.xlu0 %1917
        %v1920 = vsel %vm1237, %v1404, %v1910
        %vm1921 = vcmask 130048
        %v1922 = vsel %vm1921, %v1920, %v1914
        %vm1923 = vcmask 195584
        %v1924 = vsel %vm1923, %v1922, %v1918
        %v1926 = vlaneseq
        %v1927 = vshrl.u32 %v1926, 7
        %v1928 = vsub.s32 0, %v1927
        %v1929 = vrot.slane %v1153, %v1928
        %v1932 = vsel %vm1160, %v1924, 0
        %1934 = vmatprep.subr.mxu0 0.0
        %1935 = vmatpush1.msra.mxu0 %v1149
        %1936 = vmatprep.subr.mxu0 0.0
        %1937 = vmatpush1.msra.mxu0 %v1150
        %1938 = vmatprep.subr.mxu0 0.0
        %1939 = vmatpush1.msra.mxu0 %v1151
        %1940 = vmatprep.subr.mxu0 0.0
        %1941 = vmatpush1.msra.mxu0 %v1152
        %1942 = vmatprep.subr.mxu0 0.0
        %1943 = vmatpush1.msra.mxu0 0.0
        %1944 = vmatprep.subr.mxu0 0.0
        %1945 = vmatpush1.msra.mxu0 0.0
        %1946 = vmatprep.subr.mxu0 0.0
        %1947 = vmatpush1.msra.mxu0 0.0
        %1948 = vmatprep.subr.mxu0 0.0
        %1949 = vmatpush1.msra.mxu0 0.0
        %1950 = vmatprep.subr.mxu0 0.0
        %1951 = vmatpush1.msra.mxu0 0.0
        %1952 = vmatprep.subr.mxu0 0.0
        %1953 = vmatpush1.msra.mxu0 0.0
        %1954 = vmatprep.subr.mxu0 0.0
        %1955 = vmatpush1.msra.mxu0 0.0
        %1956 = vmatprep.subr.mxu0 0.0
        %1957 = vmatpush1.msra.mxu0 0.0
        %1958 = vmatprep.subr.mxu0 0.0
        %1959 = vmatpush1.msra.mxu0 0.0
        %1960 = vmatprep.subr.mxu0 0.0
        %1961 = vmatpush1.msra.mxu0 0.0
        %1962 = vmatprep.subr.mxu0 0.0
        %1963 = vmatpush1.msra.mxu0 0.0
        %1964 = vmatprep.subr.mxu0 0.0
        %1965 = vmatpush1.msra.mxu0 0.0
        %1966 = vmatprep.subr.mxu0 0.0
        %1967 = vmatpush1.msra.mxu0 0.0
        %1968 = vmatprep.subr.mxu0 0.0
        %1969 = vmatpush1.msra.mxu0 0.0
        %1970 = vmatprep.subr.mxu0 0.0
        %1971 = vmatpush1.msra.mxu0 0.0
        %1972 = vmatprep.subr.mxu0 0.0
        %1973 = vmatpush1.msra.mxu0 0.0
        %1974 = vmatprep.subr.mxu0 0.0
        %1975 = vmatpush1.msra.mxu0 0.0
        %1976 = vmatprep.subr.mxu0 0.0
        %1977 = vmatpush1.msra.mxu0 0.0
        %1978 = vmatprep.subr.mxu0 0.0
        %1979 = vmatpush1.msra.mxu0 0.0
        %1980 = vmatprep.subr.mxu0 0.0
        %1981 = vmatpush1.msra.mxu0 0.0
        %1982 = vmatprep.subr.mxu0 0.0
        %1983 = vmatpush1.msra.mxu0 0.0
        %1984 = vmatprep.subr.mxu0 0.0
        %1985 = vmatpush1.msra.mxu0 0.0
        %1986 = vmatprep.subr.mxu0 0.0
        %1987 = vmatpush1.msra.mxu0 0.0
        %1988 = vmatprep.subr.mxu0 0.0
        %1989 = vmatpush1.msra.mxu0 0.0
        %1990 = vmatprep.subr.mxu0 0.0
        %1991 = vmatpush1.msra.mxu0 0.0
        %1992 = vmatprep.subr.mxu0 0.0
        %1993 = vmatpush1.msra.mxu0 0.0
        %1994 = vmatprep.subr.mxu0 0.0
        %1995 = vmatpush1.msra.mxu0 0.0
        %1996 = vmatprep.subr.mxu0 0.0
        %1997 = vmatpush1.msra.mxu0 0.0
        %1998 = vmatprep.mubr.f32.mxu0 0.0
        %1999 = vmatmul.mubr.f32.gmra.mrb[0].mxu0 %v1932
        %v2000 = vpop.f32.mrb[0].mxu0
        %v2001 = vadd.f32 %v1929, %v2000
        %v2002 = vpop.f32.mrb[0].mxu0
        %2003 = vdwg.mxu0
        %v2004 = vld [vmem:[%s17] sm:$0x1]
        %v2005 = vld [vmem:[%s19] sm:$0x1]
        %v2006 = vadd.f32 %v1143, %v2001
        %v2007 = vsel %vm1160, %v2006, 0.0
        %2008 = vadd.xlane.f32.xlu0 %v2007
        %v2009 = vpop.xlane.xlu0 %2008
        %v2010 = vrcp.pop 32.0
        %v2011 = vmul.f32 %v2009, %v2010
        %v2012 = vsub.f32 %v2006, %v2011
        %v2013 = vmul.f32 %v2012, %v2012
        %v2014 = vsel %vm1160, %v2013, 0.0
        %2015 = vadd.xlane.f32.xlu0 %v2014
        %v2016 = vpop.xlane.xlu0 %2015
        %v2017 = vmul.f32 %v2016, %v2010
        %v2018 = vadd.f32 %v2017, 1e-05
        %v2019 = vrsqrt.pop %v2018
        %v2020 = vmul.f32 %v2012, %v2019
        %v2022 = vlaneseq
        %v2023 = vshrl.u32 %v2022, 7
        %v2024 = vsub.s32 0, %v2023
        %v2025 = vrot.slane %v2004, %v2024
        %v2027 = vmul.f32 %v2020, %v2025
        %v2029 = vlaneseq
        %v2030 = vshrl.u32 %v2029, 7
        %v2031 = vsub.s32 0, %v2030
        %v2032 = vrot.slane %v2005, %v2031
        %v2034 = vadd.f32 %v2027, %v2032
        %v2035 = vld [vmem:[%s21] sm:$0xff]
        %v2036 = vld [vmem:[%s21 + $0x8] sm:$0xff]
        %v2037 = vld [vmem:[%s21 + $0x10] sm:$0xff]
        %v2038 = vld [vmem:[%s21 + $0x18] sm:$0xff]
        %v2039 = vld [vmem:[%s23] sm:$0x1]
        %v2040 = vld [vmem:[%s25] sm:$0xff]
        %v2041 = vld [vmem:[%s25 + $0x8] sm:$0xff]
        %v2042 = vld [vmem:[%s25 + $0x10] sm:$0xff]
        %v2043 = vld [vmem:[%s25 + $0x18] sm:$0xff]
        %v2044 = vld [vmem:[%s25 + $0x20] sm:$0xff]
        %v2045 = vld [vmem:[%s25 + $0x28] sm:$0xff]
        %v2046 = vld [vmem:[%s25 + $0x30] sm:$0xff]
        %v2047 = vld [vmem:[%s25 + $0x38] sm:$0xff]
        %v2048 = vld [vmem:[%s27] sm:$0x1]
        %v2050 = vlaneseq
        %v2051 = vshrl.u32 %v2050, 7
        %v2052 = vsub.s32 0, %v2051
        %v2053 = vrot.slane %v2039, %v2052
        %v2056 = vsel %vm1160, %v2034, 0
        %2058 = vmatprep.subr.mxu0 0.0
        %2059 = vmatpush1.msra.mxu0 %v2035
        %2060 = vmatprep.subr.mxu0 0.0
        %2061 = vmatpush1.msra.mxu0 %v2036
        %2062 = vmatprep.subr.mxu0 0.0
        %2063 = vmatpush1.msra.mxu0 %v2037
        %2064 = vmatprep.subr.mxu0 0.0
        %2065 = vmatpush1.msra.mxu0 %v2038
        %2066 = vmatprep.subr.mxu0 0.0
        %2067 = vmatpush1.msra.mxu0 0.0
        %2068 = vmatprep.subr.mxu0 0.0
        %2069 = vmatpush1.msra.mxu0 0.0
        %2070 = vmatprep.subr.mxu0 0.0
        %2071 = vmatpush1.msra.mxu0 0.0
        %2072 = vmatprep.subr.mxu0 0.0
        %2073 = vmatpush1.msra.mxu0 0.0
        %2074 = vmatprep.subr.mxu0 0.0
        %2075 = vmatpush1.msra.mxu0 0.0
        %2076 = vmatprep.subr.mxu0 0.0
        %2077 = vmatpush1.msra.mxu0 0.0
        %2078 = vmatprep.subr.mxu0 0.0
        %2079 = vmatpush1.msra.mxu0 0.0
        %2080 = vmatprep.subr.mxu0 0.0
        %2081 = vmatpush1.msra.mxu0 0.0
        %2082 = vmatprep.subr.mxu0 0.0
        %2083 = vmatpush1.msra.mxu0 0.0
        %2084 = vmatprep.subr.mxu0 0.0
        %2085 = vmatpush1.msra.mxu0 0.0
        %2086 = vmatprep.subr.mxu0 0.0
        %2087 = vmatpush1.msra.mxu0 0.0
        %2088 = vmatprep.subr.mxu0 0.0
        %2089 = vmatpush1.msra.mxu0 0.0
        %2090 = vmatprep.subr.mxu0 0.0
        %2091 = vmatpush1.msra.mxu0 0.0
        %2092 = vmatprep.subr.mxu0 0.0
        %2093 = vmatpush1.msra.mxu0 0.0
        %2094 = vmatprep.subr.mxu0 0.0
        %2095 = vmatpush1.msra.mxu0 0.0
        %2096 = vmatprep.subr.mxu0 0.0
        %2097 = vmatpush1.msra.mxu0 0.0
        %2098 = vmatprep.subr.mxu0 0.0
        %2099 = vmatpush1.msra.mxu0 0.0
        %2100 = vmatprep.subr.mxu0 0.0
        %2101 = vmatpush1.msra.mxu0 0.0
        %2102 = vmatprep.subr.mxu0 0.0
        %2103 = vmatpush1.msra.mxu0 0.0
        %2104 = vmatprep.subr.mxu0 0.0
        %2105 = vmatpush1.msra.mxu0 0.0
        %2106 = vmatprep.subr.mxu0 0.0
        %2107 = vmatpush1.msra.mxu0 0.0
        %2108 = vmatprep.subr.mxu0 0.0
        %2109 = vmatpush1.msra.mxu0 0.0
        %2110 = vmatprep.subr.mxu0 0.0
        %2111 = vmatpush1.msra.mxu0 0.0
        %2112 = vmatprep.subr.mxu0 0.0
        %2113 = vmatpush1.msra.mxu0 0.0
        %2114 = vmatprep.subr.mxu0 0.0
        %2115 = vmatpush1.msra.mxu0 0.0
        %2116 = vmatprep.subr.mxu0 0.0
        %2117 = vmatpush1.msra.mxu0 0.0
        %2118 = vmatprep.subr.mxu0 0.0
        %2119 = vmatpush1.msra.mxu0 0.0
        %2120 = vmatprep.subr.mxu0 0.0
        %2121 = vmatpush1.msra.mxu0 0.0
        %2122 = vmatprep.mubr.f32.mxu0 0.0
        %2123 = vmatmul.mubr.f32.gmra.mrb[0].mxu0 %v2056
        %v2124 = vpop.f32.mrb[0].mxu0
        %v2125 = vadd.f32 %v2053, %v2124
        %v2126 = vpop.f32.mrb[0].mxu0
        %2127 = vdwg.mxu0
        %v2128 = vmax.f32 %v2125, 0.0
        %v2130 = vlaneseq
        %v2131 = vshrl.u32 %v2130, 7
        %v2132 = vsub.s32 0, %v2131
        %v2133 = vrot.slane %v2048, %v2132
        %vm2135 = vcmask 523264
        %v2137 = vsel %vm2135, %v2128, 0
        %2139 = vmatprep.subr.mxu0 0.0
        %2140 = vmatpush1.msra.mxu0 %v2040
        %2141 = vmatprep.subr.mxu0 0.0
        %2142 = vmatpush1.msra.mxu0 %v2041
        %2143 = vmatprep.subr.mxu0 0.0
        %2144 = vmatpush1.msra.mxu0 %v2042
        %2145 = vmatprep.subr.mxu0 0.0
        %2146 = vmatpush1.msra.mxu0 %v2043
        %2147 = vmatprep.subr.mxu0 0.0
        %2148 = vmatpush1.msra.mxu0 %v2044
        %2149 = vmatprep.subr.mxu0 0.0
        %2150 = vmatpush1.msra.mxu0 %v2045
        %2151 = vmatprep.subr.mxu0 0.0
        %2152 = vmatpush1.msra.mxu0 %v2046
        %2153 = vmatprep.subr.mxu0 0.0
        %2154 = vmatpush1.msra.mxu0 %v2047
        %2155 = vmatprep.subr.mxu0 0.0
        %2156 = vmatpush1.msra.mxu0 0.0
        %2157 = vmatprep.subr.mxu0 0.0
        %2158 = vmatpush1.msra.mxu0 0.0
        %2159 = vmatprep.subr.mxu0 0.0
        %2160 = vmatpush1.msra.mxu0 0.0
        %2161 = vmatprep.subr.mxu0 0.0
        %2162 = vmatpush1.msra.mxu0 0.0
        %2163 = vmatprep.subr.mxu0 0.0
        %2164 = vmatpush1.msra.mxu0 0.0
        %2165 = vmatprep.subr.mxu0 0.0
        %2166 = vmatpush1.msra.mxu0 0.0
        %2167 = vmatprep.subr.mxu0 0.0
        %2168 = vmatpush1.msra.mxu0 0.0
        %2169 = vmatprep.subr.mxu0 0.0
        %2170 = vmatpush1.msra.mxu0 0.0
        %2171 = vmatprep.subr.mxu0 0.0
        %2172 = vmatpush1.msra.mxu0 0.0
        %2173 = vmatprep.subr.mxu0 0.0
        %2174 = vmatpush1.msra.mxu0 0.0
        %2175 = vmatprep.subr.mxu0 0.0
        %2176 = vmatpush1.msra.mxu0 0.0
        %2177 = vmatprep.subr.mxu0 0.0
        %2178 = vmatpush1.msra.mxu0 0.0
        %2179 = vmatprep.subr.mxu0 0.0
        %2180 = vmatpush1.msra.mxu0 0.0
        %2181 = vmatprep.subr.mxu0 0.0
        %2182 = vmatpush1.msra.mxu0 0.0
        %2183 = vmatprep.subr.mxu0 0.0
        %2184 = vmatpush1.msra.mxu0 0.0
        %2185 = vmatprep.subr.mxu0 0.0
        %2186 = vmatpush1.msra.mxu0 0.0
        %2187 = vmatprep.subr.mxu0 0.0
        %2188 = vmatpush1.msra.mxu0 0.0
        %2189 = vmatprep.subr.mxu0 0.0
        %2190 = vmatpush1.msra.mxu0 0.0
        %2191 = vmatprep.subr.mxu0 0.0
        %2192 = vmatpush1.msra.mxu0 0.0
        %2193 = vmatprep.subr.mxu0 0.0
        %2194 = vmatpush1.msra.mxu0 0.0
        %2195 = vmatprep.subr.mxu0 0.0
        %2196 = vmatpush1.msra.mxu0 0.0
        %2197 = vmatprep.subr.mxu0 0.0
        %2198 = vmatpush1.msra.mxu0 0.0
        %2199 = vmatprep.subr.mxu0 0.0
        %2200 = vmatpush1.msra.mxu0 0.0
        %2201 = vmatprep.subr.mxu0 0.0
        %2202 = vmatpush1.msra.mxu0 0.0
        %2203 = vmatprep.mubr.f32.mxu0 0.0
        %2204 = vmatmul.mubr.f32.gmra.mrb[0].mxu0 %v2137
        %v2205 = vpop.f32.mrb[0].mxu0
        %v2206 = vadd.f32 %v2133, %v2205
        %v2207 = vpop.f32.mrb[0].mxu0
        %2208 = vdwg.mxu0
        %v2209 = vld [vmem:[%s29] sm:$0x1]
        %v2210 = vld [vmem:[%s31] sm:$0x1]
        %v2211 = vadd.f32 %v2034, %v2206
        %v2212 = vsel %vm1160, %v2211, 0.0
        %2213 = vadd.xlane.f32.xlu0 %v2212
        %v2214 = vpop.xlane.xlu0 %2213
        %v2215 = vmul.f32 %v2214, %v2010
        %v2216 = vsub.f32 %v2211, %v2215
        %v2217 = vmul.f32 %v2216, %v2216
        %v2218 = vsel %vm1160, %v2217, 0.0
        %2219 = vadd.xlane.f32.xlu0 %v2218
        %v2220 = vpop.xlane.xlu0 %2219
        %v2221 = vmul.f32 %v2220, %v2010
        %v2222 = vadd.f32 %v2221, 1e-05
        %v2223 = vrsqrt.pop %v2222
        %v2224 = vmul.f32 %v2216, %v2223
        %v2226 = vlaneseq
        %v2227 = vshrl.u32 %v2226, 7
        %v2228 = vsub.s32 0, %v2227
        %v2229 = vrot.slane %v2209, %v2228
        %v2231 = vmul.f32 %v2224, %v2229
        %v2233 = vlaneseq
        %v2234 = vshrl.u32 %v2233, 7
        %v2235 = vsub.s32 0, %v2234
        %v2236 = vrot.slane %v2210, %v2235
        %v2238 = vadd.f32 %v2231, %v2236
        %s2239 = scalar_lea.vmem %s9, 32
        %v2240 = vld [vmem:[%s2239] sm:$0xff]
        %v2241 = vld [vmem:[%s2239 + $0x8] sm:$0xff]
        %v2242 = vld [vmem:[%s2239 + $0x10] sm:$0xff]
        %v2243 = vld [vmem:[%s2239 + $0x18] sm:$0xff]
        %s2244 = scalar_lea.vmem %s11, 1
        %v2245 = vld [vmem:[%s2244] sm:$0x1]
        %s2246 = scalar_lea.vmem %s13, 32
        %v2247 = vld [vmem:[%s2246] sm:$0xff]
        %v2248 = vld [vmem:[%s2246 + $0x8] sm:$0xff]
        %v2249 = vld [vmem:[%s2246 + $0x10] sm:$0xff]
        %v2250 = vld [vmem:[%s2246 + $0x18] sm:$0xff]
        %s2251 = scalar_lea.vmem %s15, 1
        %v2252 = vld [vmem:[%s2251] sm:$0x1]
        %v2254 = vlaneseq
        %v2255 = vshrl.u32 %v2254, 7
        %v2256 = vsub.s32 0, %v2255
        %v2257 = vrot.slane %v2245, %v2256
        %v2260 = vsel %vm1160, %v2238, 0
        %2262 = vmatprep.subr.mxu0 0.0
        %2263 = vmatpush1.msra.mxu0 %v2240
        %2264 = vmatprep.subr.mxu0 0.0
        %2265 = vmatpush1.msra.mxu0 %v2241
        %2266 = vmatprep.subr.mxu0 0.0
        %2267 = vmatpush1.msra.mxu0 %v2242
        %2268 = vmatprep.subr.mxu0 0.0
        %2269 = vmatpush1.msra.mxu0 %v2243
        %2270 = vmatprep.subr.mxu0 0.0
        %2271 = vmatpush1.msra.mxu0 0.0
        %2272 = vmatprep.subr.mxu0 0.0
        %2273 = vmatpush1.msra.mxu0 0.0
        %2274 = vmatprep.subr.mxu0 0.0
        %2275 = vmatpush1.msra.mxu0 0.0
        %2276 = vmatprep.subr.mxu0 0.0
        %2277 = vmatpush1.msra.mxu0 0.0
        %2278 = vmatprep.subr.mxu0 0.0
        %2279 = vmatpush1.msra.mxu0 0.0
        %2280 = vmatprep.subr.mxu0 0.0
        %2281 = vmatpush1.msra.mxu0 0.0
        %2282 = vmatprep.subr.mxu0 0.0
        %2283 = vmatpush1.msra.mxu0 0.0
        %2284 = vmatprep.subr.mxu0 0.0
        %2285 = vmatpush1.msra.mxu0 0.0
        %2286 = vmatprep.subr.mxu0 0.0
        %2287 = vmatpush1.msra.mxu0 0.0
        %2288 = vmatprep.subr.mxu0 0.0
        %2289 = vmatpush1.msra.mxu0 0.0
        %2290 = vmatprep.subr.mxu0 0.0
        %2291 = vmatpush1.msra.mxu0 0.0
        %2292 = vmatprep.subr.mxu0 0.0
        %2293 = vmatpush1.msra.mxu0 0.0
        %2294 = vmatprep.subr.mxu0 0.0
        %2295 = vmatpush1.msra.mxu0 0.0
        %2296 = vmatprep.subr.mxu0 0.0
        %2297 = vmatpush1.msra.mxu0 0.0
        %2298 = vmatprep.subr.mxu0 0.0
        %2299 = vmatpush1.msra.mxu0 0.0
        %2300 = vmatprep.subr.mxu0 0.0
        %2301 = vmatpush1.msra.mxu0 0.0
        %2302 = vmatprep.subr.mxu0 0.0
        %2303 = vmatpush1.msra.mxu0 0.0
        %2304 = vmatprep.subr.mxu0 0.0
        %2305 = vmatpush1.msra.mxu0 0.0
        %2306 = vmatprep.subr.mxu0 0.0
        %2307 = vmatpush1.msra.mxu0 0.0
        %2308 = vmatprep.subr.mxu0 0.0
        %2309 = vmatpush1.msra.mxu0 0.0
        %2310 = vmatprep.subr.mxu0 0.0
        %2311 = vmatpush1.msra.mxu0 0.0
        %2312 = vmatprep.subr.mxu0 0.0
        %2313 = vmatpush1.msra.mxu0 0.0
        %2314 = vmatprep.subr.mxu0 0.0
        %2315 = vmatpush1.msra.mxu0 0.0
        %2316 = vmatprep.subr.mxu0 0.0
        %2317 = vmatpush1.msra.mxu0 0.0
        %2318 = vmatprep.subr.mxu0 0.0
        %2319 = vmatpush1.msra.mxu0 0.0
        %2320 = vmatprep.subr.mxu0 0.0
        %2321 = vmatpush1.msra.mxu0 0.0
        %2322 = vmatprep.subr.mxu0 0.0
        %2323 = vmatpush1.msra.mxu0 0.0
        %2324 = vmatprep.subr.mxu0 0.0
        %2325 = vmatpush1.msra.mxu0 0.0
        %2326 = vmatprep.mubr.f32.mxu0 0.0
        %2327 = vmatmul.mubr.f32.gmra.mrb[0].mxu0 %v2260
        %v2328 = vpop.f32.mrb[0].mxu0
        %v2329 = vadd.f32 %v2257, %v2328
        %v2330 = vpop.f32.mrb[0].mxu0
        %2331 = vdwg.mxu0
        %2333 = vrot.lane.b32.xlu0 %v2329, 96
        %v2334 = vpop.permute.xlu0 %2333
        %v2335 = vsel %vm1237, %v2329, 0
        %v2337 = vsel %vm1237, %v2334, 0
        %2339 = vmatprep.subr.mxu0 0.0
        %2340 = vmatpush1.xpose.msra.mxu0 %v2337
        %2341 = vmatprep.subr.mxu0 0.0
        %2342 = vmatpush1.xpose.msra.mxu0 0.0
        %2343 = vmatprep.subr.mxu0 0.0
        %2344 = vmatpush1.xpose.msra.mxu0 0.0
        %2345 = vmatprep.subr.mxu0 0.0
        %2346 = vmatpush1.xpose.msra.mxu0 0.0
        %2347 = vmatprep.subr.mxu0 0.0
        %2348 = vmatpush1.xpose.msra.mxu0 0.0
        %2349 = vmatprep.subr.mxu0 0.0
        %2350 = vmatpush1.xpose.msra.mxu0 0.0
        %2351 = vmatprep.subr.mxu0 0.0
        %2352 = vmatpush1.xpose.msra.mxu0 0.0
        %2353 = vmatprep.subr.mxu0 0.0
        %2354 = vmatpush1.xpose.msra.mxu0 0.0
        %2355 = vmatprep.subr.mxu0 0.0
        %2356 = vmatpush1.xpose.msra.mxu0 0.0
        %2357 = vmatprep.subr.mxu0 0.0
        %2358 = vmatpush1.xpose.msra.mxu0 0.0
        %2359 = vmatprep.subr.mxu0 0.0
        %2360 = vmatpush1.xpose.msra.mxu0 0.0
        %2361 = vmatprep.subr.mxu0 0.0
        %2362 = vmatpush1.xpose.msra.mxu0 0.0
        %2363 = vmatprep.subr.mxu0 0.0
        %2364 = vmatpush1.xpose.msra.mxu0 0.0
        %2365 = vmatprep.subr.mxu0 0.0
        %2366 = vmatpush1.xpose.msra.mxu0 0.0
        %2367 = vmatprep.subr.mxu0 0.0
        %2368 = vmatpush1.xpose.msra.mxu0 0.0
        %2369 = vmatprep.subr.mxu0 0.0
        %2370 = vmatpush1.xpose.msra.mxu0 0.0
        %2371 = vmatprep.subr.mxu0 0.0
        %2372 = vmatpush1.xpose.msra.mxu0 0.0
        %2373 = vmatprep.subr.mxu0 0.0
        %2374 = vmatpush1.xpose.msra.mxu0 0.0
        %2375 = vmatprep.subr.mxu0 0.0
        %2376 = vmatpush1.xpose.msra.mxu0 0.0
        %2377 = vmatprep.subr.mxu0 0.0
        %2378 = vmatpush1.xpose.msra.mxu0 0.0
        %2379 = vmatprep.subr.mxu0 0.0
        %2380 = vmatpush1.xpose.msra.mxu0 0.0
        %2381 = vmatprep.subr.mxu0 0.0
        %2382 = vmatpush1.xpose.msra.mxu0 0.0
        %2383 = vmatprep.subr.mxu0 0.0
        %2384 = vmatpush1.xpose.msra.mxu0 0.0
        %2385 = vmatprep.subr.mxu0 0.0
        %2386 = vmatpush1.xpose.msra.mxu0 0.0
        %2387 = vmatprep.subr.mxu0 0.0
        %2388 = vmatpush1.xpose.msra.mxu0 0.0
        %2389 = vmatprep.subr.mxu0 0.0
        %2390 = vmatpush1.xpose.msra.mxu0 0.0
        %2391 = vmatprep.subr.mxu0 0.0
        %2392 = vmatpush1.xpose.msra.mxu0 0.0
        %2393 = vmatprep.subr.mxu0 0.0
        %2394 = vmatpush1.xpose.msra.mxu0 0.0
        %2395 = vmatprep.subr.mxu0 0.0
        %2396 = vmatpush1.xpose.msra.mxu0 0.0
        %2397 = vmatprep.subr.mxu0 0.0
        %2398 = vmatpush1.xpose.msra.mxu0 0.0
        %2399 = vmatprep.subr.mxu0 0.0
        %2400 = vmatpush1.xpose.msra.mxu0 0.0
        %2401 = vmatprep.subr.mxu0 0.0
        %2402 = vmatpush1.xpose.msra.mxu0 0.0
        %2403 = vmatprep.mubr.f32.mxu0 0.0
        %2404 = vmatmul.mubr.f32.gmra.mrb[0].mxu0 %v2335
        %v2405 = vpop.f32.mrb[0].mxu0
        %v2406 = vadd.f32 0.0, %v2405
        %v2407 = vpop.f32.mrb[0].mxu0
        %2408 = vdwg.mxu0
        %v2409 = vmul.f32 %v2406, 0.35355338
        %v2410 = vadd.f32 %v2409, %v1317
        %v2411 = vsel %vm1237, %v2410, -inf
        %2412 = vmax.xlane.f32.xlu0 %v2411
        %v2413 = vpop.xlane.xlu0 %2412
        %v2414 = vsub.f32 %v2410, %v2413
        %v2415 = vmul.f32 %v2414, 1.442695
        %v2416 = vpow.pop %v2415
        %v2417 = vsel %vm1237, %v2416, 0.0
        %2418 = vadd.xlane.f32.xlu0 %v2417
        %v2419 = vpop.xlane.xlu0 %2418
        %v2420 = vrcp.pop %v2419
        %v2421 = vmul.f32 %v2416, %v2420
        %2422 = vrot.lane.b32.xlu0 %v2329, 64
        %v2423 = vpop.permute.xlu0 %2422
        %v2426 = vsel %vm1237, %v2421, 0
        %2428 = vmatprep.subr.mxu0 0.0
        %2429 = vmatpush1.msra.mxu0 %v2423
        %2430 = vmatprep.subr.mxu0 0.0
        %2431 = vmatpush1.msra.mxu0 0.0
        %2432 = vmatprep.subr.mxu0 0.0
        %2433 = vmatpush1.msra.mxu0 0.0
        %2434 = vmatprep.subr.mxu0 0.0
        %2435 = vmatpush1.msra.mxu0 0.0
        %2436 = vmatprep.subr.mxu0 0.0
        %2437 = vmatpush1.msra.mxu0 0.0
        %2438 = vmatprep.subr.mxu0 0.0
        %2439 = vmatpush1.msra.mxu0 0.0
        %2440 = vmatprep.subr.mxu0 0.0
        %2441 = vmatpush1.msra.mxu0 0.0
        %2442 = vmatprep.subr.mxu0 0.0
        %2443 = vmatpush1.msra.mxu0 0.0
        %2444 = vmatprep.subr.mxu0 0.0
        %2445 = vmatpush1.msra.mxu0 0.0
        %2446 = vmatprep.subr.mxu0 0.0
        %2447 = vmatpush1.msra.mxu0 0.0
        %2448 = vmatprep.subr.mxu0 0.0
        %2449 = vmatpush1.msra.mxu0 0.0
        %2450 = vmatprep.subr.mxu0 0.0
        %2451 = vmatpush1.msra.mxu0 0.0
        %2452 = vmatprep.subr.mxu0 0.0
        %2453 = vmatpush1.msra.mxu0 0.0
        %2454 = vmatprep.subr.mxu0 0.0
        %2455 = vmatpush1.msra.mxu0 0.0
        %2456 = vmatprep.subr.mxu0 0.0
        %2457 = vmatpush1.msra.mxu0 0.0
        %2458 = vmatprep.subr.mxu0 0.0
        %2459 = vmatpush1.msra.mxu0 0.0
        %2460 = vmatprep.subr.mxu0 0.0
        %2461 = vmatpush1.msra.mxu0 0.0
        %2462 = vmatprep.subr.mxu0 0.0
        %2463 = vmatpush1.msra.mxu0 0.0
        %2464 = vmatprep.subr.mxu0 0.0
        %2465 = vmatpush1.msra.mxu0 0.0
        %2466 = vmatprep.subr.mxu0 0.0
        %2467 = vmatpush1.msra.mxu0 0.0
        %2468 = vmatprep.subr.mxu0 0.0
        %2469 = vmatpush1.msra.mxu0 0.0
        %2470 = vmatprep.subr.mxu0 0.0
        %2471 = vmatpush1.msra.mxu0 0.0
        %2472 = vmatprep.subr.mxu0 0.0
        %2473 = vmatpush1.msra.mxu0 0.0
        %2474 = vmatprep.subr.mxu0 0.0
        %2475 = vmatpush1.msra.mxu0 0.0
        %2476 = vmatprep.subr.mxu0 0.0
        %2477 = vmatpush1.msra.mxu0 0.0
        %2478 = vmatprep.subr.mxu0 0.0
        %2479 = vmatpush1.msra.mxu0 0.0
        %2480 = vmatprep.subr.mxu0 0.0
        %2481 = vmatpush1.msra.mxu0 0.0
        %2482 = vmatprep.subr.mxu0 0.0
        %2483 = vmatpush1.msra.mxu0 0.0
        %2484 = vmatprep.subr.mxu0 0.0
        %2485 = vmatpush1.msra.mxu0 0.0
        %2486 = vmatprep.subr.mxu0 0.0
        %2487 = vmatpush1.msra.mxu0 0.0
        %2488 = vmatprep.subr.mxu0 0.0
        %2489 = vmatpush1.msra.mxu0 0.0
        %2490 = vmatprep.subr.mxu0 0.0
        %2491 = vmatpush1.msra.mxu0 0.0
        %2492 = vmatprep.mubr.f32.mxu0 0.0
        %2493 = vmatmul.mubr.f32.gmra.mrb[0].mxu0 %v2426
        %v2494 = vpop.f32.mrb[0].mxu0
        %v2495 = vadd.f32 0.0, %v2494
        %v2496 = vpop.f32.mrb[0].mxu0
        %2497 = vdwg.mxu0
        %2498 = vrot.lane.b32.xlu0 %v2329, 120
        %v2499 = vpop.permute.xlu0 %2498
        %2500 = vrot.lane.b32.xlu0 %v2329, 88
        %v2501 = vpop.permute.xlu0 %2500
        %v2502 = vsel %vm1237, %v2499, 0
        %v2504 = vsel %vm1237, %v2501, 0
        %2506 = vmatprep.subr.mxu0 0.0
        %2507 = vmatpush1.xpose.msra.mxu0 %v2504
        %2508 = vmatprep.subr.mxu0 0.0
        %2509 = vmatpush1.xpose.msra.mxu0 0.0
        %2510 = vmatprep.subr.mxu0 0.0
        %2511 = vmatpush1.xpose.msra.mxu0 0.0
        %2512 = vmatprep.subr.mxu0 0.0
        %2513 = vmatpush1.xpose.msra.mxu0 0.0
        %2514 = vmatprep.subr.mxu0 0.0
        %2515 = vmatpush1.xpose.msra.mxu0 0.0
        %2516 = vmatprep.subr.mxu0 0.0
        %2517 = vmatpush1.xpose.msra.mxu0 0.0
        %2518 = vmatprep.subr.mxu0 0.0
        %2519 = vmatpush1.xpose.msra.mxu0 0.0
        %2520 = vmatprep.subr.mxu0 0.0
        %2521 = vmatpush1.xpose.msra.mxu0 0.0
        %2522 = vmatprep.subr.mxu0 0.0
        %2523 = vmatpush1.xpose.msra.mxu0 0.0
        %2524 = vmatprep.subr.mxu0 0.0
        %2525 = vmatpush1.xpose.msra.mxu0 0.0
        %2526 = vmatprep.subr.mxu0 0.0
        %2527 = vmatpush1.xpose.msra.mxu0 0.0
        %2528 = vmatprep.subr.mxu0 0.0
        %2529 = vmatpush1.xpose.msra.mxu0 0.0
        %2530 = vmatprep.subr.mxu0 0.0
        %2531 = vmatpush1.xpose.msra.mxu0 0.0
        %2532 = vmatprep.subr.mxu0 0.0
        %2533 = vmatpush1.xpose.msra.mxu0 0.0
        %2534 = vmatprep.subr.mxu0 0.0
        %2535 = vmatpush1.xpose.msra.mxu0 0.0
        %2536 = vmatprep.subr.mxu0 0.0
        %2537 = vmatpush1.xpose.msra.mxu0 0.0
        %2538 = vmatprep.subr.mxu0 0.0
        %2539 = vmatpush1.xpose.msra.mxu0 0.0
        %2540 = vmatprep.subr.mxu0 0.0
        %2541 = vmatpush1.xpose.msra.mxu0 0.0
        %2542 = vmatprep.subr.mxu0 0.0
        %2543 = vmatpush1.xpose.msra.mxu0 0.0
        %2544 = vmatprep.subr.mxu0 0.0
        %2545 = vmatpush1.xpose.msra.mxu0 0.0
        %2546 = vmatprep.subr.mxu0 0.0
        %2547 = vmatpush1.xpose.msra.mxu0 0.0
        %2548 = vmatprep.subr.mxu0 0.0
        %2549 = vmatpush1.xpose.msra.mxu0 0.0
        %2550 = vmatprep.subr.mxu0 0.0
        %2551 = vmatpush1.xpose.msra.mxu0 0.0
        %2552 = vmatprep.subr.mxu0 0.0
        %2553 = vmatpush1.xpose.msra.mxu0 0.0
        %2554 = vmatprep.subr.mxu0 0.0
        %2555 = vmatpush1.xpose.msra.mxu0 0.0
        %2556 = vmatprep.subr.mxu0 0.0
        %2557 = vmatpush1.xpose.msra.mxu0 0.0
        %2558 = vmatprep.subr.mxu0 0.0
        %2559 = vmatpush1.xpose.msra.mxu0 0.0
        %2560 = vmatprep.subr.mxu0 0.0
        %2561 = vmatpush1.xpose.msra.mxu0 0.0
        %2562 = vmatprep.subr.mxu0 0.0
        %2563 = vmatpush1.xpose.msra.mxu0 0.0
        %2564 = vmatprep.subr.mxu0 0.0
        %2565 = vmatpush1.xpose.msra.mxu0 0.0
        %2566 = vmatprep.subr.mxu0 0.0
        %2567 = vmatpush1.xpose.msra.mxu0 0.0
        %2568 = vmatprep.subr.mxu0 0.0
        %2569 = vmatpush1.xpose.msra.mxu0 0.0
        %2570 = vmatprep.mubr.f32.mxu0 0.0
        %2571 = vmatmul.mubr.f32.gmra.mrb[0].mxu0 %v2502
        %v2572 = vpop.f32.mrb[0].mxu0
        %v2573 = vadd.f32 0.0, %v2572
        %v2574 = vpop.f32.mrb[0].mxu0
        %2575 = vdwg.mxu0
        %v2576 = vmul.f32 %v2573, 0.35355338
        %v2577 = vadd.f32 %v2576, %v1317
        %v2578 = vsel %vm1237, %v2577, -inf
        %2579 = vmax.xlane.f32.xlu0 %v2578
        %v2580 = vpop.xlane.xlu0 %2579
        %v2581 = vsub.f32 %v2577, %v2580
        %v2582 = vmul.f32 %v2581, 1.442695
        %v2583 = vpow.pop %v2582
        %v2584 = vsel %vm1237, %v2583, 0.0
        %2585 = vadd.xlane.f32.xlu0 %v2584
        %v2586 = vpop.xlane.xlu0 %2585
        %v2587 = vrcp.pop %v2586
        %v2588 = vmul.f32 %v2583, %v2587
        %2589 = vrot.lane.b32.xlu0 %v2329, 56
        %v2590 = vpop.permute.xlu0 %2589
        %v2593 = vsel %vm1237, %v2588, 0
        %2595 = vmatprep.subr.mxu0 0.0
        %2596 = vmatpush1.msra.mxu0 %v2590
        %2597 = vmatprep.subr.mxu0 0.0
        %2598 = vmatpush1.msra.mxu0 0.0
        %2599 = vmatprep.subr.mxu0 0.0
        %2600 = vmatpush1.msra.mxu0 0.0
        %2601 = vmatprep.subr.mxu0 0.0
        %2602 = vmatpush1.msra.mxu0 0.0
        %2603 = vmatprep.subr.mxu0 0.0
        %2604 = vmatpush1.msra.mxu0 0.0
        %2605 = vmatprep.subr.mxu0 0.0
        %2606 = vmatpush1.msra.mxu0 0.0
        %2607 = vmatprep.subr.mxu0 0.0
        %2608 = vmatpush1.msra.mxu0 0.0
        %2609 = vmatprep.subr.mxu0 0.0
        %2610 = vmatpush1.msra.mxu0 0.0
        %2611 = vmatprep.subr.mxu0 0.0
        %2612 = vmatpush1.msra.mxu0 0.0
        %2613 = vmatprep.subr.mxu0 0.0
        %2614 = vmatpush1.msra.mxu0 0.0
        %2615 = vmatprep.subr.mxu0 0.0
        %2616 = vmatpush1.msra.mxu0 0.0
        %2617 = vmatprep.subr.mxu0 0.0
        %2618 = vmatpush1.msra.mxu0 0.0
        %2619 = vmatprep.subr.mxu0 0.0
        %2620 = vmatpush1.msra.mxu0 0.0
        %2621 = vmatprep.subr.mxu0 0.0
        %2622 = vmatpush1.msra.mxu0 0.0
        %2623 = vmatprep.subr.mxu0 0.0
        %2624 = vmatpush1.msra.mxu0 0.0
        %2625 = vmatprep.subr.mxu0 0.0
        %2626 = vmatpush1.msra.mxu0 0.0
        %2627 = vmatprep.subr.mxu0 0.0
        %2628 = vmatpush1.msra.mxu0 0.0
        %2629 = vmatprep.subr.mxu0 0.0
        %2630 = vmatpush1.msra.mxu0 0.0
        %2631 = vmatprep.subr.mxu0 0.0
        %2632 = vmatpush1.msra.mxu0 0.0
        %2633 = vmatprep.subr.mxu0 0.0
        %2634 = vmatpush1.msra.mxu0 0.0
        %2635 = vmatprep.subr.mxu0 0.0
        %2636 = vmatpush1.msra.mxu0 0.0
        %2637 = vmatprep.subr.mxu0 0.0
        %2638 = vmatpush1.msra.mxu0 0.0
        %2639 = vmatprep.subr.mxu0 0.0
        %2640 = vmatpush1.msra.mxu0 0.0
        %2641 = vmatprep.subr.mxu0 0.0
        %2642 = vmatpush1.msra.mxu0 0.0
        %2643 = vmatprep.subr.mxu0 0.0
        %2644 = vmatpush1.msra.mxu0 0.0
        %2645 = vmatprep.subr.mxu0 0.0
        %2646 = vmatpush1.msra.mxu0 0.0
        %2647 = vmatprep.subr.mxu0 0.0
        %2648 = vmatpush1.msra.mxu0 0.0
        %2649 = vmatprep.subr.mxu0 0.0
        %2650 = vmatpush1.msra.mxu0 0.0
        %2651 = vmatprep.subr.mxu0 0.0
        %2652 = vmatpush1.msra.mxu0 0.0
        %2653 = vmatprep.subr.mxu0 0.0
        %2654 = vmatpush1.msra.mxu0 0.0
        %2655 = vmatprep.subr.mxu0 0.0
        %2656 = vmatpush1.msra.mxu0 0.0
        %2657 = vmatprep.subr.mxu0 0.0
        %2658 = vmatpush1.msra.mxu0 0.0
        %2659 = vmatprep.mubr.f32.mxu0 0.0
        %2660 = vmatmul.mubr.f32.gmra.mrb[0].mxu0 %v2593
        %v2661 = vpop.f32.mrb[0].mxu0
        %v2662 = vadd.f32 0.0, %v2661
        %v2663 = vpop.f32.mrb[0].mxu0
        %2664 = vdwg.mxu0
        %2665 = vrot.lane.b32.xlu0 %v2329, 112
        %v2666 = vpop.permute.xlu0 %2665
        %2667 = vrot.lane.b32.xlu0 %v2329, 80
        %v2668 = vpop.permute.xlu0 %2667
        %v2669 = vsel %vm1237, %v2666, 0
        %v2671 = vsel %vm1237, %v2668, 0
        %2673 = vmatprep.subr.mxu0 0.0
        %2674 = vmatpush1.xpose.msra.mxu0 %v2671
        %2675 = vmatprep.subr.mxu0 0.0
        %2676 = vmatpush1.xpose.msra.mxu0 0.0
        %2677 = vmatprep.subr.mxu0 0.0
        %2678 = vmatpush1.xpose.msra.mxu0 0.0
        %2679 = vmatprep.subr.mxu0 0.0
        %2680 = vmatpush1.xpose.msra.mxu0 0.0
        %2681 = vmatprep.subr.mxu0 0.0
        %2682 = vmatpush1.xpose.msra.mxu0 0.0
        %2683 = vmatprep.subr.mxu0 0.0
        %2684 = vmatpush1.xpose.msra.mxu0 0.0
        %2685 = vmatprep.subr.mxu0 0.0
        %2686 = vmatpush1.xpose.msra.mxu0 0.0
        %2687 = vmatprep.subr.mxu0 0.0
        %2688 = vmatpush1.xpose.msra.mxu0 0.0
        %2689 = vmatprep.subr.mxu0 0.0
        %2690 = vmatpush1.xpose.msra.mxu0 0.0
        %2691 = vmatprep.subr.mxu0 0.0
        %2692 = vmatpush1.xpose.msra.mxu0 0.0
        %2693 = vmatprep.subr.mxu0 0.0
        %2694 = vmatpush1.xpose.msra.mxu0 0.0
        %2695 = vmatprep.subr.mxu0 0.0
        %2696 = vmatpush1.xpose.msra.mxu0 0.0
        %2697 = vmatprep.subr.mxu0 0.0
        %2698 = vmatpush1.xpose.msra.mxu0 0.0
        %2699 = vmatprep.subr.mxu0 0.0
        %2700 = vmatpush1.xpose.msra.mxu0 0.0
        %2701 = vmatprep.subr.mxu0 0.0
        %2702 = vmatpush1.xpose.msra.mxu0 0.0
        %2703 = vmatprep.subr.mxu0 0.0
        %2704 = vmatpush1.xpose.msra.mxu0 0.0
        %2705 = vmatprep.subr.mxu0 0.0
        %2706 = vmatpush1.xpose.msra.mxu0 0.0
        %2707 = vmatprep.subr.mxu0 0.0
        %2708 = vmatpush1.xpose.msra.mxu0 0.0
        %2709 = vmatprep.subr.mxu0 0.0
        %2710 = vmatpush1.xpose.msra.mxu0 0.0
        %2711 = vmatprep.subr.mxu0 0.0
        %2712 = vmatpush1.xpose.msra.mxu0 0.0
        %2713 = vmatprep.subr.mxu0 0.0
        %2714 = vmatpush1.xpose.msra.mxu0 0.0
        %2715 = vmatprep.subr.mxu0 0.0
        %2716 = vmatpush1.xpose.msra.mxu0 0.0
        %2717 = vmatprep.subr.mxu0 0.0
        %2718 = vmatpush1.xpose.msra.mxu0 0.0
        %2719 = vmatprep.subr.mxu0 0.0
        %2720 = vmatpush1.xpose.msra.mxu0 0.0
        %2721 = vmatprep.subr.mxu0 0.0
        %2722 = vmatpush1.xpose.msra.mxu0 0.0
        %2723 = vmatprep.subr.mxu0 0.0
        %2724 = vmatpush1.xpose.msra.mxu0 0.0
        %2725 = vmatprep.subr.mxu0 0.0
        %2726 = vmatpush1.xpose.msra.mxu0 0.0
        %2727 = vmatprep.subr.mxu0 0.0
        %2728 = vmatpush1.xpose.msra.mxu0 0.0
        %2729 = vmatprep.subr.mxu0 0.0
        %2730 = vmatpush1.xpose.msra.mxu0 0.0
        %2731 = vmatprep.subr.mxu0 0.0
        %2732 = vmatpush1.xpose.msra.mxu0 0.0
        %2733 = vmatprep.subr.mxu0 0.0
        %2734 = vmatpush1.xpose.msra.mxu0 0.0
        %2735 = vmatprep.subr.mxu0 0.0
        %2736 = vmatpush1.xpose.msra.mxu0 0.0
        %2737 = vmatprep.mubr.f32.mxu0 0.0
        %2738 = vmatmul.mubr.f32.gmra.mrb[0].mxu0 %v2669
        %v2739 = vpop.f32.mrb[0].mxu0
        %v2740 = vadd.f32 0.0, %v2739
        %v2741 = vpop.f32.mrb[0].mxu0
        %2742 = vdwg.mxu0
        %v2743 = vmul.f32 %v2740, 0.35355338
        %v2744 = vadd.f32 %v2743, %v1317
        %v2745 = vsel %vm1237, %v2744, -inf
        %2746 = vmax.xlane.f32.xlu0 %v2745
        %v2747 = vpop.xlane.xlu0 %2746
        %v2748 = vsub.f32 %v2744, %v2747
        %v2749 = vmul.f32 %v2748, 1.442695
        %v2750 = vpow.pop %v2749
        %v2751 = vsel %vm1237, %v2750, 0.0
        %2752 = vadd.xlane.f32.xlu0 %v2751
        %v2753 = vpop.xlane.xlu0 %2752
        %v2754 = vrcp.pop %v2753
        %v2755 = vmul.f32 %v2750, %v2754
        %2756 = vrot.lane.b32.xlu0 %v2329, 48
        %v2757 = vpop.permute.xlu0 %2756
        %v2760 = vsel %vm1237, %v2755, 0
        %2762 = vmatprep.subr.mxu0 0.0
        %2763 = vmatpush1.msra.mxu0 %v2757
        %2764 = vmatprep.subr.mxu0 0.0
        %2765 = vmatpush1.msra.mxu0 0.0
        %2766 = vmatprep.subr.mxu0 0.0
        %2767 = vmatpush1.msra.mxu0 0.0
        %2768 = vmatprep.subr.mxu0 0.0
        %2769 = vmatpush1.msra.mxu0 0.0
        %2770 = vmatprep.subr.mxu0 0.0
        %2771 = vmatpush1.msra.mxu0 0.0
        %2772 = vmatprep.subr.mxu0 0.0
        %2773 = vmatpush1.msra.mxu0 0.0
        %2774 = vmatprep.subr.mxu0 0.0
        %2775 = vmatpush1.msra.mxu0 0.0
        %2776 = vmatprep.subr.mxu0 0.0
        %2777 = vmatpush1.msra.mxu0 0.0
        %2778 = vmatprep.subr.mxu0 0.0
        %2779 = vmatpush1.msra.mxu0 0.0
        %2780 = vmatprep.subr.mxu0 0.0
        %2781 = vmatpush1.msra.mxu0 0.0
        %2782 = vmatprep.subr.mxu0 0.0
        %2783 = vmatpush1.msra.mxu0 0.0
        %2784 = vmatprep.subr.mxu0 0.0
        %2785 = vmatpush1.msra.mxu0 0.0
        %2786 = vmatprep.subr.mxu0 0.0
        %2787 = vmatpush1.msra.mxu0 0.0
        %2788 = vmatprep.subr.mxu0 0.0
        %2789 = vmatpush1.msra.mxu0 0.0
        %2790 = vmatprep.subr.mxu0 0.0
        %2791 = vmatpush1.msra.mxu0 0.0
        %2792 = vmatprep.subr.mxu0 0.0
        %2793 = vmatpush1.msra.mxu0 0.0
        %2794 = vmatprep.subr.mxu0 0.0
        %2795 = vmatpush1.msra.mxu0 0.0
        %2796 = vmatprep.subr.mxu0 0.0
        %2797 = vmatpush1.msra.mxu0 0.0
        %2798 = vmatprep.subr.mxu0 0.0
        %2799 = vmatpush1.msra.mxu0 0.0
        %2800 = vmatprep.subr.mxu0 0.0
        %2801 = vmatpush1.msra.mxu0 0.0
        %2802 = vmatprep.subr.mxu0 0.0
        %2803 = vmatpush1.msra.mxu0 0.0
        %2804 = vmatprep.subr.mxu0 0.0
        %2805 = vmatpush1.msra.mxu0 0.0
        %2806 = vmatprep.subr.mxu0 0.0
        %2807 = vmatpush1.msra.mxu0 0.0
        %2808 = vmatprep.subr.mxu0 0.0
        %2809 = vmatpush1.msra.mxu0 0.0
        %2810 = vmatprep.subr.mxu0 0.0
        %2811 = vmatpush1.msra.mxu0 0.0
        %2812 = vmatprep.subr.mxu0 0.0
        %2813 = vmatpush1.msra.mxu0 0.0
        %2814 = vmatprep.subr.mxu0 0.0
        %2815 = vmatpush1.msra.mxu0 0.0
        %2816 = vmatprep.subr.mxu0 0.0
        %2817 = vmatpush1.msra.mxu0 0.0
        %2818 = vmatprep.subr.mxu0 0.0
        %2819 = vmatpush1.msra.mxu0 0.0
        %2820 = vmatprep.subr.mxu0 0.0
        %2821 = vmatpush1.msra.mxu0 0.0
        %2822 = vmatprep.subr.mxu0 0.0
        %2823 = vmatpush1.msra.mxu0 0.0
        %2824 = vmatprep.subr.mxu0 0.0
        %2825 = vmatpush1.msra.mxu0 0.0
        %2826 = vmatprep.mubr.f32.mxu0 0.0
        %2827 = vmatmul.mubr.f32.gmra.mrb[0].mxu0 %v2760
        %v2828 = vpop.f32.mrb[0].mxu0
        %v2829 = vadd.f32 0.0, %v2828
        %v2830 = vpop.f32.mrb[0].mxu0
        %2831 = vdwg.mxu0
        %2832 = vrot.lane.b32.xlu0 %v2329, 104
        %v2833 = vpop.permute.xlu0 %2832
        %2834 = vrot.lane.b32.xlu0 %v2329, 72
        %v2835 = vpop.permute.xlu0 %2834
        %v2836 = vsel %vm1237, %v2833, 0
        %v2838 = vsel %vm1237, %v2835, 0
        %2840 = vmatprep.subr.mxu0 0.0
        %2841 = vmatpush1.xpose.msra.mxu0 %v2838
        %2842 = vmatprep.subr.mxu0 0.0
        %2843 = vmatpush1.xpose.msra.mxu0 0.0
        %2844 = vmatprep.subr.mxu0 0.0
        %2845 = vmatpush1.xpose.msra.mxu0 0.0
        %2846 = vmatprep.subr.mxu0 0.0
        %2847 = vmatpush1.xpose.msra.mxu0 0.0
        %2848 = vmatprep.subr.mxu0 0.0
        %2849 = vmatpush1.xpose.msra.mxu0 0.0
        %2850 = vmatprep.subr.mxu0 0.0
        %2851 = vmatpush1.xpose.msra.mxu0 0.0
        %2852 = vmatprep.subr.mxu0 0.0
        %2853 = vmatpush1.xpose.msra.mxu0 0.0
        %2854 = vmatprep.subr.mxu0 0.0
        %2855 = vmatpush1.xpose.msra.mxu0 0.0
        %2856 = vmatprep.subr.mxu0 0.0
        %2857 = vmatpush1.xpose.msra.mxu0 0.0
        %2858 = vmatprep.subr.mxu0 0.0
        %2859 = vmatpush1.xpose.msra.mxu0 0.0
        %2860 = vmatprep.subr.mxu0 0.0
        %2861 = vmatpush1.xpose.msra.mxu0 0.0
        %2862 = vmatprep.subr.mxu0 0.0
        %2863 = vmatpush1.xpose.msra.mxu0 0.0
        %2864 = vmatprep.subr.mxu0 0.0
        %2865 = vmatpush1.xpose.msra.mxu0 0.0
        %2866 = vmatprep.subr.mxu0 0.0
        %2867 = vmatpush1.xpose.msra.mxu0 0.0
        %2868 = vmatprep.subr.mxu0 0.0
        %2869 = vmatpush1.xpose.msra.mxu0 0.0
        %2870 = vmatprep.subr.mxu0 0.0
        %2871 = vmatpush1.xpose.msra.mxu0 0.0
        %2872 = vmatprep.subr.mxu0 0.0
        %2873 = vmatpush1.xpose.msra.mxu0 0.0
        %2874 = vmatprep.subr.mxu0 0.0
        %2875 = vmatpush1.xpose.msra.mxu0 0.0
        %2876 = vmatprep.subr.mxu0 0.0
        %2877 = vmatpush1.xpose.msra.mxu0 0.0
        %2878 = vmatprep.subr.mxu0 0.0
        %2879 = vmatpush1.xpose.msra.mxu0 0.0
        %2880 = vmatprep.subr.mxu0 0.0
        %2881 = vmatpush1.xpose.msra.mxu0 0.0
        %2882 = vmatprep.subr.mxu0 0.0
        %2883 = vmatpush1.xpose.msra.mxu0 0.0
        %2884 = vmatprep.subr.mxu0 0.0
        %2885 = vmatpush1.xpose.msra.mxu0 0.0
        %2886 = vmatprep.subr.mxu0 0.0
        %2887 = vmatpush1.xpose.msra.mxu0 0.0
        %2888 = vmatprep.subr.mxu0 0.0
        %2889 = vmatpush1.xpose.msra.mxu0 0.0
        %2890 = vmatprep.subr.mxu0 0.0
        %2891 = vmatpush1.xpose.msra.mxu0 0.0
        %2892 = vmatprep.subr.mxu0 0.0
        %2893 = vmatpush1.xpose.msra.mxu0 0.0
        %2894 = vmatprep.subr.mxu0 0.0
        %2895 = vmatpush1.xpose.msra.mxu0 0.0
        %2896 = vmatprep.subr.mxu0 0.0
        %2897 = vmatpush1.xpose.msra.mxu0 0.0
        %2898 = vmatprep.subr.mxu0 0.0
        %2899 = vmatpush1.xpose.msra.mxu0 0.0
        %2900 = vmatprep.subr.mxu0 0.0
        %2901 = vmatpush1.xpose.msra.mxu0 0.0
        %2902 = vmatprep.subr.mxu0 0.0
        %2903 = vmatpush1.xpose.msra.mxu0 0.0
        %2904 = vmatprep.mubr.f32.mxu0 0.0
        %2905 = vmatmul.mubr.f32.gmra.mrb[0].mxu0 %v2836
        %v2906 = vpop.f32.mrb[0].mxu0
        %v2907 = vadd.f32 0.0, %v2906
        %v2908 = vpop.f32.mrb[0].mxu0
        %2909 = vdwg.mxu0
        %v2910 = vmul.f32 %v2907, 0.35355338
        %v2911 = vadd.f32 %v2910, %v1317
        %v2912 = vsel %vm1237, %v2911, -inf
        %2913 = vmax.xlane.f32.xlu0 %v2912
        %v2914 = vpop.xlane.xlu0 %2913
        %v2915 = vsub.f32 %v2911, %v2914
        %v2916 = vmul.f32 %v2915, 1.442695
        %v2917 = vpow.pop %v2916
        %v2918 = vsel %vm1237, %v2917, 0.0
        %2919 = vadd.xlane.f32.xlu0 %v2918
        %v2920 = vpop.xlane.xlu0 %2919
        %v2921 = vrcp.pop %v2920
        %v2922 = vmul.f32 %v2917, %v2921
        %2923 = vrot.lane.b32.xlu0 %v2329, 40
        %v2924 = vpop.permute.xlu0 %2923
        %v2927 = vsel %vm1237, %v2922, 0
        %2929 = vmatprep.subr.mxu0 0.0
        %2930 = vmatpush1.msra.mxu0 %v2924
        %2931 = vmatprep.subr.mxu0 0.0
        %2932 = vmatpush1.msra.mxu0 0.0
        %2933 = vmatprep.subr.mxu0 0.0
        %2934 = vmatpush1.msra.mxu0 0.0
        %2935 = vmatprep.subr.mxu0 0.0
        %2936 = vmatpush1.msra.mxu0 0.0
        %2937 = vmatprep.subr.mxu0 0.0
        %2938 = vmatpush1.msra.mxu0 0.0
        %2939 = vmatprep.subr.mxu0 0.0
        %2940 = vmatpush1.msra.mxu0 0.0
        %2941 = vmatprep.subr.mxu0 0.0
        %2942 = vmatpush1.msra.mxu0 0.0
        %2943 = vmatprep.subr.mxu0 0.0
        %2944 = vmatpush1.msra.mxu0 0.0
        %2945 = vmatprep.subr.mxu0 0.0
        %2946 = vmatpush1.msra.mxu0 0.0
        %2947 = vmatprep.subr.mxu0 0.0
        %2948 = vmatpush1.msra.mxu0 0.0
        %2949 = vmatprep.subr.mxu0 0.0
        %2950 = vmatpush1.msra.mxu0 0.0
        %2951 = vmatprep.subr.mxu0 0.0
        %2952 = vmatpush1.msra.mxu0 0.0
        %2953 = vmatprep.subr.mxu0 0.0
        %2954 = vmatpush1.msra.mxu0 0.0
        %2955 = vmatprep.subr.mxu0 0.0
        %2956 = vmatpush1.msra.mxu0 0.0
        %2957 = vmatprep.subr.mxu0 0.0
        %2958 = vmatpush1.msra.mxu0 0.0
        %2959 = vmatprep.subr.mxu0 0.0
        %2960 = vmatpush1.msra.mxu0 0.0
        %2961 = vmatprep.subr.mxu0 0.0
        %2962 = vmatpush1.msra.mxu0 0.0
        %2963 = vmatprep.subr.mxu0 0.0
        %2964 = vmatpush1.msra.mxu0 0.0
        %2965 = vmatprep.subr.mxu0 0.0
        %2966 = vmatpush1.msra.mxu0 0.0
        %2967 = vmatprep.subr.mxu0 0.0
        %2968 = vmatpush1.msra.mxu0 0.0
        %2969 = vmatprep.subr.mxu0 0.0
        %2970 = vmatpush1.msra.mxu0 0.0
        %2971 = vmatprep.subr.mxu0 0.0
        %2972 = vmatpush1.msra.mxu0 0.0
        %2973 = vmatprep.subr.mxu0 0.0
        %2974 = vmatpush1.msra.mxu0 0.0
        %2975 = vmatprep.subr.mxu0 0.0
        %2976 = vmatpush1.msra.mxu0 0.0
        %2977 = vmatprep.subr.mxu0 0.0
        %2978 = vmatpush1.msra.mxu0 0.0
        %2979 = vmatprep.subr.mxu0 0.0
        %2980 = vmatpush1.msra.mxu0 0.0
        %2981 = vmatprep.subr.mxu0 0.0
        %2982 = vmatpush1.msra.mxu0 0.0
        %2983 = vmatprep.subr.mxu0 0.0
        %2984 = vmatpush1.msra.mxu0 0.0
        %2985 = vmatprep.subr.mxu0 0.0
        %2986 = vmatpush1.msra.mxu0 0.0
        %2987 = vmatprep.subr.mxu0 0.0
        %2988 = vmatpush1.msra.mxu0 0.0
        %2989 = vmatprep.subr.mxu0 0.0
        %2990 = vmatpush1.msra.mxu0 0.0
        %2991 = vmatprep.subr.mxu0 0.0
        %2992 = vmatpush1.msra.mxu0 0.0
        %2993 = vmatprep.mubr.f32.mxu0 0.0
        %2994 = vmatmul.mubr.f32.gmra.mrb[0].mxu0 %v2927
        %v2995 = vpop.f32.mrb[0].mxu0
        %v2996 = vadd.f32 0.0, %v2995
        %v2997 = vpop.f32.mrb[0].mxu0
        %2998 = vdwg.mxu0
        %3000 = vrot.lane.b32.xlu0 %v2662, 8
        %v3001 = vpop.permute.xlu0 %3000
        %3004 = vrot.lane.b32.xlu0 %v2829, 16
        %v3005 = vpop.permute.xlu0 %3004
        %3008 = vrot.lane.b32.xlu0 %v2996, 24
        %v3009 = vpop.permute.xlu0 %3008
        %v3011 = vsel %vm1237, %v2495, %v3001
        %v3012 = vsel %vm1921, %v3011, %v3005
        %v3013 = vsel %vm1923, %v3012, %v3009
        %v3015 = vlaneseq
        %v3016 = vshrl.u32 %v3015, 7
        %v3017 = vsub.s32 0, %v3016
        %v3018 = vrot.slane %v2252, %v3017
        %v3021 = vsel %vm1160, %v3013, 0
        %3023 = vmatprep.subr.mxu0 0.0
        %3024 = vmatpush1.msra.mxu0 %v2247
        %3025 = vmatprep.subr.mxu0 0.0
        %3026 = vmatpush1.msra.mxu0 %v2248
        %3027 = vmatprep.subr.mxu0 0.0
        %3028 = vmatpush1.msra.mxu0 %v2249
        %3029 = vmatprep.subr.mxu0 0.0
        %3030 = vmatpush1.msra.mxu0 %v2250
        %3031 = vmatprep.subr.mxu0 0.0
        %3032 = vmatpush1.msra.mxu0 0.0
        %3033 = vmatprep.subr.mxu0 0.0
        %3034 = vmatpush1.msra.mxu0 0.0
        %3035 = vmatprep.subr.mxu0 0.0
        %3036 = vmatpush1.msra.mxu0 0.0
        %3037 = vmatprep.subr.mxu0 0.0
        %3038 = vmatpush1.msra.mxu0 0.0
        %3039 = vmatprep.subr.mxu0 0.0
        %3040 = vmatpush1.msra.mxu0 0.0
        %3041 = vmatprep.subr.mxu0 0.0
        %3042 = vmatpush1.msra.mxu0 0.0
        %3043 = vmatprep.subr.mxu0 0.0
        %3044 = vmatpush1.msra.mxu0 0.0
        %3045 = vmatprep.subr.mxu0 0.0
        %3046 = vmatpush1.msra.mxu0 0.0
        %3047 = vmatprep.subr.mxu0 0.0
        %3048 = vmatpush1.msra.mxu0 0.0
        %3049 = vmatprep.subr.mxu0 0.0
        %3050 = vmatpush1.msra.mxu0 0.0
        %3051 = vmatprep.subr.mxu0 0.0
        %3052 = vmatpush1.msra.mxu0 0.0
        %3053 = vmatprep.subr.mxu0 0.0
        %3054 = vmatpush1.msra.mxu0 0.0
        %3055 = vmatprep.subr.mxu0 0.0
        %3056 = vmatpush1.msra.mxu0 0.0
        %3057 = vmatprep.subr.mxu0 0.0
        %3058 = vmatpush1.msra.mxu0 0.0
        %3059 = vmatprep.subr.mxu0 0.0
        %3060 = vmatpush1.msra.mxu0 0.0
        %3061 = vmatprep.subr.mxu0 0.0
        %3062 = vmatpush1.msra.mxu0 0.0
        %3063 = vmatprep.subr.mxu0 0.0
        %3064 = vmatpush1.msra.mxu0 0.0
        %3065 = vmatprep.subr.mxu0 0.0
        %3066 = vmatpush1.msra.mxu0 0.0
        %3067 = vmatprep.subr.mxu0 0.0
        %3068 = vmatpush1.msra.mxu0 0.0
        %3069 = vmatprep.subr.mxu0 0.0
        %3070 = vmatpush1.msra.mxu0 0.0
        %3071 = vmatprep.subr.mxu0 0.0
        %3072 = vmatpush1.msra.mxu0 0.0
        %3073 = vmatprep.subr.mxu0 0.0
        %3074 = vmatpush1.msra.mxu0 0.0
        %3075 = vmatprep.subr.mxu0 0.0
        %3076 = vmatpush1.msra.mxu0 0.0
        %3077 = vmatprep.subr.mxu0 0.0
        %3078 = vmatpush1.msra.mxu0 0.0
        %3079 = vmatprep.subr.mxu0 0.0
        %3080 = vmatpush1.msra.mxu0 0.0
        %3081 = vmatprep.subr.mxu0 0.0
        %3082 = vmatpush1.msra.mxu0 0.0
        %3083 = vmatprep.subr.mxu0 0.0
        %3084 = vmatpush1.msra.mxu0 0.0
        %3085 = vmatprep.subr.mxu0 0.0
        %3086 = vmatpush1.msra.mxu0 0.0
        %3087 = vmatprep.mubr.f32.mxu0 0.0
        %3088 = vmatmul.mubr.f32.gmra.mrb[0].mxu0 %v3021
        %v3089 = vpop.f32.mrb[0].mxu0
        %v3090 = vadd.f32 %v3018, %v3089
        %v3091 = vpop.f32.mrb[0].mxu0
        %3092 = vdwg.mxu0
        %s3093 = scalar_lea.vmem %s17, 1
        %v3094 = vld [vmem:[%s3093] sm:$0x1]
        %s3095 = scalar_lea.vmem %s19, 1
        %v3096 = vld [vmem:[%s3095] sm:$0x1]
        %v3097 = vadd.f32 %v2238, %v3090
        %v3098 = vsel %vm1160, %v3097, 0.0
        %3099 = vadd.xlane.f32.xlu0 %v3098
        %v3100 = vpop.xlane.xlu0 %3099
        %v3101 = vmul.f32 %v3100, %v2010
        %v3102 = vsub.f32 %v3097, %v3101
        %v3103 = vmul.f32 %v3102, %v3102
        %v3104 = vsel %vm1160, %v3103, 0.0
        %3105 = vadd.xlane.f32.xlu0 %v3104
        %v3106 = vpop.xlane.xlu0 %3105
        %v3107 = vmul.f32 %v3106, %v2010
        %v3108 = vadd.f32 %v3107, 1e-05
        %v3109 = vrsqrt.pop %v3108
        %v3110 = vmul.f32 %v3102, %v3109
        %v3112 = vlaneseq
        %v3113 = vshrl.u32 %v3112, 7
        %v3114 = vsub.s32 0, %v3113
        %v3115 = vrot.slane %v3094, %v3114
        %v3117 = vmul.f32 %v3110, %v3115
        %v3119 = vlaneseq
        %v3120 = vshrl.u32 %v3119, 7
        %v3121 = vsub.s32 0, %v3120
        %v3122 = vrot.slane %v3096, %v3121
        %v3124 = vadd.f32 %v3117, %v3122
        %s3125 = scalar_lea.vmem %s21, 32
        %v3126 = vld [vmem:[%s3125] sm:$0xff]
        %v3127 = vld [vmem:[%s3125 + $0x8] sm:$0xff]
        %v3128 = vld [vmem:[%s3125 + $0x10] sm:$0xff]
        %v3129 = vld [vmem:[%s3125 + $0x18] sm:$0xff]
        %s3130 = scalar_lea.vmem %s23, 1
        %v3131 = vld [vmem:[%s3130] sm:$0x1]
        %s3132 = scalar_lea.vmem %s25, 64
        %v3133 = vld [vmem:[%s3132] sm:$0xff]
        %v3134 = vld [vmem:[%s3132 + $0x8] sm:$0xff]
        %v3135 = vld [vmem:[%s3132 + $0x10] sm:$0xff]
        %v3136 = vld [vmem:[%s3132 + $0x18] sm:$0xff]
        %v3137 = vld [vmem:[%s3132 + $0x20] sm:$0xff]
        %v3138 = vld [vmem:[%s3132 + $0x28] sm:$0xff]
        %v3139 = vld [vmem:[%s3132 + $0x30] sm:$0xff]
        %v3140 = vld [vmem:[%s3132 + $0x38] sm:$0xff]
        %s3141 = scalar_lea.vmem %s27, 1
        %v3142 = vld [vmem:[%s3141] sm:$0x1]
        %v3144 = vlaneseq
        %v3145 = vshrl.u32 %v3144, 7
        %v3146 = vsub.s32 0, %v3145
        %v3147 = vrot.slane %v3131, %v3146
        %v3150 = vsel %vm1160, %v3124, 0
        %3152 = vmatprep.subr.mxu0 0.0
        %3153 = vmatpush1.msra.mxu0 %v3126
        %3154 = vmatprep.subr.mxu0 0.0
        %3155 = vmatpush1.msra.mxu0 %v3127
        %3156 = vmatprep.subr.mxu0 0.0
        %3157 = vmatpush1.msra.mxu0 %v3128
        %3158 = vmatprep.subr.mxu0 0.0
        %3159 = vmatpush1.msra.mxu0 %v3129
        %3160 = vmatprep.subr.mxu0 0.0
        %3161 = vmatpush1.msra.mxu0 0.0
        %3162 = vmatprep.subr.mxu0 0.0
        %3163 = vmatpush1.msra.mxu0 0.0
        %3164 = vmatprep.subr.mxu0 0.0
        %3165 = vmatpush1.msra.mxu0 0.0
        %3166 = vmatprep.subr.mxu0 0.0
        %3167 = vmatpush1.msra.mxu0 0.0
        %3168 = vmatprep.subr.mxu0 0.0
        %3169 = vmatpush1.msra.mxu0 0.0
        %3170 = vmatprep.subr.mxu0 0.0
        %3171 = vmatpush1.msra.mxu0 0.0
        %3172 = vmatprep.subr.mxu0 0.0
        %3173 = vmatpush1.msra.mxu0 0.0
        %3174 = vmatprep.subr.mxu0 0.0
        %3175 = vmatpush1.msra.mxu0 0.0
        %3176 = vmatprep.subr.mxu0 0.0
        %3177 = vmatpush1.msra.mxu0 0.0
        %3178 = vmatprep.subr.mxu0 0.0
        %3179 = vmatpush1.msra.mxu0 0.0
        %3180 = vmatprep.subr.mxu0 0.0
        %3181 = vmatpush1.msra.mxu0 0.0
        %3182 = vmatprep.subr.mxu0 0.0
        %3183 = vmatpush1.msra.mxu0 0.0
        %3184 = vmatprep.subr.mxu0 0.0
        %3185 = vmatpush1.msra.mxu0 0.0
        %3186 = vmatprep.subr.mxu0 0.0
        %3187 = vmatpush1.msra.mxu0 0.0
        %3188 = vmatprep.subr.mxu0 0.0
        %3189 = vmatpush1.msra.mxu0 0.0
        %3190 = vmatprep.subr.mxu0 0.0
        %3191 = vmatpush1.msra.mxu0 0.0
        %3192 = vmatprep.subr.mxu0 0.0
        %3193 = vmatpush1.msra.mxu0 0.0
        %3194 = vmatprep.subr.mxu0 0.0
        %3195 = vmatpush1.msra.mxu0 0.0
        %3196 = vmatprep.subr.mxu0 0.0
        %3197 = vmatpush1.msra.mxu0 0.0
        %3198 = vmatprep.subr.mxu0 0.0
        %3199 = vmatpush1.msra.mxu0 0.0
        %3200 = vmatprep.subr.mxu0 0.0
        %3201 = vmatpush1.msra.mxu0 0.0
        %3202 = vmatprep.subr.mxu0 0.0
        %3203 = vmatpush1.msra.mxu0 0.0
        %3204 = vmatprep.subr.mxu0 0.0
        %3205 = vmatpush1.msra.mxu0 0.0
        %3206 = vmatprep.subr.mxu0 0.0
        %3207 = vmatpush1.msra.mxu0 0.0
        %3208 = vmatprep.subr.mxu0 0.0
        %3209 = vmatpush1.msra.mxu0 0.0
        %3210 = vmatprep.subr.mxu0 0.0
        %3211 = vmatpush1.msra.mxu0 0.0
        %3212 = vmatprep.subr.mxu0 0.0
        %3213 = vmatpush1.msra.mxu0 0.0
        %3214 = vmatprep.subr.mxu0 0.0
        %3215 = vmatpush1.msra.mxu0 0.0
        %3216 = vmatprep.mubr.f32.mxu0 0.0
        %3217 = vmatmul.mubr.f32.gmra.mrb[0].mxu0 %v3150
        %v3218 = vpop.f32.mrb[0].mxu0
        %v3219 = vadd.f32 %v3147, %v3218
        %v3220 = vpop.f32.mrb[0].mxu0
        %3221 = vdwg.mxu0
        %v3222 = vmax.f32 %v3219, 0.0
        %v3224 = vlaneseq
        %v3225 = vshrl.u32 %v3224, 7
        %v3226 = vsub.s32 0, %v3225
        %v3227 = vrot.slane %v3142, %v3226
        %v3230 = vsel %vm2135, %v3222, 0
        %3232 = vmatprep.subr.mxu0 0.0
        %3233 = vmatpush1.msra.mxu0 %v3133
        %3234 = vmatprep.subr.mxu0 0.0
        %3235 = vmatpush1.msra.mxu0 %v3134
        %3236 = vmatprep.subr.mxu0 0.0
        %3237 = vmatpush1.msra.mxu0 %v3135
        %3238 = vmatprep.subr.mxu0 0.0
        %3239 = vmatpush1.msra.mxu0 %v3136
        %3240 = vmatprep.subr.mxu0 0.0
        %3241 = vmatpush1.msra.mxu0 %v3137
        %3242 = vmatprep.subr.mxu0 0.0
        %3243 = vmatpush1.msra.mxu0 %v3138
        %3244 = vmatprep.subr.mxu0 0.0
        %3245 = vmatpush1.msra.mxu0 %v3139
        %3246 = vmatprep.subr.mxu0 0.0
        %3247 = vmatpush1.msra.mxu0 %v3140
        %3248 = vmatprep.subr.mxu0 0.0
        %3249 = vmatpush1.msra.mxu0 0.0
        %3250 = vmatprep.subr.mxu0 0.0
        %3251 = vmatpush1.msra.mxu0 0.0
        %3252 = vmatprep.subr.mxu0 0.0
        %3253 = vmatpush1.msra.mxu0 0.0
        %3254 = vmatprep.subr.mxu0 0.0
        %3255 = vmatpush1.msra.mxu0 0.0
        %3256 = vmatprep.subr.mxu0 0.0
        %3257 = vmatpush1.msra.mxu0 0.0
        %3258 = vmatprep.subr.mxu0 0.0
        %3259 = vmatpush1.msra.mxu0 0.0
        %3260 = vmatprep.subr.mxu0 0.0
        %3261 = vmatpush1.msra.mxu0 0.0
        %3262 = vmatprep.subr.mxu0 0.0
        %3263 = vmatpush1.msra.mxu0 0.0
        %3264 = vmatprep.subr.mxu0 0.0
        %3265 = vmatpush1.msra.mxu0 0.0
        %3266 = vmatprep.subr.mxu0 0.0
        %3267 = vmatpush1.msra.mxu0 0.0
        %3268 = vmatprep.subr.mxu0 0.0
        %3269 = vmatpush1.msra.mxu0 0.0
        %3270 = vmatprep.subr.mxu0 0.0
        %3271 = vmatpush1.msra.mxu0 0.0
        %3272 = vmatprep.subr.mxu0 0.0
        %3273 = vmatpush1.msra.mxu0 0.0
        %3274 = vmatprep.subr.mxu0 0.0
        %3275 = vmatpush1.msra.mxu0 0.0
        %3276 = vmatprep.subr.mxu0 0.0
        %3277 = vmatpush1.msra.mxu0 0.0
        %3278 = vmatprep.subr.mxu0 0.0
        %3279 = vmatpush1.msra.mxu0 0.0
        %3280 = vmatprep.subr.mxu0 0.0
        %3281 = vmatpush1.msra.mxu0 0.0
        %3282 = vmatprep.subr.mxu0 0.0
        %3283 = vmatpush1.msra.mxu0 0.0
        %3284 = vmatprep.subr.mxu0 0.0
        %3285 = vmatpush1.msra.mxu0 0.0
        %3286 = vmatprep.subr.mxu0 0.0
        %3287 = vmatpush1.msra.mxu0 0.0
        %3288 = vmatprep.subr.mxu0 0.0
        %3289 = vmatpush1.msra.mxu0 0.0
        %3290 = vmatprep.subr.mxu0 0.0
        %3291 = vmatpush1.msra.mxu0 0.0
        %3292 = vmatprep.subr.mxu0 0.0
        %3293 = vmatpush1.msra.mxu0 0.0
        %3294 = vmatprep.subr.mxu0 0.0
        %3295 = vmatpush1.msra.mxu0 0.0
        %3296 = vmatprep.mubr.f32.mxu0 0.0
        %3297 = vmatmul.mubr.f32.gmra.mrb[0].mxu0 %v3230
        %v3298 = vpop.f32.mrb[0].mxu0
        %v3299 = vadd.f32 %v3227, %v3298
        %v3300 = vpop.f32.mrb[0].mxu0
        %3301 = vdwg.mxu0
        %s3302 = scalar_lea.vmem %s29, 1
        %v3303 = vld [vmem:[%s3302] sm:$0x1]
        %s3304 = scalar_lea.vmem %s31, 1
        %v3305 = vld [vmem:[%s3304] sm:$0x1]
        %v3306 = vadd.f32 %v3124, %v3299
        %v3307 = vsel %vm1160, %v3306, 0.0
        %3308 = vadd.xlane.f32.xlu0 %v3307
        %v3309 = vpop.xlane.xlu0 %3308
        %v3310 = vmul.f32 %v3309, %v2010
        %v3311 = vsub.f32 %v3306, %v3310
        %v3312 = vmul.f32 %v3311, %v3311
        %v3313 = vsel %vm1160, %v3312, 0.0
        %3314 = vadd.xlane.f32.xlu0 %v3313
        %v3315 = vpop.xlane.xlu0 %3314
        %v3316 = vmul.f32 %v3315, %v2010
        %v3317 = vadd.f32 %v3316, 1e-05
        %v3318 = vrsqrt.pop %v3317
        %v3319 = vmul.f32 %v3311, %v3318
        %v3321 = vlaneseq
        %v3322 = vshrl.u32 %v3321, 7
        %v3323 = vsub.s32 0, %v3322
        %v3324 = vrot.slane %v3303, %v3323
        %v3326 = vmul.f32 %v3319, %v3324
        %v3328 = vlaneseq
        %v3329 = vshrl.u32 %v3328, 7
        %v3330 = vsub.s32 0, %v3329
        %v3331 = vrot.slane %v3305, %v3330
        %v3333 = vadd.f32 %v3326, %v3331
        %v3334 = vld [vmem:[%s1132] sm:$0xff]
        %v3335 = vld [vmem:[%s33] sm:$0xff]
        %v3336 = vld [vmem:[%s33 + $0x8] sm:$0xff]
        %v3337 = vld [vmem:[%s33 + $0x10] sm:$0xff]
        %v3338 = vld [vmem:[%s33 + $0x18] sm:$0xff]
        %v3339 = vld [vmem:[%s35] sm:$0x1]
        %v3340 = vld [vmem:[%s37] sm:$0xff]
        %v3341 = vld [vmem:[%s37 + $0x8] sm:$0xff]
        %v3342 = vld [vmem:[%s37 + $0x10] sm:$0xff]
        %v3343 = vld [vmem:[%s37 + $0x18] sm:$0xff]
        %v3344 = vld [vmem:[%s39] sm:$0x1]
        %v3346 = vlaneseq
        %v3347 = vshrl.u32 %v3346, 7
        %v3348 = vsub.s32 0, %v3347
        %v3349 = vrot.slane %v3339, %v3348
        %v3352 = vsel %vm1160, %v3334, 0
        %3354 = vmatprep.subr.mxu0 0.0
        %3355 = vmatpush1.msra.mxu0 %v3335
        %3356 = vmatprep.subr.mxu0 0.0
        %3357 = vmatpush1.msra.mxu0 %v3336
        %3358 = vmatprep.subr.mxu0 0.0
        %3359 = vmatpush1.msra.mxu0 %v3337
        %3360 = vmatprep.subr.mxu0 0.0
        %3361 = vmatpush1.msra.mxu0 %v3338
        %3362 = vmatprep.subr.mxu0 0.0
        %3363 = vmatpush1.msra.mxu0 0.0
        %3364 = vmatprep.subr.mxu0 0.0
        %3365 = vmatpush1.msra.mxu0 0.0
        %3366 = vmatprep.subr.mxu0 0.0
        %3367 = vmatpush1.msra.mxu0 0.0
        %3368 = vmatprep.subr.mxu0 0.0
        %3369 = vmatpush1.msra.mxu0 0.0
        %3370 = vmatprep.subr.mxu0 0.0
        %3371 = vmatpush1.msra.mxu0 0.0
        %3372 = vmatprep.subr.mxu0 0.0
        %3373 = vmatpush1.msra.mxu0 0.0
        %3374 = vmatprep.subr.mxu0 0.0
        %3375 = vmatpush1.msra.mxu0 0.0
        %3376 = vmatprep.subr.mxu0 0.0
        %3377 = vmatpush1.msra.mxu0 0.0
        %3378 = vmatprep.subr.mxu0 0.0
        %3379 = vmatpush1.msra.mxu0 0.0
        %3380 = vmatprep.subr.mxu0 0.0
        %3381 = vmatpush1.msra.mxu0 0.0
        %3382 = vmatprep.subr.mxu0 0.0
        %3383 = vmatpush1.msra.mxu0 0.0
        %3384 = vmatprep.subr.mxu0 0.0
        %3385 = vmatpush1.msra.mxu0 0.0
        %3386 = vmatprep.subr.mxu0 0.0
        %3387 = vmatpush1.msra.mxu0 0.0
        %3388 = vmatprep.subr.mxu0 0.0
        %3389 = vmatpush1.msra.mxu0 0.0
        %3390 = vmatprep.subr.mxu0 0.0
        %3391 = vmatpush1.msra.mxu0 0.0
        %3392 = vmatprep.subr.mxu0 0.0
        %3393 = vmatpush1.msra.mxu0 0.0
        %3394 = vmatprep.subr.mxu0 0.0
        %3395 = vmatpush1.msra.mxu0 0.0
        %3396 = vmatprep.subr.mxu0 0.0
        %3397 = vmatpush1.msra.mxu0 0.0
        %3398 = vmatprep.subr.mxu0 0.0
        %3399 = vmatpush1.msra.mxu0 0.0
        %3400 = vmatprep.subr.mxu0 0.0
        %3401 = vmatpush1.msra.mxu0 0.0
        %3402 = vmatprep.subr.mxu0 0.0
        %3403 = vmatpush1.msra.mxu0 0.0
        %3404 = vmatprep.subr.mxu0 0.0
        %3405 = vmatpush1.msra.mxu0 0.0
        %3406 = vmatprep.subr.mxu0 0.0
        %3407 = vmatpush1.msra.mxu0 0.0
        %3408 = vmatprep.subr.mxu0 0.0
        %3409 = vmatpush1.msra.mxu0 0.0
        %3410 = vmatprep.subr.mxu0 0.0
        %3411 = vmatpush1.msra.mxu0 0.0
        %3412 = vmatprep.subr.mxu0 0.0
        %3413 = vmatpush1.msra.mxu0 0.0
        %3414 = vmatprep.subr.mxu0 0.0
        %3415 = vmatpush1.msra.mxu0 0.0
        %3416 = vmatprep.subr.mxu0 0.0
        %3417 = vmatpush1.msra.mxu0 0.0
        %3418 = vmatprep.mubr.f32.mxu0 0.0
        %3419 = vmatmul.mubr.f32.gmra.mrb[0].mxu0 %v3352
        %v3420 = vpop.f32.mrb[0].mxu0
        %v3421 = vadd.f32 %v3349, %v3420
        %v3422 = vpop.f32.mrb[0].mxu0
        %3423 = vdwg.mxu0
        %3425 = vrot.lane.b32.xlu0 %v3421, 96
        %v3426 = vpop.permute.xlu0 %3425
        %v3427 = vsel %vm1237, %v3421, 0
        %v3429 = vsel %vm1237, %v3426, 0
        %3431 = vmatprep.subr.mxu0 0.0
        %3432 = vmatpush1.xpose.msra.mxu0 %v3429
        %3433 = vmatprep.subr.mxu0 0.0
        %3434 = vmatpush1.xpose.msra.mxu0 0.0
        %3435 = vmatprep.subr.mxu0 0.0
        %3436 = vmatpush1.xpose.msra.mxu0 0.0
        %3437 = vmatprep.subr.mxu0 0.0
        %3438 = vmatpush1.xpose.msra.mxu0 0.0
        %3439 = vmatprep.subr.mxu0 0.0
        %3440 = vmatpush1.xpose.msra.mxu0 0.0
        %3441 = vmatprep.subr.mxu0 0.0
        %3442 = vmatpush1.xpose.msra.mxu0 0.0
        %3443 = vmatprep.subr.mxu0 0.0
        %3444 = vmatpush1.xpose.msra.mxu0 0.0
        %3445 = vmatprep.subr.mxu0 0.0
        %3446 = vmatpush1.xpose.msra.mxu0 0.0
        %3447 = vmatprep.subr.mxu0 0.0
        %3448 = vmatpush1.xpose.msra.mxu0 0.0
        %3449 = vmatprep.subr.mxu0 0.0
        %3450 = vmatpush1.xpose.msra.mxu0 0.0
        %3451 = vmatprep.subr.mxu0 0.0
        %3452 = vmatpush1.xpose.msra.mxu0 0.0
        %3453 = vmatprep.subr.mxu0 0.0
        %3454 = vmatpush1.xpose.msra.mxu0 0.0
        %3455 = vmatprep.subr.mxu0 0.0
        %3456 = vmatpush1.xpose.msra.mxu0 0.0
        %3457 = vmatprep.subr.mxu0 0.0
        %3458 = vmatpush1.xpose.msra.mxu0 0.0
        %3459 = vmatprep.subr.mxu0 0.0
        %3460 = vmatpush1.xpose.msra.mxu0 0.0
        %3461 = vmatprep.subr.mxu0 0.0
        %3462 = vmatpush1.xpose.msra.mxu0 0.0
        %3463 = vmatprep.subr.mxu0 0.0
        %3464 = vmatpush1.xpose.msra.mxu0 0.0
        %3465 = vmatprep.subr.mxu0 0.0
        %3466 = vmatpush1.xpose.msra.mxu0 0.0
        %3467 = vmatprep.subr.mxu0 0.0
        %3468 = vmatpush1.xpose.msra.mxu0 0.0
        %3469 = vmatprep.subr.mxu0 0.0
        %3470 = vmatpush1.xpose.msra.mxu0 0.0
        %3471 = vmatprep.subr.mxu0 0.0
        %3472 = vmatpush1.xpose.msra.mxu0 0.0
        %3473 = vmatprep.subr.mxu0 0.0
        %3474 = vmatpush1.xpose.msra.mxu0 0.0
        %3475 = vmatprep.subr.mxu0 0.0
        %3476 = vmatpush1.xpose.msra.mxu0 0.0
        %3477 = vmatprep.subr.mxu0 0.0
        %3478 = vmatpush1.xpose.msra.mxu0 0.0
        %3479 = vmatprep.subr.mxu0 0.0
        %3480 = vmatpush1.xpose.msra.mxu0 0.0
        %3481 = vmatprep.subr.mxu0 0.0
        %3482 = vmatpush1.xpose.msra.mxu0 0.0
        %3483 = vmatprep.subr.mxu0 0.0
        %3484 = vmatpush1.xpose.msra.mxu0 0.0
        %3485 = vmatprep.subr.mxu0 0.0
        %3486 = vmatpush1.xpose.msra.mxu0 0.0
        %3487 = vmatprep.subr.mxu0 0.0
        %3488 = vmatpush1.xpose.msra.mxu0 0.0
        %3489 = vmatprep.subr.mxu0 0.0
        %3490 = vmatpush1.xpose.msra.mxu0 0.0
        %3491 = vmatprep.subr.mxu0 0.0
        %3492 = vmatpush1.xpose.msra.mxu0 0.0
        %3493 = vmatprep.subr.mxu0 0.0
        %3494 = vmatpush1.xpose.msra.mxu0 0.0
        %3495 = vmatprep.mubr.f32.mxu0 0.0
        %3496 = vmatmul.mubr.f32.gmra.mrb[0].mxu0 %v3427
        %v3497 = vpop.f32.mrb[0].mxu0
        %v3498 = vadd.f32 0.0, %v3497
        %v3499 = vpop.f32.mrb[0].mxu0
        %3500 = vdwg.mxu0
        %v3501 = vmul.f32 %v3498, 0.35355338
        %v3503 = vlaneseq
        %v3504 = vshrl.u32 %v3503, 7
        %v3505 = vsub.s32 0, %v3504
        %v3506 = vrot.slane %v1142, %v3505
        %v3508 = vadd.f32 %v3501, %v3506
        %v3509 = vsel %vm1237, %v3508, -inf
        %3510 = vmax.xlane.f32.xlu0 %v3509
        %v3511 = vpop.xlane.xlu0 %3510
        %v3512 = vsub.f32 %v3508, %v3511
        %v3513 = vmul.f32 %v3512, 1.442695
        %v3514 = vpow.pop %v3513
        %v3515 = vsel %vm1237, %v3514, 0.0
        %3516 = vadd.xlane.f32.xlu0 %v3515
        %v3517 = vpop.xlane.xlu0 %3516
        %v3518 = vrcp.pop %v3517
        %v3519 = vmul.f32 %v3514, %v3518
        %3520 = vrot.lane.b32.xlu0 %v3421, 64
        %v3521 = vpop.permute.xlu0 %3520
        %v3524 = vsel %vm1237, %v3519, 0
        %3526 = vmatprep.subr.mxu0 0.0
        %3527 = vmatpush1.msra.mxu0 %v3521
        %3528 = vmatprep.subr.mxu0 0.0
        %3529 = vmatpush1.msra.mxu0 0.0
        %3530 = vmatprep.subr.mxu0 0.0
        %3531 = vmatpush1.msra.mxu0 0.0
        %3532 = vmatprep.subr.mxu0 0.0
        %3533 = vmatpush1.msra.mxu0 0.0
        %3534 = vmatprep.subr.mxu0 0.0
        %3535 = vmatpush1.msra.mxu0 0.0
        %3536 = vmatprep.subr.mxu0 0.0
        %3537 = vmatpush1.msra.mxu0 0.0
        %3538 = vmatprep.subr.mxu0 0.0
        %3539 = vmatpush1.msra.mxu0 0.0
        %3540 = vmatprep.subr.mxu0 0.0
        %3541 = vmatpush1.msra.mxu0 0.0
        %3542 = vmatprep.subr.mxu0 0.0
        %3543 = vmatpush1.msra.mxu0 0.0
        %3544 = vmatprep.subr.mxu0 0.0
        %3545 = vmatpush1.msra.mxu0 0.0
        %3546 = vmatprep.subr.mxu0 0.0
        %3547 = vmatpush1.msra.mxu0 0.0
        %3548 = vmatprep.subr.mxu0 0.0
        %3549 = vmatpush1.msra.mxu0 0.0
        %3550 = vmatprep.subr.mxu0 0.0
        %3551 = vmatpush1.msra.mxu0 0.0
        %3552 = vmatprep.subr.mxu0 0.0
        %3553 = vmatpush1.msra.mxu0 0.0
        %3554 = vmatprep.subr.mxu0 0.0
        %3555 = vmatpush1.msra.mxu0 0.0
        %3556 = vmatprep.subr.mxu0 0.0
        %3557 = vmatpush1.msra.mxu0 0.0
        %3558 = vmatprep.subr.mxu0 0.0
        %3559 = vmatpush1.msra.mxu0 0.0
        %3560 = vmatprep.subr.mxu0 0.0
        %3561 = vmatpush1.msra.mxu0 0.0
        %3562 = vmatprep.subr.mxu0 0.0
        %3563 = vmatpush1.msra.mxu0 0.0
        %3564 = vmatprep.subr.mxu0 0.0
        %3565 = vmatpush1.msra.mxu0 0.0
        %3566 = vmatprep.subr.mxu0 0.0
        %3567 = vmatpush1.msra.mxu0 0.0
        %3568 = vmatprep.subr.mxu0 0.0
        %3569 = vmatpush1.msra.mxu0 0.0
        %3570 = vmatprep.subr.mxu0 0.0
        %3571 = vmatpush1.msra.mxu0 0.0
        %3572 = vmatprep.subr.mxu0 0.0
        %3573 = vmatpush1.msra.mxu0 0.0
        %3574 = vmatprep.subr.mxu0 0.0
        %3575 = vmatpush1.msra.mxu0 0.0
        %3576 = vmatprep.subr.mxu0 0.0
        %3577 = vmatpush1.msra.mxu0 0.0
        %3578 = vmatprep.subr.mxu0 0.0
        %3579 = vmatpush1.msra.mxu0 0.0
        %3580 = vmatprep.subr.mxu0 0.0
        %3581 = vmatpush1.msra.mxu0 0.0
        %3582 = vmatprep.subr.mxu0 0.0
        %3583 = vmatpush1.msra.mxu0 0.0
        %3584 = vmatprep.subr.mxu0 0.0
        %3585 = vmatpush1.msra.mxu0 0.0
        %3586 = vmatprep.subr.mxu0 0.0
        %3587 = vmatpush1.msra.mxu0 0.0
        %3588 = vmatprep.subr.mxu0 0.0
        %3589 = vmatpush1.msra.mxu0 0.0
        %3590 = vmatprep.mubr.f32.mxu0 0.0
        %3591 = vmatmul.mubr.f32.gmra.mrb[0].mxu0 %v3524
        %v3592 = vpop.f32.mrb[0].mxu0
        %v3593 = vadd.f32 0.0, %v3592
        %v3594 = vpop.f32.mrb[0].mxu0
        %3595 = vdwg.mxu0
        %3596 = vrot.lane.b32.xlu0 %v3421, 120
        %v3597 = vpop.permute.xlu0 %3596
        %3598 = vrot.lane.b32.xlu0 %v3421, 88
        %v3599 = vpop.permute.xlu0 %3598
        %v3600 = vsel %vm1237, %v3597, 0
        %v3602 = vsel %vm1237, %v3599, 0
        %3604 = vmatprep.subr.mxu0 0.0
        %3605 = vmatpush1.xpose.msra.mxu0 %v3602
        %3606 = vmatprep.subr.mxu0 0.0
        %3607 = vmatpush1.xpose.msra.mxu0 0.0
        %3608 = vmatprep.subr.mxu0 0.0
        %3609 = vmatpush1.xpose.msra.mxu0 0.0
        %3610 = vmatprep.subr.mxu0 0.0
        %3611 = vmatpush1.xpose.msra.mxu0 0.0
        %3612 = vmatprep.subr.mxu0 0.0
        %3613 = vmatpush1.xpose.msra.mxu0 0.0
        %3614 = vmatprep.subr.mxu0 0.0
        %3615 = vmatpush1.xpose.msra.mxu0 0.0
        %3616 = vmatprep.subr.mxu0 0.0
        %3617 = vmatpush1.xpose.msra.mxu0 0.0
        %3618 = vmatprep.subr.mxu0 0.0
        %3619 = vmatpush1.xpose.msra.mxu0 0.0
        %3620 = vmatprep.subr.mxu0 0.0
        %3621 = vmatpush1.xpose.msra.mxu0 0.0
        %3622 = vmatprep.subr.mxu0 0.0
        %3623 = vmatpush1.xpose.msra.mxu0 0.0
        %3624 = vmatprep.subr.mxu0 0.0
        %3625 = vmatpush1.xpose.msra.mxu0 0.0
        %3626 = vmatprep.subr.mxu0 0.0
        %3627 = vmatpush1.xpose.msra.mxu0 0.0
        %3628 = vmatprep.subr.mxu0 0.0
        %3629 = vmatpush1.xpose.msra.mxu0 0.0
        %3630 = vmatprep.subr.mxu0 0.0
        %3631 = vmatpush1.xpose.msra.mxu0 0.0
        %3632 = vmatprep.subr.mxu0 0.0
        %3633 = vmatpush1.xpose.msra.mxu0 0.0
        %3634 = vmatprep.subr.mxu0 0.0
        %3635 = vmatpush1.xpose.msra.mxu0 0.0
        %3636 = vmatprep.subr.mxu0 0.0
        %3637 = vmatpush1.xpose.msra.mxu0 0.0
        %3638 = vmatprep.subr.mxu0 0.0
        %3639 = vmatpush1.xpose.msra.mxu0 0.0
        %3640 = vmatprep.subr.mxu0 0.0
        %3641 = vmatpush1.xpose.msra.mxu0 0.0
        %3642 = vmatprep.subr.mxu0 0.0
        %3643 = vmatpush1.xpose.msra.mxu0 0.0
        %3644 = vmatprep.subr.mxu0 0.0
        %3645 = vmatpush1.xpose.msra.mxu0 0.0
        %3646 = vmatprep.subr.mxu0 0.0
        %3647 = vmatpush1.xpose.msra.mxu0 0.0
        %3648 = vmatprep.subr.mxu0 0.0
        %3649 = vmatpush1.xpose.msra.mxu0 0.0
        %3650 = vmatprep.subr.mxu0 0.0
        %3651 = vmatpush1.xpose.msra.mxu0 0.0
        %3652 = vmatprep.subr.mxu0 0.0
        %3653 = vmatpush1.xpose.msra.mxu0 0.0
        %3654 = vmatprep.subr.mxu0 0.0
        %3655 = vmatpush1.xpose.msra.mxu0 0.0
        %3656 = vmatprep.subr.mxu0 0.0
        %3657 = vmatpush1.xpose.msra.mxu0 0.0
        %3658 = vmatprep.subr.mxu0 0.0
        %3659 = vmatpush1.xpose.msra.mxu0 0.0
        %3660 = vmatprep.subr.mxu0 0.0
        %3661 = vmatpush1.xpose.msra.mxu0 0.0
        %3662 = vmatprep.subr.mxu0 0.0
        %3663 = vmatpush1.xpose.msra.mxu0 0.0
        %3664 = vmatprep.subr.mxu0 0.0
        %3665 = vmatpush1.xpose.msra.mxu0 0.0
        %3666 = vmatprep.subr.mxu0 0.0
        %3667 = vmatpush1.xpose.msra.mxu0 0.0
        %3668 = vmatprep.mubr.f32.mxu0 0.0
        %3669 = vmatmul.mubr.f32.gmra.mrb[0].mxu0 %v3600
        %v3670 = vpop.f32.mrb[0].mxu0
        %v3671 = vadd.f32 0.0, %v3670
        %v3672 = vpop.f32.mrb[0].mxu0
        %3673 = vdwg.mxu0
        %v3674 = vmul.f32 %v3671, 0.35355338
        %v3675 = vadd.f32 %v3674, %v3506
        %v3676 = vsel %vm1237, %v3675, -inf
        %3677 = vmax.xlane.f32.xlu0 %v3676
        %v3678 = vpop.xlane.xlu0 %3677
        %v3679 = vsub.f32 %v3675, %v3678
        %v3680 = vmul.f32 %v3679, 1.442695
        %v3681 = vpow.pop %v3680
        %v3682 = vsel %vm1237, %v3681, 0.0
        %3683 = vadd.xlane.f32.xlu0 %v3682
        %v3684 = vpop.xlane.xlu0 %3683
        %v3685 = vrcp.pop %v3684
        %v3686 = vmul.f32 %v3681, %v3685
        %3687 = vrot.lane.b32.xlu0 %v3421, 56
        %v3688 = vpop.permute.xlu0 %3687
        %v3691 = vsel %vm1237, %v3686, 0
        %3693 = vmatprep.subr.mxu0 0.0
        %3694 = vmatpush1.msra.mxu0 %v3688
        %3695 = vmatprep.subr.mxu0 0.0
        %3696 = vmatpush1.msra.mxu0 0.0
        %3697 = vmatprep.subr.mxu0 0.0
        %3698 = vmatpush1.msra.mxu0 0.0
        %3699 = vmatprep.subr.mxu0 0.0
        %3700 = vmatpush1.msra.mxu0 0.0
        %3701 = vmatprep.subr.mxu0 0.0
        %3702 = vmatpush1.msra.mxu0 0.0
        %3703 = vmatprep.subr.mxu0 0.0
        %3704 = vmatpush1.msra.mxu0 0.0
        %3705 = vmatprep.subr.mxu0 0.0
        %3706 = vmatpush1.msra.mxu0 0.0
        %3707 = vmatprep.subr.mxu0 0.0
        %3708 = vmatpush1.msra.mxu0 0.0
        %3709 = vmatprep.subr.mxu0 0.0
        %3710 = vmatpush1.msra.mxu0 0.0
        %3711 = vmatprep.subr.mxu0 0.0
        %3712 = vmatpush1.msra.mxu0 0.0
        %3713 = vmatprep.subr.mxu0 0.0
        %3714 = vmatpush1.msra.mxu0 0.0
        %3715 = vmatprep.subr.mxu0 0.0
        %3716 = vmatpush1.msra.mxu0 0.0
        %3717 = vmatprep.subr.mxu0 0.0
        %3718 = vmatpush1.msra.mxu0 0.0
        %3719 = vmatprep.subr.mxu0 0.0
        %3720 = vmatpush1.msra.mxu0 0.0
        %3721 = vmatprep.subr.mxu0 0.0
        %3722 = vmatpush1.msra.mxu0 0.0
        %3723 = vmatprep.subr.mxu0 0.0
        %3724 = vmatpush1.msra.mxu0 0.0
        %3725 = vmatprep.subr.mxu0 0.0
        %3726 = vmatpush1.msra.mxu0 0.0
        %3727 = vmatprep.subr.mxu0 0.0
        %3728 = vmatpush1.msra.mxu0 0.0
        %3729 = vmatprep.subr.mxu0 0.0
        %3730 = vmatpush1.msra.mxu0 0.0
        %3731 = vmatprep.subr.mxu0 0.0
        %3732 = vmatpush1.msra.mxu0 0.0
        %3733 = vmatprep.subr.mxu0 0.0
        %3734 = vmatpush1.msra.mxu0 0.0
        %3735 = vmatprep.subr.mxu0 0.0
        %3736 = vmatpush1.msra.mxu0 0.0
        %3737 = vmatprep.subr.mxu0 0.0
        %3738 = vmatpush1.msra.mxu0 0.0
        %3739 = vmatprep.subr.mxu0 0.0
        %3740 = vmatpush1.msra.mxu0 0.0
        %3741 = vmatprep.subr.mxu0 0.0
        %3742 = vmatpush1.msra.mxu0 0.0
        %3743 = vmatprep.subr.mxu0 0.0
        %3744 = vmatpush1.msra.mxu0 0.0
        %3745 = vmatprep.subr.mxu0 0.0
        %3746 = vmatpush1.msra.mxu0 0.0
        %3747 = vmatprep.subr.mxu0 0.0
        %3748 = vmatpush1.msra.mxu0 0.0
        %3749 = vmatprep.subr.mxu0 0.0
        %3750 = vmatpush1.msra.mxu0 0.0
        %3751 = vmatprep.subr.mxu0 0.0
        %3752 = vmatpush1.msra.mxu0 0.0
        %3753 = vmatprep.subr.mxu0 0.0
        %3754 = vmatpush1.msra.mxu0 0.0
        %3755 = vmatprep.subr.mxu0 0.0
        %3756 = vmatpush1.msra.mxu0 0.0
        %3757 = vmatprep.mubr.f32.mxu0 0.0
        %3758 = vmatmul.mubr.f32.gmra.mrb[0].mxu0 %v3691
        %v3759 = vpop.f32.mrb[0].mxu0
        %v3760 = vadd.f32 0.0, %v3759
        %v3761 = vpop.f32.mrb[0].mxu0
        %3762 = vdwg.mxu0
        %3763 = vrot.lane.b32.xlu0 %v3421, 112
        %v3764 = vpop.permute.xlu0 %3763
        %3765 = vrot.lane.b32.xlu0 %v3421, 80
        %v3766 = vpop.permute.xlu0 %3765
        %v3767 = vsel %vm1237, %v3764, 0
        %v3769 = vsel %vm1237, %v3766, 0
        %3771 = vmatprep.subr.mxu0 0.0
        %3772 = vmatpush1.xpose.msra.mxu0 %v3769
        %3773 = vmatprep.subr.mxu0 0.0
        %3774 = vmatpush1.xpose.msra.mxu0 0.0
        %3775 = vmatprep.subr.mxu0 0.0
        %3776 = vmatpush1.xpose.msra.mxu0 0.0
        %3777 = vmatprep.subr.mxu0 0.0
        %3778 = vmatpush1.xpose.msra.mxu0 0.0
        %3779 = vmatprep.subr.mxu0 0.0
        %3780 = vmatpush1.xpose.msra.mxu0 0.0
        %3781 = vmatprep.subr.mxu0 0.0
        %3782 = vmatpush1.xpose.msra.mxu0 0.0
        %3783 = vmatprep.subr.mxu0 0.0
        %3784 = vmatpush1.xpose.msra.mxu0 0.0
        %3785 = vmatprep.subr.mxu0 0.0
        %3786 = vmatpush1.xpose.msra.mxu0 0.0
        %3787 = vmatprep.subr.mxu0 0.0
        %3788 = vmatpush1.xpose.msra.mxu0 0.0
        %3789 = vmatprep.subr.mxu0 0.0
        %3790 = vmatpush1.xpose.msra.mxu0 0.0
        %3791 = vmatprep.subr.mxu0 0.0
        %3792 = vmatpush1.xpose.msra.mxu0 0.0
        %3793 = vmatprep.subr.mxu0 0.0
        %3794 = vmatpush1.xpose.msra.mxu0 0.0
        %3795 = vmatprep.subr.mxu0 0.0
        %3796 = vmatpush1.xpose.msra.mxu0 0.0
        %3797 = vmatprep.subr.mxu0 0.0
        %3798 = vmatpush1.xpose.msra.mxu0 0.0
        %3799 = vmatprep.subr.mxu0 0.0
        %3800 = vmatpush1.xpose.msra.mxu0 0.0
        %3801 = vmatprep.subr.mxu0 0.0
        %3802 = vmatpush1.xpose.msra.mxu0 0.0
        %3803 = vmatprep.subr.mxu0 0.0
        %3804 = vmatpush1.xpose.msra.mxu0 0.0
        %3805 = vmatprep.subr.mxu0 0.0
        %3806 = vmatpush1.xpose.msra.mxu0 0.0
        %3807 = vmatprep.subr.mxu0 0.0
        %3808 = vmatpush1.xpose.msra.mxu0 0.0
        %3809 = vmatprep.subr.mxu0 0.0
        %3810 = vmatpush1.xpose.msra.mxu0 0.0
        %3811 = vmatprep.subr.mxu0 0.0
        %3812 = vmatpush1.xpose.msra.mxu0 0.0
        %3813 = vmatprep.subr.mxu0 0.0
        %3814 = vmatpush1.xpose.msra.mxu0 0.0
        %3815 = vmatprep.subr.mxu0 0.0
        %3816 = vmatpush1.xpose.msra.mxu0 0.0
        %3817 = vmatprep.subr.mxu0 0.0
        %3818 = vmatpush1.xpose.msra.mxu0 0.0
        %3819 = vmatprep.subr.mxu0 0.0
        %3820 = vmatpush1.xpose.msra.mxu0 0.0
        %3821 = vmatprep.subr.mxu0 0.0
        %3822 = vmatpush1.xpose.msra.mxu0 0.0
        %3823 = vmatprep.subr.mxu0 0.0
        %3824 = vmatpush1.xpose.msra.mxu0 0.0
        %3825 = vmatprep.subr.mxu0 0.0
        %3826 = vmatpush1.xpose.msra.mxu0 0.0
        %3827 = vmatprep.subr.mxu0 0.0
        %3828 = vmatpush1.xpose.msra.mxu0 0.0
        %3829 = vmatprep.subr.mxu0 0.0
        %3830 = vmatpush1.xpose.msra.mxu0 0.0
        %3831 = vmatprep.subr.mxu0 0.0
        %3832 = vmatpush1.xpose.msra.mxu0 0.0
        %3833 = vmatprep.subr.mxu0 0.0
        %3834 = vmatpush1.xpose.msra.mxu0 0.0
        %3835 = vmatprep.mubr.f32.mxu0 0.0
        %3836 = vmatmul.mubr.f32.gmra.mrb[0].mxu0 %v3767
        %v3837 = vpop.f32.mrb[0].mxu0
        %v3838 = vadd.f32 0.0, %v3837
        %v3839 = vpop.f32.mrb[0].mxu0
        %3840 = vdwg.mxu0
        %v3841 = vmul.f32 %v3838, 0.35355338
        %v3842 = vadd.f32 %v3841, %v3506
        %v3843 = vsel %vm1237, %v3842, -inf
        %3844 = vmax.xlane.f32.xlu0 %v3843
        %v3845 = vpop.xlane.xlu0 %3844
        %v3846 = vsub.f32 %v3842, %v3845
        %v3847 = vmul.f32 %v3846, 1.442695
        %v3848 = vpow.pop %v3847
        %v3849 = vsel %vm1237, %v3848, 0.0
        %3850 = vadd.xlane.f32.xlu0 %v3849
        %v3851 = vpop.xlane.xlu0 %3850
        %v3852 = vrcp.pop %v3851
        %v3853 = vmul.f32 %v3848, %v3852
        %3854 = vrot.lane.b32.xlu0 %v3421, 48
        %v3855 = vpop.permute.xlu0 %3854
        %v3858 = vsel %vm1237, %v3853, 0
        %3860 = vmatprep.subr.mxu0 0.0
        %3861 = vmatpush1.msra.mxu0 %v3855
        %3862 = vmatprep.subr.mxu0 0.0
        %3863 = vmatpush1.msra.mxu0 0.0
        %3864 = vmatprep.subr.mxu0 0.0
        %3865 = vmatpush1.msra.mxu0 0.0
        %3866 = vmatprep.subr.mxu0 0.0
        %3867 = vmatpush1.msra.mxu0 0.0
        %3868 = vmatprep.subr.mxu0 0.0
        %3869 = vmatpush1.msra.mxu0 0.0
        %3870 = vmatprep.subr.mxu0 0.0
        %3871 = vmatpush1.msra.mxu0 0.0
        %3872 = vmatprep.subr.mxu0 0.0
        %3873 = vmatpush1.msra.mxu0 0.0
        %3874 = vmatprep.subr.mxu0 0.0
        %3875 = vmatpush1.msra.mxu0 0.0
        %3876 = vmatprep.subr.mxu0 0.0
        %3877 = vmatpush1.msra.mxu0 0.0
        %3878 = vmatprep.subr.mxu0 0.0
        %3879 = vmatpush1.msra.mxu0 0.0
        %3880 = vmatprep.subr.mxu0 0.0
        %3881 = vmatpush1.msra.mxu0 0.0
        %3882 = vmatprep.subr.mxu0 0.0
        %3883 = vmatpush1.msra.mxu0 0.0
        %3884 = vmatprep.subr.mxu0 0.0
        %3885 = vmatpush1.msra.mxu0 0.0
        %3886 = vmatprep.subr.mxu0 0.0
        %3887 = vmatpush1.msra.mxu0 0.0
        %3888 = vmatprep.subr.mxu0 0.0
        %3889 = vmatpush1.msra.mxu0 0.0
        %3890 = vmatprep.subr.mxu0 0.0
        %3891 = vmatpush1.msra.mxu0 0.0
        %3892 = vmatprep.subr.mxu0 0.0
        %3893 = vmatpush1.msra.mxu0 0.0
        %3894 = vmatprep.subr.mxu0 0.0
        %3895 = vmatpush1.msra.mxu0 0.0
        %3896 = vmatprep.subr.mxu0 0.0
        %3897 = vmatpush1.msra.mxu0 0.0
        %3898 = vmatprep.subr.mxu0 0.0
        %3899 = vmatpush1.msra.mxu0 0.0
        %3900 = vmatprep.subr.mxu0 0.0
        %3901 = vmatpush1.msra.mxu0 0.0
        %3902 = vmatprep.subr.mxu0 0.0
        %3903 = vmatpush1.msra.mxu0 0.0
        %3904 = vmatprep.subr.mxu0 0.0
        %3905 = vmatpush1.msra.mxu0 0.0
        %3906 = vmatprep.subr.mxu0 0.0
        %3907 = vmatpush1.msra.mxu0 0.0
        %3908 = vmatprep.subr.mxu0 0.0
        %3909 = vmatpush1.msra.mxu0 0.0
        %3910 = vmatprep.subr.mxu0 0.0
        %3911 = vmatpush1.msra.mxu0 0.0
        %3912 = vmatprep.subr.mxu0 0.0
        %3913 = vmatpush1.msra.mxu0 0.0
        %3914 = vmatprep.subr.mxu0 0.0
        %3915 = vmatpush1.msra.mxu0 0.0
        %3916 = vmatprep.subr.mxu0 0.0
        %3917 = vmatpush1.msra.mxu0 0.0
        %3918 = vmatprep.subr.mxu0 0.0
        %3919 = vmatpush1.msra.mxu0 0.0
        %3920 = vmatprep.subr.mxu0 0.0
        %3921 = vmatpush1.msra.mxu0 0.0
        %3922 = vmatprep.subr.mxu0 0.0
        %3923 = vmatpush1.msra.mxu0 0.0
        %3924 = vmatprep.mubr.f32.mxu0 0.0
        %3925 = vmatmul.mubr.f32.gmra.mrb[0].mxu0 %v3858
        %v3926 = vpop.f32.mrb[0].mxu0
        %v3927 = vadd.f32 0.0, %v3926
        %v3928 = vpop.f32.mrb[0].mxu0
        %3929 = vdwg.mxu0
        %3930 = vrot.lane.b32.xlu0 %v3421, 104
        %v3931 = vpop.permute.xlu0 %3930
        %3932 = vrot.lane.b32.xlu0 %v3421, 72
        %v3933 = vpop.permute.xlu0 %3932
        %v3934 = vsel %vm1237, %v3931, 0
        %v3936 = vsel %vm1237, %v3933, 0
        %3938 = vmatprep.subr.mxu0 0.0
        %3939 = vmatpush1.xpose.msra.mxu0 %v3936
        %3940 = vmatprep.subr.mxu0 0.0
        %3941 = vmatpush1.xpose.msra.mxu0 0.0
        %3942 = vmatprep.subr.mxu0 0.0
        %3943 = vmatpush1.xpose.msra.mxu0 0.0
        %3944 = vmatprep.subr.mxu0 0.0
        %3945 = vmatpush1.xpose.msra.mxu0 0.0
        %3946 = vmatprep.subr.mxu0 0.0
        %3947 = vmatpush1.xpose.msra.mxu0 0.0
        %3948 = vmatprep.subr.mxu0 0.0
        %3949 = vmatpush1.xpose.msra.mxu0 0.0
        %3950 = vmatprep.subr.mxu0 0.0
        %3951 = vmatpush1.xpose.msra.mxu0 0.0
        %3952 = vmatprep.subr.mxu0 0.0
        %3953 = vmatpush1.xpose.msra.mxu0 0.0
        %3954 = vmatprep.subr.mxu0 0.0
        %3955 = vmatpush1.xpose.msra.mxu0 0.0
        %3956 = vmatprep.subr.mxu0 0.0
        %3957 = vmatpush1.xpose.msra.mxu0 0.0
        %3958 = vmatprep.subr.mxu0 0.0
        %3959 = vmatpush1.xpose.msra.mxu0 0.0
        %3960 = vmatprep.subr.mxu0 0.0
        %3961 = vmatpush1.xpose.msra.mxu0 0.0
        %3962 = vmatprep.subr.mxu0 0.0
        %3963 = vmatpush1.xpose.msra.mxu0 0.0
        %3964 = vmatprep.subr.mxu0 0.0
        %3965 = vmatpush1.xpose.msra.mxu0 0.0
        %3966 = vmatprep.subr.mxu0 0.0
        %3967 = vmatpush1.xpose.msra.mxu0 0.0
        %3968 = vmatprep.subr.mxu0 0.0
        %3969 = vmatpush1.xpose.msra.mxu0 0.0
        %3970 = vmatprep.subr.mxu0 0.0
        %3971 = vmatpush1.xpose.msra.mxu0 0.0
        %3972 = vmatprep.subr.mxu0 0.0
        %3973 = vmatpush1.xpose.msra.mxu0 0.0
        %3974 = vmatprep.subr.mxu0 0.0
        %3975 = vmatpush1.xpose.msra.mxu0 0.0
        %3976 = vmatprep.subr.mxu0 0.0
        %3977 = vmatpush1.xpose.msra.mxu0 0.0
        %3978 = vmatprep.subr.mxu0 0.0
        %3979 = vmatpush1.xpose.msra.mxu0 0.0
        %3980 = vmatprep.subr.mxu0 0.0
        %3981 = vmatpush1.xpose.msra.mxu0 0.0
        %3982 = vmatprep.subr.mxu0 0.0
        %3983 = vmatpush1.xpose.msra.mxu0 0.0
        %3984 = vmatprep.subr.mxu0 0.0
        %3985 = vmatpush1.xpose.msra.mxu0 0.0
        %3986 = vmatprep.subr.mxu0 0.0
        %3987 = vmatpush1.xpose.msra.mxu0 0.0
        %3988 = vmatprep.subr.mxu0 0.0
        %3989 = vmatpush1.xpose.msra.mxu0 0.0
        %3990 = vmatprep.subr.mxu0 0.0
        %3991 = vmatpush1.xpose.msra.mxu0 0.0
        %3992 = vmatprep.subr.mxu0 0.0
        %3993 = vmatpush1.xpose.msra.mxu0 0.0
        %3994 = vmatprep.subr.mxu0 0.0
        %3995 = vmatpush1.xpose.msra.mxu0 0.0
        %3996 = vmatprep.subr.mxu0 0.0
        %3997 = vmatpush1.xpose.msra.mxu0 0.0
        %3998 = vmatprep.subr.mxu0 0.0
        %3999 = vmatpush1.xpose.msra.mxu0 0.0
        %4000 = vmatprep.subr.mxu0 0.0
        %4001 = vmatpush1.xpose.msra.mxu0 0.0
        %4002 = vmatprep.mubr.f32.mxu0 0.0
        %4003 = vmatmul.mubr.f32.gmra.mrb[0].mxu0 %v3934
        %v4004 = vpop.f32.mrb[0].mxu0
        %v4005 = vadd.f32 0.0, %v4004
        %v4006 = vpop.f32.mrb[0].mxu0
        %4007 = vdwg.mxu0
        %v4008 = vmul.f32 %v4005, 0.35355338
        %v4009 = vadd.f32 %v4008, %v3506
        %v4010 = vsel %vm1237, %v4009, -inf
        %4011 = vmax.xlane.f32.xlu0 %v4010
        %v4012 = vpop.xlane.xlu0 %4011
        %v4013 = vsub.f32 %v4009, %v4012
        %v4014 = vmul.f32 %v4013, 1.442695
        %v4015 = vpow.pop %v4014
        %v4016 = vsel %vm1237, %v4015, 0.0
        %4017 = vadd.xlane.f32.xlu0 %v4016
        %v4018 = vpop.xlane.xlu0 %4017
        %v4019 = vrcp.pop %v4018
        %v4020 = vmul.f32 %v4015, %v4019
        %4021 = vrot.lane.b32.xlu0 %v3421, 40
        %v4022 = vpop.permute.xlu0 %4021
        %v4025 = vsel %vm1237, %v4020, 0
        %4027 = vmatprep.subr.mxu0 0.0
        %4028 = vmatpush1.msra.mxu0 %v4022
        %4029 = vmatprep.subr.mxu0 0.0
        %4030 = vmatpush1.msra.mxu0 0.0
        %4031 = vmatprep.subr.mxu0 0.0
        %4032 = vmatpush1.msra.mxu0 0.0
        %4033 = vmatprep.subr.mxu0 0.0
        %4034 = vmatpush1.msra.mxu0 0.0
        %4035 = vmatprep.subr.mxu0 0.0
        %4036 = vmatpush1.msra.mxu0 0.0
        %4037 = vmatprep.subr.mxu0 0.0
        %4038 = vmatpush1.msra.mxu0 0.0
        %4039 = vmatprep.subr.mxu0 0.0
        %4040 = vmatpush1.msra.mxu0 0.0
        %4041 = vmatprep.subr.mxu0 0.0
        %4042 = vmatpush1.msra.mxu0 0.0
        %4043 = vmatprep.subr.mxu0 0.0
        %4044 = vmatpush1.msra.mxu0 0.0
        %4045 = vmatprep.subr.mxu0 0.0
        %4046 = vmatpush1.msra.mxu0 0.0
        %4047 = vmatprep.subr.mxu0 0.0
        %4048 = vmatpush1.msra.mxu0 0.0
        %4049 = vmatprep.subr.mxu0 0.0
        %4050 = vmatpush1.msra.mxu0 0.0
        %4051 = vmatprep.subr.mxu0 0.0
        %4052 = vmatpush1.msra.mxu0 0.0
        %4053 = vmatprep.subr.mxu0 0.0
        %4054 = vmatpush1.msra.mxu0 0.0
        %4055 = vmatprep.subr.mxu0 0.0
        %4056 = vmatpush1.msra.mxu0 0.0
        %4057 = vmatprep.subr.mxu0 0.0
        %4058 = vmatpush1.msra.mxu0 0.0
        %4059 = vmatprep.subr.mxu0 0.0
        %4060 = vmatpush1.msra.mxu0 0.0
        %4061 = vmatprep.subr.mxu0 0.0
        %4062 = vmatpush1.msra.mxu0 0.0
        %4063 = vmatprep.subr.mxu0 0.0
        %4064 = vmatpush1.msra.mxu0 0.0
        %4065 = vmatprep.subr.mxu0 0.0
        %4066 = vmatpush1.msra.mxu0 0.0
        %4067 = vmatprep.subr.mxu0 0.0
        %4068 = vmatpush1.msra.mxu0 0.0
        %4069 = vmatprep.subr.mxu0 0.0
        %4070 = vmatpush1.msra.mxu0 0.0
        %4071 = vmatprep.subr.mxu0 0.0
        %4072 = vmatpush1.msra.mxu0 0.0
        %4073 = vmatprep.subr.mxu0 0.0
        %4074 = vmatpush1.msra.mxu0 0.0
        %4075 = vmatprep.subr.mxu0 0.0
        %4076 = vmatpush1.msra.mxu0 0.0
        %4077 = vmatprep.subr.mxu0 0.0
        %4078 = vmatpush1.msra.mxu0 0.0
        %4079 = vmatprep.subr.mxu0 0.0
        %4080 = vmatpush1.msra.mxu0 0.0
        %4081 = vmatprep.subr.mxu0 0.0
        %4082 = vmatpush1.msra.mxu0 0.0
        %4083 = vmatprep.subr.mxu0 0.0
        %4084 = vmatpush1.msra.mxu0 0.0
        %4085 = vmatprep.subr.mxu0 0.0
        %4086 = vmatpush1.msra.mxu0 0.0
        %4087 = vmatprep.subr.mxu0 0.0
        %4088 = vmatpush1.msra.mxu0 0.0
        %4089 = vmatprep.subr.mxu0 0.0
        %4090 = vmatpush1.msra.mxu0 0.0
        %4091 = vmatprep.mubr.f32.mxu0 0.0
        %4092 = vmatmul.mubr.f32.gmra.mrb[0].mxu0 %v4025
        %v4093 = vpop.f32.mrb[0].mxu0
        %v4094 = vadd.f32 0.0, %v4093
        %v4095 = vpop.f32.mrb[0].mxu0
        %4096 = vdwg.mxu0
        %4098 = vrot.lane.b32.xlu0 %v3760, 8
        %v4099 = vpop.permute.xlu0 %4098
        %4102 = vrot.lane.b32.xlu0 %v3927, 16
        %v4103 = vpop.permute.xlu0 %4102
        %4106 = vrot.lane.b32.xlu0 %v4094, 24
        %v4107 = vpop.permute.xlu0 %4106
        %v4109 = vsel %vm1237, %v3593, %v4099
        %v4110 = vsel %vm1921, %v4109, %v4103
        %v4111 = vsel %vm1923, %v4110, %v4107
        %v4113 = vlaneseq
        %v4114 = vshrl.u32 %v4113, 7
        %v4115 = vsub.s32 0, %v4114
        %v4116 = vrot.slane %v3344, %v4115
        %v4119 = vsel %vm1160, %v4111, 0
        %4121 = vmatprep.subr.mxu0 0.0
        %4122 = vmatpush1.msra.mxu0 %v3340
        %4123 = vmatprep.subr.mxu0 0.0
        %4124 = vmatpush1.msra.mxu0 %v3341
        %4125 = vmatprep.subr.mxu0 0.0
        %4126 = vmatpush1.msra.mxu0 %v3342
        %4127 = vmatprep.subr.mxu0 0.0
        %4128 = vmatpush1.msra.mxu0 %v3343
        %4129 = vmatprep.subr.mxu0 0.0
        %4130 = vmatpush1.msra.mxu0 0.0
        %4131 = vmatprep.subr.mxu0 0.0
        %4132 = vmatpush1.msra.mxu0 0.0
        %4133 = vmatprep.subr.mxu0 0.0
        %4134 = vmatpush1.msra.mxu0 0.0
        %4135 = vmatprep.subr.mxu0 0.0
        %4136 = vmatpush1.msra.mxu0 0.0
        %4137 = vmatprep.subr.mxu0 0.0
        %4138 = vmatpush1.msra.mxu0 0.0
        %4139 = vmatprep.subr.mxu0 0.0
        %4140 = vmatpush1.msra.mxu0 0.0
        %4141 = vmatprep.subr.mxu0 0.0
        %4142 = vmatpush1.msra.mxu0 0.0
        %4143 = vmatprep.subr.mxu0 0.0
        %4144 = vmatpush1.msra.mxu0 0.0
        %4145 = vmatprep.subr.mxu0 0.0
        %4146 = vmatpush1.msra.mxu0 0.0
        %4147 = vmatprep.subr.mxu0 0.0
        %4148 = vmatpush1.msra.mxu0 0.0
        %4149 = vmatprep.subr.mxu0 0.0
        %4150 = vmatpush1.msra.mxu0 0.0
        %4151 = vmatprep.subr.mxu0 0.0
        %4152 = vmatpush1.msra.mxu0 0.0
        %4153 = vmatprep.subr.mxu0 0.0
        %4154 = vmatpush1.msra.mxu0 0.0
        %4155 = vmatprep.subr.mxu0 0.0
        %4156 = vmatpush1.msra.mxu0 0.0
        %4157 = vmatprep.subr.mxu0 0.0
        %4158 = vmatpush1.msra.mxu0 0.0
        %4159 = vmatprep.subr.mxu0 0.0
        %4160 = vmatpush1.msra.mxu0 0.0
        %4161 = vmatprep.subr.mxu0 0.0
        %4162 = vmatpush1.msra.mxu0 0.0
        %4163 = vmatprep.subr.mxu0 0.0
        %4164 = vmatpush1.msra.mxu0 0.0
        %4165 = vmatprep.subr.mxu0 0.0
        %4166 = vmatpush1.msra.mxu0 0.0
        %4167 = vmatprep.subr.mxu0 0.0
        %4168 = vmatpush1.msra.mxu0 0.0
        %4169 = vmatprep.subr.mxu0 0.0
        %4170 = vmatpush1.msra.mxu0 0.0
        %4171 = vmatprep.subr.mxu0 0.0
        %4172 = vmatpush1.msra.mxu0 0.0
        %4173 = vmatprep.subr.mxu0 0.0
        %4174 = vmatpush1.msra.mxu0 0.0
        %4175 = vmatprep.subr.mxu0 0.0
        %4176 = vmatpush1.msra.mxu0 0.0
        %4177 = vmatprep.subr.mxu0 0.0
        %4178 = vmatpush1.msra.mxu0 0.0
        %4179 = vmatprep.subr.mxu0 0.0
        %4180 = vmatpush1.msra.mxu0 0.0
        %4181 = vmatprep.subr.mxu0 0.0
        %4182 = vmatpush1.msra.mxu0 0.0
        %4183 = vmatprep.subr.mxu0 0.0
        %4184 = vmatpush1.msra.mxu0 0.0
        %4185 = vmatprep.mubr.f32.mxu0 0.0
        %4186 = vmatmul.mubr.f32.gmra.mrb[0].mxu0 %v4119
        %v4187 = vpop.f32.mrb[0].mxu0
        %v4188 = vadd.f32 %v4116, %v4187
        %v4189 = vpop.f32.mrb[0].mxu0
        %4190 = vdwg.mxu0
        %v4191 = vld [vmem:[%s41] sm:$0x1]
        %v4192 = vld [vmem:[%s43] sm:$0x1]
        %v4193 = vadd.f32 %v3334, %v4188
        %v4194 = vsel %vm1160, %v4193, 0.0
        %4195 = vadd.xlane.f32.xlu0 %v4194
        %v4196 = vpop.xlane.xlu0 %4195
        %v4197 = vmul.f32 %v4196, %v2010
        %v4198 = vsub.f32 %v4193, %v4197
        %v4199 = vmul.f32 %v4198, %v4198
        %v4200 = vsel %vm1160, %v4199, 0.0
        %4201 = vadd.xlane.f32.xlu0 %v4200
        %v4202 = vpop.xlane.xlu0 %4201
        %v4203 = vmul.f32 %v4202, %v2010
        %v4204 = vadd.f32 %v4203, 1e-05
        %v4205 = vrsqrt.pop %v4204
        %v4206 = vmul.f32 %v4198, %v4205
        %v4208 = vlaneseq
        %v4209 = vshrl.u32 %v4208, 7
        %v4210 = vsub.s32 0, %v4209
        %v4211 = vrot.slane %v4191, %v4210
        %v4213 = vmul.f32 %v4206, %v4211
        %v4215 = vlaneseq
        %v4216 = vshrl.u32 %v4215, 7
        %v4217 = vsub.s32 0, %v4216
        %v4218 = vrot.slane %v4192, %v4217
        %v4220 = vadd.f32 %v4213, %v4218
        %v4221 = vld [vmem:[%s45] sm:$0xff]
        %v4222 = vld [vmem:[%s45 + $0x8] sm:$0xff]
        %v4223 = vld [vmem:[%s45 + $0x10] sm:$0xff]
        %v4224 = vld [vmem:[%s45 + $0x18] sm:$0xff]
        %v4225 = vld [vmem:[%s47] sm:$0x1]
        %v4226 = vld [vmem:[%s49] sm:$0xff]
        %v4227 = vld [vmem:[%s49 + $0x8] sm:$0xff]
        %v4228 = vld [vmem:[%s49 + $0x10] sm:$0xff]
        %v4229 = vld [vmem:[%s49 + $0x18] sm:$0xff]
        %v4230 = vld [vmem:[%s51] sm:$0x1]
        %v4231 = vld [vmem:[%s53] sm:$0xff]
        %v4232 = vld [vmem:[%s53 + $0x8] sm:$0xff]
        %v4233 = vld [vmem:[%s53 + $0x10] sm:$0xff]
        %v4234 = vld [vmem:[%s53 + $0x18] sm:$0xff]
        %v4235 = vld [vmem:[%s55] sm:$0x1]
        %v4237 = vlaneseq
        %v4238 = vshrl.u32 %v4237, 7
        %v4239 = vsub.s32 0, %v4238
        %v4240 = vrot.slane %v4225, %v4239
        %v4243 = vsel %vm1160, %v4220, 0
        %4245 = vmatprep.subr.mxu0 0.0
        %4246 = vmatpush1.msra.mxu0 %v4221
        %4247 = vmatprep.subr.mxu0 0.0
        %4248 = vmatpush1.msra.mxu0 %v4222
        %4249 = vmatprep.subr.mxu0 0.0
        %4250 = vmatpush1.msra.mxu0 %v4223
        %4251 = vmatprep.subr.mxu0 0.0
        %4252 = vmatpush1.msra.mxu0 %v4224
        %4253 = vmatprep.subr.mxu0 0.0
        %4254 = vmatpush1.msra.mxu0 0.0
        %4255 = vmatprep.subr.mxu0 0.0
        %4256 = vmatpush1.msra.mxu0 0.0
        %4257 = vmatprep.subr.mxu0 0.0
        %4258 = vmatpush1.msra.mxu0 0.0
        %4259 = vmatprep.subr.mxu0 0.0
        %4260 = vmatpush1.msra.mxu0 0.0
        %4261 = vmatprep.subr.mxu0 0.0
        %4262 = vmatpush1.msra.mxu0 0.0
        %4263 = vmatprep.subr.mxu0 0.0
        %4264 = vmatpush1.msra.mxu0 0.0
        %4265 = vmatprep.subr.mxu0 0.0
        %4266 = vmatpush1.msra.mxu0 0.0
        %4267 = vmatprep.subr.mxu0 0.0
        %4268 = vmatpush1.msra.mxu0 0.0
        %4269 = vmatprep.subr.mxu0 0.0
        %4270 = vmatpush1.msra.mxu0 0.0
        %4271 = vmatprep.subr.mxu0 0.0
        %4272 = vmatpush1.msra.mxu0 0.0
        %4273 = vmatprep.subr.mxu0 0.0
        %4274 = vmatpush1.msra.mxu0 0.0
        %4275 = vmatprep.subr.mxu0 0.0
        %4276 = vmatpush1.msra.mxu0 0.0
        %4277 = vmatprep.subr.mxu0 0.0
        %4278 = vmatpush1.msra.mxu0 0.0
        %4279 = vmatprep.subr.mxu0 0.0
        %4280 = vmatpush1.msra.mxu0 0.0
        %4281 = vmatprep.subr.mxu0 0.0
        %4282 = vmatpush1.msra.mxu0 0.0
        %4283 = vmatprep.subr.mxu0 0.0
        %4284 = vmatpush1.msra.mxu0 0.0
        %4285 = vmatprep.subr.mxu0 0.0
        %4286 = vmatpush1.msra.mxu0 0.0
        %4287 = vmatprep.subr.mxu0 0.0
        %4288 = vmatpush1.msra.mxu0 0.0
        %4289 = vmatprep.subr.mxu0 0.0
        %4290 = vmatpush1.msra.mxu0 0.0
        %4291 = vmatprep.subr.mxu0 0.0
        %4292 = vmatpush1.msra.mxu0 0.0
        %4293 = vmatprep.subr.mxu0 0.0
        %4294 = vmatpush1.msra.mxu0 0.0
        %4295 = vmatprep.subr.mxu0 0.0
        %4296 = vmatpush1.msra.mxu0 0.0
        %4297 = vmatprep.subr.mxu0 0.0
        %4298 = vmatpush1.msra.mxu0 0.0
        %4299 = vmatprep.subr.mxu0 0.0
        %4300 = vmatpush1.msra.mxu0 0.0
        %4301 = vmatprep.subr.mxu0 0.0
        %4302 = vmatpush1.msra.mxu0 0.0
        %4303 = vmatprep.subr.mxu0 0.0
        %4304 = vmatpush1.msra.mxu0 0.0
        %4305 = vmatprep.subr.mxu0 0.0
        %4306 = vmatpush1.msra.mxu0 0.0
        %4307 = vmatprep.subr.mxu0 0.0
        %4308 = vmatpush1.msra.mxu0 0.0
        %4309 = vmatprep.mubr.f32.mxu0 0.0
        %4310 = vmatmul.mubr.f32.gmra.mrb[0].mxu0 %v4243
        %v4311 = vpop.f32.mrb[0].mxu0
        %v4312 = vadd.f32 %v4240, %v4311
        %v4313 = vpop.f32.mrb[0].mxu0
        %4314 = vdwg.mxu0
        %v4316 = vlaneseq
        %v4317 = vshrl.u32 %v4316, 7
        %v4318 = vsub.s32 0, %v4317
        %v4319 = vrot.slane %v4230, %v4318
        %v4322 = vsel %vm1160, %v3333, 0
        %4324 = vmatprep.subr.mxu0 0.0
        %4325 = vmatpush1.msra.mxu0 %v4226
        %4326 = vmatprep.subr.mxu0 0.0
        %4327 = vmatpush1.msra.mxu0 %v4227
        %4328 = vmatprep.subr.mxu0 0.0
        %4329 = vmatpush1.msra.mxu0 %v4228
        %4330 = vmatprep.subr.mxu0 0.0
        %4331 = vmatpush1.msra.mxu0 %v4229
        %4332 = vmatprep.subr.mxu0 0.0
        %4333 = vmatpush1.msra.mxu0 0.0
        %4334 = vmatprep.subr.mxu0 0.0
        %4335 = vmatpush1.msra.mxu0 0.0
        %4336 = vmatprep.subr.mxu0 0.0
        %4337 = vmatpush1.msra.mxu0 0.0
        %4338 = vmatprep.subr.mxu0 0.0
        %4339 = vmatpush1.msra.mxu0 0.0
        %4340 = vmatprep.subr.mxu0 0.0
        %4341 = vmatpush1.msra.mxu0 0.0
        %4342 = vmatprep.subr.mxu0 0.0
        %4343 = vmatpush1.msra.mxu0 0.0
        %4344 = vmatprep.subr.mxu0 0.0
        %4345 = vmatpush1.msra.mxu0 0.0
        %4346 = vmatprep.subr.mxu0 0.0
        %4347 = vmatpush1.msra.mxu0 0.0
        %4348 = vmatprep.subr.mxu0 0.0
        %4349 = vmatpush1.msra.mxu0 0.0
        %4350 = vmatprep.subr.mxu0 0.0
        %4351 = vmatpush1.msra.mxu0 0.0
        %4352 = vmatprep.subr.mxu0 0.0
        %4353 = vmatpush1.msra.mxu0 0.0
        %4354 = vmatprep.subr.mxu0 0.0
        %4355 = vmatpush1.msra.mxu0 0.0
        %4356 = vmatprep.subr.mxu0 0.0
        %4357 = vmatpush1.msra.mxu0 0.0
        %4358 = vmatprep.subr.mxu0 0.0
        %4359 = vmatpush1.msra.mxu0 0.0
        %4360 = vmatprep.subr.mxu0 0.0
        %4361 = vmatpush1.msra.mxu0 0.0
        %4362 = vmatprep.subr.mxu0 0.0
        %4363 = vmatpush1.msra.mxu0 0.0
        %4364 = vmatprep.subr.mxu0 0.0
        %4365 = vmatpush1.msra.mxu0 0.0
        %4366 = vmatprep.subr.mxu0 0.0
        %4367 = vmatpush1.msra.mxu0 0.0
        %4368 = vmatprep.subr.mxu0 0.0
        %4369 = vmatpush1.msra.mxu0 0.0
        %4370 = vmatprep.subr.mxu0 0.0
        %4371 = vmatpush1.msra.mxu0 0.0
        %4372 = vmatprep.subr.mxu0 0.0
        %4373 = vmatpush1.msra.mxu0 0.0
        %4374 = vmatprep.subr.mxu0 0.0
        %4375 = vmatpush1.msra.mxu0 0.0
        %4376 = vmatprep.subr.mxu0 0.0
        %4377 = vmatpush1.msra.mxu0 0.0
        %4378 = vmatprep.subr.mxu0 0.0
        %4379 = vmatpush1.msra.mxu0 0.0
        %4380 = vmatprep.subr.mxu0 0.0
        %4381 = vmatpush1.msra.mxu0 0.0
        %4382 = vmatprep.subr.mxu0 0.0
        %4383 = vmatpush1.msra.mxu0 0.0
        %4384 = vmatprep.subr.mxu0 0.0
        %4385 = vmatpush1.msra.mxu0 0.0
        %4386 = vmatprep.subr.mxu0 0.0
        %4387 = vmatpush1.msra.mxu0 0.0
        %4388 = vmatprep.mubr.f32.mxu0 0.0
        %4389 = vmatmul.mubr.f32.gmra.mrb[0].mxu0 %v4322
        %v4390 = vpop.f32.mrb[0].mxu0
        %v4391 = vadd.f32 %v4319, %v4390
        %v4392 = vpop.f32.mrb[0].mxu0
        %4393 = vdwg.mxu0
        %v4395 = vsel %vm1237, %v4312, 0
        %v4398 = vsel %vm1237, %v4391, 0
        %4400 = vmatprep.subr.mxu0 0.0
        %4401 = vmatpush1.xpose.msra.mxu0 %v4398
        %4402 = vmatprep.subr.mxu0 0.0
        %4403 = vmatpush1.xpose.msra.mxu0 0.0
        %4404 = vmatprep.subr.mxu0 0.0
        %4405 = vmatpush1.xpose.msra.mxu0 0.0
        %4406 = vmatprep.subr.mxu0 0.0
        %4407 = vmatpush1.xpose.msra.mxu0 0.0
        %4408 = vmatprep.subr.mxu0 0.0
        %4409 = vmatpush1.xpose.msra.mxu0 0.0
        %4410 = vmatprep.subr.mxu0 0.0
        %4411 = vmatpush1.xpose.msra.mxu0 0.0
        %4412 = vmatprep.subr.mxu0 0.0
        %4413 = vmatpush1.xpose.msra.mxu0 0.0
        %4414 = vmatprep.subr.mxu0 0.0
        %4415 = vmatpush1.xpose.msra.mxu0 0.0
        %4416 = vmatprep.subr.mxu0 0.0
        %4417 = vmatpush1.xpose.msra.mxu0 0.0
        %4418 = vmatprep.subr.mxu0 0.0
        %4419 = vmatpush1.xpose.msra.mxu0 0.0
        %4420 = vmatprep.subr.mxu0 0.0
        %4421 = vmatpush1.xpose.msra.mxu0 0.0
        %4422 = vmatprep.subr.mxu0 0.0
        %4423 = vmatpush1.xpose.msra.mxu0 0.0
        %4424 = vmatprep.subr.mxu0 0.0
        %4425 = vmatpush1.xpose.msra.mxu0 0.0
        %4426 = vmatprep.subr.mxu0 0.0
        %4427 = vmatpush1.xpose.msra.mxu0 0.0
        %4428 = vmatprep.subr.mxu0 0.0
        %4429 = vmatpush1.xpose.msra.mxu0 0.0
        %4430 = vmatprep.subr.mxu0 0.0
        %4431 = vmatpush1.xpose.msra.mxu0 0.0
        %4432 = vmatprep.subr.mxu0 0.0
        %4433 = vmatpush1.xpose.msra.mxu0 0.0
        %4434 = vmatprep.subr.mxu0 0.0
        %4435 = vmatpush1.xpose.msra.mxu0 0.0
        %4436 = vmatprep.subr.mxu0 0.0
        %4437 = vmatpush1.xpose.msra.mxu0 0.0
        %4438 = vmatprep.subr.mxu0 0.0
        %4439 = vmatpush1.xpose.msra.mxu0 0.0
        %4440 = vmatprep.subr.mxu0 0.0
        %4441 = vmatpush1.xpose.msra.mxu0 0.0
        %4442 = vmatprep.subr.mxu0 0.0
        %4443 = vmatpush1.xpose.msra.mxu0 0.0
        %4444 = vmatprep.subr.mxu0 0.0
        %4445 = vmatpush1.xpose.msra.mxu0 0.0
        %4446 = vmatprep.subr.mxu0 0.0
        %4447 = vmatpush1.xpose.msra.mxu0 0.0
        %4448 = vmatprep.subr.mxu0 0.0
        %4449 = vmatpush1.xpose.msra.mxu0 0.0
        %4450 = vmatprep.subr.mxu0 0.0
        %4451 = vmatpush1.xpose.msra.mxu0 0.0
        %4452 = vmatprep.subr.mxu0 0.0
        %4453 = vmatpush1.xpose.msra.mxu0 0.0
        %4454 = vmatprep.subr.mxu0 0.0
        %4455 = vmatpush1.xpose.msra.mxu0 0.0
        %4456 = vmatprep.subr.mxu0 0.0
        %4457 = vmatpush1.xpose.msra.mxu0 0.0
        %4458 = vmatprep.subr.mxu0 0.0
        %4459 = vmatpush1.xpose.msra.mxu0 0.0
        %4460 = vmatprep.subr.mxu0 0.0
        %4461 = vmatpush1.xpose.msra.mxu0 0.0
        %4462 = vmatprep.subr.mxu0 0.0
        %4463 = vmatpush1.xpose.msra.mxu0 0.0
        %4464 = vmatprep.mubr.f32.mxu0 0.0
        %4465 = vmatmul.mubr.f32.gmra.mrb[0].mxu0 %v4395
        %v4466 = vpop.f32.mrb[0].mxu0
        %v4467 = vadd.f32 0.0, %v4466
        %v4468 = vpop.f32.mrb[0].mxu0
        %4469 = vdwg.mxu0
        %v4470 = vmul.f32 %v4467, 0.35355338
        %v4471 = vadd.f32 %v4470, %v1317
        %v4472 = vsel %vm1237, %v4471, -inf
        %4473 = vmax.xlane.f32.xlu0 %v4472
        %v4474 = vpop.xlane.xlu0 %4473
        %v4475 = vsub.f32 %v4471, %v4474
        %v4476 = vmul.f32 %v4475, 1.442695
        %v4477 = vpow.pop %v4476
        %v4478 = vsel %vm1237, %v4477, 0.0
        %4479 = vadd.xlane.f32.xlu0 %v4478
        %v4480 = vpop.xlane.xlu0 %4479
        %v4481 = vrcp.pop %v4480
        %v4482 = vmul.f32 %v4477, %v4481
        %4483 = vrot.lane.b32.xlu0 %v4391, 96
        %v4484 = vpop.permute.xlu0 %4483
        %v4487 = vsel %vm1237, %v4482, 0
        %4489 = vmatprep.subr.mxu0 0.0
        %4490 = vmatpush1.msra.mxu0 %v4484
        %4491 = vmatprep.subr.mxu0 0.0
        %4492 = vmatpush1.msra.mxu0 0.0
        %4493 = vmatprep.subr.mxu0 0.0
        %4494 = vmatpush1.msra.mxu0 0.0
        %4495 = vmatprep.subr.mxu0 0.0
        %4496 = vmatpush1.msra.mxu0 0.0
        %4497 = vmatprep.subr.mxu0 0.0
        %4498 = vmatpush1.msra.mxu0 0.0
        %4499 = vmatprep.subr.mxu0 0.0
        %4500 = vmatpush1.msra.mxu0 0.0
        %4501 = vmatprep.subr.mxu0 0.0
        %4502 = vmatpush1.msra.mxu0 0.0
        %4503 = vmatprep.subr.mxu0 0.0
        %4504 = vmatpush1.msra.mxu0 0.0
        %4505 = vmatprep.subr.mxu0 0.0
        %4506 = vmatpush1.msra.mxu0 0.0
        %4507 = vmatprep.subr.mxu0 0.0
        %4508 = vmatpush1.msra.mxu0 0.0
        %4509 = vmatprep.subr.mxu0 0.0
        %4510 = vmatpush1.msra.mxu0 0.0
        %4511 = vmatprep.subr.mxu0 0.0
        %4512 = vmatpush1.msra.mxu0 0.0
        %4513 = vmatprep.subr.mxu0 0.0
        %4514 = vmatpush1.msra.mxu0 0.0
        %4515 = vmatprep.subr.mxu0 0.0
        %4516 = vmatpush1.msra.mxu0 0.0
        %4517 = vmatprep.subr.mxu0 0.0
        %4518 = vmatpush1.msra.mxu0 0.0
        %4519 = vmatprep.subr.mxu0 0.0
        %4520 = vmatpush1.msra.mxu0 0.0
        %4521 = vmatprep.subr.mxu0 0.0
        %4522 = vmatpush1.msra.mxu0 0.0
        %4523 = vmatprep.subr.mxu0 0.0
        %4524 = vmatpush1.msra.mxu0 0.0
        %4525 = vmatprep.subr.mxu0 0.0
        %4526 = vmatpush1.msra.mxu0 0.0
        %4527 = vmatprep.subr.mxu0 0.0
        %4528 = vmatpush1.msra.mxu0 0.0
        %4529 = vmatprep.subr.mxu0 0.0
        %4530 = vmatpush1.msra.mxu0 0.0
        %4531 = vmatprep.subr.mxu0 0.0
        %4532 = vmatpush1.msra.mxu0 0.0
        %4533 = vmatprep.subr.mxu0 0.0
        %4534 = vmatpush1.msra.mxu0 0.0
        %4535 = vmatprep.subr.mxu0 0.0
        %4536 = vmatpush1.msra.mxu0 0.0
        %4537 = vmatprep.subr.mxu0 0.0
        %4538 = vmatpush1.msra.mxu0 0.0
        %4539 = vmatprep.subr.mxu0 0.0
        %4540 = vmatpush1.msra.mxu0 0.0
        %4541 = vmatprep.subr.mxu0 0.0
        %4542 = vmatpush1.msra.mxu0 0.0
        %4543 = vmatprep.subr.mxu0 0.0
        %4544 = vmatpush1.msra.mxu0 0.0
        %4545 = vmatprep.subr.mxu0 0.0
        %4546 = vmatpush1.msra.mxu0 0.0
        %4547 = vmatprep.subr.mxu0 0.0
        %4548 = vmatpush1.msra.mxu0 0.0
        %4549 = vmatprep.subr.mxu0 0.0
        %4550 = vmatpush1.msra.mxu0 0.0
        %4551 = vmatprep.subr.mxu0 0.0
        %4552 = vmatpush1.msra.mxu0 0.0
        %4553 = vmatprep.mubr.f32.mxu0 0.0
        %4554 = vmatmul.mubr.f32.gmra.mrb[0].mxu0 %v4487
        %v4555 = vpop.f32.mrb[0].mxu0
        %v4556 = vadd.f32 0.0, %v4555
        %v4557 = vpop.f32.mrb[0].mxu0
        %4558 = vdwg.mxu0
        %4559 = vrot.lane.b32.xlu0 %v4312, 120
        %v4560 = vpop.permute.xlu0 %4559
        %4561 = vrot.lane.b32.xlu0 %v4391, 120
        %v4562 = vpop.permute.xlu0 %4561
        %v4563 = vsel %vm1237, %v4560, 0
        %v4565 = vsel %vm1237, %v4562, 0
        %4567 = vmatprep.subr.mxu0 0.0
        %4568 = vmatpush1.xpose.msra.mxu0 %v4565
        %4569 = vmatprep.subr.mxu0 0.0
        %4570 = vmatpush1.xpose.msra.mxu0 0.0
        %4571 = vmatprep.subr.mxu0 0.0
        %4572 = vmatpush1.xpose.msra.mxu0 0.0
        %4573 = vmatprep.subr.mxu0 0.0
        %4574 = vmatpush1.xpose.msra.mxu0 0.0
        %4575 = vmatprep.subr.mxu0 0.0
        %4576 = vmatpush1.xpose.msra.mxu0 0.0
        %4577 = vmatprep.subr.mxu0 0.0
        %4578 = vmatpush1.xpose.msra.mxu0 0.0
        %4579 = vmatprep.subr.mxu0 0.0
        %4580 = vmatpush1.xpose.msra.mxu0 0.0
        %4581 = vmatprep.subr.mxu0 0.0
        %4582 = vmatpush1.xpose.msra.mxu0 0.0
        %4583 = vmatprep.subr.mxu0 0.0
        %4584 = vmatpush1.xpose.msra.mxu0 0.0
        %4585 = vmatprep.subr.mxu0 0.0
        %4586 = vmatpush1.xpose.msra.mxu0 0.0
        %4587 = vmatprep.subr.mxu0 0.0
        %4588 = vmatpush1.xpose.msra.mxu0 0.0
        %4589 = vmatprep.subr.mxu0 0.0
        %4590 = vmatpush1.xpose.msra.mxu0 0.0
        %4591 = vmatprep.subr.mxu0 0.0
        %4592 = vmatpush1.xpose.msra.mxu0 0.0
        %4593 = vmatprep.subr.mxu0 0.0
        %4594 = vmatpush1.xpose.msra.mxu0 0.0
        %4595 = vmatprep.subr.mxu0 0.0
        %4596 = vmatpush1.xpose.msra.mxu0 0.0
        %4597 = vmatprep.subr.mxu0 0.0
        %4598 = vmatpush1.xpose.msra.mxu0 0.0
        %4599 = vmatprep.subr.mxu0 0.0
        %4600 = vmatpush1.xpose.msra.mxu0 0.0
        %4601 = vmatprep.subr.mxu0 0.0
        %4602 = vmatpush1.xpose.msra.mxu0 0.0
        %4603 = vmatprep.subr.mxu0 0.0
        %4604 = vmatpush1.xpose.msra.mxu0 0.0
        %4605 = vmatprep.subr.mxu0 0.0
        %4606 = vmatpush1.xpose.msra.mxu0 0.0
        %4607 = vmatprep.subr.mxu0 0.0
        %4608 = vmatpush1.xpose.msra.mxu0 0.0
        %4609 = vmatprep.subr.mxu0 0.0
        %4610 = vmatpush1.xpose.msra.mxu0 0.0
        %4611 = vmatprep.subr.mxu0 0.0
        %4612 = vmatpush1.xpose.msra.mxu0 0.0
        %4613 = vmatprep.subr.mxu0 0.0
        %4614 = vmatpush1.xpose.msra.mxu0 0.0
        %4615 = vmatprep.subr.mxu0 0.0
        %4616 = vmatpush1.xpose.msra.mxu0 0.0
        %4617 = vmatprep.subr.mxu0 0.0
        %4618 = vmatpush1.xpose.msra.mxu0 0.0
        %4619 = vmatprep.subr.mxu0 0.0
        %4620 = vmatpush1.xpose.msra.mxu0 0.0
        %4621 = vmatprep.subr.mxu0 0.0
        %4622 = vmatpush1.xpose.msra.mxu0 0.0
        %4623 = vmatprep.subr.mxu0 0.0
        %4624 = vmatpush1.xpose.msra.mxu0 0.0
        %4625 = vmatprep.subr.mxu0 0.0
        %4626 = vmatpush1.xpose.msra.mxu0 0.0
        %4627 = vmatprep.subr.mxu0 0.0
        %4628 = vmatpush1.xpose.msra.mxu0 0.0
        %4629 = vmatprep.subr.mxu0 0.0
        %4630 = vmatpush1.xpose.msra.mxu0 0.0
        %4631 = vmatprep.mubr.f32.mxu0 0.0
        %4632 = vmatmul.mubr.f32.gmra.mrb[0].mxu0 %v4563
        %v4633 = vpop.f32.mrb[0].mxu0
        %v4634 = vadd.f32 0.0, %v4633
        %v4635 = vpop.f32.mrb[0].mxu0
        %4636 = vdwg.mxu0
        %v4637 = vmul.f32 %v4634, 0.35355338
        %v4638 = vadd.f32 %v4637, %v1317
        %v4639 = vsel %vm1237, %v4638, -inf
        %4640 = vmax.xlane.f32.xlu0 %v4639
        %v4641 = vpop.xlane.xlu0 %4640
        %v4642 = vsub.f32 %v4638, %v4641
        %v4643 = vmul.f32 %v4642, 1.442695
        %v4644 = vpow.pop %v4643
        %v4645 = vsel %vm1237, %v4644, 0.0
        %4646 = vadd.xlane.f32.xlu0 %v4645
        %v4647 = vpop.xlane.xlu0 %4646
        %v4648 = vrcp.pop %v4647
        %v4649 = vmul.f32 %v4644, %v4648
        %4650 = vrot.lane.b32.xlu0 %v4391, 88
        %v4651 = vpop.permute.xlu0 %4650
        %v4654 = vsel %vm1237, %v4649, 0
        %4656 = vmatprep.subr.mxu0 0.0
        %4657 = vmatpush1.msra.mxu0 %v4651
        %4658 = vmatprep.subr.mxu0 0.0
        %4659 = vmatpush1.msra.mxu0 0.0
        %4660 = vmatprep.subr.mxu0 0.0
        %4661 = vmatpush1.msra.mxu0 0.0
        %4662 = vmatprep.subr.mxu0 0.0
        %4663 = vmatpush1.msra.mxu0 0.0
        %4664 = vmatprep.subr.mxu0 0.0
        %4665 = vmatpush1.msra.mxu0 0.0
        %4666 = vmatprep.subr.mxu0 0.0
        %4667 = vmatpush1.msra.mxu0 0.0
        %4668 = vmatprep.subr.mxu0 0.0
        %4669 = vmatpush1.msra.mxu0 0.0
        %4670 = vmatprep.subr.mxu0 0.0
        %4671 = vmatpush1.msra.mxu0 0.0
        %4672 = vmatprep.subr.mxu0 0.0
        %4673 = vmatpush1.msra.mxu0 0.0
        %4674 = vmatprep.subr.mxu0 0.0
        %4675 = vmatpush1.msra.mxu0 0.0
        %4676 = vmatprep.subr.mxu0 0.0
        %4677 = vmatpush1.msra.mxu0 0.0
        %4678 = vmatprep.subr.mxu0 0.0
        %4679 = vmatpush1.msra.mxu0 0.0
        %4680 = vmatprep.subr.mxu0 0.0
        %4681 = vmatpush1.msra.mxu0 0.0
        %4682 = vmatprep.subr.mxu0 0.0
        %4683 = vmatpush1.msra.mxu0 0.0
        %4684 = vmatprep.subr.mxu0 0.0
        %4685 = vmatpush1.msra.mxu0 0.0
        %4686 = vmatprep.subr.mxu0 0.0
        %4687 = vmatpush1.msra.mxu0 0.0
        %4688 = vmatprep.subr.mxu0 0.0
        %4689 = vmatpush1.msra.mxu0 0.0
        %4690 = vmatprep.subr.mxu0 0.0
        %4691 = vmatpush1.msra.mxu0 0.0
        %4692 = vmatprep.subr.mxu0 0.0
        %4693 = vmatpush1.msra.mxu0 0.0
        %4694 = vmatprep.subr.mxu0 0.0
        %4695 = vmatpush1.msra.mxu0 0.0
        %4696 = vmatprep.subr.mxu0 0.0
        %4697 = vmatpush1.msra.mxu0 0.0
        %4698 = vmatprep.subr.mxu0 0.0
        %4699 = vmatpush1.msra.mxu0 0.0
        %4700 = vmatprep.subr.mxu0 0.0
        %4701 = vmatpush1.msra.mxu0 0.0
        %4702 = vmatprep.subr.mxu0 0.0
        %4703 = vmatpush1.msra.mxu0 0.0
        %4704 = vmatprep.subr.mxu0 0.0
        %4705 = vmatpush1.msra.mxu0 0.0
        %4706 = vmatprep.subr.mxu0 0.0
        %4707 = vmatpush1.msra.mxu0 0.0
        %4708 = vmatprep.subr.mxu0 0.0
        %4709 = vmatpush1.msra.mxu0 0.0
        %4710 = vmatprep.subr.mxu0 0.0
        %4711 = vmatpush1.msra.mxu0 0.0
        %4712 = vmatprep.subr.mxu0 0.0
        %4713 = vmatpush1.msra.mxu0 0.0
        %4714 = vmatprep.subr.mxu0 0.0
        %4715 = vmatpush1.msra.mxu0 0.0
        %4716 = vmatprep.subr.mxu0 0.0
        %4717 = vmatpush1.msra.mxu0 0.0
        %4718 = vmatprep.subr.mxu0 0.0
        %4719 = vmatpush1.msra.mxu0 0.0
        %4720 = vmatprep.mubr.f32.mxu0 0.0
        %4721 = vmatmul.mubr.f32.gmra.mrb[0].mxu0 %v4654
        %v4722 = vpop.f32.mrb[0].mxu0
        %v4723 = vadd.f32 0.0, %v4722
        %v4724 = vpop.f32.mrb[0].mxu0
        %4725 = vdwg.mxu0
        %4726 = vrot.lane.b32.xlu0 %v4312, 112
        %v4727 = vpop.permute.xlu0 %4726
        %4728 = vrot.lane.b32.xlu0 %v4391, 112
        %v4729 = vpop.permute.xlu0 %4728
        %v4730 = vsel %vm1237, %v4727, 0
        %v4732 = vsel %vm1237, %v4729, 0
        %4734 = vmatprep.subr.mxu0 0.0
        %4735 = vmatpush1.xpose.msra.mxu0 %v4732
        %4736 = vmatprep.subr.mxu0 0.0
        %4737 = vmatpush1.xpose.msra.mxu0 0.0
        %4738 = vmatprep.subr.mxu0 0.0
        %4739 = vmatpush1.xpose.msra.mxu0 0.0
        %4740 = vmatprep.subr.mxu0 0.0
        %4741 = vmatpush1.xpose.msra.mxu0 0.0
        %4742 = vmatprep.subr.mxu0 0.0
        %4743 = vmatpush1.xpose.msra.mxu0 0.0
        %4744 = vmatprep.subr.mxu0 0.0
        %4745 = vmatpush1.xpose.msra.mxu0 0.0
        %4746 = vmatprep.subr.mxu0 0.0
        %4747 = vmatpush1.xpose.msra.mxu0 0.0
        %4748 = vmatprep.subr.mxu0 0.0
        %4749 = vmatpush1.xpose.msra.mxu0 0.0
        %4750 = vmatprep.subr.mxu0 0.0
        %4751 = vmatpush1.xpose.msra.mxu0 0.0
        %4752 = vmatprep.subr.mxu0 0.0
        %4753 = vmatpush1.xpose.msra.mxu0 0.0
        %4754 = vmatprep.subr.mxu0 0.0
        %4755 = vmatpush1.xpose.msra.mxu0 0.0
        %4756 = vmatprep.subr.mxu0 0.0
        %4757 = vmatpush1.xpose.msra.mxu0 0.0
        %4758 = vmatprep.subr.mxu0 0.0
        %4759 = vmatpush1.xpose.msra.mxu0 0.0
        %4760 = vmatprep.subr.mxu0 0.0
        %4761 = vmatpush1.xpose.msra.mxu0 0.0
        %4762 = vmatprep.subr.mxu0 0.0
        %4763 = vmatpush1.xpose.msra.mxu0 0.0
        %4764 = vmatprep.subr.mxu0 0.0
        %4765 = vmatpush1.xpose.msra.mxu0 0.0
        %4766 = vmatprep.subr.mxu0 0.0
        %4767 = vmatpush1.xpose.msra.mxu0 0.0
        %4768 = vmatprep.subr.mxu0 0.0
        %4769 = vmatpush1.xpose.msra.mxu0 0.0
        %4770 = vmatprep.subr.mxu0 0.0
        %4771 = vmatpush1.xpose.msra.mxu0 0.0
        %4772 = vmatprep.subr.mxu0 0.0
        %4773 = vmatpush1.xpose.msra.mxu0 0.0
        %4774 = vmatprep.subr.mxu0 0.0
        %4775 = vmatpush1.xpose.msra.mxu0 0.0
        %4776 = vmatprep.subr.mxu0 0.0
        %4777 = vmatpush1.xpose.msra.mxu0 0.0
        %4778 = vmatprep.subr.mxu0 0.0
        %4779 = vmatpush1.xpose.msra.mxu0 0.0
        %4780 = vmatprep.subr.mxu0 0.0
        %4781 = vmatpush1.xpose.msra.mxu0 0.0
        %4782 = vmatprep.subr.mxu0 0.0
        %4783 = vmatpush1.xpose.msra.mxu0 0.0
        %4784 = vmatprep.subr.mxu0 0.0
        %4785 = vmatpush1.xpose.msra.mxu0 0.0
        %4786 = vmatprep.subr.mxu0 0.0
        %4787 = vmatpush1.xpose.msra.mxu0 0.0
        %4788 = vmatprep.subr.mxu0 0.0
        %4789 = vmatpush1.xpose.msra.mxu0 0.0
        %4790 = vmatprep.subr.mxu0 0.0
        %4791 = vmatpush1.xpose.msra.mxu0 0.0
        %4792 = vmatprep.subr.mxu0 0.0
        %4793 = vmatpush1.xpose.msra.mxu0 0.0
        %4794 = vmatprep.subr.mxu0 0.0
        %4795 = vmatpush1.xpose.msra.mxu0 0.0
        %4796 = vmatprep.subr.mxu0 0.0
        %4797 = vmatpush1.xpose.msra.mxu0 0.0
        %4798 = vmatprep.mubr.f32.mxu0 0.0
        %4799 = vmatmul.mubr.f32.gmra.mrb[0].mxu0 %v4730
        %v4800 = vpop.f32.mrb[0].mxu0
        %v4801 = vadd.f32 0.0, %v4800
        %v4802 = vpop.f32.mrb[0].mxu0
        %4803 = vdwg.mxu0
        %v4804 = vmul.f32 %v4801, 0.35355338
        %v4805 = vadd.f32 %v4804, %v1317
        %v4806 = vsel %vm1237, %v4805, -inf
        %4807 = vmax.xlane.f32.xlu0 %v4806
        %v4808 = vpop.xlane.xlu0 %4807
        %v4809 = vsub.f32 %v4805, %v4808
        %v4810 = vmul.f32 %v4809, 1.442695
        %v4811 = vpow.pop %v4810
        %v4812 = vsel %vm1237, %v4811, 0.0
        %4813 = vadd.xlane.f32.xlu0 %v4812
        %v4814 = vpop.xlane.xlu0 %4813
        %v4815 = vrcp.pop %v4814
        %v4816 = vmul.f32 %v4811, %v4815
        %4817 = vrot.lane.b32.xlu0 %v4391, 80
        %v4818 = vpop.permute.xlu0 %4817
        %v4821 = vsel %vm1237, %v4816, 0
        %4823 = vmatprep.subr.mxu0 0.0
        %4824 = vmatpush1.msra.mxu0 %v4818
        %4825 = vmatprep.subr.mxu0 0.0
        %4826 = vmatpush1.msra.mxu0 0.0
        %4827 = vmatprep.subr.mxu0 0.0
        %4828 = vmatpush1.msra.mxu0 0.0
        %4829 = vmatprep.subr.mxu0 0.0
        %4830 = vmatpush1.msra.mxu0 0.0
        %4831 = vmatprep.subr.mxu0 0.0
        %4832 = vmatpush1.msra.mxu0 0.0
        %4833 = vmatprep.subr.mxu0 0.0
        %4834 = vmatpush1.msra.mxu0 0.0
        %4835 = vmatprep.subr.mxu0 0.0
        %4836 = vmatpush1.msra.mxu0 0.0
        %4837 = vmatprep.subr.mxu0 0.0
        %4838 = vmatpush1.msra.mxu0 0.0
        %4839 = vmatprep.subr.mxu0 0.0
        %4840 = vmatpush1.msra.mxu0 0.0
        %4841 = vmatprep.subr.mxu0 0.0
        %4842 = vmatpush1.msra.mxu0 0.0
        %4843 = vmatprep.subr.mxu0 0.0
        %4844 = vmatpush1.msra.mxu0 0.0
        %4845 = vmatprep.subr.mxu0 0.0
        %4846 = vmatpush1.msra.mxu0 0.0
        %4847 = vmatprep.subr.mxu0 0.0
        %4848 = vmatpush1.msra.mxu0 0.0
        %4849 = vmatprep.subr.mxu0 0.0
        %4850 = vmatpush1.msra.mxu0 0.0
        %4851 = vmatprep.subr.mxu0 0.0
        %4852 = vmatpush1.msra.mxu0 0.0
        %4853 = vmatprep.subr.mxu0 0.0
        %4854 = vmatpush1.msra.mxu0 0.0
        %4855 = vmatprep.subr.mxu0 0.0
        %4856 = vmatpush1.msra.mxu0 0.0
        %4857 = vmatprep.subr.mxu0 0.0
        %4858 = vmatpush1.msra.mxu0 0.0
        %4859 = vmatprep.subr.mxu0 0.0
        %4860 = vmatpush1.msra.mxu0 0.0
        %4861 = vmatprep.subr.mxu0 0.0
        %4862 = vmatpush1.msra.mxu0 0.0
        %4863 = vmatprep.subr.mxu0 0.0
        %4864 = vmatpush1.msra.mxu0 0.0
        %4865 = vmatprep.subr.mxu0 0.0
        %4866 = vmatpush1.msra.mxu0 0.0
        %4867 = vmatprep.subr.mxu0 0.0
        %4868 = vmatpush1.msra.mxu0 0.0
        %4869 = vmatprep.subr.mxu0 0.0
        %4870 = vmatpush1.msra.mxu0 0.0
        %4871 = vmatprep.subr.mxu0 0.0
        %4872 = vmatpush1.msra.mxu0 0.0
        %4873 = vmatprep.subr.mxu0 0.0
        %4874 = vmatpush1.msra.mxu0 0.0
        %4875 = vmatprep.subr.mxu0 0.0
        %4876 = vmatpush1.msra.mxu0 0.0
        %4877 = vmatprep.subr.mxu0 0.0
        %4878 = vmatpush1.msra.mxu0 0.0
        %4879 = vmatprep.subr.mxu0 0.0
        %4880 = vmatpush1.msra.mxu0 0.0
        %4881 = vmatprep.subr.mxu0 0.0
        %4882 = vmatpush1.msra.mxu0 0.0
        %4883 = vmatprep.subr.mxu0 0.0
        %4884 = vmatpush1.msra.mxu0 0.0
        %4885 = vmatprep.subr.mxu0 0.0
        %4886 = vmatpush1.msra.mxu0 0.0
        %4887 = vmatprep.mubr.f32.mxu0 0.0
        %4888 = vmatmul.mubr.f32.gmra.mrb[0].mxu0 %v4821
        %v4889 = vpop.f32.mrb[0].mxu0
        %v4890 = vadd.f32 0.0, %v4889
        %v4891 = vpop.f32.mrb[0].mxu0
        %4892 = vdwg.mxu0
        %4893 = vrot.lane.b32.xlu0 %v4312, 104
        %v4894 = vpop.permute.xlu0 %4893
        %4895 = vrot.lane.b32.xlu0 %v4391, 104
        %v4896 = vpop.permute.xlu0 %4895
        %v4897 = vsel %vm1237, %v4894, 0
        %v4899 = vsel %vm1237, %v4896, 0
        %4901 = vmatprep.subr.mxu0 0.0
        %4902 = vmatpush1.xpose.msra.mxu0 %v4899
        %4903 = vmatprep.subr.mxu0 0.0
        %4904 = vmatpush1.xpose.msra.mxu0 0.0
        %4905 = vmatprep.subr.mxu0 0.0
        %4906 = vmatpush1.xpose.msra.mxu0 0.0
        %4907 = vmatprep.subr.mxu0 0.0
        %4908 = vmatpush1.xpose.msra.mxu0 0.0
        %4909 = vmatprep.subr.mxu0 0.0
        %4910 = vmatpush1.xpose.msra.mxu0 0.0
        %4911 = vmatprep.subr.mxu0 0.0
        %4912 = vmatpush1.xpose.msra.mxu0 0.0
        %4913 = vmatprep.subr.mxu0 0.0
        %4914 = vmatpush1.xpose.msra.mxu0 0.0
        %4915 = vmatprep.subr.mxu0 0.0
        %4916 = vmatpush1.xpose.msra.mxu0 0.0
        %4917 = vmatprep.subr.mxu0 0.0
        %4918 = vmatpush1.xpose.msra.mxu0 0.0
        %4919 = vmatprep.subr.mxu0 0.0
        %4920 = vmatpush1.xpose.msra.mxu0 0.0
        %4921 = vmatprep.subr.mxu0 0.0
        %4922 = vmatpush1.xpose.msra.mxu0 0.0
        %4923 = vmatprep.subr.mxu0 0.0
        %4924 = vmatpush1.xpose.msra.mxu0 0.0
        %4925 = vmatprep.subr.mxu0 0.0
        %4926 = vmatpush1.xpose.msra.mxu0 0.0
        %4927 = vmatprep.subr.mxu0 0.0
        %4928 = vmatpush1.xpose.msra.mxu0 0.0
        %4929 = vmatprep.subr.mxu0 0.0
        %4930 = vmatpush1.xpose.msra.mxu0 0.0
        %4931 = vmatprep.subr.mxu0 0.0
        %4932 = vmatpush1.xpose.msra.mxu0 0.0
        %4933 = vmatprep.subr.mxu0 0.0
        %4934 = vmatpush1.xpose.msra.mxu0 0.0
        %4935 = vmatprep.subr.mxu0 0.0
        %4936 = vmatpush1.xpose.msra.mxu0 0.0
        %4937 = vmatprep.subr.mxu0 0.0
        %4938 = vmatpush1.xpose.msra.mxu0 0.0
        %4939 = vmatprep.subr.mxu0 0.0
        %4940 = vmatpush1.xpose.msra.mxu0 0.0
        %4941 = vmatprep.subr.mxu0 0.0
        %4942 = vmatpush1.xpose.msra.mxu0 0.0
        %4943 = vmatprep.subr.mxu0 0.0
        %4944 = vmatpush1.xpose.msra.mxu0 0.0
        %4945 = vmatprep.subr.mxu0 0.0
        %4946 = vmatpush1.xpose.msra.mxu0 0.0
        %4947 = vmatprep.subr.mxu0 0.0
        %4948 = vmatpush1.xpose.msra.mxu0 0.0
        %4949 = vmatprep.subr.mxu0 0.0
        %4950 = vmatpush1.xpose.msra.mxu0 0.0
        %4951 = vmatprep.subr.mxu0 0.0
        %4952 = vmatpush1.xpose.msra.mxu0 0.0
        %4953 = vmatprep.subr.mxu0 0.0
        %4954 = vmatpush1.xpose.msra.mxu0 0.0
        %4955 = vmatprep.subr.mxu0 0.0
        %4956 = vmatpush1.xpose.msra.mxu0 0.0
        %4957 = vmatprep.subr.mxu0 0.0
        %4958 = vmatpush1.xpose.msra.mxu0 0.0
        %4959 = vmatprep.subr.mxu0 0.0
        %4960 = vmatpush1.xpose.msra.mxu0 0.0
        %4961 = vmatprep.subr.mxu0 0.0
        %4962 = vmatpush1.xpose.msra.mxu0 0.0
        %4963 = vmatprep.subr.mxu0 0.0
        %4964 = vmatpush1.xpose.msra.mxu0 0.0
        %4965 = vmatprep.mubr.f32.mxu0 0.0
        %4966 = vmatmul.mubr.f32.gmra.mrb[0].mxu0 %v4897
        %v4967 = vpop.f32.mrb[0].mxu0
        %v4968 = vadd.f32 0.0, %v4967
        %v4969 = vpop.f32.mrb[0].mxu0
        %4970 = vdwg.mxu0
        %v4971 = vmul.f32 %v4968, 0.35355338
        %v4972 = vadd.f32 %v4971, %v1317
        %v4973 = vsel %vm1237, %v4972, -inf
        %4974 = vmax.xlane.f32.xlu0 %v4973
        %v4975 = vpop.xlane.xlu0 %4974
        %v4976 = vsub.f32 %v4972, %v4975
        %v4977 = vmul.f32 %v4976, 1.442695
        %v4978 = vpow.pop %v4977
        %v4979 = vsel %vm1237, %v4978, 0.0
        %4980 = vadd.xlane.f32.xlu0 %v4979
        %v4981 = vpop.xlane.xlu0 %4980
        %v4982 = vrcp.pop %v4981
        %v4983 = vmul.f32 %v4978, %v4982
        %4984 = vrot.lane.b32.xlu0 %v4391, 72
        %v4985 = vpop.permute.xlu0 %4984
        %v4988 = vsel %vm1237, %v4983, 0
        %4990 = vmatprep.subr.mxu0 0.0
        %4991 = vmatpush1.msra.mxu0 %v4985
        %4992 = vmatprep.subr.mxu0 0.0
        %4993 = vmatpush1.msra.mxu0 0.0
        %4994 = vmatprep.subr.mxu0 0.0
        %4995 = vmatpush1.msra.mxu0 0.0
        %4996 = vmatprep.subr.mxu0 0.0
        %4997 = vmatpush1.msra.mxu0 0.0
        %4998 = vmatprep.subr.mxu0 0.0
        %4999 = vmatpush1.msra.mxu0 0.0
        %5000 = vmatprep.subr.mxu0 0.0
        %5001 = vmatpush1.msra.mxu0 0.0
        %5002 = vmatprep.subr.mxu0 0.0
        %5003 = vmatpush1.msra.mxu0 0.0
        %5004 = vmatprep.subr.mxu0 0.0
        %5005 = vmatpush1.msra.mxu0 0.0
        %5006 = vmatprep.subr.mxu0 0.0
        %5007 = vmatpush1.msra.mxu0 0.0
        %5008 = vmatprep.subr.mxu0 0.0
        %5009 = vmatpush1.msra.mxu0 0.0
        %5010 = vmatprep.subr.mxu0 0.0
        %5011 = vmatpush1.msra.mxu0 0.0
        %5012 = vmatprep.subr.mxu0 0.0
        %5013 = vmatpush1.msra.mxu0 0.0
        %5014 = vmatprep.subr.mxu0 0.0
        %5015 = vmatpush1.msra.mxu0 0.0
        %5016 = vmatprep.subr.mxu0 0.0
        %5017 = vmatpush1.msra.mxu0 0.0
        %5018 = vmatprep.subr.mxu0 0.0
        %5019 = vmatpush1.msra.mxu0 0.0
        %5020 = vmatprep.subr.mxu0 0.0
        %5021 = vmatpush1.msra.mxu0 0.0
        %5022 = vmatprep.subr.mxu0 0.0
        %5023 = vmatpush1.msra.mxu0 0.0
        %5024 = vmatprep.subr.mxu0 0.0
        %5025 = vmatpush1.msra.mxu0 0.0
        %5026 = vmatprep.subr.mxu0 0.0
        %5027 = vmatpush1.msra.mxu0 0.0
        %5028 = vmatprep.subr.mxu0 0.0
        %5029 = vmatpush1.msra.mxu0 0.0
        %5030 = vmatprep.subr.mxu0 0.0
        %5031 = vmatpush1.msra.mxu0 0.0
        %5032 = vmatprep.subr.mxu0 0.0
        %5033 = vmatpush1.msra.mxu0 0.0
        %5034 = vmatprep.subr.mxu0 0.0
        %5035 = vmatpush1.msra.mxu0 0.0
        %5036 = vmatprep.subr.mxu0 0.0
        %5037 = vmatpush1.msra.mxu0 0.0
        %5038 = vmatprep.subr.mxu0 0.0
        %5039 = vmatpush1.msra.mxu0 0.0
        %5040 = vmatprep.subr.mxu0 0.0
        %5041 = vmatpush1.msra.mxu0 0.0
        %5042 = vmatprep.subr.mxu0 0.0
        %5043 = vmatpush1.msra.mxu0 0.0
        %5044 = vmatprep.subr.mxu0 0.0
        %5045 = vmatpush1.msra.mxu0 0.0
        %5046 = vmatprep.subr.mxu0 0.0
        %5047 = vmatpush1.msra.mxu0 0.0
        %5048 = vmatprep.subr.mxu0 0.0
        %5049 = vmatpush1.msra.mxu0 0.0
        %5050 = vmatprep.subr.mxu0 0.0
        %5051 = vmatpush1.msra.mxu0 0.0
        %5052 = vmatprep.subr.mxu0 0.0
        %5053 = vmatpush1.msra.mxu0 0.0
        %5054 = vmatprep.mubr.f32.mxu0 0.0
        %5055 = vmatmul.mubr.f32.gmra.mrb[0].mxu0 %v4988
        %v5056 = vpop.f32.mrb[0].mxu0
        %v5057 = vadd.f32 0.0, %v5056
        %v5058 = vpop.f32.mrb[0].mxu0
        %5059 = vdwg.mxu0
        %5061 = vrot.lane.b32.xlu0 %v4723, 8
        %v5062 = vpop.permute.xlu0 %5061
        %5065 = vrot.lane.b32.xlu0 %v4890, 16
        %v5066 = vpop.permute.xlu0 %5065
        %5069 = vrot.lane.b32.xlu0 %v5057, 24
        %v5070 = vpop.permute.xlu0 %5069
        %v5072 = vsel %vm1237, %v4556, %v5062
        %v5073 = vsel %vm1921, %v5072, %v5066
        %v5074 = vsel %vm1923, %v5073, %v5070
        %v5076 = vlaneseq
        %v5077 = vshrl.u32 %v5076, 7
        %v5078 = vsub.s32 0, %v5077
        %v5079 = vrot.slane %v4235, %v5078
        %v5082 = vsel %vm1160, %v5074, 0
        %5084 = vmatprep.subr.mxu0 0.0
        %5085 = vmatpush1.msra.mxu0 %v4231
        %5086 = vmatprep.subr.mxu0 0.0
        %5087 = vmatpush1.msra.mxu0 %v4232
        %5088 = vmatprep.subr.mxu0 0.0
        %5089 = vmatpush1.msra.mxu0 %v4233
        %5090 = vmatprep.subr.mxu0 0.0
        %5091 = vmatpush1.msra.mxu0 %v4234
        %5092 = vmatprep.subr.mxu0 0.0
        %5093 = vmatpush1.msra.mxu0 0.0
        %5094 = vmatprep.subr.mxu0 0.0
        %5095 = vmatpush1.msra.mxu0 0.0
        %5096 = vmatprep.subr.mxu0 0.0
        %5097 = vmatpush1.msra.mxu0 0.0
        %5098 = vmatprep.subr.mxu0 0.0
        %5099 = vmatpush1.msra.mxu0 0.0
        %5100 = vmatprep.subr.mxu0 0.0
        %5101 = vmatpush1.msra.mxu0 0.0
        %5102 = vmatprep.subr.mxu0 0.0
        %5103 = vmatpush1.msra.mxu0 0.0
        %5104 = vmatprep.subr.mxu0 0.0
        %5105 = vmatpush1.msra.mxu0 0.0
        %5106 = vmatprep.subr.mxu0 0.0
        %5107 = vmatpush1.msra.mxu0 0.0
        %5108 = vmatprep.subr.mxu0 0.0
        %5109 = vmatpush1.msra.mxu0 0.0
        %5110 = vmatprep.subr.mxu0 0.0
        %5111 = vmatpush1.msra.mxu0 0.0
        %5112 = vmatprep.subr.mxu0 0.0
        %5113 = vmatpush1.msra.mxu0 0.0
        %5114 = vmatprep.subr.mxu0 0.0
        %5115 = vmatpush1.msra.mxu0 0.0
        %5116 = vmatprep.subr.mxu0 0.0
        %5117 = vmatpush1.msra.mxu0 0.0
        %5118 = vmatprep.subr.mxu0 0.0
        %5119 = vmatpush1.msra.mxu0 0.0
        %5120 = vmatprep.subr.mxu0 0.0
        %5121 = vmatpush1.msra.mxu0 0.0
        %5122 = vmatprep.subr.mxu0 0.0
        %5123 = vmatpush1.msra.mxu0 0.0
        %5124 = vmatprep.subr.mxu0 0.0
        %5125 = vmatpush1.msra.mxu0 0.0
        %5126 = vmatprep.subr.mxu0 0.0
        %5127 = vmatpush1.msra.mxu0 0.0
        %5128 = vmatprep.subr.mxu0 0.0
        %5129 = vmatpush1.msra.mxu0 0.0
        %5130 = vmatprep.subr.mxu0 0.0
        %5131 = vmatpush1.msra.mxu0 0.0
        %5132 = vmatprep.subr.mxu0 0.0
        %5133 = vmatpush1.msra.mxu0 0.0
        %5134 = vmatprep.subr.mxu0 0.0
        %5135 = vmatpush1.msra.mxu0 0.0
        %5136 = vmatprep.subr.mxu0 0.0
        %5137 = vmatpush1.msra.mxu0 0.0
        %5138 = vmatprep.subr.mxu0 0.0
        %5139 = vmatpush1.msra.mxu0 0.0
        %5140 = vmatprep.subr.mxu0 0.0
        %5141 = vmatpush1.msra.mxu0 0.0
        %5142 = vmatprep.subr.mxu0 0.0
        %5143 = vmatpush1.msra.mxu0 0.0
        %5144 = vmatprep.subr.mxu0 0.0
        %5145 = vmatpush1.msra.mxu0 0.0
        %5146 = vmatprep.subr.mxu0 0.0
        %5147 = vmatpush1.msra.mxu0 0.0
        %5148 = vmatprep.mubr.f32.mxu0 0.0
        %5149 = vmatmul.mubr.f32.gmra.mrb[0].mxu0 %v5082
        %v5150 = vpop.f32.mrb[0].mxu0
        %v5151 = vadd.f32 %v5079, %v5150
        %v5152 = vpop.f32.mrb[0].mxu0
        %5153 = vdwg.mxu0
        %v5154 = vld [vmem:[%s57] sm:$0x1]
        %v5155 = vld [vmem:[%s59] sm:$0x1]
        %v5156 = vadd.f32 %v4220, %v5151
        %v5157 = vsel %vm1160, %v5156, 0.0
        %5158 = vadd.xlane.f32.xlu0 %v5157
        %v5159 = vpop.xlane.xlu0 %5158
        %v5160 = vmul.f32 %v5159, %v2010
        %v5161 = vsub.f32 %v5156, %v5160
        %v5162 = vmul.f32 %v5161, %v5161
        %v5163 = vsel %vm1160, %v5162, 0.0
        %5164 = vadd.xlane.f32.xlu0 %v5163
        %v5165 = vpop.xlane.xlu0 %5164
        %v5166 = vmul.f32 %v5165, %v2010
        %v5167 = vadd.f32 %v5166, 1e-05
        %v5168 = vrsqrt.pop %v5167
        %v5169 = vmul.f32 %v5161, %v5168
        %v5171 = vlaneseq
        %v5172 = vshrl.u32 %v5171, 7
        %v5173 = vsub.s32 0, %v5172
        %v5174 = vrot.slane %v5154, %v5173
        %v5176 = vmul.f32 %v5169, %v5174
        %v5178 = vlaneseq
        %v5179 = vshrl.u32 %v5178, 7
        %v5180 = vsub.s32 0, %v5179
        %v5181 = vrot.slane %v5155, %v5180
        %v5183 = vadd.f32 %v5176, %v5181
        %v5184 = vld [vmem:[%s61] sm:$0xff]
        %v5185 = vld [vmem:[%s61 + $0x8] sm:$0xff]
        %v5186 = vld [vmem:[%s61 + $0x10] sm:$0xff]
        %v5187 = vld [vmem:[%s61 + $0x18] sm:$0xff]
        %v5188 = vld [vmem:[%s63] sm:$0x1]
        %v5189 = vld [vmem:[%s65] sm:$0xff]
        %v5190 = vld [vmem:[%s65 + $0x8] sm:$0xff]
        %v5191 = vld [vmem:[%s65 + $0x10] sm:$0xff]
        %v5192 = vld [vmem:[%s65 + $0x18] sm:$0xff]
        %v5193 = vld [vmem:[%s65 + $0x20] sm:$0xff]
        %v5194 = vld [vmem:[%s65 + $0x28] sm:$0xff]
        %v5195 = vld [vmem:[%s65 + $0x30] sm:$0xff]
        %v5196 = vld [vmem:[%s65 + $0x38] sm:$0xff]
        %v5197 = vld [vmem:[%s67] sm:$0x1]
        %v5199 = vlaneseq
        %v5200 = vshrl.u32 %v5199, 7
        %v5201 = vsub.s32 0, %v5200
        %v5202 = vrot.slane %v5188, %v5201
        %v5205 = vsel %vm1160, %v5183, 0
        %5207 = vmatprep.subr.mxu0 0.0
        %5208 = vmatpush1.msra.mxu0 %v5184
        %5209 = vmatprep.subr.mxu0 0.0
        %5210 = vmatpush1.msra.mxu0 %v5185
        %5211 = vmatprep.subr.mxu0 0.0
        %5212 = vmatpush1.msra.mxu0 %v5186
        %5213 = vmatprep.subr.mxu0 0.0
        %5214 = vmatpush1.msra.mxu0 %v5187
        %5215 = vmatprep.subr.mxu0 0.0
        %5216 = vmatpush1.msra.mxu0 0.0
        %5217 = vmatprep.subr.mxu0 0.0
        %5218 = vmatpush1.msra.mxu0 0.0
        %5219 = vmatprep.subr.mxu0 0.0
        %5220 = vmatpush1.msra.mxu0 0.0
        %5221 = vmatprep.subr.mxu0 0.0
        %5222 = vmatpush1.msra.mxu0 0.0
        %5223 = vmatprep.subr.mxu0 0.0
        %5224 = vmatpush1.msra.mxu0 0.0
        %5225 = vmatprep.subr.mxu0 0.0
        %5226 = vmatpush1.msra.mxu0 0.0
        %5227 = vmatprep.subr.mxu0 0.0
        %5228 = vmatpush1.msra.mxu0 0.0
        %5229 = vmatprep.subr.mxu0 0.0
        %5230 = vmatpush1.msra.mxu0 0.0
        %5231 = vmatprep.subr.mxu0 0.0
        %5232 = vmatpush1.msra.mxu0 0.0
        %5233 = vmatprep.subr.mxu0 0.0
        %5234 = vmatpush1.msra.mxu0 0.0
        %5235 = vmatprep.subr.mxu0 0.0
        %5236 = vmatpush1.msra.mxu0 0.0
        %5237 = vmatprep.subr.mxu0 0.0
        %5238 = vmatpush1.msra.mxu0 0.0
        %5239 = vmatprep.subr.mxu0 0.0
        %5240 = vmatpush1.msra.mxu0 0.0
        %5241 = vmatprep.subr.mxu0 0.0
        %5242 = vmatpush1.msra.mxu0 0.0
        %5243 = vmatprep.subr.mxu0 0.0
        %5244 = vmatpush1.msra.mxu0 0.0
        %5245 = vmatprep.subr.mxu0 0.0
        %5246 = vmatpush1.msra.mxu0 0.0
        %5247 = vmatprep.subr.mxu0 0.0
        %5248 = vmatpush1.msra.mxu0 0.0
        %5249 = vmatprep.subr.mxu0 0.0
        %5250 = vmatpush1.msra.mxu0 0.0
        %5251 = vmatprep.subr.mxu0 0.0
        %5252 = vmatpush1.msra.mxu0 0.0
        %5253 = vmatprep.subr.mxu0 0.0
        %5254 = vmatpush1.msra.mxu0 0.0
        %5255 = vmatprep.subr.mxu0 0.0
        %5256 = vmatpush1.msra.mxu0 0.0
        %5257 = vmatprep.subr.mxu0 0.0
        %5258 = vmatpush1.msra.mxu0 0.0
        %5259 = vmatprep.subr.mxu0 0.0
        %5260 = vmatpush1.msra.mxu0 0.0
        %5261 = vmatprep.subr.mxu0 0.0
        %5262 = vmatpush1.msra.mxu0 0.0
        %5263 = vmatprep.subr.mxu0 0.0
        %5264 = vmatpush1.msra.mxu0 0.0
        %5265 = vmatprep.subr.mxu0 0.0
        %5266 = vmatpush1.msra.mxu0 0.0
        %5267 = vmatprep.subr.mxu0 0.0
        %5268 = vmatpush1.msra.mxu0 0.0
        %5269 = vmatprep.subr.mxu0 0.0
        %5270 = vmatpush1.msra.mxu0 0.0
        %5271 = vmatprep.mubr.f32.mxu0 0.0
        %5272 = vmatmul.mubr.f32.gmra.mrb[0].mxu0 %v5205
        %v5273 = vpop.f32.mrb[0].mxu0
        %v5274 = vadd.f32 %v5202, %v5273
        %v5275 = vpop.f32.mrb[0].mxu0
        %5276 = vdwg.mxu0
        %v5277 = vmax.f32 %v5274, 0.0
        %v5279 = vlaneseq
        %v5280 = vshrl.u32 %v5279, 7
        %v5281 = vsub.s32 0, %v5280
        %v5282 = vrot.slane %v5197, %v5281
        %v5285 = vsel %vm2135, %v5277, 0
        %5287 = vmatprep.subr.mxu0 0.0
        %5288 = vmatpush1.msra.mxu0 %v5189
        %5289 = vmatprep.subr.mxu0 0.0
        %5290 = vmatpush1.msra.mxu0 %v5190
        %5291 = vmatprep.subr.mxu0 0.0
        %5292 = vmatpush1.msra.mxu0 %v5191
        %5293 = vmatprep.subr.mxu0 0.0
        %5294 = vmatpush1.msra.mxu0 %v5192
        %5295 = vmatprep.subr.mxu0 0.0
        %5296 = vmatpush1.msra.mxu0 %v5193
        %5297 = vmatprep.subr.mxu0 0.0
        %5298 = vmatpush1.msra.mxu0 %v5194
        %5299 = vmatprep.subr.mxu0 0.0
        %5300 = vmatpush1.msra.mxu0 %v5195
        %5301 = vmatprep.subr.mxu0 0.0
        %5302 = vmatpush1.msra.mxu0 %v5196
        %5303 = vmatprep.subr.mxu0 0.0
        %5304 = vmatpush1.msra.mxu0 0.0
        %5305 = vmatprep.subr.mxu0 0.0
        %5306 = vmatpush1.msra.mxu0 0.0
        %5307 = vmatprep.subr.mxu0 0.0
        %5308 = vmatpush1.msra.mxu0 0.0
        %5309 = vmatprep.subr.mxu0 0.0
        %5310 = vmatpush1.msra.mxu0 0.0
        %5311 = vmatprep.subr.mxu0 0.0
        %5312 = vmatpush1.msra.mxu0 0.0
        %5313 = vmatprep.subr.mxu0 0.0
        %5314 = vmatpush1.msra.mxu0 0.0
        %5315 = vmatprep.subr.mxu0 0.0
        %5316 = vmatpush1.msra.mxu0 0.0
        %5317 = vmatprep.subr.mxu0 0.0
        %5318 = vmatpush1.msra.mxu0 0.0
        %5319 = vmatprep.subr.mxu0 0.0
        %5320 = vmatpush1.msra.mxu0 0.0
        %5321 = vmatprep.subr.mxu0 0.0
        %5322 = vmatpush1.msra.mxu0 0.0
        %5323 = vmatprep.subr.mxu0 0.0
        %5324 = vmatpush1.msra.mxu0 0.0
        %5325 = vmatprep.subr.mxu0 0.0
        %5326 = vmatpush1.msra.mxu0 0.0
        %5327 = vmatprep.subr.mxu0 0.0
        %5328 = vmatpush1.msra.mxu0 0.0
        %5329 = vmatprep.subr.mxu0 0.0
        %5330 = vmatpush1.msra.mxu0 0.0
        %5331 = vmatprep.subr.mxu0 0.0
        %5332 = vmatpush1.msra.mxu0 0.0
        %5333 = vmatprep.subr.mxu0 0.0
        %5334 = vmatpush1.msra.mxu0 0.0
        %5335 = vmatprep.subr.mxu0 0.0
        %5336 = vmatpush1.msra.mxu0 0.0
        %5337 = vmatprep.subr.mxu0 0.0
        %5338 = vmatpush1.msra.mxu0 0.0
        %5339 = vmatprep.subr.mxu0 0.0
        %5340 = vmatpush1.msra.mxu0 0.0
        %5341 = vmatprep.subr.mxu0 0.0
        %5342 = vmatpush1.msra.mxu0 0.0
        %5343 = vmatprep.subr.mxu0 0.0
        %5344 = vmatpush1.msra.mxu0 0.0
        %5345 = vmatprep.subr.mxu0 0.0
        %5346 = vmatpush1.msra.mxu0 0.0
        %5347 = vmatprep.subr.mxu0 0.0
        %5348 = vmatpush1.msra.mxu0 0.0
        %5349 = vmatprep.subr.mxu0 0.0
        %5350 = vmatpush1.msra.mxu0 0.0
        %5351 = vmatprep.mubr.f32.mxu0 0.0
        %5352 = vmatmul.mubr.f32.gmra.mrb[0].mxu0 %v5285
        %v5353 = vpop.f32.mrb[0].mxu0
        %v5354 = vadd.f32 %v5282, %v5353
        %v5355 = vpop.f32.mrb[0].mxu0
        %5356 = vdwg.mxu0
        %v5357 = vld [vmem:[%s69] sm:$0x1]
        %v5358 = vld [vmem:[%s71] sm:$0x1]
        %v5359 = vadd.f32 %v5183, %v5354
        %v5360 = vsel %vm1160, %v5359, 0.0
        %5361 = vadd.xlane.f32.xlu0 %v5360
        %v5362 = vpop.xlane.xlu0 %5361
        %v5363 = vmul.f32 %v5362, %v2010
        %v5364 = vsub.f32 %v5359, %v5363
        %v5365 = vmul.f32 %v5364, %v5364
        %v5366 = vsel %vm1160, %v5365, 0.0
        %5367 = vadd.xlane.f32.xlu0 %v5366
        %v5368 = vpop.xlane.xlu0 %5367
        %v5369 = vmul.f32 %v5368, %v2010
        %v5370 = vadd.f32 %v5369, 1e-05
        %v5371 = vrsqrt.pop %v5370
        %v5372 = vmul.f32 %v5364, %v5371
        %v5374 = vlaneseq
        %v5375 = vshrl.u32 %v5374, 7
        %v5376 = vsub.s32 0, %v5375
        %v5377 = vrot.slane %v5357, %v5376
        %v5379 = vmul.f32 %v5372, %v5377
        %v5381 = vlaneseq
        %v5382 = vshrl.u32 %v5381, 7
        %v5383 = vsub.s32 0, %v5382
        %v5384 = vrot.slane %v5358, %v5383
        %v5386 = vadd.f32 %v5379, %v5384
        %s5387 = scalar_lea.vmem %s33, 32
        %v5388 = vld [vmem:[%s5387] sm:$0xff]
        %v5389 = vld [vmem:[%s5387 + $0x8] sm:$0xff]
        %v5390 = vld [vmem:[%s5387 + $0x10] sm:$0xff]
        %v5391 = vld [vmem:[%s5387 + $0x18] sm:$0xff]
        %s5392 = scalar_lea.vmem %s35, 1
        %v5393 = vld [vmem:[%s5392] sm:$0x1]
        %s5394 = scalar_lea.vmem %s37, 32
        %v5395 = vld [vmem:[%s5394] sm:$0xff]
        %v5396 = vld [vmem:[%s5394 + $0x8] sm:$0xff]
        %v5397 = vld [vmem:[%s5394 + $0x10] sm:$0xff]
        %v5398 = vld [vmem:[%s5394 + $0x18] sm:$0xff]
        %s5399 = scalar_lea.vmem %s39, 1
        %v5400 = vld [vmem:[%s5399] sm:$0x1]
        %v5402 = vlaneseq
        %v5403 = vshrl.u32 %v5402, 7
        %v5404 = vsub.s32 0, %v5403
        %v5405 = vrot.slane %v5393, %v5404
        %v5408 = vsel %vm1160, %v5386, 0
        %5410 = vmatprep.subr.mxu0 0.0
        %5411 = vmatpush1.msra.mxu0 %v5388
        %5412 = vmatprep.subr.mxu0 0.0
        %5413 = vmatpush1.msra.mxu0 %v5389
        %5414 = vmatprep.subr.mxu0 0.0
        %5415 = vmatpush1.msra.mxu0 %v5390
        %5416 = vmatprep.subr.mxu0 0.0
        %5417 = vmatpush1.msra.mxu0 %v5391
        %5418 = vmatprep.subr.mxu0 0.0
        %5419 = vmatpush1.msra.mxu0 0.0
        %5420 = vmatprep.subr.mxu0 0.0
        %5421 = vmatpush1.msra.mxu0 0.0
        %5422 = vmatprep.subr.mxu0 0.0
        %5423 = vmatpush1.msra.mxu0 0.0
        %5424 = vmatprep.subr.mxu0 0.0
        %5425 = vmatpush1.msra.mxu0 0.0
        %5426 = vmatprep.subr.mxu0 0.0
        %5427 = vmatpush1.msra.mxu0 0.0
        %5428 = vmatprep.subr.mxu0 0.0
        %5429 = vmatpush1.msra.mxu0 0.0
        %5430 = vmatprep.subr.mxu0 0.0
        %5431 = vmatpush1.msra.mxu0 0.0
        %5432 = vmatprep.subr.mxu0 0.0
        %5433 = vmatpush1.msra.mxu0 0.0
        %5434 = vmatprep.subr.mxu0 0.0
        %5435 = vmatpush1.msra.mxu0 0.0
        %5436 = vmatprep.subr.mxu0 0.0
        %5437 = vmatpush1.msra.mxu0 0.0
        %5438 = vmatprep.subr.mxu0 0.0
        %5439 = vmatpush1.msra.mxu0 0.0
        %5440 = vmatprep.subr.mxu0 0.0
        %5441 = vmatpush1.msra.mxu0 0.0
        %5442 = vmatprep.subr.mxu0 0.0
        %5443 = vmatpush1.msra.mxu0 0.0
        %5444 = vmatprep.subr.mxu0 0.0
        %5445 = vmatpush1.msra.mxu0 0.0
        %5446 = vmatprep.subr.mxu0 0.0
        %5447 = vmatpush1.msra.mxu0 0.0
        %5448 = vmatprep.subr.mxu0 0.0
        %5449 = vmatpush1.msra.mxu0 0.0
        %5450 = vmatprep.subr.mxu0 0.0
        %5451 = vmatpush1.msra.mxu0 0.0
        %5452 = vmatprep.subr.mxu0 0.0
        %5453 = vmatpush1.msra.mxu0 0.0
        %5454 = vmatprep.subr.mxu0 0.0
        %5455 = vmatpush1.msra.mxu0 0.0
        %5456 = vmatprep.subr.mxu0 0.0
        %5457 = vmatpush1.msra.mxu0 0.0
        %5458 = vmatprep.subr.mxu0 0.0
        %5459 = vmatpush1.msra.mxu0 0.0
        %5460 = vmatprep.subr.mxu0 0.0
        %5461 = vmatpush1.msra.mxu0 0.0
        %5462 = vmatprep.subr.mxu0 0.0
        %5463 = vmatpush1.msra.mxu0 0.0
        %5464 = vmatprep.subr.mxu0 0.0
        %5465 = vmatpush1.msra.mxu0 0.0
        %5466 = vmatprep.subr.mxu0 0.0
        %5467 = vmatpush1.msra.mxu0 0.0
        %5468 = vmatprep.subr.mxu0 0.0
        %5469 = vmatpush1.msra.mxu0 0.0
        %5470 = vmatprep.subr.mxu0 0.0
        %5471 = vmatpush1.msra.mxu0 0.0
        %5472 = vmatprep.subr.mxu0 0.0
        %5473 = vmatpush1.msra.mxu0 0.0
        %5474 = vmatprep.mubr.f32.mxu0 0.0
        %5475 = vmatmul.mubr.f32.gmra.mrb[0].mxu0 %v5408
        %v5476 = vpop.f32.mrb[0].mxu0
        %v5477 = vadd.f32 %v5405, %v5476
        %v5478 = vpop.f32.mrb[0].mxu0
        %5479 = vdwg.mxu0
        %5481 = vrot.lane.b32.xlu0 %v5477, 96
        %v5482 = vpop.permute.xlu0 %5481
        %v5483 = vsel %vm1237, %v5477, 0
        %v5485 = vsel %vm1237, %v5482, 0
        %5487 = vmatprep.subr.mxu0 0.0
        %5488 = vmatpush1.xpose.msra.mxu0 %v5485
        %5489 = vmatprep.subr.mxu0 0.0
        %5490 = vmatpush1.xpose.msra.mxu0 0.0
        %5491 = vmatprep.subr.mxu0 0.0
        %5492 = vmatpush1.xpose.msra.mxu0 0.0
        %5493 = vmatprep.subr.mxu0 0.0
        %5494 = vmatpush1.xpose.msra.mxu0 0.0
        %5495 = vmatprep.subr.mxu0 0.0
        %5496 = vmatpush1.xpose.msra.mxu0 0.0
        %5497 = vmatprep.subr.mxu0 0.0
        %5498 = vmatpush1.xpose.msra.mxu0 0.0
        %5499 = vmatprep.subr.mxu0 0.0
        %5500 = vmatpush1.xpose.msra.mxu0 0.0
        %5501 = vmatprep.subr.mxu0 0.0
        %5502 = vmatpush1.xpose.msra.mxu0 0.0
        %5503 = vmatprep.subr.mxu0 0.0
        %5504 = vmatpush1.xpose.msra.mxu0 0.0
        %5505 = vmatprep.subr.mxu0 0.0
        %5506 = vmatpush1.xpose.msra.mxu0 0.0
        %5507 = vmatprep.subr.mxu0 0.0
        %5508 = vmatpush1.xpose.msra.mxu0 0.0
        %5509 = vmatprep.subr.mxu0 0.0
        %5510 = vmatpush1.xpose.msra.mxu0 0.0
        %5511 = vmatprep.subr.mxu0 0.0
        %5512 = vmatpush1.xpose.msra.mxu0 0.0
        %5513 = vmatprep.subr.mxu0 0.0
        %5514 = vmatpush1.xpose.msra.mxu0 0.0
        %5515 = vmatprep.subr.mxu0 0.0
        %5516 = vmatpush1.xpose.msra.mxu0 0.0
        %5517 = vmatprep.subr.mxu0 0.0
        %5518 = vmatpush1.xpose.msra.mxu0 0.0
        %5519 = vmatprep.subr.mxu0 0.0
        %5520 = vmatpush1.xpose.msra.mxu0 0.0
        %5521 = vmatprep.subr.mxu0 0.0
        %5522 = vmatpush1.xpose.msra.mxu0 0.0
        %5523 = vmatprep.subr.mxu0 0.0
        %5524 = vmatpush1.xpose.msra.mxu0 0.0
        %5525 = vmatprep.subr.mxu0 0.0
        %5526 = vmatpush1.xpose.msra.mxu0 0.0
        %5527 = vmatprep.subr.mxu0 0.0
        %5528 = vmatpush1.xpose.msra.mxu0 0.0
        %5529 = vmatprep.subr.mxu0 0.0
        %5530 = vmatpush1.xpose.msra.mxu0 0.0
        %5531 = vmatprep.subr.mxu0 0.0
        %5532 = vmatpush1.xpose.msra.mxu0 0.0
        %5533 = vmatprep.subr.mxu0 0.0
        %5534 = vmatpush1.xpose.msra.mxu0 0.0
        %5535 = vmatprep.subr.mxu0 0.0
        %5536 = vmatpush1.xpose.msra.mxu0 0.0
        %5537 = vmatprep.subr.mxu0 0.0
        %5538 = vmatpush1.xpose.msra.mxu0 0.0
        %5539 = vmatprep.subr.mxu0 0.0
        %5540 = vmatpush1.xpose.msra.mxu0 0.0
        %5541 = vmatprep.subr.mxu0 0.0
        %5542 = vmatpush1.xpose.msra.mxu0 0.0
        %5543 = vmatprep.subr.mxu0 0.0
        %5544 = vmatpush1.xpose.msra.mxu0 0.0
        %5545 = vmatprep.subr.mxu0 0.0
        %5546 = vmatpush1.xpose.msra.mxu0 0.0
        %5547 = vmatprep.subr.mxu0 0.0
        %5548 = vmatpush1.xpose.msra.mxu0 0.0
        %5549 = vmatprep.subr.mxu0 0.0
        %5550 = vmatpush1.xpose.msra.mxu0 0.0
        %5551 = vmatprep.mubr.f32.mxu0 0.0
        %5552 = vmatmul.mubr.f32.gmra.mrb[0].mxu0 %v5483
        %v5553 = vpop.f32.mrb[0].mxu0
        %v5554 = vadd.f32 0.0, %v5553
        %v5555 = vpop.f32.mrb[0].mxu0
        %5556 = vdwg.mxu0
        %v5557 = vmul.f32 %v5554, 0.35355338
        %v5558 = vadd.f32 %v5557, %v3506
        %v5559 = vsel %vm1237, %v5558, -inf
        %5560 = vmax.xlane.f32.xlu0 %v5559
        %v5561 = vpop.xlane.xlu0 %5560
        %v5562 = vsub.f32 %v5558, %v5561
        %v5563 = vmul.f32 %v5562, 1.442695
        %v5564 = vpow.pop %v5563
        %v5565 = vsel %vm1237, %v5564, 0.0
        %5566 = vadd.xlane.f32.xlu0 %v5565
        %v5567 = vpop.xlane.xlu0 %5566
        %v5568 = vrcp.pop %v5567
        %v5569 = vmul.f32 %v5564, %v5568
        %5570 = vrot.lane.b32.xlu0 %v5477, 64
        %v5571 = vpop.permute.xlu0 %5570
        %v5574 = vsel %vm1237, %v5569, 0
        %5576 = vmatprep.subr.mxu0 0.0
        %5577 = vmatpush1.msra.mxu0 %v5571
        %5578 = vmatprep.subr.mxu0 0.0
        %5579 = vmatpush1.msra.mxu0 0.0
        %5580 = vmatprep.subr.mxu0 0.0
        %5581 = vmatpush1.msra.mxu0 0.0
        %5582 = vmatprep.subr.mxu0 0.0
        %5583 = vmatpush1.msra.mxu0 0.0
        %5584 = vmatprep.subr.mxu0 0.0
        %5585 = vmatpush1.msra.mxu0 0.0
        %5586 = vmatprep.subr.mxu0 0.0
        %5587 = vmatpush1.msra.mxu0 0.0
        %5588 = vmatprep.subr.mxu0 0.0
        %5589 = vmatpush1.msra.mxu0 0.0
        %5590 = vmatprep.subr.mxu0 0.0
        %5591 = vmatpush1.msra.mxu0 0.0
        %5592 = vmatprep.subr.mxu0 0.0
        %5593 = vmatpush1.msra.mxu0 0.0
        %5594 = vmatprep.subr.mxu0 0.0
        %5595 = vmatpush1.msra.mxu0 0.0
        %5596 = vmatprep.subr.mxu0 0.0
        %5597 = vmatpush1.msra.mxu0 0.0
        %5598 = vmatprep.subr.mxu0 0.0
        %5599 = vmatpush1.msra.mxu0 0.0
        %5600 = vmatprep.subr.mxu0 0.0
        %5601 = vmatpush1.msra.mxu0 0.0
        %5602 = vmatprep.subr.mxu0 0.0
        %5603 = vmatpush1.msra.mxu0 0.0
        %5604 = vmatprep.subr.mxu0 0.0
        %5605 = vmatpush1.msra.mxu0 0.0
        %5606 = vmatprep.subr.mxu0 0.0
        %5607 = vmatpush1.msra.mxu0 0.0
        %5608 = vmatprep.subr.mxu0 0.0
        %5609 = vmatpush1.msra.mxu0 0.0
        %5610 = vmatprep.subr.mxu0 0.0
        %5611 = vmatpush1.msra.mxu0 0.0
        %5612 = vmatprep.subr.mxu0 0.0
        %5613 = vmatpush1.msra.mxu0 0.0
        %5614 = vmatprep.subr.mxu0 0.0
        %5615 = vmatpush1.msra.mxu0 0.0
        %5616 = vmatprep.subr.mxu0 0.0
        %5617 = vmatpush1.msra.mxu0 0.0
        %5618 = vmatprep.subr.mxu0 0.0
        %5619 = vmatpush1.msra.mxu0 0.0
        %5620 = vmatprep.subr.mxu0 0.0
        %5621 = vmatpush1.msra.mxu0 0.0
        %5622 = vmatprep.subr.mxu0 0.0
        %5623 = vmatpush1.msra.mxu0 0.0
        %5624 = vmatprep.subr.mxu0 0.0
        %5625 = vmatpush1.msra.mxu0 0.0
        %5626 = vmatprep.subr.mxu0 0.0
        %5627 = vmatpush1.msra.mxu0 0.0
        %5628 = vmatprep.subr.mxu0 0.0
        %5629 = vmatpush1.msra.mxu0 0.0
        %5630 = vmatprep.subr.mxu0 0.0
        %5631 = vmatpush1.msra.mxu0 0.0
        %5632 = vmatprep.subr.mxu0 0.0
        %5633 = vmatpush1.msra.mxu0 0.0
        %5634 = vmatprep.subr.mxu0 0.0
        %5635 = vmatpush1.msra.mxu0 0.0
        %5636 = vmatprep.subr.mxu0 0.0
        %5637 = vmatpush1.msra.mxu0 0.0
        %5638 = vmatprep.subr.mxu0 0.0
        %5639 = vmatpush1.msra.mxu0 0.0
        %5640 = vmatprep.mubr.f32.mxu0 0.0
        %5641 = vmatmul.mubr.f32.gmra.mrb[0].mxu0 %v5574
        %v5642 = vpop.f32.mrb[0].mxu0
        %v5643 = vadd.f32 0.0, %v5642
        %v5644 = vpop.f32.mrb[0].mxu0
        %5645 = vdwg.mxu0
        %5646 = vrot.lane.b32.xlu0 %v5477, 120
        %v5647 = vpop.permute.xlu0 %5646
        %5648 = vrot.lane.b32.xlu0 %v5477, 88
        %v5649 = vpop.permute.xlu0 %5648
        %v5650 = vsel %vm1237, %v5647, 0
        %v5652 = vsel %vm1237, %v5649, 0
        %5654 = vmatprep.subr.mxu0 0.0
        %5655 = vmatpush1.xpose.msra.mxu0 %v5652
        %5656 = vmatprep.subr.mxu0 0.0
        %5657 = vmatpush1.xpose.msra.mxu0 0.0
        %5658 = vmatprep.subr.mxu0 0.0
        %5659 = vmatpush1.xpose.msra.mxu0 0.0
        %5660 = vmatprep.subr.mxu0 0.0
        %5661 = vmatpush1.xpose.msra.mxu0 0.0
        %5662 = vmatprep.subr.mxu0 0.0
        %5663 = vmatpush1.xpose.msra.mxu0 0.0
        %5664 = vmatprep.subr.mxu0 0.0
        %5665 = vmatpush1.xpose.msra.mxu0 0.0
        %5666 = vmatprep.subr.mxu0 0.0
        %5667 = vmatpush1.xpose.msra.mxu0 0.0
        %5668 = vmatprep.subr.mxu0 0.0
        %5669 = vmatpush1.xpose.msra.mxu0 0.0
        %5670 = vmatprep.subr.mxu0 0.0
        %5671 = vmatpush1.xpose.msra.mxu0 0.0
        %5672 = vmatprep.subr.mxu0 0.0
        %5673 = vmatpush1.xpose.msra.mxu0 0.0
        %5674 = vmatprep.subr.mxu0 0.0
        %5675 = vmatpush1.xpose.msra.mxu0 0.0
        %5676 = vmatprep.subr.mxu0 0.0
        %5677 = vmatpush1.xpose.msra.mxu0 0.0
        %5678 = vmatprep.subr.mxu0 0.0
        %5679 = vmatpush1.xpose.msra.mxu0 0.0
        %5680 = vmatprep.subr.mxu0 0.0
        %5681 = vmatpush1.xpose.msra.mxu0 0.0
        %5682 = vmatprep.subr.mxu0 0.0
        %5683 = vmatpush1.xpose.msra.mxu0 0.0
        %5684 = vmatprep.subr.mxu0 0.0
        %5685 = vmatpush1.xpose.msra.mxu0 0.0
        %5686 = vmatprep.subr.mxu0 0.0
        %5687 = vmatpush1.xpose.msra.mxu0 0.0
        %5688 = vmatprep.subr.mxu0 0.0
        %5689 = vmatpush1.xpose.msra.mxu0 0.0
        %5690 = vmatprep.subr.mxu0 0.0
        %5691 = vmatpush1.xpose.msra.mxu0 0.0
        %5692 = vmatprep.subr.mxu0 0.0
        %5693 = vmatpush1.xpose.msra.mxu0 0.0
        %5694 = vmatprep.subr.mxu0 0.0
        %5695 = vmatpush1.xpose.msra.mxu0 0.0
        %5696 = vmatprep.subr.mxu0 0.0
        %5697 = vmatpush1.xpose.msra.mxu0 0.0
        %5698 = vmatprep.subr.mxu0 0.0
        %5699 = vmatpush1.xpose.msra.mxu0 0.0
        %5700 = vmatprep.subr.mxu0 0.0
        %5701 = vmatpush1.xpose.msra.mxu0 0.0
        %5702 = vmatprep.subr.mxu0 0.0
        %5703 = vmatpush1.xpose.msra.mxu0 0.0
        %5704 = vmatprep.subr.mxu0 0.0
        %5705 = vmatpush1.xpose.msra.mxu0 0.0
        %5706 = vmatprep.subr.mxu0 0.0
        %5707 = vmatpush1.xpose.msra.mxu0 0.0
        %5708 = vmatprep.subr.mxu0 0.0
        %5709 = vmatpush1.xpose.msra.mxu0 0.0
        %5710 = vmatprep.subr.mxu0 0.0
        %5711 = vmatpush1.xpose.msra.mxu0 0.0
        %5712 = vmatprep.subr.mxu0 0.0
        %5713 = vmatpush1.xpose.msra.mxu0 0.0
        %5714 = vmatprep.subr.mxu0 0.0
        %5715 = vmatpush1.xpose.msra.mxu0 0.0
        %5716 = vmatprep.subr.mxu0 0.0
        %5717 = vmatpush1.xpose.msra.mxu0 0.0
        %5718 = vmatprep.mubr.f32.mxu0 0.0
        %5719 = vmatmul.mubr.f32.gmra.mrb[0].mxu0 %v5650
        %v5720 = vpop.f32.mrb[0].mxu0
        %v5721 = vadd.f32 0.0, %v5720
        %v5722 = vpop.f32.mrb[0].mxu0
        %5723 = vdwg.mxu0
        %v5724 = vmul.f32 %v5721, 0.35355338
        %v5725 = vadd.f32 %v5724, %v3506
        %v5726 = vsel %vm1237, %v5725, -inf
        %5727 = vmax.xlane.f32.xlu0 %v5726
        %v5728 = vpop.xlane.xlu0 %5727
        %v5729 = vsub.f32 %v5725, %v5728
        %v5730 = vmul.f32 %v5729, 1.442695
        %v5731 = vpow.pop %v5730
        %v5732 = vsel %vm1237, %v5731, 0.0
        %5733 = vadd.xlane.f32.xlu0 %v5732
        %v5734 = vpop.xlane.xlu0 %5733
        %v5735 = vrcp.pop %v5734
        %v5736 = vmul.f32 %v5731, %v5735
        %5737 = vrot.lane.b32.xlu0 %v5477, 56
        %v5738 = vpop.permute.xlu0 %5737
        %v5741 = vsel %vm1237, %v5736, 0
        %5743 = vmatprep.subr.mxu0 0.0
        %5744 = vmatpush1.msra.mxu0 %v5738
        %5745 = vmatprep.subr.mxu0 0.0
        %5746 = vmatpush1.msra.mxu0 0.0
        %5747 = vmatprep.subr.mxu0 0.0
        %5748 = vmatpush1.msra.mxu0 0.0
        %5749 = vmatprep.subr.mxu0 0.0
        %5750 = vmatpush1.msra.mxu0 0.0
        %5751 = vmatprep.subr.mxu0 0.0
        %5752 = vmatpush1.msra.mxu0 0.0
        %5753 = vmatprep.subr.mxu0 0.0
        %5754 = vmatpush1.msra.mxu0 0.0
        %5755 = vmatprep.subr.mxu0 0.0
        %5756 = vmatpush1.msra.mxu0 0.0
        %5757 = vmatprep.subr.mxu0 0.0
        %5758 = vmatpush1.msra.mxu0 0.0
        %5759 = vmatprep.subr.mxu0 0.0
        %5760 = vmatpush1.msra.mxu0 0.0
        %5761 = vmatprep.subr.mxu0 0.0
        %5762 = vmatpush1.msra.mxu0 0.0
        %5763 = vmatprep.subr.mxu0 0.0
        %5764 = vmatpush1.msra.mxu0 0.0
        %5765 = vmatprep.subr.mxu0 0.0
        %5766 = vmatpush1.msra.mxu0 0.0
        %5767 = vmatprep.subr.mxu0 0.0
        %5768 = vmatpush1.msra.mxu0 0.0
        %5769 = vmatprep.subr.mxu0 0.0
        %5770 = vmatpush1.msra.mxu0 0.0
        %5771 = vmatprep.subr.mxu0 0.0
        %5772 = vmatpush1.msra.mxu0 0.0
        %5773 = vmatprep.subr.mxu0 0.0
        %5774 = vmatpush1.msra.mxu0 0.0
        %5775 = vmatprep.subr.mxu0 0.0
        %5776 = vmatpush1.msra.mxu0 0.0
        %5777 = vmatprep.subr.mxu0 0.0
        %5778 = vmatpush1.msra.mxu0 0.0
        %5779 = vmatprep.subr.mxu0 0.0
        %5780 = vmatpush1.msra.mxu0 0.0
        %5781 = vmatprep.subr.mxu0 0.0
        %5782 = vmatpush1.msra.mxu0 0.0
        %5783 = vmatprep.subr.mxu0 0.0
        %5784 = vmatpush1.msra.mxu0 0.0
        %5785 = vmatprep.subr.mxu0 0.0
        %5786 = vmatpush1.msra.mxu0 0.0
        %5787 = vmatprep.subr.mxu0 0.0
        %5788 = vmatpush1.msra.mxu0 0.0
        %5789 = vmatprep.subr.mxu0 0.0
        %5790 = vmatpush1.msra.mxu0 0.0
        %5791 = vmatprep.subr.mxu0 0.0
        %5792 = vmatpush1.msra.mxu0 0.0
        %5793 = vmatprep.subr.mxu0 0.0
        %5794 = vmatpush1.msra.mxu0 0.0
        %5795 = vmatprep.subr.mxu0 0.0
        %5796 = vmatpush1.msra.mxu0 0.0
        %5797 = vmatprep.subr.mxu0 0.0
        %5798 = vmatpush1.msra.mxu0 0.0
        %5799 = vmatprep.subr.mxu0 0.0
        %5800 = vmatpush1.msra.mxu0 0.0
        %5801 = vmatprep.subr.mxu0 0.0
        %5802 = vmatpush1.msra.mxu0 0.0
        %5803 = vmatprep.subr.mxu0 0.0
        %5804 = vmatpush1.msra.mxu0 0.0
        %5805 = vmatprep.subr.mxu0 0.0
        %5806 = vmatpush1.msra.mxu0 0.0
        %5807 = vmatprep.mubr.f32.mxu0 0.0
        %5808 = vmatmul.mubr.f32.gmra.mrb[0].mxu0 %v5741
        %v5809 = vpop.f32.mrb[0].mxu0
        %v5810 = vadd.f32 0.0, %v5809
        %v5811 = vpop.f32.mrb[0].mxu0
        %5812 = vdwg.mxu0
        %5813 = vrot.lane.b32.xlu0 %v5477, 112
        %v5814 = vpop.permute.xlu0 %5813
        %5815 = vrot.lane.b32.xlu0 %v5477, 80
        %v5816 = vpop.permute.xlu0 %5815
        %v5817 = vsel %vm1237, %v5814, 0
        %v5819 = vsel %vm1237, %v5816, 0
        %5821 = vmatprep.subr.mxu0 0.0
        %5822 = vmatpush1.xpose.msra.mxu0 %v5819
        %5823 = vmatprep.subr.mxu0 0.0
        %5824 = vmatpush1.xpose.msra.mxu0 0.0
        %5825 = vmatprep.subr.mxu0 0.0
        %5826 = vmatpush1.xpose.msra.mxu0 0.0
        %5827 = vmatprep.subr.mxu0 0.0
        %5828 = vmatpush1.xpose.msra.mxu0 0.0
        %5829 = vmatprep.subr.mxu0 0.0
        %5830 = vmatpush1.xpose.msra.mxu0 0.0
        %5831 = vmatprep.subr.mxu0 0.0
        %5832 = vmatpush1.xpose.msra.mxu0 0.0
        %5833 = vmatprep.subr.mxu0 0.0
        %5834 = vmatpush1.xpose.msra.mxu0 0.0
        %5835 = vmatprep.subr.mxu0 0.0
        %5836 = vmatpush1.xpose.msra.mxu0 0.0
        %5837 = vmatprep.subr.mxu0 0.0
        %5838 = vmatpush1.xpose.msra.mxu0 0.0
        %5839 = vmatprep.subr.mxu0 0.0
        %5840 = vmatpush1.xpose.msra.mxu0 0.0
        %5841 = vmatprep.subr.mxu0 0.0
        %5842 = vmatpush1.xpose.msra.mxu0 0.0
        %5843 = vmatprep.subr.mxu0 0.0
        %5844 = vmatpush1.xpose.msra.mxu0 0.0
        %5845 = vmatprep.subr.mxu0 0.0
        %5846 = vmatpush1.xpose.msra.mxu0 0.0
        %5847 = vmatprep.subr.mxu0 0.0
        %5848 = vmatpush1.xpose.msra.mxu0 0.0
        %5849 = vmatprep.subr.mxu0 0.0
        %5850 = vmatpush1.xpose.msra.mxu0 0.0
        %5851 = vmatprep.subr.mxu0 0.0
        %5852 = vmatpush1.xpose.msra.mxu0 0.0
        %5853 = vmatprep.subr.mxu0 0.0
        %5854 = vmatpush1.xpose.msra.mxu0 0.0
        %5855 = vmatprep.subr.mxu0 0.0
        %5856 = vmatpush1.xpose.msra.mxu0 0.0
        %5857 = vmatprep.subr.mxu0 0.0
        %5858 = vmatpush1.xpose.msra.mxu0 0.0
        %5859 = vmatprep.subr.mxu0 0.0
        %5860 = vmatpush1.xpose.msra.mxu0 0.0
        %5861 = vmatprep.subr.mxu0 0.0
        %5862 = vmatpush1.xpose.msra.mxu0 0.0
        %5863 = vmatprep.subr.mxu0 0.0
        %5864 = vmatpush1.xpose.msra.mxu0 0.0
        %5865 = vmatprep.subr.mxu0 0.0
        %5866 = vmatpush1.xpose.msra.mxu0 0.0
        %5867 = vmatprep.subr.mxu0 0.0
        %5868 = vmatpush1.xpose.msra.mxu0 0.0
        %5869 = vmatprep.subr.mxu0 0.0
        %5870 = vmatpush1.xpose.msra.mxu0 0.0
        %5871 = vmatprep.subr.mxu0 0.0
        %5872 = vmatpush1.xpose.msra.mxu0 0.0
        %5873 = vmatprep.subr.mxu0 0.0
        %5874 = vmatpush1.xpose.msra.mxu0 0.0
        %5875 = vmatprep.subr.mxu0 0.0
        %5876 = vmatpush1.xpose.msra.mxu0 0.0
        %5877 = vmatprep.subr.mxu0 0.0
        %5878 = vmatpush1.xpose.msra.mxu0 0.0
        %5879 = vmatprep.subr.mxu0 0.0
        %5880 = vmatpush1.xpose.msra.mxu0 0.0
        %5881 = vmatprep.subr.mxu0 0.0
        %5882 = vmatpush1.xpose.msra.mxu0 0.0
        %5883 = vmatprep.subr.mxu0 0.0
        %5884 = vmatpush1.xpose.msra.mxu0 0.0
        %5885 = vmatprep.mubr.f32.mxu0 0.0
        %5886 = vmatmul.mubr.f32.gmra.mrb[0].mxu0 %v5817
        %v5887 = vpop.f32.mrb[0].mxu0
        %v5888 = vadd.f32 0.0, %v5887
        %v5889 = vpop.f32.mrb[0].mxu0
        %5890 = vdwg.mxu0
        %v5891 = vmul.f32 %v5888, 0.35355338
        %v5892 = vadd.f32 %v5891, %v3506
        %v5893 = vsel %vm1237, %v5892, -inf
        %5894 = vmax.xlane.f32.xlu0 %v5893
        %v5895 = vpop.xlane.xlu0 %5894
        %v5896 = vsub.f32 %v5892, %v5895
        %v5897 = vmul.f32 %v5896, 1.442695
        %v5898 = vpow.pop %v5897
        %v5899 = vsel %vm1237, %v5898, 0.0
        %5900 = vadd.xlane.f32.xlu0 %v5899
        %v5901 = vpop.xlane.xlu0 %5900
        %v5902 = vrcp.pop %v5901
        %v5903 = vmul.f32 %v5898, %v5902
        %5904 = vrot.lane.b32.xlu0 %v5477, 48
        %v5905 = vpop.permute.xlu0 %5904
        %v5908 = vsel %vm1237, %v5903, 0
        %5910 = vmatprep.subr.mxu0 0.0
        %5911 = vmatpush1.msra.mxu0 %v5905
        %5912 = vmatprep.subr.mxu0 0.0
        %5913 = vmatpush1.msra.mxu0 0.0
        %5914 = vmatprep.subr.mxu0 0.0
        %5915 = vmatpush1.msra.mxu0 0.0
        %5916 = vmatprep.subr.mxu0 0.0
        %5917 = vmatpush1.msra.mxu0 0.0
        %5918 = vmatprep.subr.mxu0 0.0
        %5919 = vmatpush1.msra.mxu0 0.0
        %5920 = vmatprep.subr.mxu0 0.0
        %5921 = vmatpush1.msra.mxu0 0.0
        %5922 = vmatprep.subr.mxu0 0.0
        %5923 = vmatpush1.msra.mxu0 0.0
        %5924 = vmatprep.subr.mxu0 0.0
        %5925 = vmatpush1.msra.mxu0 0.0
        %5926 = vmatprep.subr.mxu0 0.0
        %5927 = vmatpush1.msra.mxu0 0.0
        %5928 = vmatprep.subr.mxu0 0.0
        %5929 = vmatpush1.msra.mxu0 0.0
        %5930 = vmatprep.subr.mxu0 0.0
        %5931 = vmatpush1.msra.mxu0 0.0
        %5932 = vmatprep.subr.mxu0 0.0
        %5933 = vmatpush1.msra.mxu0 0.0
        %5934 = vmatprep.subr.mxu0 0.0
        %5935 = vmatpush1.msra.mxu0 0.0
        %5936 = vmatprep.subr.mxu0 0.0
        %5937 = vmatpush1.msra.mxu0 0.0
        %5938 = vmatprep.subr.mxu0 0.0
        %5939 = vmatpush1.msra.mxu0 0.0
        %5940 = vmatprep.subr.mxu0 0.0
        %5941 = vmatpush1.msra.mxu0 0.0
        %5942 = vmatprep.subr.mxu0 0.0
        %5943 = vmatpush1.msra.mxu0 0.0
        %5944 = vmatprep.subr.mxu0 0.0
        %5945 = vmatpush1.msra.mxu0 0.0
        %5946 = vmatprep.subr.mxu0 0.0
        %5947 = vmatpush1.msra.mxu0 0.0
        %5948 = vmatprep.subr.mxu0 0.0
        %5949 = vmatpush1.msra.mxu0 0.0
        %5950 = vmatprep.subr.mxu0 0.0
        %5951 = vmatpush1.msra.mxu0 0.0
        %5952 = vmatprep.subr.mxu0 0.0
        %5953 = vmatpush1.msra.mxu0 0.0
        %5954 = vmatprep.subr.mxu0 0.0
        %5955 = vmatpush1.msra.mxu0 0.0
        %5956 = vmatprep.subr.mxu0 0.0
        %5957 = vmatpush1.msra.mxu0 0.0
        %5958 = vmatprep.subr.mxu0 0.0
        %5959 = vmatpush1.msra.mxu0 0.0
        %5960 = vmatprep.subr.mxu0 0.0
        %5961 = vmatpush1.msra.mxu0 0.0
        %5962 = vmatprep.subr.mxu0 0.0
        %5963 = vmatpush1.msra.mxu0 0.0
        %5964 = vmatprep.subr.mxu0 0.0
        %5965 = vmatpush1.msra.mxu0 0.0
        %5966 = vmatprep.subr.mxu0 0.0
        %5967 = vmatpush1.msra.mxu0 0.0
        %5968 = vmatprep.subr.mxu0 0.0
        %5969 = vmatpush1.msra.mxu0 0.0
        %5970 = vmatprep.subr.mxu0 0.0
        %5971 = vmatpush1.msra.mxu0 0.0
        %5972 = vmatprep.subr.mxu0 0.0
        %5973 = vmatpush1.msra.mxu0 0.0
        %5974 = vmatprep.mubr.f32.mxu0 0.0
        %5975 = vmatmul.mubr.f32.gmra.mrb[0].mxu0 %v5908
        %v5976 = vpop.f32.mrb[0].mxu0
        %v5977 = vadd.f32 0.0, %v5976
        %v5978 = vpop.f32.mrb[0].mxu0
        %5979 = vdwg.mxu0
        %5980 = vrot.lane.b32.xlu0 %v5477, 104
        %v5981 = vpop.permute.xlu0 %5980
        %5982 = vrot.lane.b32.xlu0 %v5477, 72
        %v5983 = vpop.permute.xlu0 %5982
        %v5984 = vsel %vm1237, %v5981, 0
        %v5986 = vsel %vm1237, %v5983, 0
        %5988 = vmatprep.subr.mxu0 0.0
        %5989 = vmatpush1.xpose.msra.mxu0 %v5986
        %5990 = vmatprep.subr.mxu0 0.0
        %5991 = vmatpush1.xpose.msra.mxu0 0.0
        %5992 = vmatprep.subr.mxu0 0.0
        %5993 = vmatpush1.xpose.msra.mxu0 0.0
        %5994 = vmatprep.subr.mxu0 0.0
        %5995 = vmatpush1.xpose.msra.mxu0 0.0
        %5996 = vmatprep.subr.mxu0 0.0
        %5997 = vmatpush1.xpose.msra.mxu0 0.0
        %5998 = vmatprep.subr.mxu0 0.0
        %5999 = vmatpush1.xpose.msra.mxu0 0.0
        %6000 = vmatprep.subr.mxu0 0.0
        %6001 = vmatpush1.xpose.msra.mxu0 0.0
        %6002 = vmatprep.subr.mxu0 0.0
        %6003 = vmatpush1.xpose.msra.mxu0 0.0
        %6004 = vmatprep.subr.mxu0 0.0
        %6005 = vmatpush1.xpose.msra.mxu0 0.0
        %6006 = vmatprep.subr.mxu0 0.0
        %6007 = vmatpush1.xpose.msra.mxu0 0.0
        %6008 = vmatprep.subr.mxu0 0.0
        %6009 = vmatpush1.xpose.msra.mxu0 0.0
        %6010 = vmatprep.subr.mxu0 0.0
        %6011 = vmatpush1.xpose.msra.mxu0 0.0
        %6012 = vmatprep.subr.mxu0 0.0
        %6013 = vmatpush1.xpose.msra.mxu0 0.0
        %6014 = vmatprep.subr.mxu0 0.0
        %6015 = vmatpush1.xpose.msra.mxu0 0.0
        %6016 = vmatprep.subr.mxu0 0.0
        %6017 = vmatpush1.xpose.msra.mxu0 0.0
        %6018 = vmatprep.subr.mxu0 0.0
        %6019 = vmatpush1.xpose.msra.mxu0 0.0
        %6020 = vmatprep.subr.mxu0 0.0
        %6021 = vmatpush1.xpose.msra.mxu0 0.0
        %6022 = vmatprep.subr.mxu0 0.0
        %6023 = vmatpush1.xpose.msra.mxu0 0.0
        %6024 = vmatprep.subr.mxu0 0.0
        %6025 = vmatpush1.xpose.msra.mxu0 0.0
        %6026 = vmatprep.subr.mxu0 0.0
        %6027 = vmatpush1.xpose.msra.mxu0 0.0
        %6028 = vmatprep.subr.mxu0 0.0
        %6029 = vmatpush1.xpose.msra.mxu0 0.0
        %6030 = vmatprep.subr.mxu0 0.0
        %6031 = vmatpush1.xpose.msra.mxu0 0.0
        %6032 = vmatprep.subr.mxu0 0.0
        %6033 = vmatpush1.xpose.msra.mxu0 0.0
        %6034 = vmatprep.subr.mxu0 0.0
        %6035 = vmatpush1.xpose.msra.mxu0 0.0
        %6036 = vmatprep.subr.mxu0 0.0
        %6037 = vmatpush1.xpose.msra.mxu0 0.0
        %6038 = vmatprep.subr.mxu0 0.0
        %6039 = vmatpush1.xpose.msra.mxu0 0.0
        %6040 = vmatprep.subr.mxu0 0.0
        %6041 = vmatpush1.xpose.msra.mxu0 0.0
        %6042 = vmatprep.subr.mxu0 0.0
        %6043 = vmatpush1.xpose.msra.mxu0 0.0
        %6044 = vmatprep.subr.mxu0 0.0
        %6045 = vmatpush1.xpose.msra.mxu0 0.0
        %6046 = vmatprep.subr.mxu0 0.0
        %6047 = vmatpush1.xpose.msra.mxu0 0.0
        %6048 = vmatprep.subr.mxu0 0.0
        %6049 = vmatpush1.xpose.msra.mxu0 0.0
        %6050 = vmatprep.subr.mxu0 0.0
        %6051 = vmatpush1.xpose.msra.mxu0 0.0
        %6052 = vmatprep.mubr.f32.mxu0 0.0
        %6053 = vmatmul.mubr.f32.gmra.mrb[0].mxu0 %v5984
        %v6054 = vpop.f32.mrb[0].mxu0
        %v6055 = vadd.f32 0.0, %v6054
        %v6056 = vpop.f32.mrb[0].mxu0
        %6057 = vdwg.mxu0
        %v6058 = vmul.f32 %v6055, 0.35355338
        %v6059 = vadd.f32 %v6058, %v3506
        %v6060 = vsel %vm1237, %v6059, -inf
        %6061 = vmax.xlane.f32.xlu0 %v6060
        %v6062 = vpop.xlane.xlu0 %6061
        %v6063 = vsub.f32 %v6059, %v6062
        %v6064 = vmul.f32 %v6063, 1.442695
        %v6065 = vpow.pop %v6064
        %v6066 = vsel %vm1237, %v6065, 0.0
        %6067 = vadd.xlane.f32.xlu0 %v6066
        %v6068 = vpop.xlane.xlu0 %6067
        %v6069 = vrcp.pop %v6068
        %v6070 = vmul.f32 %v6065, %v6069
        %6071 = vrot.lane.b32.xlu0 %v5477, 40
        %v6072 = vpop.permute.xlu0 %6071
        %v6075 = vsel %vm1237, %v6070, 0
        %6077 = vmatprep.subr.mxu0 0.0
        %6078 = vmatpush1.msra.mxu0 %v6072
        %6079 = vmatprep.subr.mxu0 0.0
        %6080 = vmatpush1.msra.mxu0 0.0
        %6081 = vmatprep.subr.mxu0 0.0
        %6082 = vmatpush1.msra.mxu0 0.0
        %6083 = vmatprep.subr.mxu0 0.0
        %6084 = vmatpush1.msra.mxu0 0.0
        %6085 = vmatprep.subr.mxu0 0.0
        %6086 = vmatpush1.msra.mxu0 0.0
        %6087 = vmatprep.subr.mxu0 0.0
        %6088 = vmatpush1.msra.mxu0 0.0
        %6089 = vmatprep.subr.mxu0 0.0
        %6090 = vmatpush1.msra.mxu0 0.0
        %6091 = vmatprep.subr.mxu0 0.0
        %6092 = vmatpush1.msra.mxu0 0.0
        %6093 = vmatprep.subr.mxu0 0.0
        %6094 = vmatpush1.msra.mxu0 0.0
        %6095 = vmatprep.subr.mxu0 0.0
        %6096 = vmatpush1.msra.mxu0 0.0
        %6097 = vmatprep.subr.mxu0 0.0
        %6098 = vmatpush1.msra.mxu0 0.0
        %6099 = vmatprep.subr.mxu0 0.0
        %6100 = vmatpush1.msra.mxu0 0.0
        %6101 = vmatprep.subr.mxu0 0.0
        %6102 = vmatpush1.msra.mxu0 0.0
        %6103 = vmatprep.subr.mxu0 0.0
        %6104 = vmatpush1.msra.mxu0 0.0
        %6105 = vmatprep.subr.mxu0 0.0
        %6106 = vmatpush1.msra.mxu0 0.0
        %6107 = vmatprep.subr.mxu0 0.0
        %6108 = vmatpush1.msra.mxu0 0.0
        %6109 = vmatprep.subr.mxu0 0.0
        %6110 = vmatpush1.msra.mxu0 0.0
        %6111 = vmatprep.subr.mxu0 0.0
        %6112 = vmatpush1.msra.mxu0 0.0
        %6113 = vmatprep.subr.mxu0 0.0
        %6114 = vmatpush1.msra.mxu0 0.0
        %6115 = vmatprep.subr.mxu0 0.0
        %6116 = vmatpush1.msra.mxu0 0.0
        %6117 = vmatprep.subr.mxu0 0.0
        %6118 = vmatpush1.msra.mxu0 0.0
        %6119 = vmatprep.subr.mxu0 0.0
        %6120 = vmatpush1.msra.mxu0 0.0
        %6121 = vmatprep.subr.mxu0 0.0
        %6122 = vmatpush1.msra.mxu0 0.0
        %6123 = vmatprep.subr.mxu0 0.0
        %6124 = vmatpush1.msra.mxu0 0.0
        %6125 = vmatprep.subr.mxu0 0.0
        %6126 = vmatpush1.msra.mxu0 0.0
        %6127 = vmatprep.subr.mxu0 0.0
        %6128 = vmatpush1.msra.mxu0 0.0
        %6129 = vmatprep.subr.mxu0 0.0
        %6130 = vmatpush1.msra.mxu0 0.0
        %6131 = vmatprep.subr.mxu0 0.0
        %6132 = vmatpush1.msra.mxu0 0.0
        %6133 = vmatprep.subr.mxu0 0.0
        %6134 = vmatpush1.msra.mxu0 0.0
        %6135 = vmatprep.subr.mxu0 0.0
        %6136 = vmatpush1.msra.mxu0 0.0
        %6137 = vmatprep.subr.mxu0 0.0
        %6138 = vmatpush1.msra.mxu0 0.0
        %6139 = vmatprep.subr.mxu0 0.0
        %6140 = vmatpush1.msra.mxu0 0.0
        %6141 = vmatprep.mubr.f32.mxu0 0.0
        %6142 = vmatmul.mubr.f32.gmra.mrb[0].mxu0 %v6075
        %v6143 = vpop.f32.mrb[0].mxu0
        %v6144 = vadd.f32 0.0, %v6143
        %v6145 = vpop.f32.mrb[0].mxu0
        %6146 = vdwg.mxu0
        %6148 = vrot.lane.b32.xlu0 %v5810, 8
        %v6149 = vpop.permute.xlu0 %6148
        %6152 = vrot.lane.b32.xlu0 %v5977, 16
        %v6153 = vpop.permute.xlu0 %6152
        %6156 = vrot.lane.b32.xlu0 %v6144, 24
        %v6157 = vpop.permute.xlu0 %6156
        %v6159 = vsel %vm1237, %v5643, %v6149
        %v6160 = vsel %vm1921, %v6159, %v6153
        %v6161 = vsel %vm1923, %v6160, %v6157
        %v6163 = vlaneseq
        %v6164 = vshrl.u32 %v6163, 7
        %v6165 = vsub.s32 0, %v6164
        %v6166 = vrot.slane %v5400, %v6165
        %v6169 = vsel %vm1160, %v6161, 0
        %6171 = vmatprep.subr.mxu0 0.0
        %6172 = vmatpush1.msra.mxu0 %v5395
        %6173 = vmatprep.subr.mxu0 0.0
        %6174 = vmatpush1.msra.mxu0 %v5396
        %6175 = vmatprep.subr.mxu0 0.0
        %6176 = vmatpush1.msra.mxu0 %v5397
        %6177 = vmatprep.subr.mxu0 0.0
        %6178 = vmatpush1.msra.mxu0 %v5398
        %6179 = vmatprep.subr.mxu0 0.0
        %6180 = vmatpush1.msra.mxu0 0.0
        %6181 = vmatprep.subr.mxu0 0.0
        %6182 = vmatpush1.msra.mxu0 0.0
        %6183 = vmatprep.subr.mxu0 0.0
        %6184 = vmatpush1.msra.mxu0 0.0
        %6185 = vmatprep.subr.mxu0 0.0
        %6186 = vmatpush1.msra.mxu0 0.0
        %6187 = vmatprep.subr.mxu0 0.0
        %6188 = vmatpush1.msra.mxu0 0.0
        %6189 = vmatprep.subr.mxu0 0.0
        %6190 = vmatpush1.msra.mxu0 0.0
        %6191 = vmatprep.subr.mxu0 0.0
        %6192 = vmatpush1.msra.mxu0 0.0
        %6193 = vmatprep.subr.mxu0 0.0
        %6194 = vmatpush1.msra.mxu0 0.0
        %6195 = vmatprep.subr.mxu0 0.0
        %6196 = vmatpush1.msra.mxu0 0.0
        %6197 = vmatprep.subr.mxu0 0.0
        %6198 = vmatpush1.msra.mxu0 0.0
        %6199 = vmatprep.subr.mxu0 0.0
        %6200 = vmatpush1.msra.mxu0 0.0
        %6201 = vmatprep.subr.mxu0 0.0
        %6202 = vmatpush1.msra.mxu0 0.0
        %6203 = vmatprep.subr.mxu0 0.0
        %6204 = vmatpush1.msra.mxu0 0.0
        %6205 = vmatprep.subr.mxu0 0.0
        %6206 = vmatpush1.msra.mxu0 0.0
        %6207 = vmatprep.subr.mxu0 0.0
        %6208 = vmatpush1.msra.mxu0 0.0
        %6209 = vmatprep.subr.mxu0 0.0
        %6210 = vmatpush1.msra.mxu0 0.0
        %6211 = vmatprep.subr.mxu0 0.0
        %6212 = vmatpush1.msra.mxu0 0.0
        %6213 = vmatprep.subr.mxu0 0.0
        %6214 = vmatpush1.msra.mxu0 0.0
        %6215 = vmatprep.subr.mxu0 0.0
        %6216 = vmatpush1.msra.mxu0 0.0
        %6217 = vmatprep.subr.mxu0 0.0
        %6218 = vmatpush1.msra.mxu0 0.0
        %6219 = vmatprep.subr.mxu0 0.0
        %6220 = vmatpush1.msra.mxu0 0.0
        %6221 = vmatprep.subr.mxu0 0.0
        %6222 = vmatpush1.msra.mxu0 0.0
        %6223 = vmatprep.subr.mxu0 0.0
        %6224 = vmatpush1.msra.mxu0 0.0
        %6225 = vmatprep.subr.mxu0 0.0
        %6226 = vmatpush1.msra.mxu0 0.0
        %6227 = vmatprep.subr.mxu0 0.0
        %6228 = vmatpush1.msra.mxu0 0.0
        %6229 = vmatprep.subr.mxu0 0.0
        %6230 = vmatpush1.msra.mxu0 0.0
        %6231 = vmatprep.subr.mxu0 0.0
        %6232 = vmatpush1.msra.mxu0 0.0
        %6233 = vmatprep.subr.mxu0 0.0
        %6234 = vmatpush1.msra.mxu0 0.0
        %6235 = vmatprep.mubr.f32.mxu0 0.0
        %6236 = vmatmul.mubr.f32.gmra.mrb[0].mxu0 %v6169
        %v6237 = vpop.f32.mrb[0].mxu0
        %v6238 = vadd.f32 %v6166, %v6237
        %v6239 = vpop.f32.mrb[0].mxu0
        %6240 = vdwg.mxu0
        %s6241 = scalar_lea.vmem %s41, 1
        %v6242 = vld [vmem:[%s6241] sm:$0x1]
        %s6243 = scalar_lea.vmem %s43, 1
        %v6244 = vld [vmem:[%s6243] sm:$0x1]
        %v6245 = vadd.f32 %v5386, %v6238
        %v6246 = vsel %vm1160, %v6245, 0.0
        %6247 = vadd.xlane.f32.xlu0 %v6246
        %v6248 = vpop.xlane.xlu0 %6247
        %v6249 = vmul.f32 %v6248, %v2010
        %v6250 = vsub.f32 %v6245, %v6249
        %v6251 = vmul.f32 %v6250, %v6250
        %v6252 = vsel %vm1160, %v6251, 0.0
        %6253 = vadd.xlane.f32.xlu0 %v6252
        %v6254 = vpop.xlane.xlu0 %6253
        %v6255 = vmul.f32 %v6254, %v2010
        %v6256 = vadd.f32 %v6255, 1e-05
        %v6257 = vrsqrt.pop %v6256
        %v6258 = vmul.f32 %v6250, %v6257
        %v6260 = vlaneseq
        %v6261 = vshrl.u32 %v6260, 7
        %v6262 = vsub.s32 0, %v6261
        %v6263 = vrot.slane %v6242, %v6262
        %v6265 = vmul.f32 %v6258, %v6263
        %v6267 = vlaneseq
        %v6268 = vshrl.u32 %v6267, 7
        %v6269 = vsub.s32 0, %v6268
        %v6270 = vrot.slane %v6244, %v6269
        %v6272 = vadd.f32 %v6265, %v6270
        %s6273 = scalar_lea.vmem %s45, 32
        %v6274 = vld [vmem:[%s6273] sm:$0xff]
        %v6275 = vld [vmem:[%s6273 + $0x8] sm:$0xff]
        %v6276 = vld [vmem:[%s6273 + $0x10] sm:$0xff]
        %v6277 = vld [vmem:[%s6273 + $0x18] sm:$0xff]
        %s6278 = scalar_lea.vmem %s47, 1
        %v6279 = vld [vmem:[%s6278] sm:$0x1]
        %s6280 = scalar_lea.vmem %s49, 32
        %v6281 = vld [vmem:[%s6280] sm:$0xff]
        %v6282 = vld [vmem:[%s6280 + $0x8] sm:$0xff]
        %v6283 = vld [vmem:[%s6280 + $0x10] sm:$0xff]
        %v6284 = vld [vmem:[%s6280 + $0x18] sm:$0xff]
        %s6285 = scalar_lea.vmem %s51, 1
        %v6286 = vld [vmem:[%s6285] sm:$0x1]
        %s6287 = scalar_lea.vmem %s53, 32
        %v6288 = vld [vmem:[%s6287] sm:$0xff]
        %v6289 = vld [vmem:[%s6287 + $0x8] sm:$0xff]
        %v6290 = vld [vmem:[%s6287 + $0x10] sm:$0xff]
        %v6291 = vld [vmem:[%s6287 + $0x18] sm:$0xff]
        %s6292 = scalar_lea.vmem %s55, 1
        %v6293 = vld [vmem:[%s6292] sm:$0x1]
        %v6295 = vlaneseq
        %v6296 = vshrl.u32 %v6295, 7
        %v6297 = vsub.s32 0, %v6296
        %v6298 = vrot.slane %v6279, %v6297
        %v6301 = vsel %vm1160, %v6272, 0
        %6303 = vmatprep.subr.mxu0 0.0
        %6304 = vmatpush1.msra.mxu0 %v6274
        %6305 = vmatprep.subr.mxu0 0.0
        %6306 = vmatpush1.msra.mxu0 %v6275
        %6307 = vmatprep.subr.mxu0 0.0
        %6308 = vmatpush1.msra.mxu0 %v6276
        %6309 = vmatprep.subr.mxu0 0.0
        %6310 = vmatpush1.msra.mxu0 %v6277
        %6311 = vmatprep.subr.mxu0 0.0
        %6312 = vmatpush1.msra.mxu0 0.0
        %6313 = vmatprep.subr.mxu0 0.0
        %6314 = vmatpush1.msra.mxu0 0.0
        %6315 = vmatprep.subr.mxu0 0.0
        %6316 = vmatpush1.msra.mxu0 0.0
        %6317 = vmatprep.subr.mxu0 0.0
        %6318 = vmatpush1.msra.mxu0 0.0
        %6319 = vmatprep.subr.mxu0 0.0
        %6320 = vmatpush1.msra.mxu0 0.0
        %6321 = vmatprep.subr.mxu0 0.0
        %6322 = vmatpush1.msra.mxu0 0.0
        %6323 = vmatprep.subr.mxu0 0.0
        %6324 = vmatpush1.msra.mxu0 0.0
        %6325 = vmatprep.subr.mxu0 0.0
        %6326 = vmatpush1.msra.mxu0 0.0
        %6327 = vmatprep.subr.mxu0 0.0
        %6328 = vmatpush1.msra.mxu0 0.0
        %6329 = vmatprep.subr.mxu0 0.0
        %6330 = vmatpush1.msra.mxu0 0.0
        %6331 = vmatprep.subr.mxu0 0.0
        %6332 = vmatpush1.msra.mxu0 0.0
        %6333 = vmatprep.subr.mxu0 0.0
        %6334 = vmatpush1.msra.mxu0 0.0
        %6335 = vmatprep.subr.mxu0 0.0
        %6336 = vmatpush1.msra.mxu0 0.0
        %6337 = vmatprep.subr.mxu0 0.0
        %6338 = vmatpush1.msra.mxu0 0.0
        %6339 = vmatprep.subr.mxu0 0.0
        %6340 = vmatpush1.msra.mxu0 0.0
        %6341 = vmatprep.subr.mxu0 0.0
        %6342 = vmatpush1.msra.mxu0 0.0
        %6343 = vmatprep.subr.mxu0 0.0
        %6344 = vmatpush1.msra.mxu0 0.0
        %6345 = vmatprep.subr.mxu0 0.0
        %6346 = vmatpush1.msra.mxu0 0.0
        %6347 = vmatprep.subr.mxu0 0.0
        %6348 = vmatpush1.msra.mxu0 0.0
        %6349 = vmatprep.subr.mxu0 0.0
        %6350 = vmatpush1.msra.mxu0 0.0
        %6351 = vmatprep.subr.mxu0 0.0
        %6352 = vmatpush1.msra.mxu0 0.0
        %6353 = vmatprep.subr.mxu0 0.0
        %6354 = vmatpush1.msra.mxu0 0.0
        %6355 = vmatprep.subr.mxu0 0.0
        %6356 = vmatpush1.msra.mxu0 0.0
        %6357 = vmatprep.subr.mxu0 0.0
        %6358 = vmatpush1.msra.mxu0 0.0
        %6359 = vmatprep.subr.mxu0 0.0
        %6360 = vmatpush1.msra.mxu0 0.0
        %6361 = vmatprep.subr.mxu0 0.0
        %6362 = vmatpush1.msra.mxu0 0.0
        %6363 = vmatprep.subr.mxu0 0.0
        %6364 = vmatpush1.msra.mxu0 0.0
        %6365 = vmatprep.subr.mxu0 0.0
        %6366 = vmatpush1.msra.mxu0 0.0
        %6367 = vmatprep.mubr.f32.mxu0 0.0
        %6368 = vmatmul.mubr.f32.gmra.mrb[0].mxu0 %v6301
        %v6369 = vpop.f32.mrb[0].mxu0
        %v6370 = vadd.f32 %v6298, %v6369
        %v6371 = vpop.f32.mrb[0].mxu0
        %6372 = vdwg.mxu0
        %v6374 = vlaneseq
        %v6375 = vshrl.u32 %v6374, 7
        %v6376 = vsub.s32 0, %v6375
        %v6377 = vrot.slane %v6286, %v6376
        %6379 = vmatprep.subr.mxu0 0.0
        %6380 = vmatpush1.msra.mxu0 %v6281
        %6381 = vmatprep.subr.mxu0 0.0
        %6382 = vmatpush1.msra.mxu0 %v6282
        %6383 = vmatprep.subr.mxu0 0.0
        %6384 = vmatpush1.msra.mxu0 %v6283
        %6385 = vmatprep.subr.mxu0 0.0
        %6386 = vmatpush1.msra.mxu0 %v6284
        %6387 = vmatprep.subr.mxu0 0.0
        %6388 = vmatpush1.msra.mxu0 0.0
        %6389 = vmatprep.subr.mxu0 0.0
        %6390 = vmatpush1.msra.mxu0 0.0
        %6391 = vmatprep.subr.mxu0 0.0
        %6392 = vmatpush1.msra.mxu0 0.0
        %6393 = vmatprep.subr.mxu0 0.0
        %6394 = vmatpush1.msra.mxu0 0.0
        %6395 = vmatprep.subr.mxu0 0.0
        %6396 = vmatpush1.msra.mxu0 0.0
        %6397 = vmatprep.subr.mxu0 0.0
        %6398 = vmatpush1.msra.mxu0 0.0
        %6399 = vmatprep.subr.mxu0 0.0
        %6400 = vmatpush1.msra.mxu0 0.0
        %6401 = vmatprep.subr.mxu0 0.0
        %6402 = vmatpush1.msra.mxu0 0.0
        %6403 = vmatprep.subr.mxu0 0.0
        %6404 = vmatpush1.msra.mxu0 0.0
        %6405 = vmatprep.subr.mxu0 0.0
        %6406 = vmatpush1.msra.mxu0 0.0
        %6407 = vmatprep.subr.mxu0 0.0
        %6408 = vmatpush1.msra.mxu0 0.0
        %6409 = vmatprep.subr.mxu0 0.0
        %6410 = vmatpush1.msra.mxu0 0.0
        %6411 = vmatprep.subr.mxu0 0.0
        %6412 = vmatpush1.msra.mxu0 0.0
        %6413 = vmatprep.subr.mxu0 0.0
        %6414 = vmatpush1.msra.mxu0 0.0
        %6415 = vmatprep.subr.mxu0 0.0
        %6416 = vmatpush1.msra.mxu0 0.0
        %6417 = vmatprep.subr.mxu0 0.0
        %6418 = vmatpush1.msra.mxu0 0.0
        %6419 = vmatprep.subr.mxu0 0.0
        %6420 = vmatpush1.msra.mxu0 0.0
        %6421 = vmatprep.subr.mxu0 0.0
        %6422 = vmatpush1.msra.mxu0 0.0
        %6423 = vmatprep.subr.mxu0 0.0
        %6424 = vmatpush1.msra.mxu0 0.0
        %6425 = vmatprep.subr.mxu0 0.0
        %6426 = vmatpush1.msra.mxu0 0.0
        %6427 = vmatprep.subr.mxu0 0.0
        %6428 = vmatpush1.msra.mxu0 0.0
        %6429 = vmatprep.subr.mxu0 0.0
        %6430 = vmatpush1.msra.mxu0 0.0
        %6431 = vmatprep.subr.mxu0 0.0
        %6432 = vmatpush1.msra.mxu0 0.0
        %6433 = vmatprep.subr.mxu0 0.0
        %6434 = vmatpush1.msra.mxu0 0.0
        %6435 = vmatprep.subr.mxu0 0.0
        %6436 = vmatpush1.msra.mxu0 0.0
        %6437 = vmatprep.subr.mxu0 0.0
        %6438 = vmatpush1.msra.mxu0 0.0
        %6439 = vmatprep.subr.mxu0 0.0
        %6440 = vmatpush1.msra.mxu0 0.0
        %6441 = vmatprep.subr.mxu0 0.0
        %6442 = vmatpush1.msra.mxu0 0.0
        %6443 = vmatprep.mubr.f32.mxu0 0.0
        %6444 = vmatmul.mubr.f32.gmra.mrb[0].mxu0 %v4322
        %v6445 = vpop.f32.mrb[0].mxu0
        %v6446 = vadd.f32 %v6377, %v6445
        %v6447 = vpop.f32.mrb[0].mxu0
        %6448 = vdwg.mxu0
        %v6450 = vsel %vm1237, %v6370, 0
        %v6453 = vsel %vm1237, %v6446, 0
        %6455 = vmatprep.subr.mxu0 0.0
        %6456 = vmatpush1.xpose.msra.mxu0 %v6453
        %6457 = vmatprep.subr.mxu0 0.0
        %6458 = vmatpush1.xpose.msra.mxu0 0.0
        %6459 = vmatprep.subr.mxu0 0.0
        %6460 = vmatpush1.xpose.msra.mxu0 0.0
        %6461 = vmatprep.subr.mxu0 0.0
        %6462 = vmatpush1.xpose.msra.mxu0 0.0
        %6463 = vmatprep.subr.mxu0 0.0
        %6464 = vmatpush1.xpose.msra.mxu0 0.0
        %6465 = vmatprep.subr.mxu0 0.0
        %6466 = vmatpush1.xpose.msra.mxu0 0.0
        %6467 = vmatprep.subr.mxu0 0.0
        %6468 = vmatpush1.xpose.msra.mxu0 0.0
        %6469 = vmatprep.subr.mxu0 0.0
        %6470 = vmatpush1.xpose.msra.mxu0 0.0
        %6471 = vmatprep.subr.mxu0 0.0
        %6472 = vmatpush1.xpose.msra.mxu0 0.0
        %6473 = vmatprep.subr.mxu0 0.0
        %6474 = vmatpush1.xpose.msra.mxu0 0.0
        %6475 = vmatprep.subr.mxu0 0.0
        %6476 = vmatpush1.xpose.msra.mxu0 0.0
        %6477 = vmatprep.subr.mxu0 0.0
        %6478 = vmatpush1.xpose.msra.mxu0 0.0
        %6479 = vmatprep.subr.mxu0 0.0
        %6480 = vmatpush1.xpose.msra.mxu0 0.0
        %6481 = vmatprep.subr.mxu0 0.0
        %6482 = vmatpush1.xpose.msra.mxu0 0.0
        %6483 = vmatprep.subr.mxu0 0.0
        %6484 = vmatpush1.xpose.msra.mxu0 0.0
        %6485 = vmatprep.subr.mxu0 0.0
        %6486 = vmatpush1.xpose.msra.mxu0 0.0
        %6487 = vmatprep.subr.mxu0 0.0
        %6488 = vmatpush1.xpose.msra.mxu0 0.0
        %6489 = vmatprep.subr.mxu0 0.0
        %6490 = vmatpush1.xpose.msra.mxu0 0.0
        %6491 = vmatprep.subr.mxu0 0.0
        %6492 = vmatpush1.xpose.msra.mxu0 0.0
        %6493 = vmatprep.subr.mxu0 0.0
        %6494 = vmatpush1.xpose.msra.mxu0 0.0
        %6495 = vmatprep.subr.mxu0 0.0
        %6496 = vmatpush1.xpose.msra.mxu0 0.0
        %6497 = vmatprep.subr.mxu0 0.0
        %6498 = vmatpush1.xpose.msra.mxu0 0.0
        %6499 = vmatprep.subr.mxu0 0.0
        %6500 = vmatpush1.xpose.msra.mxu0 0.0
        %6501 = vmatprep.subr.mxu0 0.0
        %6502 = vmatpush1.xpose.msra.mxu0 0.0
        %6503 = vmatprep.subr.mxu0 0.0
        %6504 = vmatpush1.xpose.msra.mxu0 0.0
        %6505 = vmatprep.subr.mxu0 0.0
        %6506 = vmatpush1.xpose.msra.mxu0 0.0
        %6507 = vmatprep.subr.mxu0 0.0
        %6508 = vmatpush1.xpose.msra.mxu0 0.0
        %6509 = vmatprep.subr.mxu0 0.0
        %6510 = vmatpush1.xpose.msra.mxu0 0.0
        %6511 = vmatprep.subr.mxu0 0.0
        %6512 = vmatpush1.xpose.msra.mxu0 0.0
        %6513 = vmatprep.subr.mxu0 0.0
        %6514 = vmatpush1.xpose.msra.mxu0 0.0
        %6515 = vmatprep.subr.mxu0 0.0
        %6516 = vmatpush1.xpose.msra.mxu0 0.0
        %6517 = vmatprep.subr.mxu0 0.0
        %6518 = vmatpush1.xpose.msra.mxu0 0.0
        %6519 = vmatprep.mubr.f32.mxu0 0.0
        %6520 = vmatmul.mubr.f32.gmra.mrb[0].mxu0 %v6450
        %v6521 = vpop.f32.mrb[0].mxu0
        %v6522 = vadd.f32 0.0, %v6521
        %v6523 = vpop.f32.mrb[0].mxu0
        %6524 = vdwg.mxu0
        %v6525 = vmul.f32 %v6522, 0.35355338
        %v6526 = vadd.f32 %v6525, %v1317
        %v6527 = vsel %vm1237, %v6526, -inf
        %6528 = vmax.xlane.f32.xlu0 %v6527
        %v6529 = vpop.xlane.xlu0 %6528
        %v6530 = vsub.f32 %v6526, %v6529
        %v6531 = vmul.f32 %v6530, 1.442695
        %v6532 = vpow.pop %v6531
        %v6533 = vsel %vm1237, %v6532, 0.0
        %6534 = vadd.xlane.f32.xlu0 %v6533
        %v6535 = vpop.xlane.xlu0 %6534
        %v6536 = vrcp.pop %v6535
        %v6537 = vmul.f32 %v6532, %v6536
        %6538 = vrot.lane.b32.xlu0 %v6446, 96
        %v6539 = vpop.permute.xlu0 %6538
        %v6542 = vsel %vm1237, %v6537, 0
        %6544 = vmatprep.subr.mxu0 0.0
        %6545 = vmatpush1.msra.mxu0 %v6539
        %6546 = vmatprep.subr.mxu0 0.0
        %6547 = vmatpush1.msra.mxu0 0.0
        %6548 = vmatprep.subr.mxu0 0.0
        %6549 = vmatpush1.msra.mxu0 0.0
        %6550 = vmatprep.subr.mxu0 0.0
        %6551 = vmatpush1.msra.mxu0 0.0
        %6552 = vmatprep.subr.mxu0 0.0
        %6553 = vmatpush1.msra.mxu0 0.0
        %6554 = vmatprep.subr.mxu0 0.0
        %6555 = vmatpush1.msra.mxu0 0.0
        %6556 = vmatprep.subr.mxu0 0.0
        %6557 = vmatpush1.msra.mxu0 0.0
        %6558 = vmatprep.subr.mxu0 0.0
        %6559 = vmatpush1.msra.mxu0 0.0
        %6560 = vmatprep.subr.mxu0 0.0
        %6561 = vmatpush1.msra.mxu0 0.0
        %6562 = vmatprep.subr.mxu0 0.0
        %6563 = vmatpush1.msra.mxu0 0.0
        %6564 = vmatprep.subr.mxu0 0.0
        %6565 = vmatpush1.msra.mxu0 0.0
        %6566 = vmatprep.subr.mxu0 0.0
        %6567 = vmatpush1.msra.mxu0 0.0
        %6568 = vmatprep.subr.mxu0 0.0
        %6569 = vmatpush1.msra.mxu0 0.0
        %6570 = vmatprep.subr.mxu0 0.0
        %6571 = vmatpush1.msra.mxu0 0.0
        %6572 = vmatprep.subr.mxu0 0.0
        %6573 = vmatpush1.msra.mxu0 0.0
        %6574 = vmatprep.subr.mxu0 0.0
        %6575 = vmatpush1.msra.mxu0 0.0
        %6576 = vmatprep.subr.mxu0 0.0
        %6577 = vmatpush1.msra.mxu0 0.0
        %6578 = vmatprep.subr.mxu0 0.0
        %6579 = vmatpush1.msra.mxu0 0.0
        %6580 = vmatprep.subr.mxu0 0.0
        %6581 = vmatpush1.msra.mxu0 0.0
        %6582 = vmatprep.subr.mxu0 0.0
        %6583 = vmatpush1.msra.mxu0 0.0
        %6584 = vmatprep.subr.mxu0 0.0
        %6585 = vmatpush1.msra.mxu0 0.0
        %6586 = vmatprep.subr.mxu0 0.0
        %6587 = vmatpush1.msra.mxu0 0.0
        %6588 = vmatprep.subr.mxu0 0.0
        %6589 = vmatpush1.msra.mxu0 0.0
        %6590 = vmatprep.subr.mxu0 0.0
        %6591 = vmatpush1.msra.mxu0 0.0
        %6592 = vmatprep.subr.mxu0 0.0
        %6593 = vmatpush1.msra.mxu0 0.0
        %6594 = vmatprep.subr.mxu0 0.0
        %6595 = vmatpush1.msra.mxu0 0.0
        %6596 = vmatprep.subr.mxu0 0.0
        %6597 = vmatpush1.msra.mxu0 0.0
        %6598 = vmatprep.subr.mxu0 0.0
        %6599 = vmatpush1.msra.mxu0 0.0
        %6600 = vmatprep.subr.mxu0 0.0
        %6601 = vmatpush1.msra.mxu0 0.0
        %6602 = vmatprep.subr.mxu0 0.0
        %6603 = vmatpush1.msra.mxu0 0.0
        %6604 = vmatprep.subr.mxu0 0.0
        %6605 = vmatpush1.msra.mxu0 0.0
        %6606 = vmatprep.subr.mxu0 0.0
        %6607 = vmatpush1.msra.mxu0 0.0
        %6608 = vmatprep.mubr.f32.mxu0 0.0
        %6609 = vmatmul.mubr.f32.gmra.mrb[0].mxu0 %v6542
        %v6610 = vpop.f32.mrb[0].mxu0
        %v6611 = vadd.f32 0.0, %v6610
        %v6612 = vpop.f32.mrb[0].mxu0
        %6613 = vdwg.mxu0
        %6614 = vrot.lane.b32.xlu0 %v6370, 120
        %v6615 = vpop.permute.xlu0 %6614
        %6616 = vrot.lane.b32.xlu0 %v6446, 120
        %v6617 = vpop.permute.xlu0 %6616
        %v6618 = vsel %vm1237, %v6615, 0
        %v6620 = vsel %vm1237, %v6617, 0
        %6622 = vmatprep.subr.mxu0 0.0
        %6623 = vmatpush1.xpose.msra.mxu0 %v6620
        %6624 = vmatprep.subr.mxu0 0.0
        %6625 = vmatpush1.xpose.msra.mxu0 0.0
        %6626 = vmatprep.subr.mxu0 0.0
        %6627 = vmatpush1.xpose.msra.mxu0 0.0
        %6628 = vmatprep.subr.mxu0 0.0
        %6629 = vmatpush1.xpose.msra.mxu0 0.0
        %6630 = vmatprep.subr.mxu0 0.0
        %6631 = vmatpush1.xpose.msra.mxu0 0.0
        %6632 = vmatprep.subr.mxu0 0.0
        %6633 = vmatpush1.xpose.msra.mxu0 0.0
        %6634 = vmatprep.subr.mxu0 0.0
        %6635 = vmatpush1.xpose.msra.mxu0 0.0
        %6636 = vmatprep.subr.mxu0 0.0
        %6637 = vmatpush1.xpose.msra.mxu0 0.0
        %6638 = vmatprep.subr.mxu0 0.0
        %6639 = vmatpush1.xpose.msra.mxu0 0.0
        %6640 = vmatprep.subr.mxu0 0.0
        %6641 = vmatpush1.xpose.msra.mxu0 0.0
        %6642 = vmatprep.subr.mxu0 0.0
        %6643 = vmatpush1.xpose.msra.mxu0 0.0
        %6644 = vmatprep.subr.mxu0 0.0
        %6645 = vmatpush1.xpose.msra.mxu0 0.0
        %6646 = vmatprep.subr.mxu0 0.0
        %6647 = vmatpush1.xpose.msra.mxu0 0.0
        %6648 = vmatprep.subr.mxu0 0.0
        %6649 = vmatpush1.xpose.msra.mxu0 0.0
        %6650 = vmatprep.subr.mxu0 0.0
        %6651 = vmatpush1.xpose.msra.mxu0 0.0
        %6652 = vmatprep.subr.mxu0 0.0
        %6653 = vmatpush1.xpose.msra.mxu0 0.0
        %6654 = vmatprep.subr.mxu0 0.0
        %6655 = vmatpush1.xpose.msra.mxu0 0.0
        %6656 = vmatprep.subr.mxu0 0.0
        %6657 = vmatpush1.xpose.msra.mxu0 0.0
        %6658 = vmatprep.subr.mxu0 0.0
        %6659 = vmatpush1.xpose.msra.mxu0 0.0
        %6660 = vmatprep.subr.mxu0 0.0
        %6661 = vmatpush1.xpose.msra.mxu0 0.0
        %6662 = vmatprep.subr.mxu0 0.0
        %6663 = vmatpush1.xpose.msra.mxu0 0.0
        %6664 = vmatprep.subr.mxu0 0.0
        %6665 = vmatpush1.xpose.msra.mxu0 0.0
        %6666 = vmatprep.subr.mxu0 0.0
        %6667 = vmatpush1.xpose.msra.mxu0 0.0
        %6668 = vmatprep.subr.mxu0 0.0
        %6669 = vmatpush1.xpose.msra.mxu0 0.0
        %6670 = vmatprep.subr.mxu0 0.0
        %6671 = vmatpush1.xpose.msra.mxu0 0.0
        %6672 = vmatprep.subr.mxu0 0.0
        %6673 = vmatpush1.xpose.msra.mxu0 0.0
        %6674 = vmatprep.subr.mxu0 0.0
        %6675 = vmatpush1.xpose.msra.mxu0 0.0
        %6676 = vmatprep.subr.mxu0 0.0
        %6677 = vmatpush1.xpose.msra.mxu0 0.0
        %6678 = vmatprep.subr.mxu0 0.0
        %6679 = vmatpush1.xpose.msra.mxu0 0.0
        %6680 = vmatprep.subr.mxu0 0.0
        %6681 = vmatpush1.xpose.msra.mxu0 0.0
        %6682 = vmatprep.subr.mxu0 0.0
        %6683 = vmatpush1.xpose.msra.mxu0 0.0
        %6684 = vmatprep.subr.mxu0 0.0
        %6685 = vmatpush1.xpose.msra.mxu0 0.0
        %6686 = vmatprep.mubr.f32.mxu0 0.0
        %6687 = vmatmul.mubr.f32.gmra.mrb[0].mxu0 %v6618
        %v6688 = vpop.f32.mrb[0].mxu0
        %v6689 = vadd.f32 0.0, %v6688
        %v6690 = vpop.f32.mrb[0].mxu0
        %6691 = vdwg.mxu0
        %v6692 = vmul.f32 %v6689, 0.35355338
        %v6693 = vadd.f32 %v6692, %v1317
        %v6694 = vsel %vm1237, %v6693, -inf
        %6695 = vmax.xlane.f32.xlu0 %v6694
        %v6696 = vpop.xlane.xlu0 %6695
        %v6697 = vsub.f32 %v6693, %v6696
        %v6698 = vmul.f32 %v6697, 1.442695
        %v6699 = vpow.pop %v6698
        %v6700 = vsel %vm1237, %v6699, 0.0
        %6701 = vadd.xlane.f32.xlu0 %v6700
        %v6702 = vpop.xlane.xlu0 %6701
        %v6703 = vrcp.pop %v6702
        %v6704 = vmul.f32 %v6699, %v6703
        %6705 = vrot.lane.b32.xlu0 %v6446, 88
        %v6706 = vpop.permute.xlu0 %6705
        %v6709 = vsel %vm1237, %v6704, 0
        %6711 = vmatprep.subr.mxu0 0.0
        %6712 = vmatpush1.msra.mxu0 %v6706
        %6713 = vmatprep.subr.mxu0 0.0
        %6714 = vmatpush1.msra.mxu0 0.0
        %6715 = vmatprep.subr.mxu0 0.0
        %6716 = vmatpush1.msra.mxu0 0.0
        %6717 = vmatprep.subr.mxu0 0.0
        %6718 = vmatpush1.msra.mxu0 0.0
        %6719 = vmatprep.subr.mxu0 0.0
        %6720 = vmatpush1.msra.mxu0 0.0
        %6721 = vmatprep.subr.mxu0 0.0
        %6722 = vmatpush1.msra.mxu0 0.0
        %6723 = vmatprep.subr.mxu0 0.0
        %6724 = vmatpush1.msra.mxu0 0.0
        %6725 = vmatprep.subr.mxu0 0.0
        %6726 = vmatpush1.msra.mxu0 0.0
        %6727 = vmatprep.subr.mxu0 0.0
        %6728 = vmatpush1.msra.mxu0 0.0
        %6729 = vmatprep.subr.mxu0 0.0
        %6730 = vmatpush1.msra.mxu0 0.0
        %6731 = vmatprep.subr.mxu0 0.0
        %6732 = vmatpush1.msra.mxu0 0.0
        %6733 = vmatprep.subr.mxu0 0.0
        %6734 = vmatpush1.msra.mxu0 0.0
        %6735 = vmatprep.subr.mxu0 0.0
        %6736 = vmatpush1.msra.mxu0 0.0
        %6737 = vmatprep.subr.mxu0 0.0
        %6738 = vmatpush1.msra.mxu0 0.0
        %6739 = vmatprep.subr.mxu0 0.0
        %6740 = vmatpush1.msra.mxu0 0.0
        %6741 = vmatprep.subr.mxu0 0.0
        %6742 = vmatpush1.msra.mxu0 0.0
        %6743 = vmatprep.subr.mxu0 0.0
        %6744 = vmatpush1.msra.mxu0 0.0
        %6745 = vmatprep.subr.mxu0 0.0
        %6746 = vmatpush1.msra.mxu0 0.0
        %6747 = vmatprep.subr.mxu0 0.0
        %6748 = vmatpush1.msra.mxu0 0.0
        %6749 = vmatprep.subr.mxu0 0.0
        %6750 = vmatpush1.msra.mxu0 0.0
        %6751 = vmatprep.subr.mxu0 0.0
        %6752 = vmatpush1.msra.mxu0 0.0
        %6753 = vmatprep.subr.mxu0 0.0
        %6754 = vmatpush1.msra.mxu0 0.0
        %6755 = vmatprep.subr.mxu0 0.0
        %6756 = vmatpush1.msra.mxu0 0.0
        %6757 = vmatprep.subr.mxu0 0.0
        %6758 = vmatpush1.msra.mxu0 0.0
        %6759 = vmatprep.subr.mxu0 0.0
        %6760 = vmatpush1.msra.mxu0 0.0
        %6761 = vmatprep.subr.mxu0 0.0
        %6762 = vmatpush1.msra.mxu0 0.0
        %6763 = vmatprep.subr.mxu0 0.0
        %6764 = vmatpush1.msra.mxu0 0.0
        %6765 = vmatprep.subr.mxu0 0.0
        %6766 = vmatpush1.msra.mxu0 0.0
        %6767 = vmatprep.subr.mxu0 0.0
        %6768 = vmatpush1.msra.mxu0 0.0
        %6769 = vmatprep.subr.mxu0 0.0
        %6770 = vmatpush1.msra.mxu0 0.0
        %6771 = vmatprep.subr.mxu0 0.0
        %6772 = vmatpush1.msra.mxu0 0.0
        %6773 = vmatprep.subr.mxu0 0.0
        %6774 = vmatpush1.msra.mxu0 0.0
        %6775 = vmatprep.mubr.f32.mxu0 0.0
        %6776 = vmatmul.mubr.f32.gmra.mrb[0].mxu0 %v6709
        %v6777 = vpop.f32.mrb[0].mxu0
        %v6778 = vadd.f32 0.0, %v6777
        %v6779 = vpop.f32.mrb[0].mxu0
        %6780 = vdwg.mxu0
        %6781 = vrot.lane.b32.xlu0 %v6370, 112
        %v6782 = vpop.permute.xlu0 %6781
        %6783 = vrot.lane.b32.xlu0 %v6446, 112
        %v6784 = vpop.permute.xlu0 %6783
        %v6785 = vsel %vm1237, %v6782, 0
        %v6787 = vsel %vm1237, %v6784, 0
        %6789 = vmatprep.subr.mxu0 0.0
        %6790 = vmatpush1.xpose.msra.mxu0 %v6787
        %6791 = vmatprep.subr.mxu0 0.0
        %6792 = vmatpush1.xpose.msra.mxu0 0.0
        %6793 = vmatprep.subr.mxu0 0.0
        %6794 = vmatpush1.xpose.msra.mxu0 0.0
        %6795 = vmatprep.subr.mxu0 0.0
        %6796 = vmatpush1.xpose.msra.mxu0 0.0
        %6797 = vmatprep.subr.mxu0 0.0
        %6798 = vmatpush1.xpose.msra.mxu0 0.0
        %6799 = vmatprep.subr.mxu0 0.0
        %6800 = vmatpush1.xpose.msra.mxu0 0.0
        %6801 = vmatprep.subr.mxu0 0.0
        %6802 = vmatpush1.xpose.msra.mxu0 0.0
        %6803 = vmatprep.subr.mxu0 0.0
        %6804 = vmatpush1.xpose.msra.mxu0 0.0
        %6805 = vmatprep.subr.mxu0 0.0
        %6806 = vmatpush1.xpose.msra.mxu0 0.0
        %6807 = vmatprep.subr.mxu0 0.0
        %6808 = vmatpush1.xpose.msra.mxu0 0.0
        %6809 = vmatprep.subr.mxu0 0.0
        %6810 = vmatpush1.xpose.msra.mxu0 0.0
        %6811 = vmatprep.subr.mxu0 0.0
        %6812 = vmatpush1.xpose.msra.mxu0 0.0
        %6813 = vmatprep.subr.mxu0 0.0
        %6814 = vmatpush1.xpose.msra.mxu0 0.0
        %6815 = vmatprep.subr.mxu0 0.0
        %6816 = vmatpush1.xpose.msra.mxu0 0.0
        %6817 = vmatprep.subr.mxu0 0.0
        %6818 = vmatpush1.xpose.msra.mxu0 0.0
        %6819 = vmatprep.subr.mxu0 0.0
        %6820 = vmatpush1.xpose.msra.mxu0 0.0
        %6821 = vmatprep.subr.mxu0 0.0
        %6822 = vmatpush1.xpose.msra.mxu0 0.0
        %6823 = vmatprep.subr.mxu0 0.0
        %6824 = vmatpush1.xpose.msra.mxu0 0.0
        %6825 = vmatprep.subr.mxu0 0.0
        %6826 = vmatpush1.xpose.msra.mxu0 0.0
        %6827 = vmatprep.subr.mxu0 0.0
        %6828 = vmatpush1.xpose.msra.mxu0 0.0
        %6829 = vmatprep.subr.mxu0 0.0
        %6830 = vmatpush1.xpose.msra.mxu0 0.0
        %6831 = vmatprep.subr.mxu0 0.0
        %6832 = vmatpush1.xpose.msra.mxu0 0.0
        %6833 = vmatprep.subr.mxu0 0.0
        %6834 = vmatpush1.xpose.msra.mxu0 0.0
        %6835 = vmatprep.subr.mxu0 0.0
        %6836 = vmatpush1.xpose.msra.mxu0 0.0
        %6837 = vmatprep.subr.mxu0 0.0
        %6838 = vmatpush1.xpose.msra.mxu0 0.0
        %6839 = vmatprep.subr.mxu0 0.0
        %6840 = vmatpush1.xpose.msra.mxu0 0.0
        %6841 = vmatprep.subr.mxu0 0.0
        %6842 = vmatpush1.xpose.msra.mxu0 0.0
        %6843 = vmatprep.subr.mxu0 0.0
        %6844 = vmatpush1.xpose.msra.mxu0 0.0
        %6845 = vmatprep.subr.mxu0 0.0
        %6846 = vmatpush1.xpose.msra.mxu0 0.0
        %6847 = vmatprep.subr.mxu0 0.0
        %6848 = vmatpush1.xpose.msra.mxu0 0.0
        %6849 = vmatprep.subr.mxu0 0.0
        %6850 = vmatpush1.xpose.msra.mxu0 0.0
        %6851 = vmatprep.subr.mxu0 0.0
        %6852 = vmatpush1.xpose.msra.mxu0 0.0
        %6853 = vmatprep.mubr.f32.mxu0 0.0
        %6854 = vmatmul.mubr.f32.gmra.mrb[0].mxu0 %v6785
        %v6855 = vpop.f32.mrb[0].mxu0
        %v6856 = vadd.f32 0.0, %v6855
        %v6857 = vpop.f32.mrb[0].mxu0
        %6858 = vdwg.mxu0
        %v6859 = vmul.f32 %v6856, 0.35355338
        %v6860 = vadd.f32 %v6859, %v1317
        %v6861 = vsel %vm1237, %v6860, -inf
        %6862 = vmax.xlane.f32.xlu0 %v6861
        %v6863 = vpop.xlane.xlu0 %6862
        %v6864 = vsub.f32 %v6860, %v6863
        %v6865 = vmul.f32 %v6864, 1.442695
        %v6866 = vpow.pop %v6865
        %v6867 = vsel %vm1237, %v6866, 0.0
        %6868 = vadd.xlane.f32.xlu0 %v6867
        %v6869 = vpop.xlane.xlu0 %6868
        %v6870 = vrcp.pop %v6869
        %v6871 = vmul.f32 %v6866, %v6870
        %6872 = vrot.lane.b32.xlu0 %v6446, 80
        %v6873 = vpop.permute.xlu0 %6872
        %v6876 = vsel %vm1237, %v6871, 0
        %6878 = vmatprep.subr.mxu0 0.0
        %6879 = vmatpush1.msra.mxu0 %v6873
        %6880 = vmatprep.subr.mxu0 0.0
        %6881 = vmatpush1.msra.mxu0 0.0
        %6882 = vmatprep.subr.mxu0 0.0
        %6883 = vmatpush1.msra.mxu0 0.0
        %6884 = vmatprep.subr.mxu0 0.0
        %6885 = vmatpush1.msra.mxu0 0.0
        %6886 = vmatprep.subr.mxu0 0.0
        %6887 = vmatpush1.msra.mxu0 0.0
        %6888 = vmatprep.subr.mxu0 0.0
        %6889 = vmatpush1.msra.mxu0 0.0
        %6890 = vmatprep.subr.mxu0 0.0
        %6891 = vmatpush1.msra.mxu0 0.0
        %6892 = vmatprep.subr.mxu0 0.0
        %6893 = vmatpush1.msra.mxu0 0.0
        %6894 = vmatprep.subr.mxu0 0.0
        %6895 = vmatpush1.msra.mxu0 0.0
        %6896 = vmatprep.subr.mxu0 0.0
        %6897 = vmatpush1.msra.mxu0 0.0
        %6898 = vmatprep.subr.mxu0 0.0
        %6899 = vmatpush1.msra.mxu0 0.0
        %6900 = vmatprep.subr.mxu0 0.0
        %6901 = vmatpush1.msra.mxu0 0.0
        %6902 = vmatprep.subr.mxu0 0.0
        %6903 = vmatpush1.msra.mxu0 0.0
        %6904 = vmatprep.subr.mxu0 0.0
        %6905 = vmatpush1.msra.mxu0 0.0
        %6906 = vmatprep.subr.mxu0 0.0
        %6907 = vmatpush1.msra.mxu0 0.0
        %6908 = vmatprep.subr.mxu0 0.0
        %6909 = vmatpush1.msra.mxu0 0.0
        %6910 = vmatprep.subr.mxu0 0.0
        %6911 = vmatpush1.msra.mxu0 0.0
        %6912 = vmatprep.subr.mxu0 0.0
        %6913 = vmatpush1.msra.mxu0 0.0
        %6914 = vmatprep.subr.mxu0 0.0
        %6915 = vmatpush1.msra.mxu0 0.0
        %6916 = vmatprep.subr.mxu0 0.0
        %6917 = vmatpush1.msra.mxu0 0.0
        %6918 = vmatprep.subr.mxu0 0.0
        %6919 = vmatpush1.msra.mxu0 0.0
        %6920 = vmatprep.subr.mxu0 0.0
        %6921 = vmatpush1.msra.mxu0 0.0
        %6922 = vmatprep.subr.mxu0 0.0
        %6923 = vmatpush1.msra.mxu0 0.0
        %6924 = vmatprep.subr.mxu0 0.0
        %6925 = vmatpush1.msra.mxu0 0.0
        %6926 = vmatprep.subr.mxu0 0.0
        %6927 = vmatpush1.msra.mxu0 0.0
        %6928 = vmatprep.subr.mxu0 0.0
        %6929 = vmatpush1.msra.mxu0 0.0
        %6930 = vmatprep.subr.mxu0 0.0
        %6931 = vmatpush1.msra.mxu0 0.0
        %6932 = vmatprep.subr.mxu0 0.0
        %6933 = vmatpush1.msra.mxu0 0.0
        %6934 = vmatprep.subr.mxu0 0.0
        %6935 = vmatpush1.msra.mxu0 0.0
        %6936 = vmatprep.subr.mxu0 0.0
        %6937 = vmatpush1.msra.mxu0 0.0
        %6938 = vmatprep.subr.mxu0 0.0
        %6939 = vmatpush1.msra.mxu0 0.0
        %6940 = vmatprep.subr.mxu0 0.0
        %6941 = vmatpush1.msra.mxu0 0.0
        %6942 = vmatprep.mubr.f32.mxu0 0.0
        %6943 = vmatmul.mubr.f32.gmra.mrb[0].mxu0 %v6876
        %v6944 = vpop.f32.mrb[0].mxu0
        %v6945 = vadd.f32 0.0, %v6944
        %v6946 = vpop.f32.mrb[0].mxu0
        %6947 = vdwg.mxu0
        %6948 = vrot.lane.b32.xlu0 %v6370, 104
        %v6949 = vpop.permute.xlu0 %6948
        %6950 = vrot.lane.b32.xlu0 %v6446, 104
        %v6951 = vpop.permute.xlu0 %6950
        %v6952 = vsel %vm1237, %v6949, 0
        %v6954 = vsel %vm1237, %v6951, 0
        %6956 = vmatprep.subr.mxu0 0.0
        %6957 = vmatpush1.xpose.msra.mxu0 %v6954
        %6958 = vmatprep.subr.mxu0 0.0
        %6959 = vmatpush1.xpose.msra.mxu0 0.0
        %6960 = vmatprep.subr.mxu0 0.0
        %6961 = vmatpush1.xpose.msra.mxu0 0.0
        %6962 = vmatprep.subr.mxu0 0.0
        %6963 = vmatpush1.xpose.msra.mxu0 0.0
        %6964 = vmatprep.subr.mxu0 0.0
        %6965 = vmatpush1.xpose.msra.mxu0 0.0
        %6966 = vmatprep.subr.mxu0 0.0
        %6967 = vmatpush1.xpose.msra.mxu0 0.0
        %6968 = vmatprep.subr.mxu0 0.0
        %6969 = vmatpush1.xpose.msra.mxu0 0.0
        %6970 = vmatprep.subr.mxu0 0.0
        %6971 = vmatpush1.xpose.msra.mxu0 0.0
        %6972 = vmatprep.subr.mxu0 0.0
        %6973 = vmatpush1.xpose.msra.mxu0 0.0
        %6974 = vmatprep.subr.mxu0 0.0
        %6975 = vmatpush1.xpose.msra.mxu0 0.0
        %6976 = vmatprep.subr.mxu0 0.0
        %6977 = vmatpush1.xpose.msra.mxu0 0.0
        %6978 = vmatprep.subr.mxu0 0.0
        %6979 = vmatpush1.xpose.msra.mxu0 0.0
        %6980 = vmatprep.subr.mxu0 0.0
        %6981 = vmatpush1.xpose.msra.mxu0 0.0
        %6982 = vmatprep.subr.mxu0 0.0
        %6983 = vmatpush1.xpose.msra.mxu0 0.0
        %6984 = vmatprep.subr.mxu0 0.0
        %6985 = vmatpush1.xpose.msra.mxu0 0.0
        %6986 = vmatprep.subr.mxu0 0.0
        %6987 = vmatpush1.xpose.msra.mxu0 0.0
        %6988 = vmatprep.subr.mxu0 0.0
        %6989 = vmatpush1.xpose.msra.mxu0 0.0
        %6990 = vmatprep.subr.mxu0 0.0
        %6991 = vmatpush1.xpose.msra.mxu0 0.0
        %6992 = vmatprep.subr.mxu0 0.0
        %6993 = vmatpush1.xpose.msra.mxu0 0.0
        %6994 = vmatprep.subr.mxu0 0.0
        %6995 = vmatpush1.xpose.msra.mxu0 0.0
        %6996 = vmatprep.subr.mxu0 0.0
        %6997 = vmatpush1.xpose.msra.mxu0 0.0
        %6998 = vmatprep.subr.mxu0 0.0
        %6999 = vmatpush1.xpose.msra.mxu0 0.0
        %7000 = vmatprep.subr.mxu0 0.0
        %7001 = vmatpush1.xpose.msra.mxu0 0.0
        %7002 = vmatprep.subr.mxu0 0.0
        %7003 = vmatpush1.xpose.msra.mxu0 0.0
        %7004 = vmatprep.subr.mxu0 0.0
        %7005 = vmatpush1.xpose.msra.mxu0 0.0
        %7006 = vmatprep.subr.mxu0 0.0
        %7007 = vmatpush1.xpose.msra.mxu0 0.0
        %7008 = vmatprep.subr.mxu0 0.0
        %7009 = vmatpush1.xpose.msra.mxu0 0.0
        %7010 = vmatprep.subr.mxu0 0.0
        %7011 = vmatpush1.xpose.msra.mxu0 0.0
        %7012 = vmatprep.subr.mxu0 0.0
        %7013 = vmatpush1.xpose.msra.mxu0 0.0
        %7014 = vmatprep.subr.mxu0 0.0
        %7015 = vmatpush1.xpose.msra.mxu0 0.0
        %7016 = vmatprep.subr.mxu0 0.0
        %7017 = vmatpush1.xpose.msra.mxu0 0.0
        %7018 = vmatprep.subr.mxu0 0.0
        %7019 = vmatpush1.xpose.msra.mxu0 0.0
        %7020 = vmatprep.mubr.f32.mxu0 0.0
        %7021 = vmatmul.mubr.f32.gmra.mrb[0].mxu0 %v6952
        %v7022 = vpop.f32.mrb[0].mxu0
        %v7023 = vadd.f32 0.0, %v7022
        %v7024 = vpop.f32.mrb[0].mxu0
        %7025 = vdwg.mxu0
        %v7026 = vmul.f32 %v7023, 0.35355338
        %v7027 = vadd.f32 %v7026, %v1317
        %v7028 = vsel %vm1237, %v7027, -inf
        %7029 = vmax.xlane.f32.xlu0 %v7028
        %v7030 = vpop.xlane.xlu0 %7029
        %v7031 = vsub.f32 %v7027, %v7030
        %v7032 = vmul.f32 %v7031, 1.442695
        %v7033 = vpow.pop %v7032
        %v7034 = vsel %vm1237, %v7033, 0.0
        %7035 = vadd.xlane.f32.xlu0 %v7034
        %v7036 = vpop.xlane.xlu0 %7035
        %v7037 = vrcp.pop %v7036
        %v7038 = vmul.f32 %v7033, %v7037
        %7039 = vrot.lane.b32.xlu0 %v6446, 72
        %v7040 = vpop.permute.xlu0 %7039
        %v7043 = vsel %vm1237, %v7038, 0
        %7045 = vmatprep.subr.mxu0 0.0
        %7046 = vmatpush1.msra.mxu0 %v7040
        %7047 = vmatprep.subr.mxu0 0.0
        %7048 = vmatpush1.msra.mxu0 0.0
        %7049 = vmatprep.subr.mxu0 0.0
        %7050 = vmatpush1.msra.mxu0 0.0
        %7051 = vmatprep.subr.mxu0 0.0
        %7052 = vmatpush1.msra.mxu0 0.0
        %7053 = vmatprep.subr.mxu0 0.0
        %7054 = vmatpush1.msra.mxu0 0.0
        %7055 = vmatprep.subr.mxu0 0.0
        %7056 = vmatpush1.msra.mxu0 0.0
        %7057 = vmatprep.subr.mxu0 0.0
        %7058 = vmatpush1.msra.mxu0 0.0
        %7059 = vmatprep.subr.mxu0 0.0
        %7060 = vmatpush1.msra.mxu0 0.0
        %7061 = vmatprep.subr.mxu0 0.0
        %7062 = vmatpush1.msra.mxu0 0.0
        %7063 = vmatprep.subr.mxu0 0.0
        %7064 = vmatpush1.msra.mxu0 0.0
        %7065 = vmatprep.subr.mxu0 0.0
        %7066 = vmatpush1.msra.mxu0 0.0
        %7067 = vmatprep.subr.mxu0 0.0
        %7068 = vmatpush1.msra.mxu0 0.0
        %7069 = vmatprep.subr.mxu0 0.0
        %7070 = vmatpush1.msra.mxu0 0.0
        %7071 = vmatprep.subr.mxu0 0.0
        %7072 = vmatpush1.msra.mxu0 0.0
        %7073 = vmatprep.subr.mxu0 0.0
        %7074 = vmatpush1.msra.mxu0 0.0
        %7075 = vmatprep.subr.mxu0 0.0
        %7076 = vmatpush1.msra.mxu0 0.0
        %7077 = vmatprep.subr.mxu0 0.0
        %7078 = vmatpush1.msra.mxu0 0.0
        %7079 = vmatprep.subr.mxu0 0.0
        %7080 = vmatpush1.msra.mxu0 0.0
        %7081 = vmatprep.subr.mxu0 0.0
        %7082 = vmatpush1.msra.mxu0 0.0
        %7083 = vmatprep.subr.mxu0 0.0
        %7084 = vmatpush1.msra.mxu0 0.0
        %7085 = vmatprep.subr.mxu0 0.0
        %7086 = vmatpush1.msra.mxu0 0.0
        %7087 = vmatprep.subr.mxu0 0.0
        %7088 = vmatpush1.msra.mxu0 0.0
        %7089 = vmatprep.subr.mxu0 0.0
        %7090 = vmatpush1.msra.mxu0 0.0
        %7091 = vmatprep.subr.mxu0 0.0
        %7092 = vmatpush1.msra.mxu0 0.0
        %7093 = vmatprep.subr.mxu0 0.0
        %7094 = vmatpush1.msra.mxu0 0.0
        %7095 = vmatprep.subr.mxu0 0.0
        %7096 = vmatpush1.msra.mxu0 0.0
        %7097 = vmatprep.subr.mxu0 0.0
        %7098 = vmatpush1.msra.mxu0 0.0
        %7099 = vmatprep.subr.mxu0 0.0
        %7100 = vmatpush1.msra.mxu0 0.0
        %7101 = vmatprep.subr.mxu0 0.0
        %7102 = vmatpush1.msra.mxu0 0.0
        %7103 = vmatprep.subr.mxu0 0.0
        %7104 = vmatpush1.msra.mxu0 0.0
        %7105 = vmatprep.subr.mxu0 0.0
        %7106 = vmatpush1.msra.mxu0 0.0
        %7107 = vmatprep.subr.mxu0 0.0
        %7108 = vmatpush1.msra.mxu0 0.0
        %7109 = vmatprep.mubr.f32.mxu0 0.0
        %7110 = vmatmul.mubr.f32.gmra.mrb[0].mxu0 %v7043
        %v7111 = vpop.f32.mrb[0].mxu0
        %v7112 = vadd.f32 0.0, %v7111
        %v7113 = vpop.f32.mrb[0].mxu0
        %7114 = vdwg.mxu0
        %7116 = vrot.lane.b32.xlu0 %v6778, 8
        %v7117 = vpop.permute.xlu0 %7116
        %7120 = vrot.lane.b32.xlu0 %v6945, 16
        %v7121 = vpop.permute.xlu0 %7120
        %7124 = vrot.lane.b32.xlu0 %v7112, 24
        %v7125 = vpop.permute.xlu0 %7124
        %v7127 = vsel %vm1237, %v6611, %v7117
        %v7128 = vsel %vm1921, %v7127, %v7121
        %v7129 = vsel %vm1923, %v7128, %v7125
        %v7131 = vlaneseq
        %v7132 = vshrl.u32 %v7131, 7
        %v7133 = vsub.s32 0, %v7132
        %v7134 = vrot.slane %v6293, %v7133
        %v7137 = vsel %vm1160, %v7129, 0
        %7139 = vmatprep.subr.mxu0 0.0
        %7140 = vmatpush1.msra.mxu0 %v6288
        %7141 = vmatprep.subr.mxu0 0.0
        %7142 = vmatpush1.msra.mxu0 %v6289
        %7143 = vmatprep.subr.mxu0 0.0
        %7144 = vmatpush1.msra.mxu0 %v6290
        %7145 = vmatprep.subr.mxu0 0.0
        %7146 = vmatpush1.msra.mxu0 %v6291
        %7147 = vmatprep.subr.mxu0 0.0
        %7148 = vmatpush1.msra.mxu0 0.0
        %7149 = vmatprep.subr.mxu0 0.0
        %7150 = vmatpush1.msra.mxu0 0.0
        %7151 = vmatprep.subr.mxu0 0.0
        %7152 = vmatpush1.msra.mxu0 0.0
        %7153 = vmatprep.subr.mxu0 0.0
        %7154 = vmatpush1.msra.mxu0 0.0
        %7155 = vmatprep.subr.mxu0 0.0
        %7156 = vmatpush1.msra.mxu0 0.0
        %7157 = vmatprep.subr.mxu0 0.0
        %7158 = vmatpush1.msra.mxu0 0.0
        %7159 = vmatprep.subr.mxu0 0.0
        %7160 = vmatpush1.msra.mxu0 0.0
        %7161 = vmatprep.subr.mxu0 0.0
        %7162 = vmatpush1.msra.mxu0 0.0
        %7163 = vmatprep.subr.mxu0 0.0
        %7164 = vmatpush1.msra.mxu0 0.0
        %7165 = vmatprep.subr.mxu0 0.0
        %7166 = vmatpush1.msra.mxu0 0.0
        %7167 = vmatprep.subr.mxu0 0.0
        %7168 = vmatpush1.msra.mxu0 0.0
        %7169 = vmatprep.subr.mxu0 0.0
        %7170 = vmatpush1.msra.mxu0 0.0
        %7171 = vmatprep.subr.mxu0 0.0
        %7172 = vmatpush1.msra.mxu0 0.0
        %7173 = vmatprep.subr.mxu0 0.0
        %7174 = vmatpush1.msra.mxu0 0.0
        %7175 = vmatprep.subr.mxu0 0.0
        %7176 = vmatpush1.msra.mxu0 0.0
        %7177 = vmatprep.subr.mxu0 0.0
        %7178 = vmatpush1.msra.mxu0 0.0
        %7179 = vmatprep.subr.mxu0 0.0
        %7180 = vmatpush1.msra.mxu0 0.0
        %7181 = vmatprep.subr.mxu0 0.0
        %7182 = vmatpush1.msra.mxu0 0.0
        %7183 = vmatprep.subr.mxu0 0.0
        %7184 = vmatpush1.msra.mxu0 0.0
        %7185 = vmatprep.subr.mxu0 0.0
        %7186 = vmatpush1.msra.mxu0 0.0
        %7187 = vmatprep.subr.mxu0 0.0
        %7188 = vmatpush1.msra.mxu0 0.0
        %7189 = vmatprep.subr.mxu0 0.0
        %7190 = vmatpush1.msra.mxu0 0.0
        %7191 = vmatprep.subr.mxu0 0.0
        %7192 = vmatpush1.msra.mxu0 0.0
        %7193 = vmatprep.subr.mxu0 0.0
        %7194 = vmatpush1.msra.mxu0 0.0
        %7195 = vmatprep.subr.mxu0 0.0
        %7196 = vmatpush1.msra.mxu0 0.0
        %7197 = vmatprep.subr.mxu0 0.0
        %7198 = vmatpush1.msra.mxu0 0.0
        %7199 = vmatprep.subr.mxu0 0.0
        %7200 = vmatpush1.msra.mxu0 0.0
        %7201 = vmatprep.subr.mxu0 0.0
        %7202 = vmatpush1.msra.mxu0 0.0
        %7203 = vmatprep.mubr.f32.mxu0 0.0
        %7204 = vmatmul.mubr.f32.gmra.mrb[0].mxu0 %v7137
        %v7205 = vpop.f32.mrb[0].mxu0
        %v7206 = vadd.f32 %v7134, %v7205
        %v7207 = vpop.f32.mrb[0].mxu0
        %7208 = vdwg.mxu0
        %s7209 = scalar_lea.vmem %s57, 1
        %v7210 = vld [vmem:[%s7209] sm:$0x1]
        %s7211 = scalar_lea.vmem %s59, 1
        %v7212 = vld [vmem:[%s7211] sm:$0x1]
        %v7213 = vadd.f32 %v6272, %v7206
        %v7214 = vsel %vm1160, %v7213, 0.0
        %7215 = vadd.xlane.f32.xlu0 %v7214
        %v7216 = vpop.xlane.xlu0 %7215
        %v7217 = vmul.f32 %v7216, %v2010
        %v7218 = vsub.f32 %v7213, %v7217
        %v7219 = vmul.f32 %v7218, %v7218
        %v7220 = vsel %vm1160, %v7219, 0.0
        %7221 = vadd.xlane.f32.xlu0 %v7220
        %v7222 = vpop.xlane.xlu0 %7221
        %v7223 = vmul.f32 %v7222, %v2010
        %v7224 = vadd.f32 %v7223, 1e-05
        %v7225 = vrsqrt.pop %v7224
        %v7226 = vmul.f32 %v7218, %v7225
        %v7228 = vlaneseq
        %v7229 = vshrl.u32 %v7228, 7
        %v7230 = vsub.s32 0, %v7229
        %v7231 = vrot.slane %v7210, %v7230
        %v7233 = vmul.f32 %v7226, %v7231
        %v7235 = vlaneseq
        %v7236 = vshrl.u32 %v7235, 7
        %v7237 = vsub.s32 0, %v7236
        %v7238 = vrot.slane %v7212, %v7237
        %v7240 = vadd.f32 %v7233, %v7238
        %s7241 = scalar_lea.vmem %s61, 32
        %v7242 = vld [vmem:[%s7241] sm:$0xff]
        %v7243 = vld [vmem:[%s7241 + $0x8] sm:$0xff]
        %v7244 = vld [vmem:[%s7241 + $0x10] sm:$0xff]
        %v7245 = vld [vmem:[%s7241 + $0x18] sm:$0xff]
        %s7246 = scalar_lea.vmem %s63, 1
        %v7247 = vld [vmem:[%s7246] sm:$0x1]
        %s7248 = scalar_lea.vmem %s65, 64
        %v7249 = vld [vmem:[%s7248] sm:$0xff]
        %v7250 = vld [vmem:[%s7248 + $0x8] sm:$0xff]
        %v7251 = vld [vmem:[%s7248 + $0x10] sm:$0xff]
        %v7252 = vld [vmem:[%s7248 + $0x18] sm:$0xff]
        %v7253 = vld [vmem:[%s7248 + $0x20] sm:$0xff]
        %v7254 = vld [vmem:[%s7248 + $0x28] sm:$0xff]
        %v7255 = vld [vmem:[%s7248 + $0x30] sm:$0xff]
        %v7256 = vld [vmem:[%s7248 + $0x38] sm:$0xff]
        %s7257 = scalar_lea.vmem %s67, 1
        %v7258 = vld [vmem:[%s7257] sm:$0x1]
        %v7260 = vlaneseq
        %v7261 = vshrl.u32 %v7260, 7
        %v7262 = vsub.s32 0, %v7261
        %v7263 = vrot.slane %v7247, %v7262
        %v7266 = vsel %vm1160, %v7240, 0
        %7268 = vmatprep.subr.mxu0 0.0
        %7269 = vmatpush1.msra.mxu0 %v7242
        %7270 = vmatprep.subr.mxu0 0.0
        %7271 = vmatpush1.msra.mxu0 %v7243
        %7272 = vmatprep.subr.mxu0 0.0
        %7273 = vmatpush1.msra.mxu0 %v7244
        %7274 = vmatprep.subr.mxu0 0.0
        %7275 = vmatpush1.msra.mxu0 %v7245
        %7276 = vmatprep.subr.mxu0 0.0
        %7277 = vmatpush1.msra.mxu0 0.0
        %7278 = vmatprep.subr.mxu0 0.0
        %7279 = vmatpush1.msra.mxu0 0.0
        %7280 = vmatprep.subr.mxu0 0.0
        %7281 = vmatpush1.msra.mxu0 0.0
        %7282 = vmatprep.subr.mxu0 0.0
        %7283 = vmatpush1.msra.mxu0 0.0
        %7284 = vmatprep.subr.mxu0 0.0
        %7285 = vmatpush1.msra.mxu0 0.0
        %7286 = vmatprep.subr.mxu0 0.0
        %7287 = vmatpush1.msra.mxu0 0.0
        %7288 = vmatprep.subr.mxu0 0.0
        %7289 = vmatpush1.msra.mxu0 0.0
        %7290 = vmatprep.subr.mxu0 0.0
        %7291 = vmatpush1.msra.mxu0 0.0
        %7292 = vmatprep.subr.mxu0 0.0
        %7293 = vmatpush1.msra.mxu0 0.0
        %7294 = vmatprep.subr.mxu0 0.0
        %7295 = vmatpush1.msra.mxu0 0.0
        %7296 = vmatprep.subr.mxu0 0.0
        %7297 = vmatpush1.msra.mxu0 0.0
        %7298 = vmatprep.subr.mxu0 0.0
        %7299 = vmatpush1.msra.mxu0 0.0
        %7300 = vmatprep.subr.mxu0 0.0
        %7301 = vmatpush1.msra.mxu0 0.0
        %7302 = vmatprep.subr.mxu0 0.0
        %7303 = vmatpush1.msra.mxu0 0.0
        %7304 = vmatprep.subr.mxu0 0.0
        %7305 = vmatpush1.msra.mxu0 0.0
        %7306 = vmatprep.subr.mxu0 0.0
        %7307 = vmatpush1.msra.mxu0 0.0
        %7308 = vmatprep.subr.mxu0 0.0
        %7309 = vmatpush1.msra.mxu0 0.0
        %7310 = vmatprep.subr.mxu0 0.0
        %7311 = vmatpush1.msra.mxu0 0.0
        %7312 = vmatprep.subr.mxu0 0.0
        %7313 = vmatpush1.msra.mxu0 0.0
        %7314 = vmatprep.subr.mxu0 0.0
        %7315 = vmatpush1.msra.mxu0 0.0
        %7316 = vmatprep.subr.mxu0 0.0
        %7317 = vmatpush1.msra.mxu0 0.0
        %7318 = vmatprep.subr.mxu0 0.0
        %7319 = vmatpush1.msra.mxu0 0.0
        %7320 = vmatprep.subr.mxu0 0.0
        %7321 = vmatpush1.msra.mxu0 0.0
        %7322 = vmatprep.subr.mxu0 0.0
        %7323 = vmatpush1.msra.mxu0 0.0
        %7324 = vmatprep.subr.mxu0 0.0
        %7325 = vmatpush1.msra.mxu0 0.0
        %7326 = vmatprep.subr.mxu0 0.0
        %7327 = vmatpush1.msra.mxu0 0.0
        %7328 = vmatprep.subr.mxu0 0.0
        %7329 = vmatpush1.msra.mxu0 0.0
        %7330 = vmatprep.subr.mxu0 0.0
        %7331 = vmatpush1.msra.mxu0 0.0
        %7332 = vmatprep.mubr.f32.mxu0 0.0
        %7333 = vmatmul.mubr.f32.gmra.mrb[0].mxu0 %v7266
        %v7334 = vpop.f32.mrb[0].mxu0
        %v7335 = vadd.f32 %v7263, %v7334
        %v7336 = vpop.f32.mrb[0].mxu0
        %7337 = vdwg.mxu0
        %v7338 = vmax.f32 %v7335, 0.0
        %v7340 = vlaneseq
        %v7341 = vshrl.u32 %v7340, 7
        %v7342 = vsub.s32 0, %v7341
        %v7343 = vrot.slane %v7258, %v7342
        %v7346 = vsel %vm2135, %v7338, 0
        %7348 = vmatprep.subr.mxu0 0.0
        %7349 = vmatpush1.msra.mxu0 %v7249
        %7350 = vmatprep.subr.mxu0 0.0
        %7351 = vmatpush1.msra.mxu0 %v7250
        %7352 = vmatprep.subr.mxu0 0.0
        %7353 = vmatpush1.msra.mxu0 %v7251
        %7354 = vmatprep.subr.mxu0 0.0
        %7355 = vmatpush1.msra.mxu0 %v7252
        %7356 = vmatprep.subr.mxu0 0.0
        %7357 = vmatpush1.msra.mxu0 %v7253
        %7358 = vmatprep.subr.mxu0 0.0
        %7359 = vmatpush1.msra.mxu0 %v7254
        %7360 = vmatprep.subr.mxu0 0.0
        %7361 = vmatpush1.msra.mxu0 %v7255
        %7362 = vmatprep.subr.mxu0 0.0
        %7363 = vmatpush1.msra.mxu0 %v7256
        %7364 = vmatprep.subr.mxu0 0.0
        %7365 = vmatpush1.msra.mxu0 0.0
        %7366 = vmatprep.subr.mxu0 0.0
        %7367 = vmatpush1.msra.mxu0 0.0
        %7368 = vmatprep.subr.mxu0 0.0
        %7369 = vmatpush1.msra.mxu0 0.0
        %7370 = vmatprep.subr.mxu0 0.0
        %7371 = vmatpush1.msra.mxu0 0.0
        %7372 = vmatprep.subr.mxu0 0.0
        %7373 = vmatpush1.msra.mxu0 0.0
        %7374 = vmatprep.subr.mxu0 0.0
        %7375 = vmatpush1.msra.mxu0 0.0
        %7376 = vmatprep.subr.mxu0 0.0
        %7377 = vmatpush1.msra.mxu0 0.0
        %7378 = vmatprep.subr.mxu0 0.0
        %7379 = vmatpush1.msra.mxu0 0.0
        %7380 = vmatprep.subr.mxu0 0.0
        %7381 = vmatpush1.msra.mxu0 0.0
        %7382 = vmatprep.subr.mxu0 0.0
        %7383 = vmatpush1.msra.mxu0 0.0
        %7384 = vmatprep.subr.mxu0 0.0
        %7385 = vmatpush1.msra.mxu0 0.0
        %7386 = vmatprep.subr.mxu0 0.0
        %7387 = vmatpush1.msra.mxu0 0.0
        %7388 = vmatprep.subr.mxu0 0.0
        %7389 = vmatpush1.msra.mxu0 0.0
        %7390 = vmatprep.subr.mxu0 0.0
        %7391 = vmatpush1.msra.mxu0 0.0
        %7392 = vmatprep.subr.mxu0 0.0
        %7393 = vmatpush1.msra.mxu0 0.0
        %7394 = vmatprep.subr.mxu0 0.0
        %7395 = vmatpush1.msra.mxu0 0.0
        %7396 = vmatprep.subr.mxu0 0.0
        %7397 = vmatpush1.msra.mxu0 0.0
        %7398 = vmatprep.subr.mxu0 0.0
        %7399 = vmatpush1.msra.mxu0 0.0
        %7400 = vmatprep.subr.mxu0 0.0
        %7401 = vmatpush1.msra.mxu0 0.0
        %7402 = vmatprep.subr.mxu0 0.0
        %7403 = vmatpush1.msra.mxu0 0.0
        %7404 = vmatprep.subr.mxu0 0.0
        %7405 = vmatpush1.msra.mxu0 0.0
        %7406 = vmatprep.subr.mxu0 0.0
        %7407 = vmatpush1.msra.mxu0 0.0
        %7408 = vmatprep.subr.mxu0 0.0
        %7409 = vmatpush1.msra.mxu0 0.0
        %7410 = vmatprep.subr.mxu0 0.0
        %7411 = vmatpush1.msra.mxu0 0.0
        %7412 = vmatprep.mubr.f32.mxu0 0.0
        %7413 = vmatmul.mubr.f32.gmra.mrb[0].mxu0 %v7346
        %v7414 = vpop.f32.mrb[0].mxu0
        %v7415 = vadd.f32 %v7343, %v7414
        %v7416 = vpop.f32.mrb[0].mxu0
        %7417 = vdwg.mxu0
        %s7418 = scalar_lea.vmem %s69, 1
        %v7419 = vld [vmem:[%s7418] sm:$0x1]
        %s7420 = scalar_lea.vmem %s71, 1
        %v7421 = vld [vmem:[%s7420] sm:$0x1]
        %v7422 = vadd.f32 %v7240, %v7415
        %v7423 = vsel %vm1160, %v7422, 0.0
        %7424 = vadd.xlane.f32.xlu0 %v7423
        %v7425 = vpop.xlane.xlu0 %7424
        %v7426 = vmul.f32 %v7425, %v2010
        %v7427 = vsub.f32 %v7422, %v7426
        %v7428 = vmul.f32 %v7427, %v7427
        %v7429 = vsel %vm1160, %v7428, 0.0
        %7430 = vadd.xlane.f32.xlu0 %v7429
        %v7431 = vpop.xlane.xlu0 %7430
        %v7432 = vmul.f32 %v7431, %v2010
        %v7433 = vadd.f32 %v7432, 1e-05
        %v7434 = vrsqrt.pop %v7433
        %v7435 = vmul.f32 %v7427, %v7434
        %v7437 = vlaneseq
        %v7438 = vshrl.u32 %v7437, 7
        %v7439 = vsub.s32 0, %v7438
        %v7440 = vrot.slane %v7419, %v7439
        %v7442 = vmul.f32 %v7435, %v7440
        %v7444 = vlaneseq
        %v7445 = vshrl.u32 %v7444, 7
        %v7446 = vsub.s32 0, %v7445
        %v7447 = vrot.slane %v7421, %v7446
        %v7449 = vadd.f32 %v7442, %v7447
        %7450 = vst.msk [vmem:[%s1124] sm:$0xff] %vm1160, %v7449
        %s7451 = sand.u32 %s871, 1
        %s7452 = scalar_lea.sflag [#allocation3], %s7451
        %s7453 = sand.u32 %s871, 1
        %s7454 = smul.addr %s7453, 8
        %s7455 = scalar_lea.vmem [#allocation2], %s7454
        // Predicated region
        $region165: #{dialog_transformer_forward.1} parent=163 // pred_check
          %p7456 = pneg %p881
        $region166: #{dialog_transformer_forward.1} parent=163 // pred_check_branch
          %7458 = sbr.rel (%p7456) target = $region168
        $region167: #{dialog_transformer_forward.1} parent=163 // pred_region
          %s7460 = ssub.s32 128, 128
          %7461 = vsyncadd %s7452, %s7460
          %s7462 = smul.addr %s87, 128
          %s7463 = scalar_lea.hbm %s73, %s7462
          %s7465 = sshll.u32 %s7455, 4
          %s7466 = int_to_ptr.vmem [resolvable:$true] %s7465
          %7468 = dma.vmem_to_hbm [thread:$0]  %s7466, 128, %s7463, %s7452
        $region168: #{dialog_transformer_forward.1} parent=163 // pred_fallthru
          _
      $region164: #{dialog_transformer_forward.1} parent=5 // pred_fallthru
        _
      %p7469 = scmp.le.s32.totalorder 2, %s82
      // Predicated region
      $region169: #{dialog_transformer_forward.1} parent=5 // pred_check
        %p7470 = pneg %p7469
      $region170: #{dialog_transformer_forward.1} parent=5 // pred_check_branch
        %7472 = sbr.rel (%p7470) target = $region172
      $region171: #{dialog_transformer_forward.1} parent=5 // pred_region
        %s7473 = ssub.s32 %s82, 2
        // Predicated region
        $region173: #{dialog_transformer_forward.1} parent=171 // pred_check
          %p7474 = pneg %p887
        $region174: #{dialog_transformer_forward.1} parent=171 // pred_check_branch
          %7476 = sbr.rel (%p7474) target = $region176
        $region175: #{dialog_transformer_forward.1} parent=171 // pred_region
          %s7477 = sand.u32 %s872, 1
          %s7478 = scalar_lea.sflag [#allocation3], %s7477
          %s7479 = sand.u32 %s872, 1
          %s7480 = smul.addr %s7479, 8
          %s7481 = scalar_lea.vmem [#allocation2], %s7480
          %7482 = dma.done %s7478, 128
        $region176: #{dialog_transformer_forward.1} parent=171 // pred_fallthru
          _
      $region172: #{dialog_transformer_forward.1} parent=5 // pred_fallthru
        _
    $region6: #{dialog_transformer_forward.1} parent=1 // loop_footer
      %s86 = sadd.s32 1, %s82
    $region7: #{dialog_transformer_forward.1} parent=1 // loop_footer_branch
      %81 = sbr.rel target = $region3
    $region8: #{dialog_transformer_forward.1} parent=1 // loop_exit
      _
    %7483 = vsyncpa [#allocation3], 1
    %s7484 = scalar_lea.sflag [#allocation3], 1
    %7485 = vsyncpa %s7484, 1

</llo_original>
